<compile_context>
chip_gen: v5e
topology: v5e:2x2
jax: 0.10.0
libtpu: 0.0.40
codegen_flags: <defaults>
</compile_context>

<pallas_src>
import math

import jax
import jax.numpy as jnp
import numpy as np
from jax import lax
from jax.experimental import pallas as pl
from jax.experimental.pallas import tpu as pltpu

_LANE = 128
_FULL_UNROLL_MAX = 32


def _round_up(x, m):
    return ((x + m - 1) // m) * m


def _pick_vmem_limit():
    """Half of the chip's physical VMEM (capped), falling back to 32 MiB."""
    try:
        cap = int(pltpu.get_tpu_info().vmem_capacity_bytes)
    except Exception:
        cap = 64 * 1024 * 1024          # conservative (v7x-sized) fallback
    return int(min(max(cap // 2, 32 * 1024 * 1024), 100 * 1024 * 1024))


def _choose_time_block(T, B, d_in, Hp, vmem_limit_bytes, requested=None):
    """Pick the time-block size Tt (streamed blocks have Tt*B rows).

    Alignment: streamed bf16 blocks need their second-minor dim (Tt*B) to be a
    multiple of 16, so Tt is always rounded UP and T is zero-padded + masked
    instead of shrinking Tt until it divides T.
    """
    align = 16 // math.gcd(B, 16)
    if requested is None:
        # Streamed bytes per time-row: x read twice + out written twice (bf16,
        # double-buffered) plus the resident f32 gi scratch for both dirs.
        stream_row = 2 * 2 * (2 * B * d_in + 2 * B * Hp)
        gi_row = 2 * B * 3 * Hp * 4
        # Weights/biases stay resident (currently double-buffered by Pallas).
        resident = 2 * 2 * 2 * (d_in * 3 * Hp + Hp * 3 * Hp) + 8 * B * Hp
        budget = max(vmem_limit_bytes // 2 - resident, 1 << 20)
        requested = max(1, budget // max(stream_row + gi_row, 1))
    Tt = max(1, min(int(requested), T))
    return _round_up(Tt, align)


# -----------------------------------------------------------------------------
# One fused bidirectional GRU layer (projection + recurrence) as a Pallas call.
# -----------------------------------------------------------------------------
def bigru_layer(x_flat, wih_f, wih_b, whh_f, whh_b, bi_f, bi_b, bhn_f, bhn_b,
                *, T, B, Hp, Tt, vmem_limit_bytes):
    """x_flat: [Tp*B, D] bf16 time-major layer input (zero-padded to Tp=nt*Tt).

    wih_* : [D, 3Hp]  bf16 transposed input weights (gate blocks at k*Hp)
    whh_* : [Hp, 3Hp] bf16 transposed hidden weights
    bi_*  : [1, 3Hp]  f32  b_ih (+ folded b_hh r/z), pad cols zero
    bhn_* : [1, Hp]   f32  n-gate hidden bias
    Returns out_f, out_b ([Tp*B, Hp] bf16, forward-time layout) and
            hn_f, hn_b ([B, Hp] f32).
    """
    TpB, D = x_flat.shape
    Tp = TpB // B
    nt = Tp // Tt
    assert nt * Tt == Tp
    threeHp = 3 * Hp
    rows = Tt * B
    needs_mask = (Tp != T)

    def kernel(x_f_ref, x_b_ref, wih_f_ref, wih_b_ref, whh_f_ref, whh_b_ref,
               bi_f_ref, bi_b_ref, bhn_f_ref, bhn_b_ref,
               out_f_ref, out_b_ref, hn_f_ref, hn_b_ref,
               gi_f_sc, gi_b_sc, h_f_sc, h_b_sc):
        g = pl.program_id(0)

        @pl.when(g == 0)
        def _():
            h_f_sc[...] = jnp.zeros((B, Hp), jnp.float32)
            h_b_sc[...] = jnp.zeros((B, Hp), jnp.float32)

        # --- Whole-block input projection (off the serial path): one bf16
        # --- [Tt*B, D] @ [D, 3Hp] MXU matmul per direction, f32 accumulation.
        gi_f_sc[...] = (jnp.dot(x_f_ref[...], wih_f_ref[...],
                                preferred_element_type=jnp.float32)
                        + bi_f_ref[...])
        gi_b_sc[...] = (jnp.dot(x_b_ref[...], wih_b_ref[...],
                                preferred_element_type=jnp.float32)
                        + bi_b_ref[...])

        # Hoisted once per block (not per timestep).
        bhn_fv = jnp.broadcast_to(bhn_f_ref[...], (B, Hp))
        bhn_bv = jnp.broadcast_to(bhn_b_ref[...], (B, Hp))
        whh_fv = whh_f_ref[...]
        whh_bv = whh_b_ref[...]

        def gru_step(gi, h, whh, bhn):
            # h kept f32; MXU consumes bf16 operands with f32 accumulation.
            gh = jnp.dot(h.astype(whh.dtype), whh,
                         preferred_element_type=jnp.float32)
            # Gate slices at multiples of Hp (Hp % 128 == 0 -> lane aligned).
            r = jax.nn.sigmoid(gi[:, 0:Hp] + gh[:, 0:Hp])
            z = jax.nn.sigmoid(gi[:, Hp:2 * Hp] + gh[:, Hp:2 * Hp])
            n = jnp.tanh(gi[:, 2 * Hp:3 * Hp] + r * (gh[:, 2 * Hp:3 * Hp] + bhn))
            return (1.0 - z) * n + z * h

        def step(s):
            # Forward direction: global time t = g*Tt + s.
            row_f = s * B
            hf_prev = h_f_sc[...]
            hf_new = gru_step(gi_f_sc[pl.ds(row_f, B), :], hf_prev,
                              whh_fv, bhn_fv)
            if needs_mask:
                mf = (g * Tt + s < T).astype(jnp.float32)
                hf_new = mf * hf_new + (1.0 - mf) * hf_prev
            h_f_sc[...] = hf_new
            out_f_ref[pl.ds(row_f, B), :] = hf_new.astype(out_f_ref.dtype)

            # Backward direction: its x/out blocks are already reverse-indexed,
            # so local index Tt-1-s makes global time run strictly downwards.
            sr = Tt - 1 - s
            row_b = sr * B
            hb_prev = h_b_sc[...]
            hb_new = gru_step(gi_b_sc[pl.ds(row_b, B), :], hb_prev,
                              whh_bv, bhn_bv)
            if needs_mask:
                mb = ((nt - 1 - g) * Tt + sr < T).astype(jnp.float32)
                hb_new = mb * hb_new + (1.0 - mb) * hb_prev
            h_b_sc[...] = hb_new
            out_b_ref[pl.ds(row_b, B), :] = hb_new.astype(out_b_ref.dtype)

        if Tt <= _FULL_UNROLL_MAX:
            for s in range(Tt):        # full static unroll -> scheduler-visible
                step(s)
        else:
            def body(s, carry):
                step(s)
                return carry
            lax.fori_loop(0, Tt, body, 0, unroll=8)

        @pl.when(g == nt - 1)
        def _():
            hn_f_ref[...] = h_f_sc[...]
            hn_b_ref[...] = h_b_sc[...]

    flops = (2 * 2 * TpB * D * threeHp            # input projections (both dirs)
             + 2 * 2 * Tp * B * Hp * threeHp      # hidden matmuls
             + 2 * 15 * Tp * B * Hp)              # gate elementwise math
    transc = 2 * 3 * Tp * B * Hp
    bytes_acc = (2 * 2 * TpB * D                  # x read twice (bf16)
                 + 2 * 2 * TpB * Hp               # out written (bf16)
                 + 2 * 2 * (D + Hp) * threeHp     # weights (bf16)
                 + 2 * 4 * (3 * Hp + Hp)          # biases
                 + 2 * 4 * B * Hp)                # final hidden (f32)

    out_f, out_b, hn_f, hn_b = pl.pallas_call(
        kernel,
        out_shape=(jax.ShapeDtypeStruct((TpB, Hp), jnp.bfloat16),
                   jax.ShapeDtypeStruct((TpB, Hp), jnp.bfloat16),
                   jax.ShapeDtypeStruct((B, Hp), jnp.float32),
                   jax.ShapeDtypeStruct((B, Hp), jnp.float32)),
        grid_spec=pltpu.PrefetchScalarGridSpec(
            num_scalar_prefetch=0,
            grid=(nt,),
            in_specs=[
                pl.BlockSpec((rows, D), lambda g: (g, 0)),
                pl.BlockSpec((rows, D), lambda g: (nt - 1 - g, 0)),
                # TODO(synk): v7x — single-buffer these constant-index weight
                # blocks (pipeline_mode=pl.Buffered(1)) so double-buffering
                # doesn't blow the 64 MiB VMEM at large H.
                pl.BlockSpec((D, threeHp), lambda g: (0, 0)),
                pl.BlockSpec((D, threeHp), lambda g: (0, 0)),
                pl.BlockSpec((Hp, threeHp), lambda g: (0, 0)),
                pl.BlockSpec((Hp, threeHp), lambda g: (0, 0)),
                pl.BlockSpec((1, threeHp), lambda g: (0, 0)),
                pl.BlockSpec((1, threeHp), lambda g: (0, 0)),
                pl.BlockSpec((1, Hp), lambda g: (0, 0)),
                pl.BlockSpec((1, Hp), lambda g: (0, 0)),
            ],
            out_specs=[
                pl.BlockSpec((rows, Hp), lambda g: (g, 0)),
                pl.BlockSpec((rows, Hp), lambda g: (nt - 1 - g, 0)),
                pl.BlockSpec((B, Hp), lambda g: (0, 0)),
                pl.BlockSpec((B, Hp), lambda g: (0, 0)),
            ],
            scratch_shapes=[
                pltpu.VMEM((rows, threeHp), jnp.float32),   # gi forward
                pltpu.VMEM((rows, threeHp), jnp.float32),   # gi backward
                pltpu.VMEM((B, Hp), jnp.float32),           # h forward
                pltpu.VMEM((B, Hp), jnp.float32),           # h backward
            ],
        ),
        compiler_params=pltpu.CompilerParams(
            dimension_semantics=("arbitrary",),             # serial recurrence
            vmem_limit_bytes=int(vmem_limit_bytes),
        ),
        cost_estimate=pl.CostEstimate(flops=int(flops),
                                      transcendentals=int(transc),
                                      bytes_accessed=int(bytes_acc)),
    )(x_flat, x_flat, wih_f, wih_b, whh_f, whh_b, bi_f, bi_b, bhn_f, bhn_b)
    return out_f, out_b, hn_f, hn_b


# -----------------------------------------------------------------------------
# Parameter padding: lane-align H -> Hp, transpose weights for x @ W layout,
# fold b_ih (+ the r/z parts of b_hh) into one bias row.  `in_map` describes
# where the real input features live inside the kernel-side input of width
# `d_kernel` (layer 0: dense [0:E]; layer>0: out_f at [0:H], out_b at [Hp:Hp+H]).
# -----------------------------------------------------------------------------
def _pad_dir_params(w_ih, w_hh, b_ih, b_hh, H, Hp, in_map, d_kernel):
    w_ih = w_ih.astype(jnp.float32)
    w_hh = w_hh.astype(jnp.float32)
    b_ih = b_ih.astype(jnp.float32)
    b_hh = b_hh.astype(jnp.float32)
    wih_t = jnp.zeros((d_kernel, 3 * Hp), jnp.float32)
    whh_t = jnp.zeros((Hp, 3 * Hp), jnp.float32)
    bi = jnp.zeros((1, 3 * Hp), jnp.float32)
    bhn = jnp.zeros((1, Hp), jnp.float32)
    for gate in range(3):                                   # (r, z, n)
        w_g = w_ih[gate * H:(gate + 1) * H, :]              # [H, d_real]
        for dst_off, src_off, width in in_map:
            wih_t = wih_t.at[dst_off:dst_off + width,
                             gate * Hp:gate * Hp + H].set(
                w_g[:, src_off:src_off + width].T)
        whh_t = whh_t.at[:H, gate * Hp:gate * Hp + H].set(
            w_hh[gate * H:(gate + 1) * H, :].T)
        b_g = b_ih[gate * H:(gate + 1) * H]
        if gate < 2:         # fold r/z hidden bias; n-gate bias stays in r*(.)
            b_g = b_g + b_hh[gate * H:(gate + 1) * H]
        bi = bi.at[0, gate * Hp:gate * Hp + H].set(b_g)
    bhn = bhn.at[0, :H].set(b_hh[2 * H:3 * H])
    return (wih_t.astype(jnp.bfloat16), whh_t.astype(jnp.bfloat16), bi, bhn)


# -----------------------------------------------------------------------------
# Parameter init (deterministic; mirrors nn.Embedding / nn.GRU shapes & init)
# -----------------------------------------------------------------------------
def init_encoder_params(key, en_vocab_size, emb_dim, hid_dim, n_layers):
    params = {"gru": {}}
    key, k_emb = jax.random.split(key)
    params["embedding"] = jax.random.normal(
        k_emb, (en_vocab_size, emb_dim), dtype=jnp.float32)
    bound = 1.0 / math.sqrt(hid_dim)
    for layer in range(n_layers):
        in_dim = emb_dim if layer == 0 else 2 * hid_dim
        for direction in range(2):  # 0 = forward, 1 = backward
            key, k1, k2, k3, k4 = jax.random.split(key, 5)
            w_ih = jax.random.uniform(k1, (3 * hid_dim, in_dim),
                                      minval=-bound, maxval=bound)
            w_hh = jax.random.uniform(k2, (3 * hid_dim, hid_dim),
                                      minval=-bound, maxval=bound)
            b_ih = jax.random.uniform(k3, (3 * hid_dim,),
                                      minval=-bound, maxval=bound)
            b_hh = jax.random.uniform(k4, (3 * hid_dim,),
                                      minval=-bound, maxval=bound)
            params["gru"][(layer, direction)] = (w_ih, w_hh, b_ih, b_hh)
    return params


# -----------------------------------------------------------------------------
# Encoder forward (embedding gather + layout glue in JAX, GRU layers in Pallas)
# -----------------------------------------------------------------------------
def encoder_forward(params, tokens, hid_dim, n_layers, time_block=None):
    B, S = tokens.shape
    H = hid_dim
    Hp = _round_up(H, _LANE)
    E = params["embedding"].shape[1]
    vmem_limit = _pick_vmem_limit()
    Tt = _choose_time_block(S, B, max(E, 2 * Hp), Hp, vmem_limit, time_block)
    nt = pl.cdiv(S, Tt)
    Tp = nt * Tt

    # Embedding lookup (memory-bound gather, kept as JAX glue); eval-mode
    # dropout is the identity.
    emb = jnp.take(params["embedding"], tokens, axis=0)            # [B, S, E]
    x = jnp.transpose(emb, (1, 0, 2))                              # [S, B, E]
    if Tp != S:
        x = jnp.pad(x, ((0, Tp - S), (0, 0), (0, 0)))
    x_flat = x.reshape(Tp * B, E).astype(jnp.bfloat16)             # time-major

    hiddens = []
    out_f = out_b = None
    for layer in range(n_layers):
        d_kernel = E if layer == 0 else 2 * Hp
        in_map = [(0, 0, E)] if layer == 0 else [(0, 0, H), (Hp, H, H)]
        wih_f, whh_f, bi_f, bhn_f = _pad_dir_params(
            *params["gru"][(layer, 0)], H, Hp, in_map, d_kernel)
        wih_b, whh_b, bi_b, bhn_b = _pad_dir_params(
            *params["gru"][(layer, 1)], H, Hp, in_map, d_kernel)

        out_f, out_b, h_f, h_b = bigru_layer(
            x_flat, wih_f, wih_b, whh_f, whh_b, bi_f, bi_b, bhn_f, bhn_b,
            T=S, B=B, Hp=Hp, Tt=Tt, vmem_limit_bytes=vmem_limit)

        hiddens.extend([h_f[:, :H], h_b[:, :H]])
        if layer + 1 < n_layers:
            # Next layer input stays bf16; padded-H layout matches the padded
            # w_ih rows built in _pad_dir_params (no f32 round trip).
            x_flat = jnp.concatenate([out_f, out_b], axis=-1)
        # inter-layer GRU dropout: identity in eval mode.

    out_f3 = out_f.reshape(Tp, B, Hp)[:S, :, :H]
    out_b3 = out_b.reshape(Tp, B, Hp)[:S, :, :H]
    outputs = jnp.transpose(jnp.concatenate([out_f3, out_b3], axis=-1),
                            (1, 0, 2)).astype(jnp.float32)         # [B, S, 2H]
    hidden = jnp.stack(hiddens, axis=0)                            # [2L, B, H]
    return outputs, hidden


# -----------------------------------------------------------------------------
# Pure-JAX reference (torch.nn.GRU semantics) for a correctness cross-check
# -----------------------------------------------------------------------------
def gru_layer_dir_ref(x_tm, h0, w_ih, w_hh, b_ih, b_hh):
    H = h0.shape[-1]

    def step(h, x_t):
        gi = x_t @ w_ih.T + b_ih
        gh = h @ w_hh.T + b_hh
        r = jax.nn.sigmoid(gi[:, :H] + gh[:, :H])
        z = jax.nn.sigmoid(gi[:, H:2 * H] + gh[:, H:2 * H])
        n = jnp.tanh(gi[:, 2 * H:] + r * gh[:, 2 * H:])
        h_new = (1.0 - z) * n + z * h
        return h_new, h_new

    h_n, outs = jax.lax.scan(step, h0, x_tm)
    return outs, h_n


def encoder_forward_ref(params, tokens, hid_dim, n_layers):
    B, S = tokens.shape
    emb = jnp.take(params["embedding"], tokens, axis=0)
    x = jnp.transpose(emb, (1, 0, 2)).astype(jnp.float32)
    hiddens = []
    for layer in range(n_layers):
        h0 = jnp.zeros((B, hid_dim), jnp.float32)
        out_f, h_f = gru_layer_dir_ref(x, h0, *params["gru"][(layer, 0)])
        out_b_rev, h_b = gru_layer_dir_ref(x[::-1], h0, *params["gru"][(layer, 1)])
        x = jnp.concatenate([out_f, out_b_rev[::-1]], axis=-1)
        hiddens.extend([h_f, h_b])
    return jnp.transpose(x, (1, 0, 2)), jnp.stack(hiddens, axis=0)


# -----------------------------------------------------------------------------
if __name__ == "__main__":
    en_vocab_size = 50
    emb_dim = 16
    hid_dim = 32
    n_layers = 2
    dropout = 0.5  # eval-mode => identity; kept for signature parity

    # seq=15 with time_block=8 exercises the two-block time grid (carried
    # hidden state across grid steps) AND the zero-padded + masked tail step.
    batch, seq = 2, 15

    key = jax.random.PRNGKey(0)
    key, k_tok, k_par = jax.random.split(key, 3)
    tokens = jax.random.randint(k_tok, (batch, seq), 0, en_vocab_size,
                                dtype=jnp.int32)
    params = init_encoder_params(k_par, en_vocab_size, emb_dim, hid_dim,
                                 n_layers)

    fwd = jax.jit(lambda p, t: encoder_forward(p, t, hid_dim, n_layers,
                                               time_block=8))
    outputs, hidden = fwd(params, tokens)
    outputs = jax.block_until_ready(outputs)
    hidden = jax.block_until_ready(hidden)

    assert outputs.shape == (batch, seq, 2 * hid_dim), outputs.shape
    assert hidden.shape == (2 * n_layers, batch, hid_dim), hidden.shape

    # Cross-check the Pallas path against a pure-f32 JAX reference.  The
    # kernel streams activations/weights in bf16 (per the perf review) with
    # f32 accumulation, hence the slightly widened tolerance.
    out_ref, hid_ref = encoder_forward_ref(params, tokens, hid_dim, n_layers)
    np.testing.assert_allclose(np.asarray(outputs), np.asarray(out_ref),
                               rtol=3e-2, atol=3e-2)
    np.testing.assert_allclose(np.asarray(hidden), np.asarray(hid_ref),
                               rtol=3e-2, atol=3e-2)

    print("KERNEL_OK")
</pallas_src>

<mosaic_0001>
module attributes {stable_mosaic.version = 11 : i64} {
  func.func @kernel(%arg0: i32, %arg1: memref<16x16xbf16, #tpu.memory_space<vmem>>, %arg2: memref<16x16xbf16, #tpu.memory_space<vmem>>, %arg3: memref<16x384xbf16, #tpu.memory_space<vmem>>, %arg4: memref<16x384xbf16, #tpu.memory_space<vmem>>, %arg5: memref<128x384xbf16, #tpu.memory_space<vmem>>, %arg6: memref<128x384xbf16, #tpu.memory_space<vmem>>, %arg7: memref<1x384xf32, #tpu.memory_space<vmem>>, %arg8: memref<1x384xf32, #tpu.memory_space<vmem>>, %arg9: memref<1x128xf32, #tpu.memory_space<vmem>>, %arg10: memref<1x128xf32, #tpu.memory_space<vmem>>, %arg11: memref<16x128xbf16, #tpu.memory_space<vmem>>, %arg12: memref<16x128xbf16, #tpu.memory_space<vmem>>, %arg13: memref<2x128xf32, #tpu.memory_space<vmem>>, %arg14: memref<2x128xf32, #tpu.memory_space<vmem>>, %arg15: memref<16x384xf32, #tpu.memory_space<vmem>>, %arg16: memref<16x384xf32, #tpu.memory_space<vmem>>, %arg17: memref<2x128xf32, #tpu.memory_space<vmem>>, %arg18: memref<2x128xf32, #tpu.memory_space<vmem>>) attributes {dimension_semantics = [#tpu.dimension_semantics<arbitrary>], iteration_bounds = array<i64: 2>, scalar_prefetch = 0 : i64, scratch_operands = 4 : i64, tpu.core_type = #tpu.core_type<tc>, window_params = [{transform_indices = @transform_0, window_bounds = array<i64: 16, 16>}, {transform_indices = @transform_1, window_bounds = array<i64: 16, 16>}, {pipeline_mode = #tpu.pipeline_mode<synchronous>, transform_indices = @transform_2, window_bounds = array<i64: 16, 384>}, {pipeline_mode = #tpu.pipeline_mode<synchronous>, transform_indices = @transform_3, window_bounds = array<i64: 16, 384>}, {pipeline_mode = #tpu.pipeline_mode<synchronous>, transform_indices = @transform_4, window_bounds = array<i64: 128, 384>}, {pipeline_mode = #tpu.pipeline_mode<synchronous>, transform_indices = @transform_5, window_bounds = array<i64: 128, 384>}, {pipeline_mode = #tpu.pipeline_mode<synchronous>, transform_indices = @transform_6, window_bounds = array<i64: 1, 384>}, {pipeline_mode = #tpu.pipeline_mode<synchronous>, transform_indices = @transform_7, window_bounds = array<i64: 1, 384>}, {pipeline_mode = #tpu.pipeline_mode<synchronous>, transform_indices = @transform_8, window_bounds = array<i64: 1, 128>}, {pipeline_mode = #tpu.pipeline_mode<synchronous>, transform_indices = @transform_9, window_bounds = array<i64: 1, 128>}, {transform_indices = @transform_10, window_bounds = array<i64: 16, 128>}, {transform_indices = @transform_11, window_bounds = array<i64: 16, 128>}, {pipeline_mode = #tpu.pipeline_mode<synchronous>, transform_indices = @transform_12, window_bounds = array<i64: 2, 128>}, {pipeline_mode = #tpu.pipeline_mode<synchronous>, transform_indices = @transform_13, window_bounds = array<i64: 2, 128>}]} {
    %c0_i32 = arith.constant 0 : i32
    %0 = arith.cmpi eq, %arg0, %c0_i32 : i32
    %1 = arith.extui %0 : i1 to i32
    %c0_i32_0 = arith.constant 0 : i32
    %2 = arith.cmpi ne, %1, %c0_i32_0 : i32
    scf.if %2 {
      %cst_275 = arith.constant 0.000000e+00 : f32
      %756 = vector.broadcast %cst_275 : f32 to vector<2x128xf32>
      %c0_276 = arith.constant 0 : index
      %c0_277 = arith.constant 0 : index
      %757 = vector.load %arg17[%c0_276, %c0_277] : memref<2x128xf32, #tpu.memory_space<vmem>>, vector<2x128xf32>
      tpu.vector_store %arg17[%c0_276, %c0_277], %756 {strides = array<i32>} : memref<2x128xf32, #tpu.memory_space<vmem>>, vector<2x128xf32>,
      %cst_278 = arith.constant 0.000000e+00 : f32
      %758 = vector.broadcast %cst_278 : f32 to vector<2x128xf32>
      %c0_279 = arith.constant 0 : index
      %c0_280 = arith.constant 0 : index
      %759 = vector.load %arg18[%c0_279, %c0_280] : memref<2x128xf32, #tpu.memory_space<vmem>>, vector<2x128xf32>
      tpu.vector_store %arg18[%c0_279, %c0_280], %758 {strides = array<i32>} : memref<2x128xf32, #tpu.memory_space<vmem>>, vector<2x128xf32>,
    } else {
    }
    %c0 = arith.constant 0 : index
    %c0_1 = arith.constant 0 : index
    %3 = vector.load %arg1[%c0, %c0_1] : memref<16x16xbf16, #tpu.memory_space<vmem>>, vector<16x16xbf16>
    %c0_2 = arith.constant 0 : index
    %c0_3 = arith.constant 0 : index
    %4 = vector.load %arg3[%c0_2, %c0_3] : memref<16x384xbf16, #tpu.memory_space<vmem>>, vector<16x384xbf16>
    %cst = arith.constant dense<0.000000e+00> : vector<16x384xf32>
    %5 = tpu.matmul %3, %4, %cst {dimension_numbers = #tpu.dot_dimension_numbers<[1], [0], [0], [1], [0, 0, 1, 1], [], []>} : vector<16x16xbf16>, vector<16x384xbf16>, vector<16x384xf32> -> vector<16x384xf32>
    %c0_4 = arith.constant 0 : index
    %c0_5 = arith.constant 0 : index
    %6 = vector.load %arg7[%c0_4, %c0_5] : memref<1x384xf32, #tpu.memory_space<vmem>>, vector<1x384xf32>
    %7 = vector.broadcast %6 : vector<1x384xf32> to vector<16x384xf32>
    %8 = arith.addf %5, %7 : vector<16x384xf32>
    %c0_6 = arith.constant 0 : index
    %c0_7 = arith.constant 0 : index
    %9 = vector.load %arg15[%c0_6, %c0_7] : memref<16x384xf32, #tpu.memory_space<vmem>>, vector<16x384xf32>
    tpu.vector_store %arg15[%c0_6, %c0_7], %8 {strides = array<i32>} : memref<16x384xf32, #tpu.memory_space<vmem>>, vector<16x384xf32>,
    %c0_8 = arith.constant 0 : index
    %c0_9 = arith.constant 0 : index
    %10 = vector.load %arg2[%c0_8, %c0_9] : memref<16x16xbf16, #tpu.memory_space<vmem>>, vector<16x16xbf16>
    %c0_10 = arith.constant 0 : index
    %c0_11 = arith.constant 0 : index
    %11 = vector.load %arg4[%c0_10, %c0_11] : memref<16x384xbf16, #tpu.memory_space<vmem>>, vector<16x384xbf16>
    %cst_12 = arith.constant dense<0.000000e+00> : vector<16x384xf32>
    %12 = tpu.matmul %10, %11, %cst_12 {dimension_numbers = #tpu.dot_dimension_numbers<[1], [0], [0], [1], [0, 0, 1, 1], [], []>} : vector<16x16xbf16>, vector<16x384xbf16>, vector<16x384xf32> -> vector<16x384xf32>
    %c0_13 = arith.constant 0 : index
    %c0_14 = arith.constant 0 : index
    %13 = vector.load %arg8[%c0_13, %c0_14] : memref<1x384xf32, #tpu.memory_space<vmem>>, vector<1x384xf32>
    %14 = vector.broadcast %13 : vector<1x384xf32> to vector<16x384xf32>
    %15 = arith.addf %12, %14 : vector<16x384xf32>
    %c0_15 = arith.constant 0 : index
    %c0_16 = arith.constant 0 : index
    %16 = vector.load %arg16[%c0_15, %c0_16] : memref<16x384xf32, #tpu.memory_space<vmem>>, vector<16x384xf32>
    tpu.vector_store %arg16[%c0_15, %c0_16], %15 {strides = array<i32>} : memref<16x384xf32, #tpu.memory_space<vmem>>, vector<16x384xf32>,
    %c0_17 = arith.constant 0 : index
    %c0_18 = arith.constant 0 : index
    %17 = vector.load %arg9[%c0_17, %c0_18] : memref<1x128xf32, #tpu.memory_space<vmem>>, vector<1x128xf32>
    %18 = vector.shape_cast %17 : vector<1x128xf32> to vector<1x128xf32>
    %19 = vector.broadcast %18 : vector<1x128xf32> to vector<2x128xf32>
    %c0_19 = arith.constant 0 : index
    %c0_20 = arith.constant 0 : index
    %20 = vector.load %arg10[%c0_19, %c0_20] : memref<1x128xf32, #tpu.memory_space<vmem>>, vector<1x128xf32>
    %21 = vector.shape_cast %20 : vector<1x128xf32> to vector<1x128xf32>
    %22 = vector.broadcast %21 : vector<1x128xf32> to vector<2x128xf32>
    %c0_21 = arith.constant 0 : index
    %c0_22 = arith.constant 0 : index
    %23 = vector.load %arg5[%c0_21, %c0_22] : memref<128x384xbf16, #tpu.memory_space<vmem>>, vector<128x384xbf16>
    %c0_23 = arith.constant 0 : index
    %c0_24 = arith.constant 0 : index
    %24 = vector.load %arg6[%c0_23, %c0_24] : memref<128x384xbf16, #tpu.memory_space<vmem>>, vector<128x384xbf16>
    %c0_25 = arith.constant 0 : index
    %c0_26 = arith.constant 0 : index
    %25 = vector.load %arg17[%c0_25, %c0_26] : memref<2x128xf32, #tpu.memory_space<vmem>>, vector<2x128xf32>
    %c0_27 = arith.constant 0 : index
    %c0_28 = arith.constant 0 : index
    %26 = vector.load %arg15[%c0_27, %c0_28] : memref<16x384xf32, #tpu.memory_space<vmem>>, vector<2x384xf32>
    %27 = arith.truncf %25 : vector<2x128xf32> to vector<2x128xbf16>
    %cst_29 = arith.constant dense<0.000000e+00> : vector<2x384xf32>
    %28 = tpu.matmul %27, %23, %cst_29 {dimension_numbers = #tpu.dot_dimension_numbers<[1], [0], [0], [1], [0, 0, 1, 1], [], []>} : vector<2x128xbf16>, vector<128x384xbf16>, vector<2x384xf32> -> vector<2x384xf32>
    %29 = vector.extract_strided_slice %26 {offsets = [0, 0], sizes = [2, 128], strides = [1, 1]} : vector<2x384xf32> to vector<2x128xf32>
    %30 = vector.extract_strided_slice %28 {offsets = [0, 0], sizes = [2, 128], strides = [1, 1]} : vector<2x384xf32> to vector<2x128xf32>
    %31 = arith.addf %29, %30 : vector<2x128xf32>
    %32 = arith.negf %31 : vector<2x128xf32>
    %33 = math.exp %32 : vector<2x128xf32>
    %cst_30 = arith.constant 1.000000e+00 : f32
    %34 = vector.broadcast %cst_30 : f32 to vector<2x128xf32>
    %35 = arith.addf %34, %33 : vector<2x128xf32>
    %36 = arith.divf %34, %35 : vector<2x128xf32>
    %37 = vector.extract_strided_slice %26 {offsets = [0, 128], sizes = [2, 128], strides = [1, 1]} : vector<2x384xf32> to vector<2x128xf32>
    %38 = vector.extract_strided_slice %28 {offsets = [0, 128], sizes = [2, 128], strides = [1, 1]} : vector<2x384xf32> to vector<2x128xf32>
    %39 = arith.addf %37, %38 : vector<2x128xf32>
    %40 = arith.negf %39 : vector<2x128xf32>
    %41 = math.exp %40 : vector<2x128xf32>
    %cst_31 = arith.constant 1.000000e+00 : f32
    %42 = vector.broadcast %cst_31 : f32 to vector<2x128xf32>
    %43 = arith.addf %42, %41 : vector<2x128xf32>
    %44 = arith.divf %42, %43 : vector<2x128xf32>
    %45 = vector.extract_strided_slice %26 {offsets = [0, 256], sizes = [2, 128], strides = [1, 1]} : vector<2x384xf32> to vector<2x128xf32>
    %46 = vector.extract_strided_slice %28 {offsets = [0, 256], sizes = [2, 128], strides = [1, 1]} : vector<2x384xf32> to vector<2x128xf32>
    %47 = arith.addf %46, %19 : vector<2x128xf32>
    %48 = arith.mulf %36, %47 : vector<2x128xf32>
    %49 = arith.addf %45, %48 : vector<2x128xf32>
    %50 = math.tanh %49 : vector<2x128xf32>
    %cst_32 = arith.constant 1.000000e+00 : f32
    %51 = vector.broadcast %cst_32 : f32 to vector<2x128xf32>
    %52 = arith.subf %51, %44 : vector<2x128xf32>
    %53 = arith.mulf %52, %50 : vector<2x128xf32>
    %54 = arith.mulf %44, %25 : vector<2x128xf32>
    %55 = arith.addf %53, %54 : vector<2x128xf32>
    %c8_i32 = arith.constant 8 : i32
    %56 = arith.muli %arg0, %c8_i32 : i32
    %c0_i32_33 = arith.constant 0 : i32
    %57 = arith.addi %56, %c0_i32_33 : i32
    %c15_i32 = arith.constant 15 : i32
    %58 = arith.cmpi slt, %57, %c15_i32 : i32
    %59 = arith.extui %58 : i1 to i32
    %60 = arith.sitofp %59 : i32 to f32
    %61 = vector.broadcast %60 : f32 to vector<2x128xf32>
    %62 = arith.mulf %61, %55 : vector<2x128xf32>
    %cst_34 = arith.constant 1.000000e+00 : f32
    %63 = arith.subf %cst_34, %60 : f32
    %64 = vector.broadcast %63 : f32 to vector<2x128xf32>
    %65 = arith.mulf %64, %25 : vector<2x128xf32>
    %66 = arith.addf %62, %65 : vector<2x128xf32>
    %c0_35 = arith.constant 0 : index
    %c0_36 = arith.constant 0 : index
    %67 = vector.load %arg17[%c0_35, %c0_36] : memref<2x128xf32, #tpu.memory_space<vmem>>, vector<2x128xf32>
    tpu.vector_store %arg17[%c0_35, %c0_36], %66 {strides = array<i32>} : memref<2x128xf32, #tpu.memory_space<vmem>>, vector<2x128xf32>,
    %68 = arith.truncf %66 : vector<2x128xf32> to vector<2x128xbf16>
    %c0_37 = arith.constant 0 : index
    %c0_38 = arith.constant 0 : index
    %69 = vector.load %arg11[%c0_37, %c0_38] : memref<16x128xbf16, #tpu.memory_space<vmem>>, vector<2x128xbf16>
    tpu.vector_store %arg11[%c0_37, %c0_38], %68 {strides = array<i32>} : memref<16x128xbf16, #tpu.memory_space<vmem>>, vector<2x128xbf16>,
    %c0_39 = arith.constant 0 : index
    %c0_40 = arith.constant 0 : index
    %70 = vector.load %arg18[%c0_39, %c0_40] : memref<2x128xf32, #tpu.memory_space<vmem>>, vector<2x128xf32>
    %c14 = arith.constant 14 : index
    %c0_41 = arith.constant 0 : index
    %71 = vector.load %arg16[%c14, %c0_41] : memref<16x384xf32, #tpu.memory_space<vmem>>, vector<2x384xf32>
    %72 = arith.truncf %70 : vector<2x128xf32> to vector<2x128xbf16>
    %cst_42 = arith.constant dense<0.000000e+00> : vector<2x384xf32>
    %73 = tpu.matmul %72, %24, %cst_42 {dimension_numbers = #tpu.dot_dimension_numbers<[1], [0], [0], [1], [0, 0, 1, 1], [], []>} : vector<2x128xbf16>, vector<128x384xbf16>, vector<2x384xf32> -> vector<2x384xf32>
    %74 = vector.extract_strided_slice %71 {offsets = [0, 0], sizes = [2, 128], strides = [1, 1]} : vector<2x384xf32> to vector<2x128xf32>
    %75 = vector.extract_strided_slice %73 {offsets = [0, 0], sizes = [2, 128], strides = [1, 1]} : vector<2x384xf32> to vector<2x128xf32>
    %76 = arith.addf %74, %75 : vector<2x128xf32>
    %77 = arith.negf %76 : vector<2x128xf32>
    %78 = math.exp %77 : vector<2x128xf32>
    %cst_43 = arith.constant 1.000000e+00 : f32
    %79 = vector.broadcast %cst_43 : f32 to vector<2x128xf32>
    %80 = arith.addf %79, %78 : vector<2x128xf32>
    %81 = arith.divf %79, %80 : vector<2x128xf32>
    %82 = vector.extract_strided_slice %71 {offsets = [0, 128], sizes = [2, 128], strides = [1, 1]} : vector<2x384xf32> to vector<2x128xf32>
    %83 = vector.extract_strided_slice %73 {offsets = [0, 128], sizes = [2, 128], strides = [1, 1]} : vector<2x384xf32> to vector<2x128xf32>
    %84 = arith.addf %82, %83 : vector<2x128xf32>
    %85 = arith.negf %84 : vector<2x128xf32>
    %86 = math.exp %85 : vector<2x128xf32>
    %cst_44 = arith.constant 1.000000e+00 : f32
    %87 = vector.broadcast %cst_44 : f32 to vector<2x128xf32>
    %88 = arith.addf %87, %86 : vector<2x128xf32>
    %89 = arith.divf %87, %88 : vector<2x128xf32>
    %90 = vector.extract_strided_slice %71 {offsets = [0, 256], sizes = [2, 128], strides = [1, 1]} : vector<2x384xf32> to vector<2x128xf32>
    %91 = vector.extract_strided_slice %73 {offsets = [0, 256], sizes = [2, 128], strides = [1, 1]} : vector<2x384xf32> to vector<2x128xf32>
    %92 = arith.addf %91, %22 : vector<2x128xf32>
    %93 = arith.mulf %81, %92 : vector<2x128xf32>
    %94 = arith.addf %90, %93 : vector<2x128xf32>
    %95 = math.tanh %94 : vector<2x128xf32>
    %cst_45 = arith.constant 1.000000e+00 : f32
    %96 = vector.broadcast %cst_45 : f32 to vector<2x128xf32>
    %97 = arith.subf %96, %89 : vector<2x128xf32>
    %98 = arith.mulf %97, %95 : vector<2x128xf32>
    %99 = arith.mulf %89, %70 : vector<2x128xf32>
    %100 = arith.addf %98, %99 : vector<2x128xf32>
    %c1_i32 = arith.constant 1 : i32
    %101 = arith.subi %c1_i32, %arg0 : i32
    %c8_i32_46 = arith.constant 8 : i32
    %102 = arith.muli %101, %c8_i32_46 : i32
    %c7_i32 = arith.constant 7 : i32
    %103 = arith.addi %102, %c7_i32 : i32
    %c15_i32_47 = arith.constant 15 : i32
    %104 = arith.cmpi slt, %103, %c15_i32_47 : i32
    %105 = arith.extui %104 : i1 to i32
    %106 = arith.sitofp %105 : i32 to f32
    %107 = vector.broadcast %106 : f32 to vector<2x128xf32>
    %108 = arith.mulf %107, %100 : vector<2x128xf32>
    %cst_48 = arith.constant 1.000000e+00 : f32
    %109 = arith.subf %cst_48, %106 : f32
    %110 = vector.broadcast %109 : f32 to vector<2x128xf32>
    %111 = arith.mulf %110, %70 : vector<2x128xf32>
    %112 = arith.addf %108, %111 : vector<2x128xf32>
    %c0_49 = arith.constant 0 : index
    %c0_50 = arith.constant 0 : index
    %113 = vector.load %arg18[%c0_49, %c0_50] : memref<2x128xf32, #tpu.memory_space<vmem>>, vector<2x128xf32>
    tpu.vector_store %arg18[%c0_49, %c0_50], %112 {strides = array<i32>} : memref<2x128xf32, #tpu.memory_space<vmem>>, vector<2x128xf32>,
    %114 = arith.truncf %112 : vector<2x128xf32> to vector<2x128xbf16>
    %c14_51 = arith.constant 14 : index
    %c0_52 = arith.constant 0 : index
    %115 = vector.load %arg12[%c14_51, %c0_52] : memref<16x128xbf16, #tpu.memory_space<vmem>>, vector<2x128xbf16>
    tpu.vector_store %arg12[%c14_51, %c0_52], %114 {strides = array<i32>} : memref<16x128xbf16, #tpu.memory_space<vmem>>, vector<2x128xbf16>,
    %c0_53 = arith.constant 0 : index
    %c0_54 = arith.constant 0 : index
    %116 = vector.load %arg17[%c0_53, %c0_54] : memref<2x128xf32, #tpu.memory_space<vmem>>, vector<2x128xf32>
    %c2 = arith.constant 2 : index
    %c0_55 = arith.constant 0 : index
    %117 = vector.load %arg15[%c2, %c0_55] : memref<16x384xf32, #tpu.memory_space<vmem>>, vector<2x384xf32>
    %118 = arith.truncf %116 : vector<2x128xf32> to vector<2x128xbf16>
    %cst_56 = arith.constant dense<0.000000e+00> : vector<2x384xf32>
    %119 = tpu.matmul %118, %23, %cst_56 {dimension_numbers = #tpu.dot_dimension_numbers<[1], [0], [0], [1], [0, 0, 1, 1], [], []>} : vector<2x128xbf16>, vector<128x384xbf16>, vector<2x384xf32> -> vector<2x384xf32>
    %120 = vector.extract_strided_slice %117 {offsets = [0, 0], sizes = [2, 128], strides = [1, 1]} : vector<2x384xf32> to vector<2x128xf32>
    %121 = vector.extract_strided_slice %119 {offsets = [0, 0], sizes = [2, 128], strides = [1, 1]} : vector<2x384xf32> to vector<2x128xf32>
    %122 = arith.addf %120, %121 : vector<2x128xf32>
    %123 = arith.negf %122 : vector<2x128xf32>
    %124 = math.exp %123 : vector<2x128xf32>
    %cst_57 = arith.constant 1.000000e+00 : f32
    %125 = vector.broadcast %cst_57 : f32 to vector<2x128xf32>
    %126 = arith.addf %125, %124 : vector<2x128xf32>
    %127 = arith.divf %125, %126 : vector<2x128xf32>
    %128 = vector.extract_strided_slice %117 {offsets = [0, 128], sizes = [2, 128], strides = [1, 1]} : vector<2x384xf32> to vector<2x128xf32>
    %129 = vector.extract_strided_slice %119 {offsets = [0, 128], sizes = [2, 128], strides = [1, 1]} : vector<2x384xf32> to vector<2x128xf32>
    %130 = arith.addf %128, %129 : vector<2x128xf32>
    %131 = arith.negf %130 : vector<2x128xf32>
    %132 = math.exp %131 : vector<2x128xf32>
    %cst_58 = arith.constant 1.000000e+00 : f32
    %133 = vector.broadcast %cst_58 : f32 to vector<2x128xf32>
    %134 = arith.addf %133, %132 : vector<2x128xf32>
    %135 = arith.divf %133, %134 : vector<2x128xf32>
    %136 = vector.extract_strided_slice %117 {offsets = [0, 256], sizes = [2, 128], strides = [1, 1]} : vector<2x384xf32> to vector<2x128xf32>
    %137 = vector.extract_strided_slice %119 {offsets = [0, 256], sizes = [2, 128], strides = [1, 1]} : vector<2x384xf32> to vector<2x128xf32>
    %138 = arith.addf %137, %19 : vector<2x128xf32>
    %139 = arith.mulf %127, %138 : vector<2x128xf32>
    %140 = arith.addf %136, %139 : vector<2x128xf32>
    %141 = math.tanh %140 : vector<2x128xf32>
    %cst_59 = arith.constant 1.000000e+00 : f32
    %142 = vector.broadcast %cst_59 : f32 to vector<2x128xf32>
    %143 = arith.subf %142, %135 : vector<2x128xf32>
    %144 = arith.mulf %143, %141 : vector<2x128xf32>
    %145 = arith.mulf %135, %116 : vector<2x128xf32>
    %146 = arith.addf %144, %145 : vector<2x128xf32>
    %c8_i32_60 = arith.constant 8 : i32
    %147 = arith.muli %arg0, %c8_i32_60 : i32
    %c1_i32_61 = arith.constant 1 : i32
    %148 = arith.addi %147, %c1_i32_61 : i32
    %c15_i32_62 = arith.constant 15 : i32
    %149 = arith.cmpi slt, %148, %c15_i32_62 : i32
    %150 = arith.extui %149 : i1 to i32
    %151 = arith.sitofp %150 : i32 to f32
    %152 = vector.broadcast %151 : f32 to vector<2x128xf32>
    %153 = arith.mulf %152, %146 : vector<2x128xf32>
    %cst_63 = arith.constant 1.000000e+00 : f32
    %154 = arith.subf %cst_63, %151 : f32
    %155 = vector.broadcast %154 : f32 to vector<2x128xf32>
    %156 = arith.mulf %155, %116 : vector<2x128xf32>
    %157 = arith.addf %153, %156 : vector<2x128xf32>
    %c0_64 = arith.constant 0 : index
    %c0_65 = arith.constant 0 : index
    %158 = vector.load %arg17[%c0_64, %c0_65] : memref<2x128xf32, #tpu.memory_space<vmem>>, vector<2x128xf32>
    tpu.vector_store %arg17[%c0_64, %c0_65], %157 {strides = array<i32>} : memref<2x128xf32, #tpu.memory_space<vmem>>, vector<2x128xf32>,
    %159 = arith.truncf %157 : vector<2x128xf32> to vector<2x128xbf16>
    %c2_66 = arith.constant 2 : index
    %c0_67 = arith.constant 0 : index
    %160 = vector.load %arg11[%c2_66, %c0_67] : memref<16x128xbf16, #tpu.memory_space<vmem>>, vector<2x128xbf16>
    tpu.vector_store %arg11[%c2_66, %c0_67], %159 {strides = array<i32>} : memref<16x128xbf16, #tpu.memory_space<vmem>>, vector<2x128xbf16>,
    %c0_68 = arith.constant 0 : index
    %c0_69 = arith.constant 0 : index
    %161 = vector.load %arg18[%c0_68, %c0_69] : memref<2x128xf32, #tpu.memory_space<vmem>>, vector<2x128xf32>
    %c12 = arith.constant 12 : index
    %c0_70 = arith.constant 0 : index
    %162 = vector.load %arg16[%c12, %c0_70] : memref<16x384xf32, #tpu.memory_space<vmem>>, vector<2x384xf32>
    %163 = arith.truncf %161 : vector<2x128xf32> to vector<2x128xbf16>
    %cst_71 = arith.constant dense<0.000000e+00> : vector<2x384xf32>
    %164 = tpu.matmul %163, %24, %cst_71 {dimension_numbers = #tpu.dot_dimension_numbers<[1], [0], [0], [1], [0, 0, 1, 1], [], []>} : vector<2x128xbf16>, vector<128x384xbf16>, vector<2x384xf32> -> vector<2x384xf32>
    %165 = vector.extract_strided_slice %162 {offsets = [0, 0], sizes = [2, 128], strides = [1, 1]} : vector<2x384xf32> to vector<2x128xf32>
    %166 = vector.extract_strided_slice %164 {offsets = [0, 0], sizes = [2, 128], strides = [1, 1]} : vector<2x384xf32> to vector<2x128xf32>
    %167 = arith.addf %165, %166 : vector<2x128xf32>
    %168 = arith.negf %167 : vector<2x128xf32>
    %169 = math.exp %168 : vector<2x128xf32>
    %cst_72 = arith.constant 1.000000e+00 : f32
    %170 = vector.broadcast %cst_72 : f32 to vector<2x128xf32>
    %171 = arith.addf %170, %169 : vector<2x128xf32>
    %172 = arith.divf %170, %171 : vector<2x128xf32>
    %173 = vector.extract_strided_slice %162 {offsets = [0, 128], sizes = [2, 128], strides = [1, 1]} : vector<2x384xf32> to vector<2x128xf32>
    %174 = vector.extract_strided_slice %164 {offsets = [0, 128], sizes = [2, 128], strides = [1, 1]} : vector<2x384xf32> to vector<2x128xf32>
    %175 = arith.addf %173, %174 : vector<2x128xf32>
    %176 = arith.negf %175 : vector<2x128xf32>
    %177 = math.exp %176 : vector<2x128xf32>
    %cst_73 = arith.constant 1.000000e+00 : f32
    %178 = vector.broadcast %cst_73 : f32 to vector<2x128xf32>
    %179 = arith.addf %178, %177 : vector<2x128xf32>
    %180 = arith.divf %178, %179 : vector<2x128xf32>
    %181 = vector.extract_strided_slice %162 {offsets = [0, 256], sizes = [2, 128], strides = [1, 1]} : vector<2x384xf32> to vector<2x128xf32>
    %182 = vector.extract_strided_slice %164 {offsets = [0, 256], sizes = [2, 128], strides = [1, 1]} : vector<2x384xf32> to vector<2x128xf32>
    %183 = arith.addf %182, %22 : vector<2x128xf32>
    %184 = arith.mulf %172, %183 : vector<2x128xf32>
    %185 = arith.addf %181, %184 : vector<2x128xf32>
    %186 = math.tanh %185 : vector<2x128xf32>
    %cst_74 = arith.constant 1.000000e+00 : f32
    %187 = vector.broadcast %cst_74 : f32 to vector<2x128xf32>
    %188 = arith.subf %187, %180 : vector<2x128xf32>
    %189 = arith.mulf %188, %186 : vector<2x128xf32>
    %190 = arith.mulf %180, %161 : vector<2x128xf32>
    %191 = arith.addf %189, %190 : vector<2x128xf32>
    %c1_i32_75 = arith.constant 1 : i32
    %192 = arith.subi %c1_i32_75, %arg0 : i32
    %c8_i32_76 = arith.constant 8 : i32
    %193 = arith.muli %192, %c8_i32_76 : i32
    %c6_i32 = arith.constant 6 : i32
    %194 = arith.addi %193, %c6_i32 : i32
    %c15_i32_77 = arith.constant 15 : i32
    %195 = arith.cmpi slt, %194, %c15_i32_77 : i32
    %196 = arith.extui %195 : i1 to i32
    %197 = arith.sitofp %196 : i32 to f32
    %198 = vector.broadcast %197 : f32 to vector<2x128xf32>
    %199 = arith.mulf %198, %191 : vector<2x128xf32>
    %cst_78 = arith.constant 1.000000e+00 : f32
    %200 = arith.subf %cst_78, %197 : f32
    %201 = vector.broadcast %200 : f32 to vector<2x128xf32>
    %202 = arith.mulf %201, %161 : vector<2x128xf32>
    %203 = arith.addf %199, %202 : vector<2x128xf32>
    %c0_79 = arith.constant 0 : index
    %c0_80 = arith.constant 0 : index
    %204 = vector.load %arg18[%c0_79, %c0_80] : memref<2x128xf32, #tpu.memory_space<vmem>>, vector<2x128xf32>
    tpu.vector_store %arg18[%c0_79, %c0_80], %203 {strides = array<i32>} : memref<2x128xf32, #tpu.memory_space<vmem>>, vector<2x128xf32>,
    %205 = arith.truncf %203 : vector<2x128xf32> to vector<2x128xbf16>
    %c12_81 = arith.constant 12 : index
    %c0_82 = arith.constant 0 : index
    %206 = vector.load %arg12[%c12_81, %c0_82] : memref<16x128xbf16, #tpu.memory_space<vmem>>, vector<2x128xbf16>
    tpu.vector_store %arg12[%c12_81, %c0_82], %205 {strides = array<i32>} : memref<16x128xbf16, #tpu.memory_space<vmem>>, vector<2x128xbf16>,
    %c0_83 = arith.constant 0 : index
    %c0_84 = arith.constant 0 : index
    %207 = vector.load %arg17[%c0_83, %c0_84] : memref<2x128xf32, #tpu.memory_space<vmem>>, vector<2x128xf32>
    %c4 = arith.constant 4 : index
    %c0_85 = arith.constant 0 : index
    %208 = vector.load %arg15[%c4, %c0_85] : memref<16x384xf32, #tpu.memory_space<vmem>>, vector<2x384xf32>
    %209 = arith.truncf %207 : vector<2x128xf32> to vector<2x128xbf16>
    %cst_86 = arith.constant dense<0.000000e+00> : vector<2x384xf32>
    %210 = tpu.matmul %209, %23, %cst_86 {dimension_numbers = #tpu.dot_dimension_numbers<[1], [0], [0], [1], [0, 0, 1, 1], [], []>} : vector<2x128xbf16>, vector<128x384xbf16>, vector<2x384xf32> -> vector<2x384xf32>
    %211 = vector.extract_strided_slice %208 {offsets = [0, 0], sizes = [2, 128], strides = [1, 1]} : vector<2x384xf32> to vector<2x128xf32>
    %212 = vector.extract_strided_slice %210 {offsets = [0, 0], sizes = [2, 128], strides = [1, 1]} : vector<2x384xf32> to vector<2x128xf32>
    %213 = arith.addf %211, %212 : vector<2x128xf32>
    %214 = arith.negf %213 : vector<2x128xf32>
    %215 = math.exp %214 : vector<2x128xf32>
    %cst_87 = arith.constant 1.000000e+00 : f32
    %216 = vector.broadcast %cst_87 : f32 to vector<2x128xf32>
    %217 = arith.addf %216, %215 : vector<2x128xf32>
    %218 = arith.divf %216, %217 : vector<2x128xf32>
    %219 = vector.extract_strided_slice %208 {offsets = [0, 128], sizes = [2, 128], strides = [1, 1]} : vector<2x384xf32> to vector<2x128xf32>
    %220 = vector.extract_strided_slice %210 {offsets = [0, 128], sizes = [2, 128], strides = [1, 1]} : vector<2x384xf32> to vector<2x128xf32>
    %221 = arith.addf %219, %220 : vector<2x128xf32>
    %222 = arith.negf %221 : vector<2x128xf32>
    %223 = math.exp %222 : vector<2x128xf32>
    %cst_88 = arith.constant 1.000000e+00 : f32
    %224 = vector.broadcast %cst_88 : f32 to vector<2x128xf32>
    %225 = arith.addf %224, %223 : vector<2x128xf32>
    %226 = arith.divf %224, %225 : vector<2x128xf32>
    %227 = vector.extract_strided_slice %208 {offsets = [0, 256], sizes = [2, 128], strides = [1, 1]} : vector<2x384xf32> to vector<2x128xf32>
    %228 = vector.extract_strided_slice %210 {offsets = [0, 256], sizes = [2, 128], strides = [1, 1]} : vector<2x384xf32> to vector<2x128xf32>
    %229 = arith.addf %228, %19 : vector<2x128xf32>
    %230 = arith.mulf %218, %229 : vector<2x128xf32>
    %231 = arith.addf %227, %230 : vector<2x128xf32>
    %232 = math.tanh %231 : vector<2x128xf32>
    %cst_89 = arith.constant 1.000000e+00 : f32
    %233 = vector.broadcast %cst_89 : f32 to vector<2x128xf32>
    %234 = arith.subf %233, %226 : vector<2x128xf32>
    %235 = arith.mulf %234, %232 : vector<2x128xf32>
    %236 = arith.mulf %226, %207 : vector<2x128xf32>
    %237 = arith.addf %235, %236 : vector<2x128xf32>
    %c8_i32_90 = arith.constant 8 : i32
    %238 = arith.muli %arg0, %c8_i32_90 : i32
    %c2_i32 = arith.constant 2 : i32
    %239 = arith.addi %238, %c2_i32 : i32
    %c15_i32_91 = arith.constant 15 : i32
    %240 = arith.cmpi slt, %239, %c15_i32_91 : i32
    %241 = arith.extui %240 : i1 to i32
    %242 = arith.sitofp %241 : i32 to f32
    %243 = vector.broadcast %242 : f32 to vector<2x128xf32>
    %244 = arith.mulf %243, %237 : vector<2x128xf32>
    %cst_92 = arith.constant 1.000000e+00 : f32
    %245 = arith.subf %cst_92, %242 : f32
    %246 = vector.broadcast %245 : f32 to vector<2x128xf32>
    %247 = arith.mulf %246, %207 : vector<2x128xf32>
    %248 = arith.addf %244, %247 : vector<2x128xf32>
    %c0_93 = arith.constant 0 : index
    %c0_94 = arith.constant 0 : index
    %249 = vector.load %arg17[%c0_93, %c0_94] : memref<2x128xf32, #tpu.memory_space<vmem>>, vector<2x128xf32>
    tpu.vector_store %arg17[%c0_93, %c0_94], %248 {strides = array<i32>} : memref<2x128xf32, #tpu.memory_space<vmem>>, vector<2x128xf32>,
    %250 = arith.truncf %248 : vector<2x128xf32> to vector<2x128xbf16>
    %c4_95 = arith.constant 4 : index
    %c0_96 = arith.constant 0 : index
    %251 = vector.load %arg11[%c4_95, %c0_96] : memref<16x128xbf16, #tpu.memory_space<vmem>>, vector<2x128xbf16>
    tpu.vector_store %arg11[%c4_95, %c0_96], %250 {strides = array<i32>} : memref<16x128xbf16, #tpu.memory_space<vmem>>, vector<2x128xbf16>,
    %c0_97 = arith.constant 0 : index
    %c0_98 = arith.constant 0 : index
    %252 = vector.load %arg18[%c0_97, %c0_98] : memref<2x128xf32, #tpu.memory_space<vmem>>, vector<2x128xf32>
    %c10 = arith.constant 10 : index
    %c0_99 = arith.constant 0 : index
    %253 = vector.load %arg16[%c10, %c0_99] : memref<16x384xf32, #tpu.memory_space<vmem>>, vector<2x384xf32>
    %254 = arith.truncf %252 : vector<2x128xf32> to vector<2x128xbf16>
    %cst_100 = arith.constant dense<0.000000e+00> : vector<2x384xf32>
    %255 = tpu.matmul %254, %24, %cst_100 {dimension_numbers = #tpu.dot_dimension_numbers<[1], [0], [0], [1], [0, 0, 1, 1], [], []>} : vector<2x128xbf16>, vector<128x384xbf16>, vector<2x384xf32> -> vector<2x384xf32>
    %256 = vector.extract_strided_slice %253 {offsets = [0, 0], sizes = [2, 128], strides = [1, 1]} : vector<2x384xf32> to vector<2x128xf32>
    %257 = vector.extract_strided_slice %255 {offsets = [0, 0], sizes = [2, 128], strides = [1, 1]} : vector<2x384xf32> to vector<2x128xf32>
    %258 = arith.addf %256, %257 : vector<2x128xf32>
    %259 = arith.negf %258 : vector<2x128xf32>
    %260 = math.exp %259 : vector<2x128xf32>
    %cst_101 = arith.constant 1.000000e+00 : f32
    %261 = vector.broadcast %cst_101 : f32 to vector<2x128xf32>
    %262 = arith.addf %261, %260 : vector<2x128xf32>
    %263 = arith.divf %261, %262 : vector<2x128xf32>
    %264 = vector.extract_strided_slice %253 {offsets = [0, 128], sizes = [2, 128], strides = [1, 1]} : vector<2x384xf32> to vector<2x128xf32>
    %265 = vector.extract_strided_slice %255 {offsets = [0, 128], sizes = [2, 128], strides = [1, 1]} : vector<2x384xf32> to vector<2x128xf32>
    %266 = arith.addf %264, %265 : vector<2x128xf32>
    %267 = arith.negf %266 : vector<2x128xf32>
    %268 = math.exp %267 : vector<2x128xf32>
    %cst_102 = arith.constant 1.000000e+00 : f32
    %269 = vector.broadcast %cst_102 : f32 to vector<2x128xf32>
    %270 = arith.addf %269, %268 : vector<2x128xf32>
    %271 = arith.divf %269, %270 : vector<2x128xf32>
    %272 = vector.extract_strided_slice %253 {offsets = [0, 256], sizes = [2, 128], strides = [1, 1]} : vector<2x384xf32> to vector<2x128xf32>
    %273 = vector.extract_strided_slice %255 {offsets = [0, 256], sizes = [2, 128], strides = [1, 1]} : vector<2x384xf32> to vector<2x128xf32>
    %274 = arith.addf %273, %22 : vector<2x128xf32>
    %275 = arith.mulf %263, %274 : vector<2x128xf32>
    %276 = arith.addf %272, %275 : vector<2x128xf32>
    %277 = math.tanh %276 : vector<2x128xf32>
    %cst_103 = arith.constant 1.000000e+00 : f32
    %278 = vector.broadcast %cst_103 : f32 to vector<2x128xf32>
    %279 = arith.subf %278, %271 : vector<2x128xf32>
    %280 = arith.mulf %279, %277 : vector<2x128xf32>
    %281 = arith.mulf %271, %252 : vector<2x128xf32>
    %282 = arith.addf %280, %281 : vector<2x128xf32>
    %c1_i32_104 = arith.constant 1 : i32
    %283 = arith.subi %c1_i32_104, %arg0 : i32
    %c8_i32_105 = arith.constant 8 : i32
    %284 = arith.muli %283, %c8_i32_105 : i32
    %c5_i32 = arith.constant 5 : i32
    %285 = arith.addi %284, %c5_i32 : i32
    %c15_i32_106 = arith.constant 15 : i32
    %286 = arith.cmpi slt, %285, %c15_i32_106 : i32
    %287 = arith.extui %286 : i1 to i32
    %288 = arith.sitofp %287 : i32 to f32
    %289 = vector.broadcast %288 : f32 to vector<2x128xf32>
    %290 = arith.mulf %289, %282 : vector<2x128xf32>
    %cst_107 = arith.constant 1.000000e+00 : f32
    %291 = arith.subf %cst_107, %288 : f32
    %292 = vector.broadcast %291 : f32 to vector<2x128xf32>
    %293 = arith.mulf %292, %252 : vector<2x128xf32>
    %294 = arith.addf %290, %293 : vector<2x128xf32>
    %c0_108 = arith.constant 0 : index
    %c0_109 = arith.constant 0 : index
    %295 = vector.load %arg18[%c0_108, %c0_109] : memref<2x128xf32, #tpu.memory_space<vmem>>, vector<2x128xf32>
    tpu.vector_store %arg18[%c0_108, %c0_109], %294 {strides = array<i32>} : memref<2x128xf32, #tpu.memory_space<vmem>>, vector<2x128xf32>,
    %296 = arith.truncf %294 : vector<2x128xf32> to vector<2x128xbf16>
    %c10_110 = arith.constant 10 : index
    %c0_111 = arith.constant 0 : index
    %297 = vector.load %arg12[%c10_110, %c0_111] : memref<16x128xbf16, #tpu.memory_space<vmem>>, vector<2x128xbf16>
    tpu.vector_store %arg12[%c10_110, %c0_111], %296 {strides = array<i32>} : memref<16x128xbf16, #tpu.memory_space<vmem>>, vector<2x128xbf16>,
    %c0_112 = arith.constant 0 : index
    %c0_113 = arith.constant 0 : index
    %298 = vector.load %arg17[%c0_112, %c0_113] : memref<2x128xf32, #tpu.memory_space<vmem>>, vector<2x128xf32>
    %c6 = arith.constant 6 : index
    %c0_114 = arith.constant 0 : index
    %299 = vector.load %arg15[%c6, %c0_114] : memref<16x384xf32, #tpu.memory_space<vmem>>, vector<2x384xf32>
    %300 = arith.truncf %298 : vector<2x128xf32> to vector<2x128xbf16>
    %cst_115 = arith.constant dense<0.000000e+00> : vector<2x384xf32>
    %301 = tpu.matmul %300, %23, %cst_115 {dimension_numbers = #tpu.dot_dimension_numbers<[1], [0], [0], [1], [0, 0, 1, 1], [], []>} : vector<2x128xbf16>, vector<128x384xbf16>, vector<2x384xf32> -> vector<2x384xf32>
    %302 = vector.extract_strided_slice %299 {offsets = [0, 0], sizes = [2, 128], strides = [1, 1]} : vector<2x384xf32> to vector<2x128xf32>
    %303 = vector.extract_strided_slice %301 {offsets = [0, 0], sizes = [2, 128], strides = [1, 1]} : vector<2x384xf32> to vector<2x128xf32>
    %304 = arith.addf %302, %303 : vector<2x128xf32>
    %305 = arith.negf %304 : vector<2x128xf32>
    %306 = math.exp %305 : vector<2x128xf32>
    %cst_116 = arith.constant 1.000000e+00 : f32
    %307 = vector.broadcast %cst_116 : f32 to vector<2x128xf32>
    %308 = arith.addf %307, %306 : vector<2x128xf32>
    %309 = arith.divf %307, %308 : vector<2x128xf32>
    %310 = vector.extract_strided_slice %299 {offsets = [0, 128], sizes = [2, 128], strides = [1, 1]} : vector<2x384xf32> to vector<2x128xf32>
    %311 = vector.extract_strided_slice %301 {offsets = [0, 128], sizes = [2, 128], strides = [1, 1]} : vector<2x384xf32> to vector<2x128xf32>
    %312 = arith.addf %310, %311 : vector<2x128xf32>
    %313 = arith.negf %312 : vector<2x128xf32>
    %314 = math.exp %313 : vector<2x128xf32>
    %cst_117 = arith.constant 1.000000e+00 : f32
    %315 = vector.broadcast %cst_117 : f32 to vector<2x128xf32>
    %316 = arith.addf %315, %314 : vector<2x128xf32>
    %317 = arith.divf %315, %316 : vector<2x128xf32>
    %318 = vector.extract_strided_slice %299 {offsets = [0, 256], sizes = [2, 128], strides = [1, 1]} : vector<2x384xf32> to vector<2x128xf32>
    %319 = vector.extract_strided_slice %301 {offsets = [0, 256], sizes = [2, 128], strides = [1, 1]} : vector<2x384xf32> to vector<2x128xf32>
    %320 = arith.addf %319, %19 : vector<2x128xf32>
    %321 = arith.mulf %309, %320 : vector<2x128xf32>
    %322 = arith.addf %318, %321 : vector<2x128xf32>
    %323 = math.tanh %322 : vector<2x128xf32>
    %cst_118 = arith.constant 1.000000e+00 : f32
    %324 = vector.broadcast %cst_118 : f32 to vector<2x128xf32>
    %325 = arith.subf %324, %317 : vector<2x128xf32>
    %326 = arith.mulf %325, %323 : vector<2x128xf32>
    %327 = arith.mulf %317, %298 : vector<2x128xf32>
    %328 = arith.addf %326, %327 : vector<2x128xf32>
    %c8_i32_119 = arith.constant 8 : i32
    %329 = arith.muli %arg0, %c8_i32_119 : i32
    %c3_i32 = arith.constant 3 : i32
    %330 = arith.addi %329, %c3_i32 : i32
    %c15_i32_120 = arith.constant 15 : i32
    %331 = arith.cmpi slt, %330, %c15_i32_120 : i32
    %332 = arith.extui %331 : i1 to i32
    %333 = arith.sitofp %332 : i32 to f32
    %334 = vector.broadcast %333 : f32 to vector<2x128xf32>
    %335 = arith.mulf %334, %328 : vector<2x128xf32>
    %cst_121 = arith.constant 1.000000e+00 : f32
    %336 = arith.subf %cst_121, %333 : f32
    %337 = vector.broadcast %336 : f32 to vector<2x128xf32>
    %338 = arith.mulf %337, %298 : vector<2x128xf32>
    %339 = arith.addf %335, %338 : vector<2x128xf32>
    %c0_122 = arith.constant 0 : index
    %c0_123 = arith.constant 0 : index
    %340 = vector.load %arg17[%c0_122, %c0_123] : memref<2x128xf32, #tpu.memory_space<vmem>>, vector<2x128xf32>
    tpu.vector_store %arg17[%c0_122, %c0_123], %339 {strides = array<i32>} : memref<2x128xf32, #tpu.memory_space<vmem>>, vector<2x128xf32>,
    %341 = arith.truncf %339 : vector<2x128xf32> to vector<2x128xbf16>
    %c6_124 = arith.constant 6 : index
    %c0_125 = arith.constant 0 : index
    %342 = vector.load %arg11[%c6_124, %c0_125] : memref<16x128xbf16, #tpu.memory_space<vmem>>, vector<2x128xbf16>
    tpu.vector_store %arg11[%c6_124, %c0_125], %341 {strides = array<i32>} : memref<16x128xbf16, #tpu.memory_space<vmem>>, vector<2x128xbf16>,
    %c0_126 = arith.constant 0 : index
    %c0_127 = arith.constant 0 : index
    %343 = vector.load %arg18[%c0_126, %c0_127] : memref<2x128xf32, #tpu.memory_space<vmem>>, vector<2x128xf32>
    %c8 = arith.constant 8 : index
    %c0_128 = arith.constant 0 : index
    %344 = vector.load %arg16[%c8, %c0_128] : memref<16x384xf32, #tpu.memory_space<vmem>>, vector<2x384xf32>
    %345 = arith.truncf %343 : vector<2x128xf32> to vector<2x128xbf16>
    %cst_129 = arith.constant dense<0.000000e+00> : vector<2x384xf32>
    %346 = tpu.matmul %345, %24, %cst_129 {dimension_numbers = #tpu.dot_dimension_numbers<[1], [0], [0], [1], [0, 0, 1, 1], [], []>} : vector<2x128xbf16>, vector<128x384xbf16>, vector<2x384xf32> -> vector<2x384xf32>
    %347 = vector.extract_strided_slice %344 {offsets = [0, 0], sizes = [2, 128], strides = [1, 1]} : vector<2x384xf32> to vector<2x128xf32>
    %348 = vector.extract_strided_slice %346 {offsets = [0, 0], sizes = [2, 128], strides = [1, 1]} : vector<2x384xf32> to vector<2x128xf32>
    %349 = arith.addf %347, %348 : vector<2x128xf32>
    %350 = arith.negf %349 : vector<2x128xf32>
    %351 = math.exp %350 : vector<2x128xf32>
    %cst_130 = arith.constant 1.000000e+00 : f32
    %352 = vector.broadcast %cst_130 : f32 to vector<2x128xf32>
    %353 = arith.addf %352, %351 : vector<2x128xf32>
    %354 = arith.divf %352, %353 : vector<2x128xf32>
    %355 = vector.extract_strided_slice %344 {offsets = [0, 128], sizes = [2, 128], strides = [1, 1]} : vector<2x384xf32> to vector<2x128xf32>
    %356 = vector.extract_strided_slice %346 {offsets = [0, 128], sizes = [2, 128], strides = [1, 1]} : vector<2x384xf32> to vector<2x128xf32>
    %357 = arith.addf %355, %356 : vector<2x128xf32>
    %358 = arith.negf %357 : vector<2x128xf32>
    %359 = math.exp %358 : vector<2x128xf32>
    %cst_131 = arith.constant 1.000000e+00 : f32
    %360 = vector.broadcast %cst_131 : f32 to vector<2x128xf32>
    %361 = arith.addf %360, %359 : vector<2x128xf32>
    %362 = arith.divf %360, %361 : vector<2x128xf32>
    %363 = vector.extract_strided_slice %344 {offsets = [0, 256], sizes = [2, 128], strides = [1, 1]} : vector<2x384xf32> to vector<2x128xf32>
    %364 = vector.extract_strided_slice %346 {offsets = [0, 256], sizes = [2, 128], strides = [1, 1]} : vector<2x384xf32> to vector<2x128xf32>
    %365 = arith.addf %364, %22 : vector<2x128xf32>
    %366 = arith.mulf %354, %365 : vector<2x128xf32>
    %367 = arith.addf %363, %366 : vector<2x128xf32>
    %368 = math.tanh %367 : vector<2x128xf32>
    %cst_132 = arith.constant 1.000000e+00 : f32
    %369 = vector.broadcast %cst_132 : f32 to vector<2x128xf32>
    %370 = arith.subf %369, %362 : vector<2x128xf32>
    %371 = arith.mulf %370, %368 : vector<2x128xf32>
    %372 = arith.mulf %362, %343 : vector<2x128xf32>
    %373 = arith.addf %371, %372 : vector<2x128xf32>
    %c1_i32_133 = arith.constant 1 : i32
    %374 = arith.subi %c1_i32_133, %arg0 : i32
    %c8_i32_134 = arith.constant 8 : i32
    %375 = arith.muli %374, %c8_i32_134 : i32
    %c4_i32 = arith.constant 4 : i32
    %376 = arith.addi %375, %c4_i32 : i32
    %c15_i32_135 = arith.constant 15 : i32
    %377 = arith.cmpi slt, %376, %c15_i32_135 : i32
    %378 = arith.extui %377 : i1 to i32
    %379 = arith.sitofp %378 : i32 to f32
    %380 = vector.broadcast %379 : f32 to vector<2x128xf32>
    %381 = arith.mulf %380, %373 : vector<2x128xf32>
    %cst_136 = arith.constant 1.000000e+00 : f32
    %382 = arith.subf %cst_136, %379 : f32
    %383 = vector.broadcast %382 : f32 to vector<2x128xf32>
    %384 = arith.mulf %383, %343 : vector<2x128xf32>
    %385 = arith.addf %381, %384 : vector<2x128xf32>
    %c0_137 = arith.constant 0 : index
    %c0_138 = arith.constant 0 : index
    %386 = vector.load %arg18[%c0_137, %c0_138] : memref<2x128xf32, #tpu.memory_space<vmem>>, vector<2x128xf32>
    tpu.vector_store %arg18[%c0_137, %c0_138], %385 {strides = array<i32>} : memref<2x128xf32, #tpu.memory_space<vmem>>, vector<2x128xf32>,
    %387 = arith.truncf %385 : vector<2x128xf32> to vector<2x128xbf16>
    %c8_139 = arith.constant 8 : index
    %c0_140 = arith.constant 0 : index
    %388 = vector.load %arg12[%c8_139, %c0_140] : memref<16x128xbf16, #tpu.memory_space<vmem>>, vector<2x128xbf16>
    tpu.vector_store %arg12[%c8_139, %c0_140], %387 {strides = array<i32>} : memref<16x128xbf16, #tpu.memory_space<vmem>>, vector<2x128xbf16>,
    %c0_141 = arith.constant 0 : index
    %c0_142 = arith.constant 0 : index
    %389 = vector.load %arg17[%c0_141, %c0_142] : memref<2x128xf32, #tpu.memory_space<vmem>>, vector<2x128xf32>
    %c8_143 = arith.constant 8 : index
    %c0_144 = arith.constant 0 : index
    %390 = vector.load %arg15[%c8_143, %c0_144] : memref<16x384xf32, #tpu.memory_space<vmem>>, vector<2x384xf32>
    %391 = arith.truncf %389 : vector<2x128xf32> to vector<2x128xbf16>
    %cst_145 = arith.constant dense<0.000000e+00> : vector<2x384xf32>
    %392 = tpu.matmul %391, %23, %cst_145 {dimension_numbers = #tpu.dot_dimension_numbers<[1], [0], [0], [1], [0, 0, 1, 1], [], []>} : vector<2x128xbf16>, vector<128x384xbf16>, vector<2x384xf32> -> vector<2x384xf32>
    %393 = vector.extract_strided_slice %390 {offsets = [0, 0], sizes = [2, 128], strides = [1, 1]} : vector<2x384xf32> to vector<2x128xf32>
    %394 = vector.extract_strided_slice %392 {offsets = [0, 0], sizes = [2, 128], strides = [1, 1]} : vector<2x384xf32> to vector<2x128xf32>
    %395 = arith.addf %393, %394 : vector<2x128xf32>
    %396 = arith.negf %395 : vector<2x128xf32>
    %397 = math.exp %396 : vector<2x128xf32>
    %cst_146 = arith.constant 1.000000e+00 : f32
    %398 = vector.broadcast %cst_146 : f32 to vector<2x128xf32>
    %399 = arith.addf %398, %397 : vector<2x128xf32>
    %400 = arith.divf %398, %399 : vector<2x128xf32>
    %401 = vector.extract_strided_slice %390 {offsets = [0, 128], sizes = [2, 128], strides = [1, 1]} : vector<2x384xf32> to vector<2x128xf32>
    %402 = vector.extract_strided_slice %392 {offsets = [0, 128], sizes = [2, 128], strides = [1, 1]} : vector<2x384xf32> to vector<2x128xf32>
    %403 = arith.addf %401, %402 : vector<2x128xf32>
    %404 = arith.negf %403 : vector<2x128xf32>
    %405 = math.exp %404 : vector<2x128xf32>
    %cst_147 = arith.constant 1.000000e+00 : f32
    %406 = vector.broadcast %cst_147 : f32 to vector<2x128xf32>
    %407 = arith.addf %406, %405 : vector<2x128xf32>
    %408 = arith.divf %406, %407 : vector<2x128xf32>
    %409 = vector.extract_strided_slice %390 {offsets = [0, 256], sizes = [2, 128], strides = [1, 1]} : vector<2x384xf32> to vector<2x128xf32>
    %410 = vector.extract_strided_slice %392 {offsets = [0, 256], sizes = [2, 128], strides = [1, 1]} : vector<2x384xf32> to vector<2x128xf32>
    %411 = arith.addf %410, %19 : vector<2x128xf32>
    %412 = arith.mulf %400, %411 : vector<2x128xf32>
    %413 = arith.addf %409, %412 : vector<2x128xf32>
    %414 = math.tanh %413 : vector<2x128xf32>
    %cst_148 = arith.constant 1.000000e+00 : f32
    %415 = vector.broadcast %cst_148 : f32 to vector<2x128xf32>
    %416 = arith.subf %415, %408 : vector<2x128xf32>
    %417 = arith.mulf %416, %414 : vector<2x128xf32>
    %418 = arith.mulf %408, %389 : vector<2x128xf32>
    %419 = arith.addf %417, %418 : vector<2x128xf32>
    %c8_i32_149 = arith.constant 8 : i32
    %420 = arith.muli %arg0, %c8_i32_149 : i32
    %c4_i32_150 = arith.constant 4 : i32
    %421 = arith.addi %420, %c4_i32_150 : i32
    %c15_i32_151 = arith.constant 15 : i32
    %422 = arith.cmpi slt, %421, %c15_i32_151 : i32
    %423 = arith.extui %422 : i1 to i32
    %424 = arith.sitofp %423 : i32 to f32
    %425 = vector.broadcast %424 : f32 to vector<2x128xf32>
    %426 = arith.mulf %425, %419 : vector<2x128xf32>
    %cst_152 = arith.constant 1.000000e+00 : f32
    %427 = arith.subf %cst_152, %424 : f32
    %428 = vector.broadcast %427 : f32 to vector<2x128xf32>
    %429 = arith.mulf %428, %389 : vector<2x128xf32>
    %430 = arith.addf %426, %429 : vector<2x128xf32>
    %c0_153 = arith.constant 0 : index
    %c0_154 = arith.constant 0 : index
    %431 = vector.load %arg17[%c0_153, %c0_154] : memref<2x128xf32, #tpu.memory_space<vmem>>, vector<2x128xf32>
    tpu.vector_store %arg17[%c0_153, %c0_154], %430 {strides = array<i32>} : memref<2x128xf32, #tpu.memory_space<vmem>>, vector<2x128xf32>,
    %432 = arith.truncf %430 : vector<2x128xf32> to vector<2x128xbf16>
    %c8_155 = arith.constant 8 : index
    %c0_156 = arith.constant 0 : index
    %433 = vector.load %arg11[%c8_155, %c0_156] : memref<16x128xbf16, #tpu.memory_space<vmem>>, vector<2x128xbf16>
    tpu.vector_store %arg11[%c8_155, %c0_156], %432 {strides = array<i32>} : memref<16x128xbf16, #tpu.memory_space<vmem>>, vector<2x128xbf16>,
    %c0_157 = arith.constant 0 : index
    %c0_158 = arith.constant 0 : index
    %434 = vector.load %arg18[%c0_157, %c0_158] : memref<2x128xf32, #tpu.memory_space<vmem>>, vector<2x128xf32>
    %c6_159 = arith.constant 6 : index
    %c0_160 = arith.constant 0 : index
    %435 = vector.load %arg16[%c6_159, %c0_160] : memref<16x384xf32, #tpu.memory_space<vmem>>, vector<2x384xf32>
    %436 = arith.truncf %434 : vector<2x128xf32> to vector<2x128xbf16>
    %cst_161 = arith.constant dense<0.000000e+00> : vector<2x384xf32>
    %437 = tpu.matmul %436, %24, %cst_161 {dimension_numbers = #tpu.dot_dimension_numbers<[1], [0], [0], [1], [0, 0, 1, 1], [], []>} : vector<2x128xbf16>, vector<128x384xbf16>, vector<2x384xf32> -> vector<2x384xf32>
    %438 = vector.extract_strided_slice %435 {offsets = [0, 0], sizes = [2, 128], strides = [1, 1]} : vector<2x384xf32> to vector<2x128xf32>
    %439 = vector.extract_strided_slice %437 {offsets = [0, 0], sizes = [2, 128], strides = [1, 1]} : vector<2x384xf32> to vector<2x128xf32>
    %440 = arith.addf %438, %439 : vector<2x128xf32>
    %441 = arith.negf %440 : vector<2x128xf32>
    %442 = math.exp %441 : vector<2x128xf32>
    %cst_162 = arith.constant 1.000000e+00 : f32
    %443 = vector.broadcast %cst_162 : f32 to vector<2x128xf32>
    %444 = arith.addf %443, %442 : vector<2x128xf32>
    %445 = arith.divf %443, %444 : vector<2x128xf32>
    %446 = vector.extract_strided_slice %435 {offsets = [0, 128], sizes = [2, 128], strides = [1, 1]} : vector<2x384xf32> to vector<2x128xf32>
    %447 = vector.extract_strided_slice %437 {offsets = [0, 128], sizes = [2, 128], strides = [1, 1]} : vector<2x384xf32> to vector<2x128xf32>
    %448 = arith.addf %446, %447 : vector<2x128xf32>
    %449 = arith.negf %448 : vector<2x128xf32>
    %450 = math.exp %449 : vector<2x128xf32>
    %cst_163 = arith.constant 1.000000e+00 : f32
    %451 = vector.broadcast %cst_163 : f32 to vector<2x128xf32>
    %452 = arith.addf %451, %450 : vector<2x128xf32>
    %453 = arith.divf %451, %452 : vector<2x128xf32>
    %454 = vector.extract_strided_slice %435 {offsets = [0, 256], sizes = [2, 128], strides = [1, 1]} : vector<2x384xf32> to vector<2x128xf32>
    %455 = vector.extract_strided_slice %437 {offsets = [0, 256], sizes = [2, 128], strides = [1, 1]} : vector<2x384xf32> to vector<2x128xf32>
    %456 = arith.addf %455, %22 : vector<2x128xf32>
    %457 = arith.mulf %445, %456 : vector<2x128xf32>
    %458 = arith.addf %454, %457 : vector<2x128xf32>
    %459 = math.tanh %458 : vector<2x128xf32>
    %cst_164 = arith.constant 1.000000e+00 : f32
    %460 = vector.broadcast %cst_164 : f32 to vector<2x128xf32>
    %461 = arith.subf %460, %453 : vector<2x128xf32>
    %462 = arith.mulf %461, %459 : vector<2x128xf32>
    %463 = arith.mulf %453, %434 : vector<2x128xf32>
    %464 = arith.addf %462, %463 : vector<2x128xf32>
    %c1_i32_165 = arith.constant 1 : i32
    %465 = arith.subi %c1_i32_165, %arg0 : i32
    %c8_i32_166 = arith.constant 8 : i32
    %466 = arith.muli %465, %c8_i32_166 : i32
    %c3_i32_167 = arith.constant 3 : i32
    %467 = arith.addi %466, %c3_i32_167 : i32
    %c15_i32_168 = arith.constant 15 : i32
    %468 = arith.cmpi slt, %467, %c15_i32_168 : i32
    %469 = arith.extui %468 : i1 to i32
    %470 = arith.sitofp %469 : i32 to f32
    %471 = vector.broadcast %470 : f32 to vector<2x128xf32>
    %472 = arith.mulf %471, %464 : vector<2x128xf32>
    %cst_169 = arith.constant 1.000000e+00 : f32
    %473 = arith.subf %cst_169, %470 : f32
    %474 = vector.broadcast %473 : f32 to vector<2x128xf32>
    %475 = arith.mulf %474, %434 : vector<2x128xf32>
    %476 = arith.addf %472, %475 : vector<2x128xf32>
    %c0_170 = arith.constant 0 : index
    %c0_171 = arith.constant 0 : index
    %477 = vector.load %arg18[%c0_170, %c0_171] : memref<2x128xf32, #tpu.memory_space<vmem>>, vector<2x128xf32>
    tpu.vector_store %arg18[%c0_170, %c0_171], %476 {strides = array<i32>} : memref<2x128xf32, #tpu.memory_space<vmem>>, vector<2x128xf32>,
    %478 = arith.truncf %476 : vector<2x128xf32> to vector<2x128xbf16>
    %c6_172 = arith.constant 6 : index
    %c0_173 = arith.constant 0 : index
    %479 = vector.load %arg12[%c6_172, %c0_173] : memref<16x128xbf16, #tpu.memory_space<vmem>>, vector<2x128xbf16>
    tpu.vector_store %arg12[%c6_172, %c0_173], %478 {strides = array<i32>} : memref<16x128xbf16, #tpu.memory_space<vmem>>, vector<2x128xbf16>,
    %c0_174 = arith.constant 0 : index
    %c0_175 = arith.constant 0 : index
    %480 = vector.load %arg17[%c0_174, %c0_175] : memref<2x128xf32, #tpu.memory_space<vmem>>, vector<2x128xf32>
    %c10_176 = arith.constant 10 : index
    %c0_177 = arith.constant 0 : index
    %481 = vector.load %arg15[%c10_176, %c0_177] : memref<16x384xf32, #tpu.memory_space<vmem>>, vector<2x384xf32>
    %482 = arith.truncf %480 : vector<2x128xf32> to vector<2x128xbf16>
    %cst_178 = arith.constant dense<0.000000e+00> : vector<2x384xf32>
    %483 = tpu.matmul %482, %23, %cst_178 {dimension_numbers = #tpu.dot_dimension_numbers<[1], [0], [0], [1], [0, 0, 1, 1], [], []>} : vector<2x128xbf16>, vector<128x384xbf16>, vector<2x384xf32> -> vector<2x384xf32>
    %484 = vector.extract_strided_slice %481 {offsets = [0, 0], sizes = [2, 128], strides = [1, 1]} : vector<2x384xf32> to vector<2x128xf32>
    %485 = vector.extract_strided_slice %483 {offsets = [0, 0], sizes = [2, 128], strides = [1, 1]} : vector<2x384xf32> to vector<2x128xf32>
    %486 = arith.addf %484, %485 : vector<2x128xf32>
    %487 = arith.negf %486 : vector<2x128xf32>
    %488 = math.exp %487 : vector<2x128xf32>
    %cst_179 = arith.constant 1.000000e+00 : f32
    %489 = vector.broadcast %cst_179 : f32 to vector<2x128xf32>
    %490 = arith.addf %489, %488 : vector<2x128xf32>
    %491 = arith.divf %489, %490 : vector<2x128xf32>
    %492 = vector.extract_strided_slice %481 {offsets = [0, 128], sizes = [2, 128], strides = [1, 1]} : vector<2x384xf32> to vector<2x128xf32>
    %493 = vector.extract_strided_slice %483 {offsets = [0, 128], sizes = [2, 128], strides = [1, 1]} : vector<2x384xf32> to vector<2x128xf32>
    %494 = arith.addf %492, %493 : vector<2x128xf32>
    %495 = arith.negf %494 : vector<2x128xf32>
    %496 = math.exp %495 : vector<2x128xf32>
    %cst_180 = arith.constant 1.000000e+00 : f32
    %497 = vector.broadcast %cst_180 : f32 to vector<2x128xf32>
    %498 = arith.addf %497, %496 : vector<2x128xf32>
    %499 = arith.divf %497, %498 : vector<2x128xf32>
    %500 = vector.extract_strided_slice %481 {offsets = [0, 256], sizes = [2, 128], strides = [1, 1]} : vector<2x384xf32> to vector<2x128xf32>
    %501 = vector.extract_strided_slice %483 {offsets = [0, 256], sizes = [2, 128], strides = [1, 1]} : vector<2x384xf32> to vector<2x128xf32>
    %502 = arith.addf %501, %19 : vector<2x128xf32>
    %503 = arith.mulf %491, %502 : vector<2x128xf32>
    %504 = arith.addf %500, %503 : vector<2x128xf32>
    %505 = math.tanh %504 : vector<2x128xf32>
    %cst_181 = arith.constant 1.000000e+00 : f32
    %506 = vector.broadcast %cst_181 : f32 to vector<2x128xf32>
    %507 = arith.subf %506, %499 : vector<2x128xf32>
    %508 = arith.mulf %507, %505 : vector<2x128xf32>
    %509 = arith.mulf %499, %480 : vector<2x128xf32>
    %510 = arith.addf %508, %509 : vector<2x128xf32>
    %c8_i32_182 = arith.constant 8 : i32
    %511 = arith.muli %arg0, %c8_i32_182 : i32
    %c5_i32_183 = arith.constant 5 : i32
    %512 = arith.addi %511, %c5_i32_183 : i32
    %c15_i32_184 = arith.constant 15 : i32
    %513 = arith.cmpi slt, %512, %c15_i32_184 : i32
    %514 = arith.extui %513 : i1 to i32
    %515 = arith.sitofp %514 : i32 to f32
    %516 = vector.broadcast %515 : f32 to vector<2x128xf32>
    %517 = arith.mulf %516, %510 : vector<2x128xf32>
    %cst_185 = arith.constant 1.000000e+00 : f32
    %518 = arith.subf %cst_185, %515 : f32
    %519 = vector.broadcast %518 : f32 to vector<2x128xf32>
    %520 = arith.mulf %519, %480 : vector<2x128xf32>
    %521 = arith.addf %517, %520 : vector<2x128xf32>
    %c0_186 = arith.constant 0 : index
    %c0_187 = arith.constant 0 : index
    %522 = vector.load %arg17[%c0_186, %c0_187] : memref<2x128xf32, #tpu.memory_space<vmem>>, vector<2x128xf32>
    tpu.vector_store %arg17[%c0_186, %c0_187], %521 {strides = array<i32>} : memref<2x128xf32, #tpu.memory_space<vmem>>, vector<2x128xf32>,
    %523 = arith.truncf %521 : vector<2x128xf32> to vector<2x128xbf16>
    %c10_188 = arith.constant 10 : index
    %c0_189 = arith.constant 0 : index
    %524 = vector.load %arg11[%c10_188, %c0_189] : memref<16x128xbf16, #tpu.memory_space<vmem>>, vector<2x128xbf16>
    tpu.vector_store %arg11[%c10_188, %c0_189], %523 {strides = array<i32>} : memref<16x128xbf16, #tpu.memory_space<vmem>>, vector<2x128xbf16>,
    %c0_190 = arith.constant 0 : index
    %c0_191 = arith.constant 0 : index
    %525 = vector.load %arg18[%c0_190, %c0_191] : memref<2x128xf32, #tpu.memory_space<vmem>>, vector<2x128xf32>
    %c4_192 = arith.constant 4 : index
    %c0_193 = arith.constant 0 : index
    %526 = vector.load %arg16[%c4_192, %c0_193] : memref<16x384xf32, #tpu.memory_space<vmem>>, vector<2x384xf32>
    %527 = arith.truncf %525 : vector<2x128xf32> to vector<2x128xbf16>
    %cst_194 = arith.constant dense<0.000000e+00> : vector<2x384xf32>
    %528 = tpu.matmul %527, %24, %cst_194 {dimension_numbers = #tpu.dot_dimension_numbers<[1], [0], [0], [1], [0, 0, 1, 1], [], []>} : vector<2x128xbf16>, vector<128x384xbf16>, vector<2x384xf32> -> vector<2x384xf32>
    %529 = vector.extract_strided_slice %526 {offsets = [0, 0], sizes = [2, 128], strides = [1, 1]} : vector<2x384xf32> to vector<2x128xf32>
    %530 = vector.extract_strided_slice %528 {offsets = [0, 0], sizes = [2, 128], strides = [1, 1]} : vector<2x384xf32> to vector<2x128xf32>
    %531 = arith.addf %529, %530 : vector<2x128xf32>
    %532 = arith.negf %531 : vector<2x128xf32>
    %533 = math.exp %532 : vector<2x128xf32>
    %cst_195 = arith.constant 1.000000e+00 : f32
    %534 = vector.broadcast %cst_195 : f32 to vector<2x128xf32>
    %535 = arith.addf %534, %533 : vector<2x128xf32>
    %536 = arith.divf %534, %535 : vector<2x128xf32>
    %537 = vector.extract_strided_slice %526 {offsets = [0, 128], sizes = [2, 128], strides = [1, 1]} : vector<2x384xf32> to vector<2x128xf32>
    %538 = vector.extract_strided_slice %528 {offsets = [0, 128], sizes = [2, 128], strides = [1, 1]} : vector<2x384xf32> to vector<2x128xf32>
    %539 = arith.addf %537, %538 : vector<2x128xf32>
    %540 = arith.negf %539 : vector<2x128xf32>
    %541 = math.exp %540 : vector<2x128xf32>
    %cst_196 = arith.constant 1.000000e+00 : f32
    %542 = vector.broadcast %cst_196 : f32 to vector<2x128xf32>
    %543 = arith.addf %542, %541 : vector<2x128xf32>
    %544 = arith.divf %542, %543 : vector<2x128xf32>
    %545 = vector.extract_strided_slice %526 {offsets = [0, 256], sizes = [2, 128], strides = [1, 1]} : vector<2x384xf32> to vector<2x128xf32>
    %546 = vector.extract_strided_slice %528 {offsets = [0, 256], sizes = [2, 128], strides = [1, 1]} : vector<2x384xf32> to vector<2x128xf32>
    %547 = arith.addf %546, %22 : vector<2x128xf32>
    %548 = arith.mulf %536, %547 : vector<2x128xf32>
    %549 = arith.addf %545, %548 : vector<2x128xf32>
    %550 = math.tanh %549 : vector<2x128xf32>
    %cst_197 = arith.constant 1.000000e+00 : f32
    %551 = vector.broadcast %cst_197 : f32 to vector<2x128xf32>
    %552 = arith.subf %551, %544 : vector<2x128xf32>
    %553 = arith.mulf %552, %550 : vector<2x128xf32>
    %554 = arith.mulf %544, %525 : vector<2x128xf32>
    %555 = arith.addf %553, %554 : vector<2x128xf32>
    %c1_i32_198 = arith.constant 1 : i32
    %556 = arith.subi %c1_i32_198, %arg0 : i32
    %c8_i32_199 = arith.constant 8 : i32
    %557 = arith.muli %556, %c8_i32_199 : i32
    %c2_i32_200 = arith.constant 2 : i32
    %558 = arith.addi %557, %c2_i32_200 : i32
    %c15_i32_201 = arith.constant 15 : i32
    %559 = arith.cmpi slt, %558, %c15_i32_201 : i32
    %560 = arith.extui %559 : i1 to i32
    %561 = arith.sitofp %560 : i32 to f32
    %562 = vector.broadcast %561 : f32 to vector<2x128xf32>
    %563 = arith.mulf %562, %555 : vector<2x128xf32>
    %cst_202 = arith.constant 1.000000e+00 : f32
    %564 = arith.subf %cst_202, %561 : f32
    %565 = vector.broadcast %564 : f32 to vector<2x128xf32>
    %566 = arith.mulf %565, %525 : vector<2x128xf32>
    %567 = arith.addf %563, %566 : vector<2x128xf32>
    %c0_203 = arith.constant 0 : index
    %c0_204 = arith.constant 0 : index
    %568 = vector.load %arg18[%c0_203, %c0_204] : memref<2x128xf32, #tpu.memory_space<vmem>>, vector<2x128xf32>
    tpu.vector_store %arg18[%c0_203, %c0_204], %567 {strides = array<i32>} : memref<2x128xf32, #tpu.memory_space<vmem>>, vector<2x128xf32>,
    %569 = arith.truncf %567 : vector<2x128xf32> to vector<2x128xbf16>
    %c4_205 = arith.constant 4 : index
    %c0_206 = arith.constant 0 : index
    %570 = vector.load %arg12[%c4_205, %c0_206] : memref<16x128xbf16, #tpu.memory_space<vmem>>, vector<2x128xbf16>
    tpu.vector_store %arg12[%c4_205, %c0_206], %569 {strides = array<i32>} : memref<16x128xbf16, #tpu.memory_space<vmem>>, vector<2x128xbf16>,
    %c0_207 = arith.constant 0 : index
    %c0_208 = arith.constant 0 : index
    %571 = vector.load %arg17[%c0_207, %c0_208] : memref<2x128xf32, #tpu.memory_space<vmem>>, vector<2x128xf32>
    %c12_209 = arith.constant 12 : index
    %c0_210 = arith.constant 0 : index
    %572 = vector.load %arg15[%c12_209, %c0_210] : memref<16x384xf32, #tpu.memory_space<vmem>>, vector<2x384xf32>
    %573 = arith.truncf %571 : vector<2x128xf32> to vector<2x128xbf16>
    %cst_211 = arith.constant dense<0.000000e+00> : vector<2x384xf32>
    %574 = tpu.matmul %573, %23, %cst_211 {dimension_numbers = #tpu.dot_dimension_numbers<[1], [0], [0], [1], [0, 0, 1, 1], [], []>} : vector<2x128xbf16>, vector<128x384xbf16>, vector<2x384xf32> -> vector<2x384xf32>
    %575 = vector.extract_strided_slice %572 {offsets = [0, 0], sizes = [2, 128], strides = [1, 1]} : vector<2x384xf32> to vector<2x128xf32>
    %576 = vector.extract_strided_slice %574 {offsets = [0, 0], sizes = [2, 128], strides = [1, 1]} : vector<2x384xf32> to vector<2x128xf32>
    %577 = arith.addf %575, %576 : vector<2x128xf32>
    %578 = arith.negf %577 : vector<2x128xf32>
    %579 = math.exp %578 : vector<2x128xf32>
    %cst_212 = arith.constant 1.000000e+00 : f32
    %580 = vector.broadcast %cst_212 : f32 to vector<2x128xf32>
    %581 = arith.addf %580, %579 : vector<2x128xf32>
    %582 = arith.divf %580, %581 : vector<2x128xf32>
    %583 = vector.extract_strided_slice %572 {offsets = [0, 128], sizes = [2, 128], strides = [1, 1]} : vector<2x384xf32> to vector<2x128xf32>
    %584 = vector.extract_strided_slice %574 {offsets = [0, 128], sizes = [2, 128], strides = [1, 1]} : vector<2x384xf32> to vector<2x128xf32>
    %585 = arith.addf %583, %584 : vector<2x128xf32>
    %586 = arith.negf %585 : vector<2x128xf32>
    %587 = math.exp %586 : vector<2x128xf32>
    %cst_213 = arith.constant 1.000000e+00 : f32
    %588 = vector.broadcast %cst_213 : f32 to vector<2x128xf32>
    %589 = arith.addf %588, %587 : vector<2x128xf32>
    %590 = arith.divf %588, %589 : vector<2x128xf32>
    %591 = vector.extract_strided_slice %572 {offsets = [0, 256], sizes = [2, 128], strides = [1, 1]} : vector<2x384xf32> to vector<2x128xf32>
    %592 = vector.extract_strided_slice %574 {offsets = [0, 256], sizes = [2, 128], strides = [1, 1]} : vector<2x384xf32> to vector<2x128xf32>
    %593 = arith.addf %592, %19 : vector<2x128xf32>
    %594 = arith.mulf %582, %593 : vector<2x128xf32>
    %595 = arith.addf %591, %594 : vector<2x128xf32>
    %596 = math.tanh %595 : vector<2x128xf32>
    %cst_214 = arith.constant 1.000000e+00 : f32
    %597 = vector.broadcast %cst_214 : f32 to vector<2x128xf32>
    %598 = arith.subf %597, %590 : vector<2x128xf32>
    %599 = arith.mulf %598, %596 : vector<2x128xf32>
    %600 = arith.mulf %590, %571 : vector<2x128xf32>
    %601 = arith.addf %599, %600 : vector<2x128xf32>
    %c8_i32_215 = arith.constant 8 : i32
    %602 = arith.muli %arg0, %c8_i32_215 : i32
    %c6_i32_216 = arith.constant 6 : i32
    %603 = arith.addi %602, %c6_i32_216 : i32
    %c15_i32_217 = arith.constant 15 : i32
    %604 = arith.cmpi slt, %603, %c15_i32_217 : i32
    %605 = arith.extui %604 : i1 to i32
    %606 = arith.sitofp %605 : i32 to f32
    %607 = vector.broadcast %606 : f32 to vector<2x128xf32>
    %608 = arith.mulf %607, %601 : vector<2x128xf32>
    %cst_218 = arith.constant 1.000000e+00 : f32
    %609 = arith.subf %cst_218, %606 : f32
    %610 = vector.broadcast %609 : f32 to vector<2x128xf32>
    %611 = arith.mulf %610, %571 : vector<2x128xf32>
    %612 = arith.addf %608, %611 : vector<2x128xf32>
    %c0_219 = arith.constant 0 : index
    %c0_220 = arith.constant 0 : index
    %613 = vector.load %arg17[%c0_219, %c0_220] : memref<2x128xf32, #tpu.memory_space<vmem>>, vector<2x128xf32>
    tpu.vector_store %arg17[%c0_219, %c0_220], %612 {strides = array<i32>} : memref<2x128xf32, #tpu.memory_space<vmem>>, vector<2x128xf32>,
    %614 = arith.truncf %612 : vector<2x128xf32> to vector<2x128xbf16>
    %c12_221 = arith.constant 12 : index
    %c0_222 = arith.constant 0 : index
    %615 = vector.load %arg11[%c12_221, %c0_222] : memref<16x128xbf16, #tpu.memory_space<vmem>>, vector<2x128xbf16>
    tpu.vector_store %arg11[%c12_221, %c0_222], %614 {strides = array<i32>} : memref<16x128xbf16, #tpu.memory_space<vmem>>, vector<2x128xbf16>,
    %c0_223 = arith.constant 0 : index
    %c0_224 = arith.constant 0 : index
    %616 = vector.load %arg18[%c0_223, %c0_224] : memref<2x128xf32, #tpu.memory_space<vmem>>, vector<2x128xf32>
    %c2_225 = arith.constant 2 : index
    %c0_226 = arith.constant 0 : index
    %617 = vector.load %arg16[%c2_225, %c0_226] : memref<16x384xf32, #tpu.memory_space<vmem>>, vector<2x384xf32>
    %618 = arith.truncf %616 : vector<2x128xf32> to vector<2x128xbf16>
    %cst_227 = arith.constant dense<0.000000e+00> : vector<2x384xf32>
    %619 = tpu.matmul %618, %24, %cst_227 {dimension_numbers = #tpu.dot_dimension_numbers<[1], [0], [0], [1], [0, 0, 1, 1], [], []>} : vector<2x128xbf16>, vector<128x384xbf16>, vector<2x384xf32> -> vector<2x384xf32>
    %620 = vector.extract_strided_slice %617 {offsets = [0, 0], sizes = [2, 128], strides = [1, 1]} : vector<2x384xf32> to vector<2x128xf32>
    %621 = vector.extract_strided_slice %619 {offsets = [0, 0], sizes = [2, 128], strides = [1, 1]} : vector<2x384xf32> to vector<2x128xf32>
    %622 = arith.addf %620, %621 : vector<2x128xf32>
    %623 = arith.negf %622 : vector<2x128xf32>
    %624 = math.exp %623 : vector<2x128xf32>
    %cst_228 = arith.constant 1.000000e+00 : f32
    %625 = vector.broadcast %cst_228 : f32 to vector<2x128xf32>
    %626 = arith.addf %625, %624 : vector<2x128xf32>
    %627 = arith.divf %625, %626 : vector<2x128xf32>
    %628 = vector.extract_strided_slice %617 {offsets = [0, 128], sizes = [2, 128], strides = [1, 1]} : vector<2x384xf32> to vector<2x128xf32>
    %629 = vector.extract_strided_slice %619 {offsets = [0, 128], sizes = [2, 128], strides = [1, 1]} : vector<2x384xf32> to vector<2x128xf32>
    %630 = arith.addf %628, %629 : vector<2x128xf32>
    %631 = arith.negf %630 : vector<2x128xf32>
    %632 = math.exp %631 : vector<2x128xf32>
    %cst_229 = arith.constant 1.000000e+00 : f32
    %633 = vector.broadcast %cst_229 : f32 to vector<2x128xf32>
    %634 = arith.addf %633, %632 : vector<2x128xf32>
    %635 = arith.divf %633, %634 : vector<2x128xf32>
    %636 = vector.extract_strided_slice %617 {offsets = [0, 256], sizes = [2, 128], strides = [1, 1]} : vector<2x384xf32> to vector<2x128xf32>
    %637 = vector.extract_strided_slice %619 {offsets = [0, 256], sizes = [2, 128], strides = [1, 1]} : vector<2x384xf32> to vector<2x128xf32>
    %638 = arith.addf %637, %22 : vector<2x128xf32>
    %639 = arith.mulf %627, %638 : vector<2x128xf32>
    %640 = arith.addf %636, %639 : vector<2x128xf32>
    %641 = math.tanh %640 : vector<2x128xf32>
    %cst_230 = arith.constant 1.000000e+00 : f32
    %642 = vector.broadcast %cst_230 : f32 to vector<2x128xf32>
    %643 = arith.subf %642, %635 : vector<2x128xf32>
    %644 = arith.mulf %643, %641 : vector<2x128xf32>
    %645 = arith.mulf %635, %616 : vector<2x128xf32>
    %646 = arith.addf %644, %645 : vector<2x128xf32>
    %c1_i32_231 = arith.constant 1 : i32
    %647 = arith.subi %c1_i32_231, %arg0 : i32
    %c8_i32_232 = arith.constant 8 : i32
    %648 = arith.muli %647, %c8_i32_232 : i32
    %c1_i32_233 = arith.constant 1 : i32
    %649 = arith.addi %648, %c1_i32_233 : i32
    %c15_i32_234 = arith.constant 15 : i32
    %650 = arith.cmpi slt, %649, %c15_i32_234 : i32
    %651 = arith.extui %650 : i1 to i32
    %652 = arith.sitofp %651 : i32 to f32
    %653 = vector.broadcast %652 : f32 to vector<2x128xf32>
    %654 = arith.mulf %653, %646 : vector<2x128xf32>
    %cst_235 = arith.constant 1.000000e+00 : f32
    %655 = arith.subf %cst_235, %652 : f32
    %656 = vector.broadcast %655 : f32 to vector<2x128xf32>
    %657 = arith.mulf %656, %616 : vector<2x128xf32>
    %658 = arith.addf %654, %657 : vector<2x128xf32>
    %c0_236 = arith.constant 0 : index
    %c0_237 = arith.constant 0 : index
    %659 = vector.load %arg18[%c0_236, %c0_237] : memref<2x128xf32, #tpu.memory_space<vmem>>, vector<2x128xf32>
    tpu.vector_store %arg18[%c0_236, %c0_237], %658 {strides = array<i32>} : memref<2x128xf32, #tpu.memory_space<vmem>>, vector<2x128xf32>,
    %660 = arith.truncf %658 : vector<2x128xf32> to vector<2x128xbf16>
    %c2_238 = arith.constant 2 : index
    %c0_239 = arith.constant 0 : index
    %661 = vector.load %arg12[%c2_238, %c0_239] : memref<16x128xbf16, #tpu.memory_space<vmem>>, vector<2x128xbf16>
    tpu.vector_store %arg12[%c2_238, %c0_239], %660 {strides = array<i32>} : memref<16x128xbf16, #tpu.memory_space<vmem>>, vector<2x128xbf16>,
    %c0_240 = arith.constant 0 : index
    %c0_241 = arith.constant 0 : index
    %662 = vector.load %arg17[%c0_240, %c0_241] : memref<2x128xf32, #tpu.memory_space<vmem>>, vector<2x128xf32>
    %c14_242 = arith.constant 14 : index
    %c0_243 = arith.constant 0 : index
    %663 = vector.load %arg15[%c14_242, %c0_243] : memref<16x384xf32, #tpu.memory_space<vmem>>, vector<2x384xf32>
    %664 = arith.truncf %662 : vector<2x128xf32> to vector<2x128xbf16>
    %cst_244 = arith.constant dense<0.000000e+00> : vector<2x384xf32>
    %665 = tpu.matmul %664, %23, %cst_244 {dimension_numbers = #tpu.dot_dimension_numbers<[1], [0], [0], [1], [0, 0, 1, 1], [], []>} : vector<2x128xbf16>, vector<128x384xbf16>, vector<2x384xf32> -> vector<2x384xf32>
    %666 = vector.extract_strided_slice %663 {offsets = [0, 0], sizes = [2, 128], strides = [1, 1]} : vector<2x384xf32> to vector<2x128xf32>
    %667 = vector.extract_strided_slice %665 {offsets = [0, 0], sizes = [2, 128], strides = [1, 1]} : vector<2x384xf32> to vector<2x128xf32>
    %668 = arith.addf %666, %667 : vector<2x128xf32>
    %669 = arith.negf %668 : vector<2x128xf32>
    %670 = math.exp %669 : vector<2x128xf32>
    %cst_245 = arith.constant 1.000000e+00 : f32
    %671 = vector.broadcast %cst_245 : f32 to vector<2x128xf32>
    %672 = arith.addf %671, %670 : vector<2x128xf32>
    %673 = arith.divf %671, %672 : vector<2x128xf32>
    %674 = vector.extract_strided_slice %663 {offsets = [0, 128], sizes = [2, 128], strides = [1, 1]} : vector<2x384xf32> to vector<2x128xf32>
    %675 = vector.extract_strided_slice %665 {offsets = [0, 128], sizes = [2, 128], strides = [1, 1]} : vector<2x384xf32> to vector<2x128xf32>
    %676 = arith.addf %674, %675 : vector<2x128xf32>
    %677 = arith.negf %676 : vector<2x128xf32>
    %678 = math.exp %677 : vector<2x128xf32>
    %cst_246 = arith.constant 1.000000e+00 : f32
    %679 = vector.broadcast %cst_246 : f32 to vector<2x128xf32>
    %680 = arith.addf %679, %678 : vector<2x128xf32>
    %681 = arith.divf %679, %680 : vector<2x128xf32>
    %682 = vector.extract_strided_slice %663 {offsets = [0, 256], sizes = [2, 128], strides = [1, 1]} : vector<2x384xf32> to vector<2x128xf32>
    %683 = vector.extract_strided_slice %665 {offsets = [0, 256], sizes = [2, 128], strides = [1, 1]} : vector<2x384xf32> to vector<2x128xf32>
    %684 = arith.addf %683, %19 : vector<2x128xf32>
    %685 = arith.mulf %673, %684 : vector<2x128xf32>
    %686 = arith.addf %682, %685 : vector<2x128xf32>
    %687 = math.tanh %686 : vector<2x128xf32>
    %cst_247 = arith.constant 1.000000e+00 : f32
    %688 = vector.broadcast %cst_247 : f32 to vector<2x128xf32>
    %689 = arith.subf %688, %681 : vector<2x128xf32>
    %690 = arith.mulf %689, %687 : vector<2x128xf32>
    %691 = arith.mulf %681, %662 : vector<2x128xf32>
    %692 = arith.addf %690, %691 : vector<2x128xf32>
    %c8_i32_248 = arith.constant 8 : i32
    %693 = arith.muli %arg0, %c8_i32_248 : i32
    %c7_i32_249 = arith.constant 7 : i32
    %694 = arith.addi %693, %c7_i32_249 : i32
    %c15_i32_250 = arith.constant 15 : i32
    %695 = arith.cmpi slt, %694, %c15_i32_250 : i32
    %696 = arith.extui %695 : i1 to i32
    %697 = arith.sitofp %696 : i32 to f32
    %698 = vector.broadcast %697 : f32 to vector<2x128xf32>
    %699 = arith.mulf %698, %692 : vector<2x128xf32>
    %cst_251 = arith.constant 1.000000e+00 : f32
    %700 = arith.subf %cst_251, %697 : f32
    %701 = vector.broadcast %700 : f32 to vector<2x128xf32>
    %702 = arith.mulf %701, %662 : vector<2x128xf32>
    %703 = arith.addf %699, %702 : vector<2x128xf32>
    %c0_252 = arith.constant 0 : index
    %c0_253 = arith.constant 0 : index
    %704 = vector.load %arg17[%c0_252, %c0_253] : memref<2x128xf32, #tpu.memory_space<vmem>>, vector<2x128xf32>
    tpu.vector_store %arg17[%c0_252, %c0_253], %703 {strides = array<i32>} : memref<2x128xf32, #tpu.memory_space<vmem>>, vector<2x128xf32>,
    %705 = arith.truncf %703 : vector<2x128xf32> to vector<2x128xbf16>
    %c14_254 = arith.constant 14 : index
    %c0_255 = arith.constant 0 : index
    %706 = vector.load %arg11[%c14_254, %c0_255] : memref<16x128xbf16, #tpu.memory_space<vmem>>, vector<2x128xbf16>
    tpu.vector_store %arg11[%c14_254, %c0_255], %705 {strides = array<i32>} : memref<16x128xbf16, #tpu.memory_space<vmem>>, vector<2x128xbf16>,
    %c0_256 = arith.constant 0 : index
    %c0_257 = arith.constant 0 : index
    %707 = vector.load %arg18[%c0_256, %c0_257] : memref<2x128xf32, #tpu.memory_space<vmem>>, vector<2x128xf32>
    %c0_258 = arith.constant 0 : index
    %c0_259 = arith.constant 0 : index
    %708 = vector.load %arg16[%c0_258, %c0_259] : memref<16x384xf32, #tpu.memory_space<vmem>>, vector<2x384xf32>
    %709 = arith.truncf %707 : vector<2x128xf32> to vector<2x128xbf16>
    %cst_260 = arith.constant dense<0.000000e+00> : vector<2x384xf32>
    %710 = tpu.matmul %709, %24, %cst_260 {dimension_numbers = #tpu.dot_dimension_numbers<[1], [0], [0], [1], [0, 0, 1, 1], [], []>} : vector<2x128xbf16>, vector<128x384xbf16>, vector<2x384xf32> -> vector<2x384xf32>
    %711 = vector.extract_strided_slice %708 {offsets = [0, 0], sizes = [2, 128], strides = [1, 1]} : vector<2x384xf32> to vector<2x128xf32>
    %712 = vector.extract_strided_slice %710 {offsets = [0, 0], sizes = [2, 128], strides = [1, 1]} : vector<2x384xf32> to vector<2x128xf32>
    %713 = arith.addf %711, %712 : vector<2x128xf32>
    %714 = arith.negf %713 : vector<2x128xf32>
    %715 = math.exp %714 : vector<2x128xf32>
    %cst_261 = arith.constant 1.000000e+00 : f32
    %716 = vector.broadcast %cst_261 : f32 to vector<2x128xf32>
    %717 = arith.addf %716, %715 : vector<2x128xf32>
    %718 = arith.divf %716, %717 : vector<2x128xf32>
    %719 = vector.extract_strided_slice %708 {offsets = [0, 128], sizes = [2, 128], strides = [1, 1]} : vector<2x384xf32> to vector<2x128xf32>
    %720 = vector.extract_strided_slice %710 {offsets = [0, 128], sizes = [2, 128], strides = [1, 1]} : vector<2x384xf32> to vector<2x128xf32>
    %721 = arith.addf %719, %720 : vector<2x128xf32>
    %722 = arith.negf %721 : vector<2x128xf32>
    %723 = math.exp %722 : vector<2x128xf32>
    %cst_262 = arith.constant 1.000000e+00 : f32
    %724 = vector.broadcast %cst_262 : f32 to vector<2x128xf32>
    %725 = arith.addf %724, %723 : vector<2x128xf32>
    %726 = arith.divf %724, %725 : vector<2x128xf32>
    %727 = vector.extract_strided_slice %708 {offsets = [0, 256], sizes = [2, 128], strides = [1, 1]} : vector<2x384xf32> to vector<2x128xf32>
    %728 = vector.extract_strided_slice %710 {offsets = [0, 256], sizes = [2, 128], strides = [1, 1]} : vector<2x384xf32> to vector<2x128xf32>
    %729 = arith.addf %728, %22 : vector<2x128xf32>
    %730 = arith.mulf %718, %729 : vector<2x128xf32>
    %731 = arith.addf %727, %730 : vector<2x128xf32>
    %732 = math.tanh %731 : vector<2x128xf32>
    %cst_263 = arith.constant 1.000000e+00 : f32
    %733 = vector.broadcast %cst_263 : f32 to vector<2x128xf32>
    %734 = arith.subf %733, %726 : vector<2x128xf32>
    %735 = arith.mulf %734, %732 : vector<2x128xf32>
    %736 = arith.mulf %726, %707 : vector<2x128xf32>
    %737 = arith.addf %735, %736 : vector<2x128xf32>
    %c1_i32_264 = arith.constant 1 : i32
    %738 = arith.subi %c1_i32_264, %arg0 : i32
    %c8_i32_265 = arith.constant 8 : i32
    %739 = arith.muli %738, %c8_i32_265 : i32
    %c0_i32_266 = arith.constant 0 : i32
    %740 = arith.addi %739, %c0_i32_266 : i32
    %c15_i32_267 = arith.constant 15 : i32
    %741 = arith.cmpi slt, %740, %c15_i32_267 : i32
    %742 = arith.extui %741 : i1 to i32
    %743 = arith.sitofp %742 : i32 to f32
    %744 = vector.broadcast %743 : f32 to vector<2x128xf32>
    %745 = arith.mulf %744, %737 : vector<2x128xf32>
    %cst_268 = arith.constant 1.000000e+00 : f32
    %746 = arith.subf %cst_268, %743 : f32
    %747 = vector.broadcast %746 : f32 to vector<2x128xf32>
    %748 = arith.mulf %747, %707 : vector<2x128xf32>
    %749 = arith.addf %745, %748 : vector<2x128xf32>
    %c0_269 = arith.constant 0 : index
    %c0_270 = arith.constant 0 : index
    %750 = vector.load %arg18[%c0_269, %c0_270] : memref<2x128xf32, #tpu.memory_space<vmem>>, vector<2x128xf32>
    tpu.vector_store %arg18[%c0_269, %c0_270], %749 {strides = array<i32>} : memref<2x128xf32, #tpu.memory_space<vmem>>, vector<2x128xf32>,
    %751 = arith.truncf %749 : vector<2x128xf32> to vector<2x128xbf16>
    %c0_271 = arith.constant 0 : index
    %c0_272 = arith.constant 0 : index
    %752 = vector.load %arg12[%c0_271, %c0_272] : memref<16x128xbf16, #tpu.memory_space<vmem>>, vector<2x128xbf16>
    tpu.vector_store %arg12[%c0_271, %c0_272], %751 {strides = array<i32>} : memref<16x128xbf16, #tpu.memory_space<vmem>>, vector<2x128xbf16>,
    %c1_i32_273 = arith.constant 1 : i32
    %753 = arith.cmpi eq, %arg0, %c1_i32_273 : i32
    %754 = arith.extui %753 : i1 to i32
    %c0_i32_274 = arith.constant 0 : i32
    %755 = arith.cmpi ne, %754, %c0_i32_274 : i32
    scf.if %755 {
      %c0_275 = arith.constant 0 : index
      %c0_276 = arith.constant 0 : index
      %756 = vector.load %arg17[%c0_275, %c0_276] : memref<2x128xf32, #tpu.memory_space<vmem>>, vector<2x128xf32>
      %c0_277 = arith.constant 0 : index
      %c0_278 = arith.constant 0 : index
      %757 = vector.load %arg13[%c0_277, %c0_278] : memref<2x128xf32, #tpu.memory_space<vmem>>, vector<2x128xf32>
      tpu.vector_store %arg13[%c0_277, %c0_278], %756 {strides = array<i32>} : memref<2x128xf32, #tpu.memory_space<vmem>>, vector<2x128xf32>,
      %c0_279 = arith.constant 0 : index
      %c0_280 = arith.constant 0 : index
      %758 = vector.load %arg18[%c0_279, %c0_280] : memref<2x128xf32, #tpu.memory_space<vmem>>, vector<2x128xf32>
      %c0_281 = arith.constant 0 : index
      %c0_282 = arith.constant 0 : index
      %759 = vector.load %arg14[%c0_281, %c0_282] : memref<2x128xf32, #tpu.memory_space<vmem>>, vector<2x128xf32>
      tpu.vector_store %arg14[%c0_281, %c0_282], %758 {strides = array<i32>} : memref<2x128xf32, #tpu.memory_space<vmem>>, vector<2x128xf32>,
    } else {
    }
    return
  }
  func.func @transform_0(%arg0: i32) -> (i32, i32) {
    %c0_i32 = arith.constant 0 : i32
    %c0_i32_0 = arith.constant 0 : i32
    return %arg0, %c0_i32 : i32, i32
  }
  func.func @transform_1(%arg0: i32) -> (i32, i32) {
    %c1_i32 = arith.constant 1 : i32
    %0 = arith.subi %c1_i32, %arg0 : i32
    %c0_i32 = arith.constant 0 : i32
    %c0_i32_0 = arith.constant 0 : i32
    return %0, %c0_i32 : i32, i32
  }
  func.func @transform_2(%arg0: i32) -> (i32, i32) {
    %c0_i32 = arith.constant 0 : i32
    %c0_i32_0 = arith.constant 0 : i32
    %c0_i32_1 = arith.constant 0 : i32
    return %c0_i32, %c0_i32_0 : i32, i32
  }
  func.func @transform_3(%arg0: i32) -> (i32, i32) {
    %c0_i32 = arith.constant 0 : i32
    %c0_i32_0 = arith.constant 0 : i32
    %c0_i32_1 = arith.constant 0 : i32
    return %c0_i32, %c0_i32_0 : i32, i32
  }
  func.func @transform_4(%arg0: i32) -> (i32, i32) {
    %c0_i32 = arith.constant 0 : i32
    %c0_i32_0 = arith.constant 0 : i32
    %c0_i32_1 = arith.constant 0 : i32
    return %c0_i32, %c0_i32_0 : i32, i32
  }
  func.func @transform_5(%arg0: i32) -> (i32, i32) {
    %c0_i32 = arith.constant 0 : i32
    %c0_i32_0 = arith.constant 0 : i32
    %c0_i32_1 = arith.constant 0 : i32
    return %c0_i32, %c0_i32_0 : i32, i32
  }
  func.func @transform_6(%arg0: i32) -> (i32, i32) {
    %c0_i32 = arith.constant 0 : i32
    %c0_i32_0 = arith.constant 0 : i32
    %c0_i32_1 = arith.constant 0 : i32
    return %c0_i32, %c0_i32_0 : i32, i32
  }
  func.func @transform_7(%arg0: i32) -> (i32, i32) {
    %c0_i32 = arith.constant 0 : i32
    %c0_i32_0 = arith.constant 0 : i32
    %c0_i32_1 = arith.constant 0 : i32
    return %c0_i32, %c0_i32_0 : i32, i32
  }
  func.func @transform_8(%arg0: i32) -> (i32, i32) {
    %c0_i32 = arith.constant 0 : i32
    %c0_i32_0 = arith.constant 0 : i32
    %c0_i32_1 = arith.constant 0 : i32
    return %c0_i32, %c0_i32_0 : i32, i32
  }
  func.func @transform_9(%arg0: i32) -> (i32, i32) {
    %c0_i32 = arith.constant 0 : i32
    %c0_i32_0 = arith.constant 0 : i32
    %c0_i32_1 = arith.constant 0 : i32
    return %c0_i32, %c0_i32_0 : i32, i32
  }
  func.func @transform_10(%arg0: i32) -> (i32, i32) {
    %c0_i32 = arith.constant 0 : i32
    %c0_i32_0 = arith.constant 0 : i32
    return %arg0, %c0_i32 : i32, i32
  }
  func.func @transform_11(%arg0: i32) -> (i32, i32) {
    %c1_i32 = arith.constant 1 : i32
    %0 = arith.subi %c1_i32, %arg0 : i32
    %c0_i32 = arith.constant 0 : i32
    %c0_i32_0 = arith.constant 0 : i32
    return %0, %c0_i32 : i32, i32
  }
  func.func @transform_12(%arg0: i32) -> (i32, i32) {
    %c0_i32 = arith.constant 0 : i32
    %c0_i32_0 = arith.constant 0 : i32
    %c0_i32_1 = arith.constant 0 : i32
    return %c0_i32, %c0_i32_0 : i32, i32
  }
  func.func @transform_13(%arg0: i32) -> (i32, i32) {
    %c0_i32 = arith.constant 0 : i32
    %c0_i32_0 = arith.constant 0 : i32
    %c0_i32_1 = arith.constant 0 : i32
    return %c0_i32, %c0_i32_0 : i32, i32
  }
}

module attributes {stable_mosaic.version = 11 : i64} {
  func.func @kernel(%arg0: i32, %arg1: memref<16x256xbf16, #tpu.memory_space<vmem>>, %arg2: memref<16x256xbf16, #tpu.memory_space<vmem>>, %arg3: memref<256x384xbf16, #tpu.memory_space<vmem>>, %arg4: memref<256x384xbf16, #tpu.memory_space<vmem>>, %arg5: memref<128x384xbf16, #tpu.memory_space<vmem>>, %arg6: memref<128x384xbf16, #tpu.memory_space<vmem>>, %arg7: memref<1x384xf32, #tpu.memory_space<vmem>>, %arg8: memref<1x384xf32, #tpu.memory_space<vmem>>, %arg9: memref<1x128xf32, #tpu.memory_space<vmem>>, %arg10: memref<1x128xf32, #tpu.memory_space<vmem>>, %arg11: memref<16x128xbf16, #tpu.memory_space<vmem>>, %arg12: memref<16x128xbf16, #tpu.memory_space<vmem>>, %arg13: memref<2x128xf32, #tpu.memory_space<vmem>>, %arg14: memref<2x128xf32, #tpu.memory_space<vmem>>, %arg15: memref<16x384xf32, #tpu.memory_space<vmem>>, %arg16: memref<16x384xf32, #tpu.memory_space<vmem>>, %arg17: memref<2x128xf32, #tpu.memory_space<vmem>>, %arg18: memref<2x128xf32, #tpu.memory_space<vmem>>) attributes {dimension_semantics = [#tpu.dimension_semantics<arbitrary>], iteration_bounds = array<i64: 2>, scalar_prefetch = 0 : i64, scratch_operands = 4 : i64, tpu.core_type = #tpu.core_type<tc>, window_params = [{transform_indices = @transform_0, window_bounds = array<i64: 16, 256>}, {transform_indices = @transform_1, window_bounds = array<i64: 16, 256>}, {pipeline_mode = #tpu.pipeline_mode<synchronous>, transform_indices = @transform_2, window_bounds = array<i64: 256, 384>}, {pipeline_mode = #tpu.pipeline_mode<synchronous>, transform_indices = @transform_3, window_bounds = array<i64: 256, 384>}, {pipeline_mode = #tpu.pipeline_mode<synchronous>, transform_indices = @transform_4, window_bounds = array<i64: 128, 384>}, {pipeline_mode = #tpu.pipeline_mode<synchronous>, transform_indices = @transform_5, window_bounds = array<i64: 128, 384>}, {pipeline_mode = #tpu.pipeline_mode<synchronous>, transform_indices = @transform_6, window_bounds = array<i64: 1, 384>}, {pipeline_mode = #tpu.pipeline_mode<synchronous>, transform_indices = @transform_7, window_bounds = array<i64: 1, 384>}, {pipeline_mode = #tpu.pipeline_mode<synchronous>, transform_indices = @transform_8, window_bounds = array<i64: 1, 128>}, {pipeline_mode = #tpu.pipeline_mode<synchronous>, transform_indices = @transform_9, window_bounds = array<i64: 1, 128>}, {transform_indices = @transform_10, window_bounds = array<i64: 16, 128>}, {transform_indices = @transform_11, window_bounds = array<i64: 16, 128>}, {pipeline_mode = #tpu.pipeline_mode<synchronous>, transform_indices = @transform_12, window_bounds = array<i64: 2, 128>}, {pipeline_mode = #tpu.pipeline_mode<synchronous>, transform_indices = @transform_13, window_bounds = array<i64: 2, 128>}]} {
    %c0_i32 = arith.constant 0 : i32
    %0 = arith.cmpi eq, %arg0, %c0_i32 : i32
    %1 = arith.extui %0 : i1 to i32
    %c0_i32_0 = arith.constant 0 : i32
    %2 = arith.cmpi ne, %1, %c0_i32_0 : i32
    scf.if %2 {
      %cst_275 = arith.constant 0.000000e+00 : f32
      %756 = vector.broadcast %cst_275 : f32 to vector<2x128xf32>
      %c0_276 = arith.constant 0 : index
      %c0_277 = arith.constant 0 : index
      %757 = vector.load %arg17[%c0_276, %c0_277] : memref<2x128xf32, #tpu.memory_space<vmem>>, vector<2x128xf32>
      tpu.vector_store %arg17[%c0_276, %c0_277], %756 {strides = array<i32>} : memref<2x128xf32, #tpu.memory_space<vmem>>, vector<2x128xf32>,
      %cst_278 = arith.constant 0.000000e+00 : f32
      %758 = vector.broadcast %cst_278 : f32 to vector<2x128xf32>
      %c0_279 = arith.constant 0 : index
      %c0_280 = arith.constant 0 : index
      %759 = vector.load %arg18[%c0_279, %c0_280] : memref<2x128xf32, #tpu.memory_space<vmem>>, vector<2x128xf32>
      tpu.vector_store %arg18[%c0_279, %c0_280], %758 {strides = array<i32>} : memref<2x128xf32, #tpu.memory_space<vmem>>, vector<2x128xf32>,
    } else {
    }
    %c0 = arith.constant 0 : index
    %c0_1 = arith.constant 0 : index
    %3 = vector.load %arg1[%c0, %c0_1] : memref<16x256xbf16, #tpu.memory_space<vmem>>, vector<16x256xbf16>
    %c0_2 = arith.constant 0 : index
    %c0_3 = arith.constant 0 : index
    %4 = vector.load %arg3[%c0_2, %c0_3] : memref<256x384xbf16, #tpu.memory_space<vmem>>, vector<256x384xbf16>
    %cst = arith.constant dense<0.000000e+00> : vector<16x384xf32>
    %5 = tpu.matmul %3, %4, %cst {dimension_numbers = #tpu.dot_dimension_numbers<[1], [0], [0], [1], [0, 0, 1, 1], [], []>} : vector<16x256xbf16>, vector<256x384xbf16>, vector<16x384xf32> -> vector<16x384xf32>
    %c0_4 = arith.constant 0 : index
    %c0_5 = arith.constant 0 : index
    %6 = vector.load %arg7[%c0_4, %c0_5] : memref<1x384xf32, #tpu.memory_space<vmem>>, vector<1x384xf32>
    %7 = vector.broadcast %6 : vector<1x384xf32> to vector<16x384xf32>
    %8 = arith.addf %5, %7 : vector<16x384xf32>
    %c0_6 = arith.constant 0 : index
    %c0_7 = arith.constant 0 : index
    %9 = vector.load %arg15[%c0_6, %c0_7] : memref<16x384xf32, #tpu.memory_space<vmem>>, vector<16x384xf32>
    tpu.vector_store %arg15[%c0_6, %c0_7], %8 {strides = array<i32>} : memref<16x384xf32, #tpu.memory_space<vmem>>, vector<16x384xf32>,
    %c0_8 = arith.constant 0 : index
    %c0_9 = arith.constant 0 : index
    %10 = vector.load %arg2[%c0_8, %c0_9] : memref<16x256xbf16, #tpu.memory_space<vmem>>, vector<16x256xbf16>
    %c0_10 = arith.constant 0 : index
    %c0_11 = arith.constant 0 : index
    %11 = vector.load %arg4[%c0_10, %c0_11] : memref<256x384xbf16, #tpu.memory_space<vmem>>, vector<256x384xbf16>
    %cst_12 = arith.constant dense<0.000000e+00> : vector<16x384xf32>
    %12 = tpu.matmul %10, %11, %cst_12 {dimension_numbers = #tpu.dot_dimension_numbers<[1], [0], [0], [1], [0, 0, 1, 1], [], []>} : vector<16x256xbf16>, vector<256x384xbf16>, vector<16x384xf32> -> vector<16x384xf32>
    %c0_13 = arith.constant 0 : index
    %c0_14 = arith.constant 0 : index
    %13 = vector.load %arg8[%c0_13, %c0_14] : memref<1x384xf32, #tpu.memory_space<vmem>>, vector<1x384xf32>
    %14 = vector.broadcast %13 : vector<1x384xf32> to vector<16x384xf32>
    %15 = arith.addf %12, %14 : vector<16x384xf32>
    %c0_15 = arith.constant 0 : index
    %c0_16 = arith.constant 0 : index
    %16 = vector.load %arg16[%c0_15, %c0_16] : memref<16x384xf32, #tpu.memory_space<vmem>>, vector<16x384xf32>
    tpu.vector_store %arg16[%c0_15, %c0_16], %15 {strides = array<i32>} : memref<16x384xf32, #tpu.memory_space<vmem>>, vector<16x384xf32>,
    %c0_17 = arith.constant 0 : index
    %c0_18 = arith.constant 0 : index
    %17 = vector.load %arg9[%c0_17, %c0_18] : memref<1x128xf32, #tpu.memory_space<vmem>>, vector<1x128xf32>
    %18 = vector.shape_cast %17 : vector<1x128xf32> to vector<1x128xf32>
    %19 = vector.broadcast %18 : vector<1x128xf32> to vector<2x128xf32>
    %c0_19 = arith.constant 0 : index
    %c0_20 = arith.constant 0 : index
    %20 = vector.load %arg10[%c0_19, %c0_20] : memref<1x128xf32, #tpu.memory_space<vmem>>, vector<1x128xf32>
    %21 = vector.shape_cast %20 : vector<1x128xf32> to vector<1x128xf32>
    %22 = vector.broadcast %21 : vector<1x128xf32> to vector<2x128xf32>
    %c0_21 = arith.constant 0 : index
    %c0_22 = arith.constant 0 : index
    %23 = vector.load %arg5[%c0_21, %c0_22] : memref<128x384xbf16, #tpu.memory_space<vmem>>, vector<128x384xbf16>
    %c0_23 = arith.constant 0 : index
    %c0_24 = arith.constant 0 : index
    %24 = vector.load %arg6[%c0_23, %c0_24] : memref<128x384xbf16, #tpu.memory_space<vmem>>, vector<128x384xbf16>
    %c0_25 = arith.constant 0 : index
    %c0_26 = arith.constant 0 : index
    %25 = vector.load %arg17[%c0_25, %c0_26] : memref<2x128xf32, #tpu.memory_space<vmem>>, vector<2x128xf32>
    %c0_27 = arith.constant 0 : index
    %c0_28 = arith.constant 0 : index
    %26 = vector.load %arg15[%c0_27, %c0_28] : memref<16x384xf32, #tpu.memory_space<vmem>>, vector<2x384xf32>
    %27 = arith.truncf %25 : vector<2x128xf32> to vector<2x128xbf16>
    %cst_29 = arith.constant dense<0.000000e+00> : vector<2x384xf32>
    %28 = tpu.matmul %27, %23, %cst_29 {dimension_numbers = #tpu.dot_dimension_numbers<[1], [0], [0], [1], [0, 0, 1, 1], [], []>} : vector<2x128xbf16>, vector<128x384xbf16>, vector<2x384xf32> -> vector<2x384xf32>
    %29 = vector.extract_strided_slice %26 {offsets = [0, 0], sizes = [2, 128], strides = [1, 1]} : vector<2x384xf32> to vector<2x128xf32>
    %30 = vector.extract_strided_slice %28 {offsets = [0, 0], sizes = [2, 128], strides = [1, 1]} : vector<2x384xf32> to vector<2x128xf32>
    %31 = arith.addf %29, %30 : vector<2x128xf32>
    %32 = arith.negf %31 : vector<2x128xf32>
    %33 = math.exp %32 : vector<2x128xf32>
    %cst_30 = arith.constant 1.000000e+00 : f32
    %34 = vector.broadcast %cst_30 : f32 to vector<2x128xf32>
    %35 = arith.addf %34, %33 : vector<2x128xf32>
    %36 = arith.divf %34, %35 : vector<2x128xf32>
    %37 = vector.extract_strided_slice %26 {offsets = [0, 128], sizes = [2, 128], strides = [1, 1]} : vector<2x384xf32> to vector<2x128xf32>
    %38 = vector.extract_strided_slice %28 {offsets = [0, 128], sizes = [2, 128], strides = [1, 1]} : vector<2x384xf32> to vector<2x128xf32>
    %39 = arith.addf %37, %38 : vector<2x128xf32>
    %40 = arith.negf %39 : vector<2x128xf32>
    %41 = math.exp %40 : vector<2x128xf32>
    %cst_31 = arith.constant 1.000000e+00 : f32
    %42 = vector.broadcast %cst_31 : f32 to vector<2x128xf32>
    %43 = arith.addf %42, %41 : vector<2x128xf32>
    %44 = arith.divf %42, %43 : vector<2x128xf32>
    %45 = vector.extract_strided_slice %26 {offsets = [0, 256], sizes = [2, 128], strides = [1, 1]} : vector<2x384xf32> to vector<2x128xf32>
    %46 = vector.extract_strided_slice %28 {offsets = [0, 256], sizes = [2, 128], strides = [1, 1]} : vector<2x384xf32> to vector<2x128xf32>
    %47 = arith.addf %46, %19 : vector<2x128xf32>
    %48 = arith.mulf %36, %47 : vector<2x128xf32>
    %49 = arith.addf %45, %48 : vector<2x128xf32>
    %50 = math.tanh %49 : vector<2x128xf32>
    %cst_32 = arith.constant 1.000000e+00 : f32
    %51 = vector.broadcast %cst_32 : f32 to vector<2x128xf32>
    %52 = arith.subf %51, %44 : vector<2x128xf32>
    %53 = arith.mulf %52, %50 : vector<2x128xf32>
    %54 = arith.mulf %44, %25 : vector<2x128xf32>
    %55 = arith.addf %53, %54 : vector<2x128xf32>
    %c8_i32 = arith.constant 8 : i32
    %56 = arith.muli %arg0, %c8_i32 : i32
    %c0_i32_33 = arith.constant 0 : i32
    %57 = arith.addi %56, %c0_i32_33 : i32
    %c15_i32 = arith.constant 15 : i32
    %58 = arith.cmpi slt, %57, %c15_i32 : i32
    %59 = arith.extui %58 : i1 to i32
    %60 = arith.sitofp %59 : i32 to f32
    %61 = vector.broadcast %60 : f32 to vector<2x128xf32>
    %62 = arith.mulf %61, %55 : vector<2x128xf32>
    %cst_34 = arith.constant 1.000000e+00 : f32
    %63 = arith.subf %cst_34, %60 : f32
    %64 = vector.broadcast %63 : f32 to vector<2x128xf32>
    %65 = arith.mulf %64, %25 : vector<2x128xf32>
    %66 = arith.addf %62, %65 : vector<2x128xf32>
    %c0_35 = arith.constant 0 : index
    %c0_36 = arith.constant 0 : index
    %67 = vector.load %arg17[%c0_35, %c0_36] : memref<2x128xf32, #tpu.memory_space<vmem>>, vector<2x128xf32>
    tpu.vector_store %arg17[%c0_35, %c0_36], %66 {strides = array<i32>} : memref<2x128xf32, #tpu.memory_space<vmem>>, vector<2x128xf32>,
    %68 = arith.truncf %66 : vector<2x128xf32> to vector<2x128xbf16>
    %c0_37 = arith.constant 0 : index
    %c0_38 = arith.constant 0 : index
    %69 = vector.load %arg11[%c0_37, %c0_38] : memref<16x128xbf16, #tpu.memory_space<vmem>>, vector<2x128xbf16>
    tpu.vector_store %arg11[%c0_37, %c0_38], %68 {strides = array<i32>} : memref<16x128xbf16, #tpu.memory_space<vmem>>, vector<2x128xbf16>,
    %c0_39 = arith.constant 0 : index
    %c0_40 = arith.constant 0 : index
    %70 = vector.load %arg18[%c0_39, %c0_40] : memref<2x128xf32, #tpu.memory_space<vmem>>, vector<2x128xf32>
    %c14 = arith.constant 14 : index
    %c0_41 = arith.constant 0 : index
    %71 = vector.load %arg16[%c14, %c0_41] : memref<16x384xf32, #tpu.memory_space<vmem>>, vector<2x384xf32>
    %72 = arith.truncf %70 : vector<2x128xf32> to vector<2x128xbf16>
    %cst_42 = arith.constant dense<0.000000e+00> : vector<2x384xf32>
    %73 = tpu.matmul %72, %24, %cst_42 {dimension_numbers = #tpu.dot_dimension_numbers<[1], [0], [0], [1], [0, 0, 1, 1], [], []>} : vector<2x128xbf16>, vector<128x384xbf16>, vector<2x384xf32> -> vector<2x384xf32>
    %74 = vector.extract_strided_slice %71 {offsets = [0, 0], sizes = [2, 128], strides = [1, 1]} : vector<2x384xf32> to vector<2x128xf32>
    %75 = vector.extract_strided_slice %73 {offsets = [0, 0], sizes = [2, 128], strides = [1, 1]} : vector<2x384xf32> to vector<2x128xf32>
    %76 = arith.addf %74, %75 : vector<2x128xf32>
    %77 = arith.negf %76 : vector<2x128xf32>
    %78 = math.exp %77 : vector<2x128xf32>
    %cst_43 = arith.constant 1.000000e+00 : f32
    %79 = vector.broadcast %cst_43 : f32 to vector<2x128xf32>
    %80 = arith.addf %79, %78 : vector<2x128xf32>
    %81 = arith.divf %79, %80 : vector<2x128xf32>
    %82 = vector.extract_strided_slice %71 {offsets = [0, 128], sizes = [2, 128], strides = [1, 1]} : vector<2x384xf32> to vector<2x128xf32>
    %83 = vector.extract_strided_slice %73 {offsets = [0, 128], sizes = [2, 128], strides = [1, 1]} : vector<2x384xf32> to vector<2x128xf32>
    %84 = arith.addf %82, %83 : vector<2x128xf32>
    %85 = arith.negf %84 : vector<2x128xf32>
    %86 = math.exp %85 : vector<2x128xf32>
    %cst_44 = arith.constant 1.000000e+00 : f32
    %87 = vector.broadcast %cst_44 : f32 to vector<2x128xf32>
    %88 = arith.addf %87, %86 : vector<2x128xf32>
    %89 = arith.divf %87, %88 : vector<2x128xf32>
    %90 = vector.extract_strided_slice %71 {offsets = [0, 256], sizes = [2, 128], strides = [1, 1]} : vector<2x384xf32> to vector<2x128xf32>
    %91 = vector.extract_strided_slice %73 {offsets = [0, 256], sizes = [2, 128], strides = [1, 1]} : vector<2x384xf32> to vector<2x128xf32>
    %92 = arith.addf %91, %22 : vector<2x128xf32>
    %93 = arith.mulf %81, %92 : vector<2x128xf32>
    %94 = arith.addf %90, %93 : vector<2x128xf32>
    %95 = math.tanh %94 : vector<2x128xf32>
    %cst_45 = arith.constant 1.000000e+00 : f32
    %96 = vector.broadcast %cst_45 : f32 to vector<2x128xf32>
    %97 = arith.subf %96, %89 : vector<2x128xf32>
    %98 = arith.mulf %97, %95 : vector<2x128xf32>
    %99 = arith.mulf %89, %70 : vector<2x128xf32>
    %100 = arith.addf %98, %99 : vector<2x128xf32>
    %c1_i32 = arith.constant 1 : i32
    %101 = arith.subi %c1_i32, %arg0 : i32
    %c8_i32_46 = arith.constant 8 : i32
    %102 = arith.muli %101, %c8_i32_46 : i32
    %c7_i32 = arith.constant 7 : i32
    %103 = arith.addi %102, %c7_i32 : i32
    %c15_i32_47 = arith.constant 15 : i32
    %104 = arith.cmpi slt, %103, %c15_i32_47 : i32
    %105 = arith.extui %104 : i1 to i32
    %106 = arith.sitofp %105 : i32 to f32
    %107 = vector.broadcast %106 : f32 to vector<2x128xf32>
    %108 = arith.mulf %107, %100 : vector<2x128xf32>
    %cst_48 = arith.constant 1.000000e+00 : f32
    %109 = arith.subf %cst_48, %106 : f32
    %110 = vector.broadcast %109 : f32 to vector<2x128xf32>
    %111 = arith.mulf %110, %70 : vector<2x128xf32>
    %112 = arith.addf %108, %111 : vector<2x128xf32>
    %c0_49 = arith.constant 0 : index
    %c0_50 = arith.constant 0 : index
    %113 = vector.load %arg18[%c0_49, %c0_50] : memref<2x128xf32, #tpu.memory_space<vmem>>, vector<2x128xf32>
    tpu.vector_store %arg18[%c0_49, %c0_50], %112 {strides = array<i32>} : memref<2x128xf32, #tpu.memory_space<vmem>>, vector<2x128xf32>,
    %114 = arith.truncf %112 : vector<2x128xf32> to vector<2x128xbf16>
    %c14_51 = arith.constant 14 : index
    %c0_52 = arith.constant 0 : index
    %115 = vector.load %arg12[%c14_51, %c0_52] : memref<16x128xbf16, #tpu.memory_space<vmem>>, vector<2x128xbf16>
    tpu.vector_store %arg12[%c14_51, %c0_52], %114 {strides = array<i32>} : memref<16x128xbf16, #tpu.memory_space<vmem>>, vector<2x128xbf16>,
    %c0_53 = arith.constant 0 : index
    %c0_54 = arith.constant 0 : index
    %116 = vector.load %arg17[%c0_53, %c0_54] : memref<2x128xf32, #tpu.memory_space<vmem>>, vector<2x128xf32>
    %c2 = arith.constant 2 : index
    %c0_55 = arith.constant 0 : index
    %117 = vector.load %arg15[%c2, %c0_55] : memref<16x384xf32, #tpu.memory_space<vmem>>, vector<2x384xf32>
    %118 = arith.truncf %116 : vector<2x128xf32> to vector<2x128xbf16>
    %cst_56 = arith.constant dense<0.000000e+00> : vector<2x384xf32>
    %119 = tpu.matmul %118, %23, %cst_56 {dimension_numbers = #tpu.dot_dimension_numbers<[1], [0], [0], [1], [0, 0, 1, 1], [], []>} : vector<2x128xbf16>, vector<128x384xbf16>, vector<2x384xf32> -> vector<2x384xf32>
    %120 = vector.extract_strided_slice %117 {offsets = [0, 0], sizes = [2, 128], strides = [1, 1]} : vector<2x384xf32> to vector<2x128xf32>
    %121 = vector.extract_strided_slice %119 {offsets = [0, 0], sizes = [2, 128], strides = [1, 1]} : vector<2x384xf32> to vector<2x128xf32>
    %122 = arith.addf %120, %121 : vector<2x128xf32>
    %123 = arith.negf %122 : vector<2x128xf32>
    %124 = math.exp %123 : vector<2x128xf32>
    %cst_57 = arith.constant 1.000000e+00 : f32
    %125 = vector.broadcast %cst_57 : f32 to vector<2x128xf32>
    %126 = arith.addf %125, %124 : vector<2x128xf32>
    %127 = arith.divf %125, %126 : vector<2x128xf32>
    %128 = vector.extract_strided_slice %117 {offsets = [0, 128], sizes = [2, 128], strides = [1, 1]} : vector<2x384xf32> to vector<2x128xf32>
    %129 = vector.extract_strided_slice %119 {offsets = [0, 128], sizes = [2, 128], strides = [1, 1]} : vector<2x384xf32> to vector<2x128xf32>
    %130 = arith.addf %128, %129 : vector<2x128xf32>
    %131 = arith.negf %130 : vector<2x128xf32>
    %132 = math.exp %131 : vector<2x128xf32>
    %cst_58 = arith.constant 1.000000e+00 : f32
    %133 = vector.broadcast %cst_58 : f32 to vector<2x128xf32>
    %134 = arith.addf %133, %132 : vector<2x128xf32>
    %135 = arith.divf %133, %134 : vector<2x128xf32>
    %136 = vector.extract_strided_slice %117 {offsets = [0, 256], sizes = [2, 128], strides = [1, 1]} : vector<2x384xf32> to vector<2x128xf32>
    %137 = vector.extract_strided_slice %119 {offsets = [0, 256], sizes = [2, 128], strides = [1, 1]} : vector<2x384xf32> to vector<2x128xf32>
    %138 = arith.addf %137, %19 : vector<2x128xf32>
    %139 = arith.mulf %127, %138 : vector<2x128xf32>
    %140 = arith.addf %136, %139 : vector<2x128xf32>
    %141 = math.tanh %140 : vector<2x128xf32>
    %cst_59 = arith.constant 1.000000e+00 : f32
    %142 = vector.broadcast %cst_59 : f32 to vector<2x128xf32>
    %143 = arith.subf %142, %135 : vector<2x128xf32>
    %144 = arith.mulf %143, %141 : vector<2x128xf32>
    %145 = arith.mulf %135, %116 : vector<2x128xf32>
    %146 = arith.addf %144, %145 : vector<2x128xf32>
    %c8_i32_60 = arith.constant 8 : i32
    %147 = arith.muli %arg0, %c8_i32_60 : i32
    %c1_i32_61 = arith.constant 1 : i32
    %148 = arith.addi %147, %c1_i32_61 : i32
    %c15_i32_62 = arith.constant 15 : i32
    %149 = arith.cmpi slt, %148, %c15_i32_62 : i32
    %150 = arith.extui %149 : i1 to i32
    %151 = arith.sitofp %150 : i32 to f32
    %152 = vector.broadcast %151 : f32 to vector<2x128xf32>
    %153 = arith.mulf %152, %146 : vector<2x128xf32>
    %cst_63 = arith.constant 1.000000e+00 : f32
    %154 = arith.subf %cst_63, %151 : f32
    %155 = vector.broadcast %154 : f32 to vector<2x128xf32>
    %156 = arith.mulf %155, %116 : vector<2x128xf32>
    %157 = arith.addf %153, %156 : vector<2x128xf32>
    %c0_64 = arith.constant 0 : index
    %c0_65 = arith.constant 0 : index
    %158 = vector.load %arg17[%c0_64, %c0_65] : memref<2x128xf32, #tpu.memory_space<vmem>>, vector<2x128xf32>
    tpu.vector_store %arg17[%c0_64, %c0_65], %157 {strides = array<i32>} : memref<2x128xf32, #tpu.memory_space<vmem>>, vector<2x128xf32>,
    %159 = arith.truncf %157 : vector<2x128xf32> to vector<2x128xbf16>
    %c2_66 = arith.constant 2 : index
    %c0_67 = arith.constant 0 : index
    %160 = vector.load %arg11[%c2_66, %c0_67] : memref<16x128xbf16, #tpu.memory_space<vmem>>, vector<2x128xbf16>
    tpu.vector_store %arg11[%c2_66, %c0_67], %159 {strides = array<i32>} : memref<16x128xbf16, #tpu.memory_space<vmem>>, vector<2x128xbf16>,
    %c0_68 = arith.constant 0 : index
    %c0_69 = arith.constant 0 : index
    %161 = vector.load %arg18[%c0_68, %c0_69] : memref<2x128xf32, #tpu.memory_space<vmem>>, vector<2x128xf32>
    %c12 = arith.constant 12 : index
    %c0_70 = arith.constant 0 : index
    %162 = vector.load %arg16[%c12, %c0_70] : memref<16x384xf32, #tpu.memory_space<vmem>>, vector<2x384xf32>
    %163 = arith.truncf %161 : vector<2x128xf32> to vector<2x128xbf16>
    %cst_71 = arith.constant dense<0.000000e+00> : vector<2x384xf32>
    %164 = tpu.matmul %163, %24, %cst_71 {dimension_numbers = #tpu.dot_dimension_numbers<[1], [0], [0], [1], [0, 0, 1, 1], [], []>} : vector<2x128xbf16>, vector<128x384xbf16>, vector<2x384xf32> -> vector<2x384xf32>
    %165 = vector.extract_strided_slice %162 {offsets = [0, 0], sizes = [2, 128], strides = [1, 1]} : vector<2x384xf32> to vector<2x128xf32>
    %166 = vector.extract_strided_slice %164 {offsets = [0, 0], sizes = [2, 128], strides = [1, 1]} : vector<2x384xf32> to vector<2x128xf32>
    %167 = arith.addf %165, %166 : vector<2x128xf32>
    %168 = arith.negf %167 : vector<2x128xf32>
    %169 = math.exp %168 : vector<2x128xf32>
    %cst_72 = arith.constant 1.000000e+00 : f32
    %170 = vector.broadcast %cst_72 : f32 to vector<2x128xf32>
    %171 = arith.addf %170, %169 : vector<2x128xf32>
    %172 = arith.divf %170, %171 : vector<2x128xf32>
    %173 = vector.extract_strided_slice %162 {offsets = [0, 128], sizes = [2, 128], strides = [1, 1]} : vector<2x384xf32> to vector<2x128xf32>
    %174 = vector.extract_strided_slice %164 {offsets = [0, 128], sizes = [2, 128], strides = [1, 1]} : vector<2x384xf32> to vector<2x128xf32>
    %175 = arith.addf %173, %174 : vector<2x128xf32>
    %176 = arith.negf %175 : vector<2x128xf32>
    %177 = math.exp %176 : vector<2x128xf32>
    %cst_73 = arith.constant 1.000000e+00 : f32
    %178 = vector.broadcast %cst_73 : f32 to vector<2x128xf32>
    %179 = arith.addf %178, %177 : vector<2x128xf32>
    %180 = arith.divf %178, %179 : vector<2x128xf32>
    %181 = vector.extract_strided_slice %162 {offsets = [0, 256], sizes = [2, 128], strides = [1, 1]} : vector<2x384xf32> to vector<2x128xf32>
    %182 = vector.extract_strided_slice %164 {offsets = [0, 256], sizes = [2, 128], strides = [1, 1]} : vector<2x384xf32> to vector<2x128xf32>
    %183 = arith.addf %182, %22 : vector<2x128xf32>
    %184 = arith.mulf %172, %183 : vector<2x128xf32>
    %185 = arith.addf %181, %184 : vector<2x128xf32>
    %186 = math.tanh %185 : vector<2x128xf32>
    %cst_74 = arith.constant 1.000000e+00 : f32
    %187 = vector.broadcast %cst_74 : f32 to vector<2x128xf32>
    %188 = arith.subf %187, %180 : vector<2x128xf32>
    %189 = arith.mulf %188, %186 : vector<2x128xf32>
    %190 = arith.mulf %180, %161 : vector<2x128xf32>
    %191 = arith.addf %189, %190 : vector<2x128xf32>
    %c1_i32_75 = arith.constant 1 : i32
    %192 = arith.subi %c1_i32_75, %arg0 : i32
    %c8_i32_76 = arith.constant 8 : i32
    %193 = arith.muli %192, %c8_i32_76 : i32
    %c6_i32 = arith.constant 6 : i32
    %194 = arith.addi %193, %c6_i32 : i32
    %c15_i32_77 = arith.constant 15 : i32
    %195 = arith.cmpi slt, %194, %c15_i32_77 : i32
    %196 = arith.extui %195 : i1 to i32
    %197 = arith.sitofp %196 : i32 to f32
    %198 = vector.broadcast %197 : f32 to vector<2x128xf32>
    %199 = arith.mulf %198, %191 : vector<2x128xf32>
    %cst_78 = arith.constant 1.000000e+00 : f32
    %200 = arith.subf %cst_78, %197 : f32
    %201 = vector.broadcast %200 : f32 to vector<2x128xf32>
    %202 = arith.mulf %201, %161 : vector<2x128xf32>
    %203 = arith.addf %199, %202 : vector<2x128xf32>
    %c0_79 = arith.constant 0 : index
    %c0_80 = arith.constant 0 : index
    %204 = vector.load %arg18[%c0_79, %c0_80] : memref<2x128xf32, #tpu.memory_space<vmem>>, vector<2x128xf32>
    tpu.vector_store %arg18[%c0_79, %c0_80], %203 {strides = array<i32>} : memref<2x128xf32, #tpu.memory_space<vmem>>, vector<2x128xf32>,
    %205 = arith.truncf %203 : vector<2x128xf32> to vector<2x128xbf16>
    %c12_81 = arith.constant 12 : index
    %c0_82 = arith.constant 0 : index
    %206 = vector.load %arg12[%c12_81, %c0_82] : memref<16x128xbf16, #tpu.memory_space<vmem>>, vector<2x128xbf16>
    tpu.vector_store %arg12[%c12_81, %c0_82], %205 {strides = array<i32>} : memref<16x128xbf16, #tpu.memory_space<vmem>>, vector<2x128xbf16>,
    %c0_83 = arith.constant 0 : index
    %c0_84 = arith.constant 0 : index
    %207 = vector.load %arg17[%c0_83, %c0_84] : memref<2x128xf32, #tpu.memory_space<vmem>>, vector<2x128xf32>
    %c4 = arith.constant 4 : index
    %c0_85 = arith.constant 0 : index
    %208 = vector.load %arg15[%c4, %c0_85] : memref<16x384xf32, #tpu.memory_space<vmem>>, vector<2x384xf32>
    %209 = arith.truncf %207 : vector<2x128xf32> to vector<2x128xbf16>
    %cst_86 = arith.constant dense<0.000000e+00> : vector<2x384xf32>
    %210 = tpu.matmul %209, %23, %cst_86 {dimension_numbers = #tpu.dot_dimension_numbers<[1], [0], [0], [1], [0, 0, 1, 1], [], []>} : vector<2x128xbf16>, vector<128x384xbf16>, vector<2x384xf32> -> vector<2x384xf32>
    %211 = vector.extract_strided_slice %208 {offsets = [0, 0], sizes = [2, 128], strides = [1, 1]} : vector<2x384xf32> to vector<2x128xf32>
    %212 = vector.extract_strided_slice %210 {offsets = [0, 0], sizes = [2, 128], strides = [1, 1]} : vector<2x384xf32> to vector<2x128xf32>
    %213 = arith.addf %211, %212 : vector<2x128xf32>
    %214 = arith.negf %213 : vector<2x128xf32>
    %215 = math.exp %214 : vector<2x128xf32>
    %cst_87 = arith.constant 1.000000e+00 : f32
    %216 = vector.broadcast %cst_87 : f32 to vector<2x128xf32>
    %217 = arith.addf %216, %215 : vector<2x128xf32>
    %218 = arith.divf %216, %217 : vector<2x128xf32>
    %219 = vector.extract_strided_slice %208 {offsets = [0, 128], sizes = [2, 128], strides = [1, 1]} : vector<2x384xf32> to vector<2x128xf32>
    %220 = vector.extract_strided_slice %210 {offsets = [0, 128], sizes = [2, 128], strides = [1, 1]} : vector<2x384xf32> to vector<2x128xf32>
    %221 = arith.addf %219, %220 : vector<2x128xf32>
    %222 = arith.negf %221 : vector<2x128xf32>
    %223 = math.exp %222 : vector<2x128xf32>
    %cst_88 = arith.constant 1.000000e+00 : f32
    %224 = vector.broadcast %cst_88 : f32 to vector<2x128xf32>
    %225 = arith.addf %224, %223 : vector<2x128xf32>
    %226 = arith.divf %224, %225 : vector<2x128xf32>
    %227 = vector.extract_strided_slice %208 {offsets = [0, 256], sizes = [2, 128], strides = [1, 1]} : vector<2x384xf32> to vector<2x128xf32>
    %228 = vector.extract_strided_slice %210 {offsets = [0, 256], sizes = [2, 128], strides = [1, 1]} : vector<2x384xf32> to vector<2x128xf32>
    %229 = arith.addf %228, %19 : vector<2x128xf32>
    %230 = arith.mulf %218, %229 : vector<2x128xf32>
    %231 = arith.addf %227, %230 : vector<2x128xf32>
    %232 = math.tanh %231 : vector<2x128xf32>
    %cst_89 = arith.constant 1.000000e+00 : f32
    %233 = vector.broadcast %cst_89 : f32 to vector<2x128xf32>
    %234 = arith.subf %233, %226 : vector<2x128xf32>
    %235 = arith.mulf %234, %232 : vector<2x128xf32>
    %236 = arith.mulf %226, %207 : vector<2x128xf32>
    %237 = arith.addf %235, %236 : vector<2x128xf32>
    %c8_i32_90 = arith.constant 8 : i32
    %238 = arith.muli %arg0, %c8_i32_90 : i32
    %c2_i32 = arith.constant 2 : i32
    %239 = arith.addi %238, %c2_i32 : i32
    %c15_i32_91 = arith.constant 15 : i32
    %240 = arith.cmpi slt, %239, %c15_i32_91 : i32
    %241 = arith.extui %240 : i1 to i32
    %242 = arith.sitofp %241 : i32 to f32
    %243 = vector.broadcast %242 : f32 to vector<2x128xf32>
    %244 = arith.mulf %243, %237 : vector<2x128xf32>
    %cst_92 = arith.constant 1.000000e+00 : f32
    %245 = arith.subf %cst_92, %242 : f32
    %246 = vector.broadcast %245 : f32 to vector<2x128xf32>
    %247 = arith.mulf %246, %207 : vector<2x128xf32>
    %248 = arith.addf %244, %247 : vector<2x128xf32>
    %c0_93 = arith.constant 0 : index
    %c0_94 = arith.constant 0 : index
    %249 = vector.load %arg17[%c0_93, %c0_94] : memref<2x128xf32, #tpu.memory_space<vmem>>, vector<2x128xf32>
    tpu.vector_store %arg17[%c0_93, %c0_94], %248 {strides = array<i32>} : memref<2x128xf32, #tpu.memory_space<vmem>>, vector<2x128xf32>,
    %250 = arith.truncf %248 : vector<2x128xf32> to vector<2x128xbf16>
    %c4_95 = arith.constant 4 : index
    %c0_96 = arith.constant 0 : index
    %251 = vector.load %arg11[%c4_95, %c0_96] : memref<16x128xbf16, #tpu.memory_space<vmem>>, vector<2x128xbf16>
    tpu.vector_store %arg11[%c4_95, %c0_96], %250 {strides = array<i32>} : memref<16x128xbf16, #tpu.memory_space<vmem>>, vector<2x128xbf16>,
    %c0_97 = arith.constant 0 : index
    %c0_98 = arith.constant 0 : index
    %252 = vector.load %arg18[%c0_97, %c0_98] : memref<2x128xf32, #tpu.memory_space<vmem>>, vector<2x128xf32>
    %c10 = arith.constant 10 : index
    %c0_99 = arith.constant 0 : index
    %253 = vector.load %arg16[%c10, %c0_99] : memref<16x384xf32, #tpu.memory_space<vmem>>, vector<2x384xf32>
    %254 = arith.truncf %252 : vector<2x128xf32> to vector<2x128xbf16>
    %cst_100 = arith.constant dense<0.000000e+00> : vector<2x384xf32>
    %255 = tpu.matmul %254, %24, %cst_100 {dimension_numbers = #tpu.dot_dimension_numbers<[1], [0], [0], [1], [0, 0, 1, 1], [], []>} : vector<2x128xbf16>, vector<128x384xbf16>, vector<2x384xf32> -> vector<2x384xf32>
    %256 = vector.extract_strided_slice %253 {offsets = [0, 0], sizes = [2, 128], strides = [1, 1]} : vector<2x384xf32> to vector<2x128xf32>
    %257 = vector.extract_strided_slice %255 {offsets = [0, 0], sizes = [2, 128], strides = [1, 1]} : vector<2x384xf32> to vector<2x128xf32>
    %258 = arith.addf %256, %257 : vector<2x128xf32>
    %259 = arith.negf %258 : vector<2x128xf32>
    %260 = math.exp %259 : vector<2x128xf32>
    %cst_101 = arith.constant 1.000000e+00 : f32
    %261 = vector.broadcast %cst_101 : f32 to vector<2x128xf32>
    %262 = arith.addf %261, %260 : vector<2x128xf32>
    %263 = arith.divf %261, %262 : vector<2x128xf32>
    %264 = vector.extract_strided_slice %253 {offsets = [0, 128], sizes = [2, 128], strides = [1, 1]} : vector<2x384xf32> to vector<2x128xf32>
    %265 = vector.extract_strided_slice %255 {offsets = [0, 128], sizes = [2, 128], strides = [1, 1]} : vector<2x384xf32> to vector<2x128xf32>
    %266 = arith.addf %264, %265 : vector<2x128xf32>
    %267 = arith.negf %266 : vector<2x128xf32>
    %268 = math.exp %267 : vector<2x128xf32>
    %cst_102 = arith.constant 1.000000e+00 : f32
    %269 = vector.broadcast %cst_102 : f32 to vector<2x128xf32>
    %270 = arith.addf %269, %268 : vector<2x128xf32>
    %271 = arith.divf %269, %270 : vector<2x128xf32>
    %272 = vector.extract_strided_slice %253 {offsets = [0, 256], sizes = [2, 128], strides = [1, 1]} : vector<2x384xf32> to vector<2x128xf32>
    %273 = vector.extract_strided_slice %255 {offsets = [0, 256], sizes = [2, 128], strides = [1, 1]} : vector<2x384xf32> to vector<2x128xf32>
    %274 = arith.addf %273, %22 : vector<2x128xf32>
    %275 = arith.mulf %263, %274 : vector<2x128xf32>
    %276 = arith.addf %272, %275 : vector<2x128xf32>
    %277 = math.tanh %276 : vector<2x128xf32>
    %cst_103 = arith.constant 1.000000e+00 : f32
    %278 = vector.broadcast %cst_103 : f32 to vector<2x128xf32>
    %279 = arith.subf %278, %271 : vector<2x128xf32>
    %280 = arith.mulf %279, %277 : vector<2x128xf32>
    %281 = arith.mulf %271, %252 : vector<2x128xf32>
    %282 = arith.addf %280, %281 : vector<2x128xf32>
    %c1_i32_104 = arith.constant 1 : i32
    %283 = arith.subi %c1_i32_104, %arg0 : i32
    %c8_i32_105 = arith.constant 8 : i32
    %284 = arith.muli %283, %c8_i32_105 : i32
    %c5_i32 = arith.constant 5 : i32
    %285 = arith.addi %284, %c5_i32 : i32
    %c15_i32_106 = arith.constant 15 : i32
    %286 = arith.cmpi slt, %285, %c15_i32_106 : i32
    %287 = arith.extui %286 : i1 to i32
    %288 = arith.sitofp %287 : i32 to f32
    %289 = vector.broadcast %288 : f32 to vector<2x128xf32>
    %290 = arith.mulf %289, %282 : vector<2x128xf32>
    %cst_107 = arith.constant 1.000000e+00 : f32
    %291 = arith.subf %cst_107, %288 : f32
    %292 = vector.broadcast %291 : f32 to vector<2x128xf32>
    %293 = arith.mulf %292, %252 : vector<2x128xf32>
    %294 = arith.addf %290, %293 : vector<2x128xf32>
    %c0_108 = arith.constant 0 : index
    %c0_109 = arith.constant 0 : index
    %295 = vector.load %arg18[%c0_108, %c0_109] : memref<2x128xf32, #tpu.memory_space<vmem>>, vector<2x128xf32>
    tpu.vector_store %arg18[%c0_108, %c0_109], %294 {strides = array<i32>} : memref<2x128xf32, #tpu.memory_space<vmem>>, vector<2x128xf32>,
    %296 = arith.truncf %294 : vector<2x128xf32> to vector<2x128xbf16>
    %c10_110 = arith.constant 10 : index
    %c0_111 = arith.constant 0 : index
    %297 = vector.load %arg12[%c10_110, %c0_111] : memref<16x128xbf16, #tpu.memory_space<vmem>>, vector<2x128xbf16>
    tpu.vector_store %arg12[%c10_110, %c0_111], %296 {strides = array<i32>} : memref<16x128xbf16, #tpu.memory_space<vmem>>, vector<2x128xbf16>,
    %c0_112 = arith.constant 0 : index
    %c0_113 = arith.constant 0 : index
    %298 = vector.load %arg17[%c0_112, %c0_113] : memref<2x128xf32, #tpu.memory_space<vmem>>, vector<2x128xf32>
    %c6 = arith.constant 6 : index
    %c0_114 = arith.constant 0 : index
    %299 = vector.load %arg15[%c6, %c0_114] : memref<16x384xf32, #tpu.memory_space<vmem>>, vector<2x384xf32>
    %300 = arith.truncf %298 : vector<2x128xf32> to vector<2x128xbf16>
    %cst_115 = arith.constant dense<0.000000e+00> : vector<2x384xf32>
    %301 = tpu.matmul %300, %23, %cst_115 {dimension_numbers = #tpu.dot_dimension_numbers<[1], [0], [0], [1], [0, 0, 1, 1], [], []>} : vector<2x128xbf16>, vector<128x384xbf16>, vector<2x384xf32> -> vector<2x384xf32>
    %302 = vector.extract_strided_slice %299 {offsets = [0, 0], sizes = [2, 128], strides = [1, 1]} : vector<2x384xf32> to vector<2x128xf32>
    %303 = vector.extract_strided_slice %301 {offsets = [0, 0], sizes = [2, 128], strides = [1, 1]} : vector<2x384xf32> to vector<2x128xf32>
    %304 = arith.addf %302, %303 : vector<2x128xf32>
    %305 = arith.negf %304 : vector<2x128xf32>
    %306 = math.exp %305 : vector<2x128xf32>
    %cst_116 = arith.constant 1.000000e+00 : f32
    %307 = vector.broadcast %cst_116 : f32 to vector<2x128xf32>
    %308 = arith.addf %307, %306 : vector<2x128xf32>
    %309 = arith.divf %307, %308 : vector<2x128xf32>
    %310 = vector.extract_strided_slice %299 {offsets = [0, 128], sizes = [2, 128], strides = [1, 1]} : vector<2x384xf32> to vector<2x128xf32>
    %311 = vector.extract_strided_slice %301 {offsets = [0, 128], sizes = [2, 128], strides = [1, 1]} : vector<2x384xf32> to vector<2x128xf32>
    %312 = arith.addf %310, %311 : vector<2x128xf32>
    %313 = arith.negf %312 : vector<2x128xf32>
    %314 = math.exp %313 : vector<2x128xf32>
    %cst_117 = arith.constant 1.000000e+00 : f32
    %315 = vector.broadcast %cst_117 : f32 to vector<2x128xf32>
    %316 = arith.addf %315, %314 : vector<2x128xf32>
    %317 = arith.divf %315, %316 : vector<2x128xf32>
    %318 = vector.extract_strided_slice %299 {offsets = [0, 256], sizes = [2, 128], strides = [1, 1]} : vector<2x384xf32> to vector<2x128xf32>
    %319 = vector.extract_strided_slice %301 {offsets = [0, 256], sizes = [2, 128], strides = [1, 1]} : vector<2x384xf32> to vector<2x128xf32>
    %320 = arith.addf %319, %19 : vector<2x128xf32>
    %321 = arith.mulf %309, %320 : vector<2x128xf32>
    %322 = arith.addf %318, %321 : vector<2x128xf32>
    %323 = math.tanh %322 : vector<2x128xf32>
    %cst_118 = arith.constant 1.000000e+00 : f32
    %324 = vector.broadcast %cst_118 : f32 to vector<2x128xf32>
    %325 = arith.subf %324, %317 : vector<2x128xf32>
    %326 = arith.mulf %325, %323 : vector<2x128xf32>
    %327 = arith.mulf %317, %298 : vector<2x128xf32>
    %328 = arith.addf %326, %327 : vector<2x128xf32>
    %c8_i32_119 = arith.constant 8 : i32
    %329 = arith.muli %arg0, %c8_i32_119 : i32
    %c3_i32 = arith.constant 3 : i32
    %330 = arith.addi %329, %c3_i32 : i32
    %c15_i32_120 = arith.constant 15 : i32
    %331 = arith.cmpi slt, %330, %c15_i32_120 : i32
    %332 = arith.extui %331 : i1 to i32
    %333 = arith.sitofp %332 : i32 to f32
    %334 = vector.broadcast %333 : f32 to vector<2x128xf32>
    %335 = arith.mulf %334, %328 : vector<2x128xf32>
    %cst_121 = arith.constant 1.000000e+00 : f32
    %336 = arith.subf %cst_121, %333 : f32
    %337 = vector.broadcast %336 : f32 to vector<2x128xf32>
    %338 = arith.mulf %337, %298 : vector<2x128xf32>
    %339 = arith.addf %335, %338 : vector<2x128xf32>
    %c0_122 = arith.constant 0 : index
    %c0_123 = arith.constant 0 : index
    %340 = vector.load %arg17[%c0_122, %c0_123] : memref<2x128xf32, #tpu.memory_space<vmem>>, vector<2x128xf32>
    tpu.vector_store %arg17[%c0_122, %c0_123], %339 {strides = array<i32>} : memref<2x128xf32, #tpu.memory_space<vmem>>, vector<2x128xf32>,
    %341 = arith.truncf %339 : vector<2x128xf32> to vector<2x128xbf16>
    %c6_124 = arith.constant 6 : index
    %c0_125 = arith.constant 0 : index
    %342 = vector.load %arg11[%c6_124, %c0_125] : memref<16x128xbf16, #tpu.memory_space<vmem>>, vector<2x128xbf16>
    tpu.vector_store %arg11[%c6_124, %c0_125], %341 {strides = array<i32>} : memref<16x128xbf16, #tpu.memory_space<vmem>>, vector<2x128xbf16>,
    %c0_126 = arith.constant 0 : index
    %c0_127 = arith.constant 0 : index
    %343 = vector.load %arg18[%c0_126, %c0_127] : memref<2x128xf32, #tpu.memory_space<vmem>>, vector<2x128xf32>
    %c8 = arith.constant 8 : index
    %c0_128 = arith.constant 0 : index
    %344 = vector.load %arg16[%c8, %c0_128] : memref<16x384xf32, #tpu.memory_space<vmem>>, vector<2x384xf32>
    %345 = arith.truncf %343 : vector<2x128xf32> to vector<2x128xbf16>
    %cst_129 = arith.constant dense<0.000000e+00> : vector<2x384xf32>
    %346 = tpu.matmul %345, %24, %cst_129 {dimension_numbers = #tpu.dot_dimension_numbers<[1], [0], [0], [1], [0, 0, 1, 1], [], []>} : vector<2x128xbf16>, vector<128x384xbf16>, vector<2x384xf32> -> vector<2x384xf32>
    %347 = vector.extract_strided_slice %344 {offsets = [0, 0], sizes = [2, 128], strides = [1, 1]} : vector<2x384xf32> to vector<2x128xf32>
    %348 = vector.extract_strided_slice %346 {offsets = [0, 0], sizes = [2, 128], strides = [1, 1]} : vector<2x384xf32> to vector<2x128xf32>
    %349 = arith.addf %347, %348 : vector<2x128xf32>
    %350 = arith.negf %349 : vector<2x128xf32>
    %351 = math.exp %350 : vector<2x128xf32>
    %cst_130 = arith.constant 1.000000e+00 : f32
    %352 = vector.broadcast %cst_130 : f32 to vector<2x128xf32>
    %353 = arith.addf %352, %351 : vector<2x128xf32>
    %354 = arith.divf %352, %353 : vector<2x128xf32>
    %355 = vector.extract_strided_slice %344 {offsets = [0, 128], sizes = [2, 128], strides = [1, 1]} : vector<2x384xf32> to vector<2x128xf32>
    %356 = vector.extract_strided_slice %346 {offsets = [0, 128], sizes = [2, 128], strides = [1, 1]} : vector<2x384xf32> to vector<2x128xf32>
    %357 = arith.addf %355, %356 : vector<2x128xf32>
    %358 = arith.negf %357 : vector<2x128xf32>
    %359 = math.exp %358 : vector<2x128xf32>
    %cst_131 = arith.constant 1.000000e+00 : f32
    %360 = vector.broadcast %cst_131 : f32 to vector<2x128xf32>
    %361 = arith.addf %360, %359 : vector<2x128xf32>
    %362 = arith.divf %360, %361 : vector<2x128xf32>
    %363 = vector.extract_strided_slice %344 {offsets = [0, 256], sizes = [2, 128], strides = [1, 1]} : vector<2x384xf32> to vector<2x128xf32>
    %364 = vector.extract_strided_slice %346 {offsets = [0, 256], sizes = [2, 128], strides = [1, 1]} : vector<2x384xf32> to vector<2x128xf32>
    %365 = arith.addf %364, %22 : vector<2x128xf32>
    %366 = arith.mulf %354, %365 : vector<2x128xf32>
    %367 = arith.addf %363, %366 : vector<2x128xf32>
    %368 = math.tanh %367 : vector<2x128xf32>
    %cst_132 = arith.constant 1.000000e+00 : f32
    %369 = vector.broadcast %cst_132 : f32 to vector<2x128xf32>
    %370 = arith.subf %369, %362 : vector<2x128xf32>
    %371 = arith.mulf %370, %368 : vector<2x128xf32>
    %372 = arith.mulf %362, %343 : vector<2x128xf32>
    %373 = arith.addf %371, %372 : vector<2x128xf32>
    %c1_i32_133 = arith.constant 1 : i32
    %374 = arith.subi %c1_i32_133, %arg0 : i32
    %c8_i32_134 = arith.constant 8 : i32
    %375 = arith.muli %374, %c8_i32_134 : i32
    %c4_i32 = arith.constant 4 : i32
    %376 = arith.addi %375, %c4_i32 : i32
    %c15_i32_135 = arith.constant 15 : i32
    %377 = arith.cmpi slt, %376, %c15_i32_135 : i32
    %378 = arith.extui %377 : i1 to i32
    %379 = arith.sitofp %378 : i32 to f32
    %380 = vector.broadcast %379 : f32 to vector<2x128xf32>
    %381 = arith.mulf %380, %373 : vector<2x128xf32>
    %cst_136 = arith.constant 1.000000e+00 : f32
    %382 = arith.subf %cst_136, %379 : f32
    %383 = vector.broadcast %382 : f32 to vector<2x128xf32>
    %384 = arith.mulf %383, %343 : vector<2x128xf32>
    %385 = arith.addf %381, %384 : vector<2x128xf32>
    %c0_137 = arith.constant 0 : index
    %c0_138 = arith.constant 0 : index
    %386 = vector.load %arg18[%c0_137, %c0_138] : memref<2x128xf32, #tpu.memory_space<vmem>>, vector<2x128xf32>
    tpu.vector_store %arg18[%c0_137, %c0_138], %385 {strides = array<i32>} : memref<2x128xf32, #tpu.memory_space<vmem>>, vector<2x128xf32>,
    %387 = arith.truncf %385 : vector<2x128xf32> to vector<2x128xbf16>
    %c8_139 = arith.constant 8 : index
    %c0_140 = arith.constant 0 : index
    %388 = vector.load %arg12[%c8_139, %c0_140] : memref<16x128xbf16, #tpu.memory_space<vmem>>, vector<2x128xbf16>
    tpu.vector_store %arg12[%c8_139, %c0_140], %387 {strides = array<i32>} : memref<16x128xbf16, #tpu.memory_space<vmem>>, vector<2x128xbf16>,
    %c0_141 = arith.constant 0 : index
    %c0_142 = arith.constant 0 : index
    %389 = vector.load %arg17[%c0_141, %c0_142] : memref<2x128xf32, #tpu.memory_space<vmem>>, vector<2x128xf32>
    %c8_143 = arith.constant 8 : index
    %c0_144 = arith.constant 0 : index
    %390 = vector.load %arg15[%c8_143, %c0_144] : memref<16x384xf32, #tpu.memory_space<vmem>>, vector<2x384xf32>
    %391 = arith.truncf %389 : vector<2x128xf32> to vector<2x128xbf16>
    %cst_145 = arith.constant dense<0.000000e+00> : vector<2x384xf32>
    %392 = tpu.matmul %391, %23, %cst_145 {dimension_numbers = #tpu.dot_dimension_numbers<[1], [0], [0], [1], [0, 0, 1, 1], [], []>} : vector<2x128xbf16>, vector<128x384xbf16>, vector<2x384xf32> -> vector<2x384xf32>
    %393 = vector.extract_strided_slice %390 {offsets = [0, 0], sizes = [2, 128], strides = [1, 1]} : vector<2x384xf32> to vector<2x128xf32>
    %394 = vector.extract_strided_slice %392 {offsets = [0, 0], sizes = [2, 128], strides = [1, 1]} : vector<2x384xf32> to vector<2x128xf32>
    %395 = arith.addf %393, %394 : vector<2x128xf32>
    %396 = arith.negf %395 : vector<2x128xf32>
    %397 = math.exp %396 : vector<2x128xf32>
    %cst_146 = arith.constant 1.000000e+00 : f32
    %398 = vector.broadcast %cst_146 : f32 to vector<2x128xf32>
    %399 = arith.addf %398, %397 : vector<2x128xf32>
    %400 = arith.divf %398, %399 : vector<2x128xf32>
    %401 = vector.extract_strided_slice %390 {offsets = [0, 128], sizes = [2, 128], strides = [1, 1]} : vector<2x384xf32> to vector<2x128xf32>
    %402 = vector.extract_strided_slice %392 {offsets = [0, 128], sizes = [2, 128], strides = [1, 1]} : vector<2x384xf32> to vector<2x128xf32>
    %403 = arith.addf %401, %402 : vector<2x128xf32>
    %404 = arith.negf %403 : vector<2x128xf32>
    %405 = math.exp %404 : vector<2x128xf32>
    %cst_147 = arith.constant 1.000000e+00 : f32
    %406 = vector.broadcast %cst_147 : f32 to vector<2x128xf32>
    %407 = arith.addf %406, %405 : vector<2x128xf32>
    %408 = arith.divf %406, %407 : vector<2x128xf32>
    %409 = vector.extract_strided_slice %390 {offsets = [0, 256], sizes = [2, 128], strides = [1, 1]} : vector<2x384xf32> to vector<2x128xf32>
    %410 = vector.extract_strided_slice %392 {offsets = [0, 256], sizes = [2, 128], strides = [1, 1]} : vector<2x384xf32> to vector<2x128xf32>
    %411 = arith.addf %410, %19 : vector<2x128xf32>
    %412 = arith.mulf %400, %411 : vector<2x128xf32>
    %413 = arith.addf %409, %412 : vector<2x128xf32>
    %414 = math.tanh %413 : vector<2x128xf32>
    %cst_148 = arith.constant 1.000000e+00 : f32
    %415 = vector.broadcast %cst_148 : f32 to vector<2x128xf32>
    %416 = arith.subf %415, %408 : vector<2x128xf32>
    %417 = arith.mulf %416, %414 : vector<2x128xf32>
    %418 = arith.mulf %408, %389 : vector<2x128xf32>
    %419 = arith.addf %417, %418 : vector<2x128xf32>
    %c8_i32_149 = arith.constant 8 : i32
    %420 = arith.muli %arg0, %c8_i32_149 : i32
    %c4_i32_150 = arith.constant 4 : i32
    %421 = arith.addi %420, %c4_i32_150 : i32
    %c15_i32_151 = arith.constant 15 : i32
    %422 = arith.cmpi slt, %421, %c15_i32_151 : i32
    %423 = arith.extui %422 : i1 to i32
    %424 = arith.sitofp %423 : i32 to f32
    %425 = vector.broadcast %424 : f32 to vector<2x128xf32>
    %426 = arith.mulf %425, %419 : vector<2x128xf32>
    %cst_152 = arith.constant 1.000000e+00 : f32
    %427 = arith.subf %cst_152, %424 : f32
    %428 = vector.broadcast %427 : f32 to vector<2x128xf32>
    %429 = arith.mulf %428, %389 : vector<2x128xf32>
    %430 = arith.addf %426, %429 : vector<2x128xf32>
    %c0_153 = arith.constant 0 : index
    %c0_154 = arith.constant 0 : index
    %431 = vector.load %arg17[%c0_153, %c0_154] : memref<2x128xf32, #tpu.memory_space<vmem>>, vector<2x128xf32>
    tpu.vector_store %arg17[%c0_153, %c0_154], %430 {strides = array<i32>} : memref<2x128xf32, #tpu.memory_space<vmem>>, vector<2x128xf32>,
    %432 = arith.truncf %430 : vector<2x128xf32> to vector<2x128xbf16>
    %c8_155 = arith.constant 8 : index
    %c0_156 = arith.constant 0 : index
    %433 = vector.load %arg11[%c8_155, %c0_156] : memref<16x128xbf16, #tpu.memory_space<vmem>>, vector<2x128xbf16>
    tpu.vector_store %arg11[%c8_155, %c0_156], %432 {strides = array<i32>} : memref<16x128xbf16, #tpu.memory_space<vmem>>, vector<2x128xbf16>,
    %c0_157 = arith.constant 0 : index
    %c0_158 = arith.constant 0 : index
    %434 = vector.load %arg18[%c0_157, %c0_158] : memref<2x128xf32, #tpu.memory_space<vmem>>, vector<2x128xf32>
    %c6_159 = arith.constant 6 : index
    %c0_160 = arith.constant 0 : index
    %435 = vector.load %arg16[%c6_159, %c0_160] : memref<16x384xf32, #tpu.memory_space<vmem>>, vector<2x384xf32>
    %436 = arith.truncf %434 : vector<2x128xf32> to vector<2x128xbf16>
    %cst_161 = arith.constant dense<0.000000e+00> : vector<2x384xf32>
    %437 = tpu.matmul %436, %24, %cst_161 {dimension_numbers = #tpu.dot_dimension_numbers<[1], [0], [0], [1], [0, 0, 1, 1], [], []>} : vector<2x128xbf16>, vector<128x384xbf16>, vector<2x384xf32> -> vector<2x384xf32>
    %438 = vector.extract_strided_slice %435 {offsets = [0, 0], sizes = [2, 128], strides = [1, 1]} : vector<2x384xf32> to vector<2x128xf32>
    %439 = vector.extract_strided_slice %437 {offsets = [0, 0], sizes = [2, 128], strides = [1, 1]} : vector<2x384xf32> to vector<2x128xf32>
    %440 = arith.addf %438, %439 : vector<2x128xf32>
    %441 = arith.negf %440 : vector<2x128xf32>
    %442 = math.exp %441 : vector<2x128xf32>
    %cst_162 = arith.constant 1.000000e+00 : f32
    %443 = vector.broadcast %cst_162 : f32 to vector<2x128xf32>
    %444 = arith.addf %443, %442 : vector<2x128xf32>
    %445 = arith.divf %443, %444 : vector<2x128xf32>
    %446 = vector.extract_strided_slice %435 {offsets = [0, 128], sizes = [2, 128], strides = [1, 1]} : vector<2x384xf32> to vector<2x128xf32>
    %447 = vector.extract_strided_slice %437 {offsets = [0, 128], sizes = [2, 128], strides = [1, 1]} : vector<2x384xf32> to vector<2x128xf32>
    %448 = arith.addf %446, %447 : vector<2x128xf32>
    %449 = arith.negf %448 : vector<2x128xf32>
    %450 = math.exp %449 : vector<2x128xf32>
    %cst_163 = arith.constant 1.000000e+00 : f32
    %451 = vector.broadcast %cst_163 : f32 to vector<2x128xf32>
    %452 = arith.addf %451, %450 : vector<2x128xf32>
    %453 = arith.divf %451, %452 : vector<2x128xf32>
    %454 = vector.extract_strided_slice %435 {offsets = [0, 256], sizes = [2, 128], strides = [1, 1]} : vector<2x384xf32> to vector<2x128xf32>
    %455 = vector.extract_strided_slice %437 {offsets = [0, 256], sizes = [2, 128], strides = [1, 1]} : vector<2x384xf32> to vector<2x128xf32>
    %456 = arith.addf %455, %22 : vector<2x128xf32>
    %457 = arith.mulf %445, %456 : vector<2x128xf32>
    %458 = arith.addf %454, %457 : vector<2x128xf32>
    %459 = math.tanh %458 : vector<2x128xf32>
    %cst_164 = arith.constant 1.000000e+00 : f32
    %460 = vector.broadcast %cst_164 : f32 to vector<2x128xf32>
    %461 = arith.subf %460, %453 : vector<2x128xf32>
    %462 = arith.mulf %461, %459 : vector<2x128xf32>
    %463 = arith.mulf %453, %434 : vector<2x128xf32>
    %464 = arith.addf %462, %463 : vector<2x128xf32>
    %c1_i32_165 = arith.constant 1 : i32
    %465 = arith.subi %c1_i32_165, %arg0 : i32
    %c8_i32_166 = arith.constant 8 : i32
    %466 = arith.muli %465, %c8_i32_166 : i32
    %c3_i32_167 = arith.constant 3 : i32
    %467 = arith.addi %466, %c3_i32_167 : i32
    %c15_i32_168 = arith.constant 15 : i32
    %468 = arith.cmpi slt, %467, %c15_i32_168 : i32
    %469 = arith.extui %468 : i1 to i32
    %470 = arith.sitofp %469 : i32 to f32
    %471 = vector.broadcast %470 : f32 to vector<2x128xf32>
    %472 = arith.mulf %471, %464 : vector<2x128xf32>
    %cst_169 = arith.constant 1.000000e+00 : f32
    %473 = arith.subf %cst_169, %470 : f32
    %474 = vector.broadcast %473 : f32 to vector<2x128xf32>
    %475 = arith.mulf %474, %434 : vector<2x128xf32>
    %476 = arith.addf %472, %475 : vector<2x128xf32>
    %c0_170 = arith.constant 0 : index
    %c0_171 = arith.constant 0 : index
    %477 = vector.load %arg18[%c0_170, %c0_171] : memref<2x128xf32, #tpu.memory_space<vmem>>, vector<2x128xf32>
    tpu.vector_store %arg18[%c0_170, %c0_171], %476 {strides = array<i32>} : memref<2x128xf32, #tpu.memory_space<vmem>>, vector<2x128xf32>,
    %478 = arith.truncf %476 : vector<2x128xf32> to vector<2x128xbf16>
    %c6_172 = arith.constant 6 : index
    %c0_173 = arith.constant 0 : index
    %479 = vector.load %arg12[%c6_172, %c0_173] : memref<16x128xbf16, #tpu.memory_space<vmem>>, vector<2x128xbf16>
    tpu.vector_store %arg12[%c6_172, %c0_173], %478 {strides = array<i32>} : memref<16x128xbf16, #tpu.memory_space<vmem>>, vector<2x128xbf16>,
    %c0_174 = arith.constant 0 : index
    %c0_175 = arith.constant 0 : index
    %480 = vector.load %arg17[%c0_174, %c0_175] : memref<2x128xf32, #tpu.memory_space<vmem>>, vector<2x128xf32>
    %c10_176 = arith.constant 10 : index
    %c0_177 = arith.constant 0 : index
    %481 = vector.load %arg15[%c10_176, %c0_177] : memref<16x384xf32, #tpu.memory_space<vmem>>, vector<2x384xf32>
    %482 = arith.truncf %480 : vector<2x128xf32> to vector<2x128xbf16>
    %cst_178 = arith.constant dense<0.000000e+00> : vector<2x384xf32>
    %483 = tpu.matmul %482, %23, %cst_178 {dimension_numbers = #tpu.dot_dimension_numbers<[1], [0], [0], [1], [0, 0, 1, 1], [], []>} : vector<2x128xbf16>, vector<128x384xbf16>, vector<2x384xf32> -> vector<2x384xf32>
    %484 = vector.extract_strided_slice %481 {offsets = [0, 0], sizes = [2, 128], strides = [1, 1]} : vector<2x384xf32> to vector<2x128xf32>
    %485 = vector.extract_strided_slice %483 {offsets = [0, 0], sizes = [2, 128], strides = [1, 1]} : vector<2x384xf32> to vector<2x128xf32>
    %486 = arith.addf %484, %485 : vector<2x128xf32>
    %487 = arith.negf %486 : vector<2x128xf32>
    %488 = math.exp %487 : vector<2x128xf32>
    %cst_179 = arith.constant 1.000000e+00 : f32
    %489 = vector.broadcast %cst_179 : f32 to vector<2x128xf32>
    %490 = arith.addf %489, %488 : vector<2x128xf32>
    %491 = arith.divf %489, %490 : vector<2x128xf32>
    %492 = vector.extract_strided_slice %481 {offsets = [0, 128], sizes = [2, 128], strides = [1, 1]} : vector<2x384xf32> to vector<2x128xf32>
    %493 = vector.extract_strided_slice %483 {offsets = [0, 128], sizes = [2, 128], strides = [1, 1]} : vector<2x384xf32> to vector<2x128xf32>
    %494 = arith.addf %492, %493 : vector<2x128xf32>
    %495 = arith.negf %494 : vector<2x128xf32>
    %496 = math.exp %495 : vector<2x128xf32>
    %cst_180 = arith.constant 1.000000e+00 : f32
    %497 = vector.broadcast %cst_180 : f32 to vector<2x128xf32>
    %498 = arith.addf %497, %496 : vector<2x128xf32>
    %499 = arith.divf %497, %498 : vector<2x128xf32>
    %500 = vector.extract_strided_slice %481 {offsets = [0, 256], sizes = [2, 128], strides = [1, 1]} : vector<2x384xf32> to vector<2x128xf32>
    %501 = vector.extract_strided_slice %483 {offsets = [0, 256], sizes = [2, 128], strides = [1, 1]} : vector<2x384xf32> to vector<2x128xf32>
    %502 = arith.addf %501, %19 : vector<2x128xf32>
    %503 = arith.mulf %491, %502 : vector<2x128xf32>
    %504 = arith.addf %500, %503 : vector<2x128xf32>
    %505 = math.tanh %504 : vector<2x128xf32>
    %cst_181 = arith.constant 1.000000e+00 : f32
    %506 = vector.broadcast %cst_181 : f32 to vector<2x128xf32>
    %507 = arith.subf %506, %499 : vector<2x128xf32>
    %508 = arith.mulf %507, %505 : vector<2x128xf32>
    %509 = arith.mulf %499, %480 : vector<2x128xf32>
    %510 = arith.addf %508, %509 : vector<2x128xf32>
    %c8_i32_182 = arith.constant 8 : i32
    %511 = arith.muli %arg0, %c8_i32_182 : i32
    %c5_i32_183 = arith.constant 5 : i32
    %512 = arith.addi %511, %c5_i32_183 : i32
    %c15_i32_184 = arith.constant 15 : i32
    %513 = arith.cmpi slt, %512, %c15_i32_184 : i32
    %514 = arith.extui %513 : i1 to i32
    %515 = arith.sitofp %514 : i32 to f32
    %516 = vector.broadcast %515 : f32 to vector<2x128xf32>
    %517 = arith.mulf %516, %510 : vector<2x128xf32>
    %cst_185 = arith.constant 1.000000e+00 : f32
    %518 = arith.subf %cst_185, %515 : f32
    %519 = vector.broadcast %518 : f32 to vector<2x128xf32>
    %520 = arith.mulf %519, %480 : vector<2x128xf32>
    %521 = arith.addf %517, %520 : vector<2x128xf32>
    %c0_186 = arith.constant 0 : index
    %c0_187 = arith.constant 0 : index
    %522 = vector.load %arg17[%c0_186, %c0_187] : memref<2x128xf32, #tpu.memory_space<vmem>>, vector<2x128xf32>
    tpu.vector_store %arg17[%c0_186, %c0_187], %521 {strides = array<i32>} : memref<2x128xf32, #tpu.memory_space<vmem>>, vector<2x128xf32>,
    %523 = arith.truncf %521 : vector<2x128xf32> to vector<2x128xbf16>
    %c10_188 = arith.constant 10 : index
    %c0_189 = arith.constant 0 : index
    %524 = vector.load %arg11[%c10_188, %c0_189] : memref<16x128xbf16, #tpu.memory_space<vmem>>, vector<2x128xbf16>
    tpu.vector_store %arg11[%c10_188, %c0_189], %523 {strides = array<i32>} : memref<16x128xbf16, #tpu.memory_space<vmem>>, vector<2x128xbf16>,
    %c0_190 = arith.constant 0 : index
    %c0_191 = arith.constant 0 : index
    %525 = vector.load %arg18[%c0_190, %c0_191] : memref<2x128xf32, #tpu.memory_space<vmem>>, vector<2x128xf32>
    %c4_192 = arith.constant 4 : index
    %c0_193 = arith.constant 0 : index
    %526 = vector.load %arg16[%c4_192, %c0_193] : memref<16x384xf32, #tpu.memory_space<vmem>>, vector<2x384xf32>
    %527 = arith.truncf %525 : vector<2x128xf32> to vector<2x128xbf16>
    %cst_194 = arith.constant dense<0.000000e+00> : vector<2x384xf32>
    %528 = tpu.matmul %527, %24, %cst_194 {dimension_numbers = #tpu.dot_dimension_numbers<[1], [0], [0], [1], [0, 0, 1, 1], [], []>} : vector<2x128xbf16>, vector<128x384xbf16>, vector<2x384xf32> -> vector<2x384xf32>
    %529 = vector.extract_strided_slice %526 {offsets = [0, 0], sizes = [2, 128], strides = [1, 1]} : vector<2x384xf32> to vector<2x128xf32>
    %530 = vector.extract_strided_slice %528 {offsets = [0, 0], sizes = [2, 128], strides = [1, 1]} : vector<2x384xf32> to vector<2x128xf32>
    %531 = arith.addf %529, %530 : vector<2x128xf32>
    %532 = arith.negf %531 : vector<2x128xf32>
    %533 = math.exp %532 : vector<2x128xf32>
    %cst_195 = arith.constant 1.000000e+00 : f32
    %534 = vector.broadcast %cst_195 : f32 to vector<2x128xf32>
    %535 = arith.addf %534, %533 : vector<2x128xf32>
    %536 = arith.divf %534, %535 : vector<2x128xf32>
    %537 = vector.extract_strided_slice %526 {offsets = [0, 128], sizes = [2, 128], strides = [1, 1]} : vector<2x384xf32> to vector<2x128xf32>
    %538 = vector.extract_strided_slice %528 {offsets = [0, 128], sizes = [2, 128], strides = [1, 1]} : vector<2x384xf32> to vector<2x128xf32>
    %539 = arith.addf %537, %538 : vector<2x128xf32>
    %540 = arith.negf %539 : vector<2x128xf32>
    %541 = math.exp %540 : vector<2x128xf32>
    %cst_196 = arith.constant 1.000000e+00 : f32
    %542 = vector.broadcast %cst_196 : f32 to vector<2x128xf32>
    %543 = arith.addf %542, %541 : vector<2x128xf32>
    %544 = arith.divf %542, %543 : vector<2x128xf32>
    %545 = vector.extract_strided_slice %526 {offsets = [0, 256], sizes = [2, 128], strides = [1, 1]} : vector<2x384xf32> to vector<2x128xf32>
    %546 = vector.extract_strided_slice %528 {offsets = [0, 256], sizes = [2, 128], strides = [1, 1]} : vector<2x384xf32> to vector<2x128xf32>
    %547 = arith.addf %546, %22 : vector<2x128xf32>
    %548 = arith.mulf %536, %547 : vector<2x128xf32>
    %549 = arith.addf %545, %548 : vector<2x128xf32>
    %550 = math.tanh %549 : vector<2x128xf32>
    %cst_197 = arith.constant 1.000000e+00 : f32
    %551 = vector.broadcast %cst_197 : f32 to vector<2x128xf32>
    %552 = arith.subf %551, %544 : vector<2x128xf32>
    %553 = arith.mulf %552, %550 : vector<2x128xf32>
    %554 = arith.mulf %544, %525 : vector<2x128xf32>
    %555 = arith.addf %553, %554 : vector<2x128xf32>
    %c1_i32_198 = arith.constant 1 : i32
    %556 = arith.subi %c1_i32_198, %arg0 : i32
    %c8_i32_199 = arith.constant 8 : i32
    %557 = arith.muli %556, %c8_i32_199 : i32
    %c2_i32_200 = arith.constant 2 : i32
    %558 = arith.addi %557, %c2_i32_200 : i32
    %c15_i32_201 = arith.constant 15 : i32
    %559 = arith.cmpi slt, %558, %c15_i32_201 : i32
    %560 = arith.extui %559 : i1 to i32
    %561 = arith.sitofp %560 : i32 to f32
    %562 = vector.broadcast %561 : f32 to vector<2x128xf32>
    %563 = arith.mulf %562, %555 : vector<2x128xf32>
    %cst_202 = arith.constant 1.000000e+00 : f32
    %564 = arith.subf %cst_202, %561 : f32
    %565 = vector.broadcast %564 : f32 to vector<2x128xf32>
    %566 = arith.mulf %565, %525 : vector<2x128xf32>
    %567 = arith.addf %563, %566 : vector<2x128xf32>
    %c0_203 = arith.constant 0 : index
    %c0_204 = arith.constant 0 : index
    %568 = vector.load %arg18[%c0_203, %c0_204] : memref<2x128xf32, #tpu.memory_space<vmem>>, vector<2x128xf32>
    tpu.vector_store %arg18[%c0_203, %c0_204], %567 {strides = array<i32>} : memref<2x128xf32, #tpu.memory_space<vmem>>, vector<2x128xf32>,
    %569 = arith.truncf %567 : vector<2x128xf32> to vector<2x128xbf16>
    %c4_205 = arith.constant 4 : index
    %c0_206 = arith.constant 0 : index
    %570 = vector.load %arg12[%c4_205, %c0_206] : memref<16x128xbf16, #tpu.memory_space<vmem>>, vector<2x128xbf16>
    tpu.vector_store %arg12[%c4_205, %c0_206], %569 {strides = array<i32>} : memref<16x128xbf16, #tpu.memory_space<vmem>>, vector<2x128xbf16>,
    %c0_207 = arith.constant 0 : index
    %c0_208 = arith.constant 0 : index
    %571 = vector.load %arg17[%c0_207, %c0_208] : memref<2x128xf32, #tpu.memory_space<vmem>>, vector<2x128xf32>
    %c12_209 = arith.constant 12 : index
    %c0_210 = arith.constant 0 : index
    %572 = vector.load %arg15[%c12_209, %c0_210] : memref<16x384xf32, #tpu.memory_space<vmem>>, vector<2x384xf32>
    %573 = arith.truncf %571 : vector<2x128xf32> to vector<2x128xbf16>
    %cst_211 = arith.constant dense<0.000000e+00> : vector<2x384xf32>
    %574 = tpu.matmul %573, %23, %cst_211 {dimension_numbers = #tpu.dot_dimension_numbers<[1], [0], [0], [1], [0, 0, 1, 1], [], []>} : vector<2x128xbf16>, vector<128x384xbf16>, vector<2x384xf32> -> vector<2x384xf32>
    %575 = vector.extract_strided_slice %572 {offsets = [0, 0], sizes = [2, 128], strides = [1, 1]} : vector<2x384xf32> to vector<2x128xf32>
    %576 = vector.extract_strided_slice %574 {offsets = [0, 0], sizes = [2, 128], strides = [1, 1]} : vector<2x384xf32> to vector<2x128xf32>
    %577 = arith.addf %575, %576 : vector<2x128xf32>
    %578 = arith.negf %577 : vector<2x128xf32>
    %579 = math.exp %578 : vector<2x128xf32>
    %cst_212 = arith.constant 1.000000e+00 : f32
    %580 = vector.broadcast %cst_212 : f32 to vector<2x128xf32>
    %581 = arith.addf %580, %579 : vector<2x128xf32>
    %582 = arith.divf %580, %581 : vector<2x128xf32>
    %583 = vector.extract_strided_slice %572 {offsets = [0, 128], sizes = [2, 128], strides = [1, 1]} : vector<2x384xf32> to vector<2x128xf32>
    %584 = vector.extract_strided_slice %574 {offsets = [0, 128], sizes = [2, 128], strides = [1, 1]} : vector<2x384xf32> to vector<2x128xf32>
    %585 = arith.addf %583, %584 : vector<2x128xf32>
    %586 = arith.negf %585 : vector<2x128xf32>
    %587 = math.exp %586 : vector<2x128xf32>
    %cst_213 = arith.constant 1.000000e+00 : f32
    %588 = vector.broadcast %cst_213 : f32 to vector<2x128xf32>
    %589 = arith.addf %588, %587 : vector<2x128xf32>
    %590 = arith.divf %588, %589 : vector<2x128xf32>
    %591 = vector.extract_strided_slice %572 {offsets = [0, 256], sizes = [2, 128], strides = [1, 1]} : vector<2x384xf32> to vector<2x128xf32>
    %592 = vector.extract_strided_slice %574 {offsets = [0, 256], sizes = [2, 128], strides = [1, 1]} : vector<2x384xf32> to vector<2x128xf32>
    %593 = arith.addf %592, %19 : vector<2x128xf32>
    %594 = arith.mulf %582, %593 : vector<2x128xf32>
    %595 = arith.addf %591, %594 : vector<2x128xf32>
    %596 = math.tanh %595 : vector<2x128xf32>
    %cst_214 = arith.constant 1.000000e+00 : f32
    %597 = vector.broadcast %cst_214 : f32 to vector<2x128xf32>
    %598 = arith.subf %597, %590 : vector<2x128xf32>
    %599 = arith.mulf %598, %596 : vector<2x128xf32>
    %600 = arith.mulf %590, %571 : vector<2x128xf32>
    %601 = arith.addf %599, %600 : vector<2x128xf32>
    %c8_i32_215 = arith.constant 8 : i32
    %602 = arith.muli %arg0, %c8_i32_215 : i32
    %c6_i32_216 = arith.constant 6 : i32
    %603 = arith.addi %602, %c6_i32_216 : i32
    %c15_i32_217 = arith.constant 15 : i32
    %604 = arith.cmpi slt, %603, %c15_i32_217 : i32
    %605 = arith.extui %604 : i1 to i32
    %606 = arith.sitofp %605 : i32 to f32
    %607 = vector.broadcast %606 : f32 to vector<2x128xf32>
    %608 = arith.mulf %607, %601 : vector<2x128xf32>
    %cst_218 = arith.constant 1.000000e+00 : f32
    %609 = arith.subf %cst_218, %606 : f32
    %610 = vector.broadcast %609 : f32 to vector<2x128xf32>
    %611 = arith.mulf %610, %571 : vector<2x128xf32>
    %612 = arith.addf %608, %611 : vector<2x128xf32>
    %c0_219 = arith.constant 0 : index
    %c0_220 = arith.constant 0 : index
    %613 = vector.load %arg17[%c0_219, %c0_220] : memref<2x128xf32, #tpu.memory_space<vmem>>, vector<2x128xf32>
    tpu.vector_store %arg17[%c0_219, %c0_220], %612 {strides = array<i32>} : memref<2x128xf32, #tpu.memory_space<vmem>>, vector<2x128xf32>,
    %614 = arith.truncf %612 : vector<2x128xf32> to vector<2x128xbf16>
    %c12_221 = arith.constant 12 : index
    %c0_222 = arith.constant 0 : index
    %615 = vector.load %arg11[%c12_221, %c0_222] : memref<16x128xbf16, #tpu.memory_space<vmem>>, vector<2x128xbf16>
    tpu.vector_store %arg11[%c12_221, %c0_222], %614 {strides = array<i32>} : memref<16x128xbf16, #tpu.memory_space<vmem>>, vector<2x128xbf16>,
    %c0_223 = arith.constant 0 : index
    %c0_224 = arith.constant 0 : index
    %616 = vector.load %arg18[%c0_223, %c0_224] : memref<2x128xf32, #tpu.memory_space<vmem>>, vector<2x128xf32>
    %c2_225 = arith.constant 2 : index
    %c0_226 = arith.constant 0 : index
    %617 = vector.load %arg16[%c2_225, %c0_226] : memref<16x384xf32, #tpu.memory_space<vmem>>, vector<2x384xf32>
    %618 = arith.truncf %616 : vector<2x128xf32> to vector<2x128xbf16>
    %cst_227 = arith.constant dense<0.000000e+00> : vector<2x384xf32>
    %619 = tpu.matmul %618, %24, %cst_227 {dimension_numbers = #tpu.dot_dimension_numbers<[1], [0], [0], [1], [0, 0, 1, 1], [], []>} : vector<2x128xbf16>, vector<128x384xbf16>, vector<2x384xf32> -> vector<2x384xf32>
    %620 = vector.extract_strided_slice %617 {offsets = [0, 0], sizes = [2, 128], strides = [1, 1]} : vector<2x384xf32> to vector<2x128xf32>
    %621 = vector.extract_strided_slice %619 {offsets = [0, 0], sizes = [2, 128], strides = [1, 1]} : vector<2x384xf32> to vector<2x128xf32>
    %622 = arith.addf %620, %621 : vector<2x128xf32>
    %623 = arith.negf %622 : vector<2x128xf32>
    %624 = math.exp %623 : vector<2x128xf32>
    %cst_228 = arith.constant 1.000000e+00 : f32
    %625 = vector.broadcast %cst_228 : f32 to vector<2x128xf32>
    %626 = arith.addf %625, %624 : vector<2x128xf32>
    %627 = arith.divf %625, %626 : vector<2x128xf32>
    %628 = vector.extract_strided_slice %617 {offsets = [0, 128], sizes = [2, 128], strides = [1, 1]} : vector<2x384xf32> to vector<2x128xf32>
    %629 = vector.extract_strided_slice %619 {offsets = [0, 128], sizes = [2, 128], strides = [1, 1]} : vector<2x384xf32> to vector<2x128xf32>
    %630 = arith.addf %628, %629 : vector<2x128xf32>
    %631 = arith.negf %630 : vector<2x128xf32>
    %632 = math.exp %631 : vector<2x128xf32>
    %cst_229 = arith.constant 1.000000e+00 : f32
    %633 = vector.broadcast %cst_229 : f32 to vector<2x128xf32>
    %634 = arith.addf %633, %632 : vector<2x128xf32>
    %635 = arith.divf %633, %634 : vector<2x128xf32>
    %636 = vector.extract_strided_slice %617 {offsets = [0, 256], sizes = [2, 128], strides = [1, 1]} : vector<2x384xf32> to vector<2x128xf32>
    %637 = vector.extract_strided_slice %619 {offsets = [0, 256], sizes = [2, 128], strides = [1, 1]} : vector<2x384xf32> to vector<2x128xf32>
    %638 = arith.addf %637, %22 : vector<2x128xf32>
    %639 = arith.mulf %627, %638 : vector<2x128xf32>
    %640 = arith.addf %636, %639 : vector<2x128xf32>
    %641 = math.tanh %640 : vector<2x128xf32>
    %cst_230 = arith.constant 1.000000e+00 : f32
    %642 = vector.broadcast %cst_230 : f32 to vector<2x128xf32>
    %643 = arith.subf %642, %635 : vector<2x128xf32>
    %644 = arith.mulf %643, %641 : vector<2x128xf32>
    %645 = arith.mulf %635, %616 : vector<2x128xf32>
    %646 = arith.addf %644, %645 : vector<2x128xf32>
    %c1_i32_231 = arith.constant 1 : i32
    %647 = arith.subi %c1_i32_231, %arg0 : i32
    %c8_i32_232 = arith.constant 8 : i32
    %648 = arith.muli %647, %c8_i32_232 : i32
    %c1_i32_233 = arith.constant 1 : i32
    %649 = arith.addi %648, %c1_i32_233 : i32
    %c15_i32_234 = arith.constant 15 : i32
    %650 = arith.cmpi slt, %649, %c15_i32_234 : i32
    %651 = arith.extui %650 : i1 to i32
    %652 = arith.sitofp %651 : i32 to f32
    %653 = vector.broadcast %652 : f32 to vector<2x128xf32>
    %654 = arith.mulf %653, %646 : vector<2x128xf32>
    %cst_235 = arith.constant 1.000000e+00 : f32
    %655 = arith.subf %cst_235, %652 : f32
    %656 = vector.broadcast %655 : f32 to vector<2x128xf32>
    %657 = arith.mulf %656, %616 : vector<2x128xf32>
    %658 = arith.addf %654, %657 : vector<2x128xf32>
    %c0_236 = arith.constant 0 : index
    %c0_237 = arith.constant 0 : index
    %659 = vector.load %arg18[%c0_236, %c0_237] : memref<2x128xf32, #tpu.memory_space<vmem>>, vector<2x128xf32>
    tpu.vector_store %arg18[%c0_236, %c0_237], %658 {strides = array<i32>} : memref<2x128xf32, #tpu.memory_space<vmem>>, vector<2x128xf32>,
    %660 = arith.truncf %658 : vector<2x128xf32> to vector<2x128xbf16>
    %c2_238 = arith.constant 2 : index
    %c0_239 = arith.constant 0 : index
    %661 = vector.load %arg12[%c2_238, %c0_239] : memref<16x128xbf16, #tpu.memory_space<vmem>>, vector<2x128xbf16>
    tpu.vector_store %arg12[%c2_238, %c0_239], %660 {strides = array<i32>} : memref<16x128xbf16, #tpu.memory_space<vmem>>, vector<2x128xbf16>,
    %c0_240 = arith.constant 0 : index
    %c0_241 = arith.constant 0 : index
    %662 = vector.load %arg17[%c0_240, %c0_241] : memref<2x128xf32, #tpu.memory_space<vmem>>, vector<2x128xf32>
    %c14_242 = arith.constant 14 : index
    %c0_243 = arith.constant 0 : index
    %663 = vector.load %arg15[%c14_242, %c0_243] : memref<16x384xf32, #tpu.memory_space<vmem>>, vector<2x384xf32>
    %664 = arith.truncf %662 : vector<2x128xf32> to vector<2x128xbf16>
    %cst_244 = arith.constant dense<0.000000e+00> : vector<2x384xf32>
    %665 = tpu.matmul %664, %23, %cst_244 {dimension_numbers = #tpu.dot_dimension_numbers<[1], [0], [0], [1], [0, 0, 1, 1], [], []>} : vector<2x128xbf16>, vector<128x384xbf16>, vector<2x384xf32> -> vector<2x384xf32>
    %666 = vector.extract_strided_slice %663 {offsets = [0, 0], sizes = [2, 128], strides = [1, 1]} : vector<2x384xf32> to vector<2x128xf32>
    %667 = vector.extract_strided_slice %665 {offsets = [0, 0], sizes = [2, 128], strides = [1, 1]} : vector<2x384xf32> to vector<2x128xf32>
    %668 = arith.addf %666, %667 : vector<2x128xf32>
    %669 = arith.negf %668 : vector<2x128xf32>
    %670 = math.exp %669 : vector<2x128xf32>
    %cst_245 = arith.constant 1.000000e+00 : f32
    %671 = vector.broadcast %cst_245 : f32 to vector<2x128xf32>
    %672 = arith.addf %671, %670 : vector<2x128xf32>
    %673 = arith.divf %671, %672 : vector<2x128xf32>
    %674 = vector.extract_strided_slice %663 {offsets = [0, 128], sizes = [2, 128], strides = [1, 1]} : vector<2x384xf32> to vector<2x128xf32>
    %675 = vector.extract_strided_slice %665 {offsets = [0, 128], sizes = [2, 128], strides = [1, 1]} : vector<2x384xf32> to vector<2x128xf32>
    %676 = arith.addf %674, %675 : vector<2x128xf32>
    %677 = arith.negf %676 : vector<2x128xf32>
    %678 = math.exp %677 : vector<2x128xf32>
    %cst_246 = arith.constant 1.000000e+00 : f32
    %679 = vector.broadcast %cst_246 : f32 to vector<2x128xf32>
    %680 = arith.addf %679, %678 : vector<2x128xf32>
    %681 = arith.divf %679, %680 : vector<2x128xf32>
    %682 = vector.extract_strided_slice %663 {offsets = [0, 256], sizes = [2, 128], strides = [1, 1]} : vector<2x384xf32> to vector<2x128xf32>
    %683 = vector.extract_strided_slice %665 {offsets = [0, 256], sizes = [2, 128], strides = [1, 1]} : vector<2x384xf32> to vector<2x128xf32>
    %684 = arith.addf %683, %19 : vector<2x128xf32>
    %685 = arith.mulf %673, %684 : vector<2x128xf32>
    %686 = arith.addf %682, %685 : vector<2x128xf32>
    %687 = math.tanh %686 : vector<2x128xf32>
    %cst_247 = arith.constant 1.000000e+00 : f32
    %688 = vector.broadcast %cst_247 : f32 to vector<2x128xf32>
    %689 = arith.subf %688, %681 : vector<2x128xf32>
    %690 = arith.mulf %689, %687 : vector<2x128xf32>
    %691 = arith.mulf %681, %662 : vector<2x128xf32>
    %692 = arith.addf %690, %691 : vector<2x128xf32>
    %c8_i32_248 = arith.constant 8 : i32
    %693 = arith.muli %arg0, %c8_i32_248 : i32
    %c7_i32_249 = arith.constant 7 : i32
    %694 = arith.addi %693, %c7_i32_249 : i32
    %c15_i32_250 = arith.constant 15 : i32
    %695 = arith.cmpi slt, %694, %c15_i32_250 : i32
    %696 = arith.extui %695 : i1 to i32
    %697 = arith.sitofp %696 : i32 to f32
    %698 = vector.broadcast %697 : f32 to vector<2x128xf32>
    %699 = arith.mulf %698, %692 : vector<2x128xf32>
    %cst_251 = arith.constant 1.000000e+00 : f32
    %700 = arith.subf %cst_251, %697 : f32
    %701 = vector.broadcast %700 : f32 to vector<2x128xf32>
    %702 = arith.mulf %701, %662 : vector<2x128xf32>
    %703 = arith.addf %699, %702 : vector<2x128xf32>
    %c0_252 = arith.constant 0 : index
    %c0_253 = arith.constant 0 : index
    %704 = vector.load %arg17[%c0_252, %c0_253] : memref<2x128xf32, #tpu.memory_space<vmem>>, vector<2x128xf32>
    tpu.vector_store %arg17[%c0_252, %c0_253], %703 {strides = array<i32>} : memref<2x128xf32, #tpu.memory_space<vmem>>, vector<2x128xf32>,
    %705 = arith.truncf %703 : vector<2x128xf32> to vector<2x128xbf16>
    %c14_254 = arith.constant 14 : index
    %c0_255 = arith.constant 0 : index
    %706 = vector.load %arg11[%c14_254, %c0_255] : memref<16x128xbf16, #tpu.memory_space<vmem>>, vector<2x128xbf16>
    tpu.vector_store %arg11[%c14_254, %c0_255], %705 {strides = array<i32>} : memref<16x128xbf16, #tpu.memory_space<vmem>>, vector<2x128xbf16>,
    %c0_256 = arith.constant 0 : index
    %c0_257 = arith.constant 0 : index
    %707 = vector.load %arg18[%c0_256, %c0_257] : memref<2x128xf32, #tpu.memory_space<vmem>>, vector<2x128xf32>
    %c0_258 = arith.constant 0 : index
    %c0_259 = arith.constant 0 : index
    %708 = vector.load %arg16[%c0_258, %c0_259] : memref<16x384xf32, #tpu.memory_space<vmem>>, vector<2x384xf32>
    %709 = arith.truncf %707 : vector<2x128xf32> to vector<2x128xbf16>
    %cst_260 = arith.constant dense<0.000000e+00> : vector<2x384xf32>
    %710 = tpu.matmul %709, %24, %cst_260 {dimension_numbers = #tpu.dot_dimension_numbers<[1], [0], [0], [1], [0, 0, 1, 1], [], []>} : vector<2x128xbf16>, vector<128x384xbf16>, vector<2x384xf32> -> vector<2x384xf32>
    %711 = vector.extract_strided_slice %708 {offsets = [0, 0], sizes = [2, 128], strides = [1, 1]} : vector<2x384xf32> to vector<2x128xf32>
    %712 = vector.extract_strided_slice %710 {offsets = [0, 0], sizes = [2, 128], strides = [1, 1]} : vector<2x384xf32> to vector<2x128xf32>
    %713 = arith.addf %711, %712 : vector<2x128xf32>
    %714 = arith.negf %713 : vector<2x128xf32>
    %715 = math.exp %714 : vector<2x128xf32>
    %cst_261 = arith.constant 1.000000e+00 : f32
    %716 = vector.broadcast %cst_261 : f32 to vector<2x128xf32>
    %717 = arith.addf %716, %715 : vector<2x128xf32>
    %718 = arith.divf %716, %717 : vector<2x128xf32>
    %719 = vector.extract_strided_slice %708 {offsets = [0, 128], sizes = [2, 128], strides = [1, 1]} : vector<2x384xf32> to vector<2x128xf32>
    %720 = vector.extract_strided_slice %710 {offsets = [0, 128], sizes = [2, 128], strides = [1, 1]} : vector<2x384xf32> to vector<2x128xf32>
    %721 = arith.addf %719, %720 : vector<2x128xf32>
    %722 = arith.negf %721 : vector<2x128xf32>
    %723 = math.exp %722 : vector<2x128xf32>
    %cst_262 = arith.constant 1.000000e+00 : f32
    %724 = vector.broadcast %cst_262 : f32 to vector<2x128xf32>
    %725 = arith.addf %724, %723 : vector<2x128xf32>
    %726 = arith.divf %724, %725 : vector<2x128xf32>
    %727 = vector.extract_strided_slice %708 {offsets = [0, 256], sizes = [2, 128], strides = [1, 1]} : vector<2x384xf32> to vector<2x128xf32>
    %728 = vector.extract_strided_slice %710 {offsets = [0, 256], sizes = [2, 128], strides = [1, 1]} : vector<2x384xf32> to vector<2x128xf32>
    %729 = arith.addf %728, %22 : vector<2x128xf32>
    %730 = arith.mulf %718, %729 : vector<2x128xf32>
    %731 = arith.addf %727, %730 : vector<2x128xf32>
    %732 = math.tanh %731 : vector<2x128xf32>
    %cst_263 = arith.constant 1.000000e+00 : f32
    %733 = vector.broadcast %cst_263 : f32 to vector<2x128xf32>
    %734 = arith.subf %733, %726 : vector<2x128xf32>
    %735 = arith.mulf %734, %732 : vector<2x128xf32>
    %736 = arith.mulf %726, %707 : vector<2x128xf32>
    %737 = arith.addf %735, %736 : vector<2x128xf32>
    %c1_i32_264 = arith.constant 1 : i32
    %738 = arith.subi %c1_i32_264, %arg0 : i32
    %c8_i32_265 = arith.constant 8 : i32
    %739 = arith.muli %738, %c8_i32_265 : i32
    %c0_i32_266 = arith.constant 0 : i32
    %740 = arith.addi %739, %c0_i32_266 : i32
    %c15_i32_267 = arith.constant 15 : i32
    %741 = arith.cmpi slt, %740, %c15_i32_267 : i32
    %742 = arith.extui %741 : i1 to i32
    %743 = arith.sitofp %742 : i32 to f32
    %744 = vector.broadcast %743 : f32 to vector<2x128xf32>
    %745 = arith.mulf %744, %737 : vector<2x128xf32>
    %cst_268 = arith.constant 1.000000e+00 : f32
    %746 = arith.subf %cst_268, %743 : f32
    %747 = vector.broadcast %746 : f32 to vector<2x128xf32>
    %748 = arith.mulf %747, %707 : vector<2x128xf32>
    %749 = arith.addf %745, %748 : vector<2x128xf32>
    %c0_269 = arith.constant 0 : index
    %c0_270 = arith.constant 0 : index
    %750 = vector.load %arg18[%c0_269, %c0_270] : memref<2x128xf32, #tpu.memory_space<vmem>>, vector<2x128xf32>
    tpu.vector_store %arg18[%c0_269, %c0_270], %749 {strides = array<i32>} : memref<2x128xf32, #tpu.memory_space<vmem>>, vector<2x128xf32>,
    %751 = arith.truncf %749 : vector<2x128xf32> to vector<2x128xbf16>
    %c0_271 = arith.constant 0 : index
    %c0_272 = arith.constant 0 : index
    %752 = vector.load %arg12[%c0_271, %c0_272] : memref<16x128xbf16, #tpu.memory_space<vmem>>, vector<2x128xbf16>
    tpu.vector_store %arg12[%c0_271, %c0_272], %751 {strides = array<i32>} : memref<16x128xbf16, #tpu.memory_space<vmem>>, vector<2x128xbf16>,
    %c1_i32_273 = arith.constant 1 : i32
    %753 = arith.cmpi eq, %arg0, %c1_i32_273 : i32
    %754 = arith.extui %753 : i1 to i32
    %c0_i32_274 = arith.constant 0 : i32
    %755 = arith.cmpi ne, %754, %c0_i32_274 : i32
    scf.if %755 {
      %c0_275 = arith.constant 0 : index
      %c0_276 = arith.constant 0 : index
      %756 = vector.load %arg17[%c0_275, %c0_276] : memref<2x128xf32, #tpu.memory_space<vmem>>, vector<2x128xf32>
      %c0_277 = arith.constant 0 : index
      %c0_278 = arith.constant 0 : index
      %757 = vector.load %arg13[%c0_277, %c0_278] : memref<2x128xf32, #tpu.memory_space<vmem>>, vector<2x128xf32>
      tpu.vector_store %arg13[%c0_277, %c0_278], %756 {strides = array<i32>} : memref<2x128xf32, #tpu.memory_space<vmem>>, vector<2x128xf32>,
      %c0_279 = arith.constant 0 : index
      %c0_280 = arith.constant 0 : index
      %758 = vector.load %arg18[%c0_279, %c0_280] : memref<2x128xf32, #tpu.memory_space<vmem>>, vector<2x128xf32>
      %c0_281 = arith.constant 0 : index
      %c0_282 = arith.constant 0 : index
      %759 = vector.load %arg14[%c0_281, %c0_282] : memref<2x128xf32, #tpu.memory_space<vmem>>, vector<2x128xf32>
      tpu.vector_store %arg14[%c0_281, %c0_282], %758 {strides = array<i32>} : memref<2x128xf32, #tpu.memory_space<vmem>>, vector<2x128xf32>,
    } else {
    }
    return
  }
  func.func @transform_0(%arg0: i32) -> (i32, i32) {
    %c0_i32 = arith.constant 0 : i32
    %c0_i32_0 = arith.constant 0 : i32
    return %arg0, %c0_i32 : i32, i32
  }
  func.func @transform_1(%arg0: i32) -> (i32, i32) {
    %c1_i32 = arith.constant 1 : i32
    %0 = arith.subi %c1_i32, %arg0 : i32
    %c0_i32 = arith.constant 0 : i32
    %c0_i32_0 = arith.constant 0 : i32
    return %0, %c0_i32 : i32, i32
  }
  func.func @transform_2(%arg0: i32) -> (i32, i32) {
    %c0_i32 = arith.constant 0 : i32
    %c0_i32_0 = arith.constant 0 : i32
    %c0_i32_1 = arith.constant 0 : i32
    return %c0_i32, %c0_i32_0 : i32, i32
  }
  func.func @transform_3(%arg0: i32) -> (i32, i32) {
    %c0_i32 = arith.constant 0 : i32
    %c0_i32_0 = arith.constant 0 : i32
    %c0_i32_1 = arith.constant 0 : i32
    return %c0_i32, %c0_i32_0 : i32, i32
  }
  func.func @transform_4(%arg0: i32) -> (i32, i32) {
    %c0_i32 = arith.constant 0 : i32
    %c0_i32_0 = arith.constant 0 : i32
    %c0_i32_1 = arith.constant 0 : i32
    return %c0_i32, %c0_i32_0 : i32, i32
  }
  func.func @transform_5(%arg0: i32) -> (i32, i32) {
    %c0_i32 = arith.constant 0 : i32
    %c0_i32_0 = arith.constant 0 : i32
    %c0_i32_1 = arith.constant 0 : i32
    return %c0_i32, %c0_i32_0 : i32, i32
  }
  func.func @transform_6(%arg0: i32) -> (i32, i32) {
    %c0_i32 = arith.constant 0 : i32
    %c0_i32_0 = arith.constant 0 : i32
    %c0_i32_1 = arith.constant 0 : i32
    return %c0_i32, %c0_i32_0 : i32, i32
  }
  func.func @transform_7(%arg0: i32) -> (i32, i32) {
    %c0_i32 = arith.constant 0 : i32
    %c0_i32_0 = arith.constant 0 : i32
    %c0_i32_1 = arith.constant 0 : i32
    return %c0_i32, %c0_i32_0 : i32, i32
  }
  func.func @transform_8(%arg0: i32) -> (i32, i32) {
    %c0_i32 = arith.constant 0 : i32
    %c0_i32_0 = arith.constant 0 : i32
    %c0_i32_1 = arith.constant 0 : i32
    return %c0_i32, %c0_i32_0 : i32, i32
  }
  func.func @transform_9(%arg0: i32) -> (i32, i32) {
    %c0_i32 = arith.constant 0 : i32
    %c0_i32_0 = arith.constant 0 : i32
    %c0_i32_1 = arith.constant 0 : i32
    return %c0_i32, %c0_i32_0 : i32, i32
  }
  func.func @transform_10(%arg0: i32) -> (i32, i32) {
    %c0_i32 = arith.constant 0 : i32
    %c0_i32_0 = arith.constant 0 : i32
    return %arg0, %c0_i32 : i32, i32
  }
  func.func @transform_11(%arg0: i32) -> (i32, i32) {
    %c1_i32 = arith.constant 1 : i32
    %0 = arith.subi %c1_i32, %arg0 : i32
    %c0_i32 = arith.constant 0 : i32
    %c0_i32_0 = arith.constant 0 : i32
    return %0, %c0_i32 : i32, i32
  }
  func.func @transform_12(%arg0: i32) -> (i32, i32) {
    %c0_i32 = arith.constant 0 : i32
    %c0_i32_0 = arith.constant 0 : i32
    %c0_i32_1 = arith.constant 0 : i32
    return %c0_i32, %c0_i32_0 : i32, i32
  }
  func.func @transform_13(%arg0: i32) -> (i32, i32) {
    %c0_i32 = arith.constant 0 : i32
    %c0_i32_0 = arith.constant 0 : i32
    %c0_i32_1 = arith.constant 0 : i32
    return %c0_i32, %c0_i32_0 : i32, i32
  }
}

</mosaic_0001>

<llo_original>
// kernel: _lambda_.2
$region0: #{_lambda_.2}
  #allocation0 [shape = 'u32[]', space=smem, size = 0x4, offset = 0x4, fixed_abs, tag = 'smem constant byte address 0x4 - core index']
  #allocation1 [shape = 'u32[72,128]{1,0:T(1,128)}', space=vmem, size = 0x9000, scoped, tag = 'internal scratch']
  #allocation2 [shape = 'f32[16,384]{1,0:T(8,128)}', space=vmem, size = 0x6000, scoped, tag = 'scratch operand']
  #allocation3 [shape = 'f32[16,384]{1,0:T(8,128)}', space=vmem, size = 0x6000, scoped, tag = 'scratch operand']
  #allocation4 [shape = 'f32[2,128]{1,0:T(2,128)}', space=vmem, size = 0x400, scoped, tag = 'scratch operand']
  #allocation5 [shape = 'f32[2,128]{1,0:T(2,128)}', space=vmem, size = 0x400, scoped, tag = 'scratch operand']
  %s0 = inlined_call_operand.vmem [shape: bf16[32,16], index: 0, kind: input, shape index: {}, may-alias: {0,1}]
  %s1 = inlined_call_operand.vmem [shape: bf16[32,16], index: 1, kind: input, shape index: {}, may-alias: {0,1}]
  %s2 = inlined_call_operand.vmem [shape: bf16[16,384], index: 2, kind: input, shape index: {}]
  %s3 = inlined_call_operand.vmem [shape: bf16[16,384], index: 3, kind: input, shape index: {}]
  %s4 = inlined_call_operand.vmem [shape: bf16[128,384], index: 4, kind: input, shape index: {}]
  %s5 = inlined_call_operand.vmem [shape: bf16[128,384], index: 5, kind: input, shape index: {}]
  %s6 = inlined_call_operand.vmem [shape: f32[1,384], index: 6, kind: input, shape index: {}]
  %s7 = inlined_call_operand.vmem [shape: f32[1,384], index: 7, kind: input, shape index: {}]
  %s8 = inlined_call_operand.vmem [shape: f32[1,128], index: 8, kind: input, shape index: {}]
  %s9 = inlined_call_operand.vmem [shape: f32[1,128], index: 9, kind: input, shape index: {}]
  %s10 = inlined_call_operand.vmem [shape: bf16[32,128], index: 10, kind: output, shape index: {0}]
  %s11 = inlined_call_operand.vmem [shape: bf16[32,128], index: 11, kind: output, shape index: {1}]
  %s12 = inlined_call_operand.vmem [shape: f32[2,128], index: 12, kind: output, shape index: {2}]
  %s13 = inlined_call_operand.vmem [shape: f32[2,128], index: 13, kind: output, shape index: {3}]
  %14 = xla_tuple %s10, %s11, %s12, %s13
  %s15 = sld [smem:[#allocation0]]
  $region105: #{_lambda_.2} parent=0
    _
  %s17 = ssub.s32 1, %s15
  %s18 = scalar_select 0, %s17, %s15
  loop: start=0, step=1, limit=4
  $region2: #{_lambda_.2} parent=0 // loop_pre_header
    _
  $region3: #{_lambda_.2} parent=0 // loop_header
    %s20 = sphi 0, %s24
    %p21 = scmp.ge.s32.totalorder %s20, 4
    %s30 = sphi 0, %s32
    %s33 = sphi 0, %s30
    %s34 = sphi 0, %s33
    %s50 = sphi 0, %s34
    %s58 = sphi 0, %s60
    %s61 = sphi 0, %s58
    %s62 = sphi 0, %s61
    %s78 = sphi 0, %s62
    %s82 = sphi 0, %s82
    %s84 = sphi 0, %s82
    %s85 = sphi 0, %s84
    %s99 = sphi 0, %s85
    %s103 = sphi 0, %s103
    %s105 = sphi 0, %s103
    %s106 = sphi 0, %s105
    %s120 = sphi 0, %s106
    %s124 = sphi 0, %s124
    %s126 = sphi 0, %s124
    %s127 = sphi 0, %s126
    %s141 = sphi 0, %s127
    %s145 = sphi 0, %s145
    %s147 = sphi 0, %s145
    %s148 = sphi 0, %s147
    %s162 = sphi 0, %s148
    %s166 = sphi 0, %s166
    %s168 = sphi 0, %s166
    %s169 = sphi 0, %s168
    %s183 = sphi 0, %s169
    %s187 = sphi 0, %s187
    %s189 = sphi 0, %s187
    %s190 = sphi 0, %s189
    %s204 = sphi 0, %s190
    %s208 = sphi 0, %s208
    %s210 = sphi 0, %s208
    %s211 = sphi 0, %s210
    %s225 = sphi 0, %s211
    %s229 = sphi 0, %s229
    %s231 = sphi 0, %s229
    %s232 = sphi 0, %s231
    %s246 = sphi 0, %s232
    %s252 = sphi 0, %s254
    %s255 = sphi 0, %s252
    %s256 = sphi 0, %s255
    %s272 = sphi 0, %s256
    %s280 = sphi 0, %s282
    %s283 = sphi 0, %s280
    %s284 = sphi 0, %s283
    %s300 = sphi 0, %s284
    %s304 = sphi 0, %s304
    %s306 = sphi 0, %s304
    %s307 = sphi 0, %s306
    %s321 = sphi 0, %s307
    %s325 = sphi 0, %s325
    %s327 = sphi 0, %s325
    %s328 = sphi 0, %s327
    %s342 = sphi 0, %s328
  $region4: #{_lambda_.2} parent=0 // loop_header_branch
    %23 = sbr.rel (%p21) target = $region8
  $region5: #{_lambda_.2} parent=0 // loop_body
    %s25 = ssub.s32 %s20, 1
    %s26 = ssub.s32 %s20, 2
    %s27 = sadd.s32 %s20, 1
    %s28 = ssub.s32 %s20, %s27
    %p29 = scmp.eq.s32.totalorder %s28, 0
    %s31 = sadd.s32 %s30, 1
    %s32 = scalar_select %p29, %s30, %s31
    %p35 = pneg %p29
    %p36 = scmp.eq.s32.totalorder %s20, 1
    %p37 = por %p35, %p36
    %p38 = scmp.ne.s32.totalorder %s30, %s33
    %p39 = scmp.eq.s32.totalorder %s20, 0
    %p40 = por %p38, %p39
    %p41 = scmp.ne.s32.totalorder %s30, %s33
    %p42 = scmp.eq.s32.totalorder %s25, 1
    %p43 = por %p41, %p42
    %p44 = scmp.ne.s32.totalorder %s33, %s34
    %p45 = scmp.eq.s32.totalorder %s25, 0
    %p46 = por %p44, %p45
    %p47 = scmp.ne.s32.totalorder %s33, %s34
    %p48 = scmp.eq.s32.totalorder %s26, 1
    %p49 = por %p47, %p48
    %p51 = scmp.ne.s32.totalorder %s34, %s50
    %p52 = scmp.eq.s32.totalorder %s26, 0
    %p53 = por %p51, %p52
    %s54 = ssub.s32 1, %s20
    %s55 = ssub.s32 1, %s27
    %s56 = ssub.s32 %s54, %s55
    %p57 = scmp.eq.s32.totalorder %s56, 0
    %s59 = sadd.s32 %s58, 1
    %s60 = scalar_select %p57, %s58, %s59
    %p63 = pneg %p57
    %p64 = scmp.eq.s32.totalorder %s20, 1
    %p65 = por %p63, %p64
    %p66 = scmp.ne.s32.totalorder %s58, %s61
    %p67 = scmp.eq.s32.totalorder %s20, 0
    %p68 = por %p66, %p67
    %p69 = scmp.ne.s32.totalorder %s58, %s61
    %p70 = scmp.eq.s32.totalorder %s25, 1
    %p71 = por %p69, %p70
    %p72 = scmp.ne.s32.totalorder %s61, %s62
    %p73 = scmp.eq.s32.totalorder %s25, 0
    %p74 = por %p72, %p73
    %p75 = scmp.ne.s32.totalorder %s61, %s62
    %p76 = scmp.eq.s32.totalorder %s26, 1
    %p77 = por %p75, %p76
    %p79 = scmp.ne.s32.totalorder %s62, %s78
    %p80 = scmp.eq.s32.totalorder %s26, 0
    %p81 = por %p79, %p80
    %s83 = sadd.s32 %s82, 1
    %p86 = scmp.eq.s32.totalorder %s20, 1
    %p87 = scmp.ne.s32.totalorder %s82, %s84
    %p88 = scmp.eq.s32.totalorder %s20, 0
    %p89 = por %p87, %p88
    %p90 = scmp.ne.s32.totalorder %s82, %s84
    %p91 = scmp.eq.s32.totalorder %s25, 1
    %p92 = por %p90, %p91
    %p93 = scmp.ne.s32.totalorder %s84, %s85
    %p94 = scmp.eq.s32.totalorder %s25, 0
    %p95 = por %p93, %p94
    %p96 = scmp.ne.s32.totalorder %s84, %s85
    %p97 = scmp.eq.s32.totalorder %s26, 1
    %p98 = por %p96, %p97
    %p100 = scmp.ne.s32.totalorder %s85, %s99
    %p101 = scmp.eq.s32.totalorder %s26, 0
    %p102 = por %p100, %p101
    %s104 = sadd.s32 %s103, 1
    %p107 = scmp.eq.s32.totalorder %s20, 1
    %p108 = scmp.ne.s32.totalorder %s103, %s105
    %p109 = scmp.eq.s32.totalorder %s20, 0
    %p110 = por %p108, %p109
    %p111 = scmp.ne.s32.totalorder %s103, %s105
    %p112 = scmp.eq.s32.totalorder %s25, 1
    %p113 = por %p111, %p112
    %p114 = scmp.ne.s32.totalorder %s105, %s106
    %p115 = scmp.eq.s32.totalorder %s25, 0
    %p116 = por %p114, %p115
    %p117 = scmp.ne.s32.totalorder %s105, %s106
    %p118 = scmp.eq.s32.totalorder %s26, 1
    %p119 = por %p117, %p118
    %p121 = scmp.ne.s32.totalorder %s106, %s120
    %p122 = scmp.eq.s32.totalorder %s26, 0
    %p123 = por %p121, %p122
    %s125 = sadd.s32 %s124, 1
    %p128 = scmp.eq.s32.totalorder %s20, 1
    %p129 = scmp.ne.s32.totalorder %s124, %s126
    %p130 = scmp.eq.s32.totalorder %s20, 0
    %p131 = por %p129, %p130
    %p132 = scmp.ne.s32.totalorder %s124, %s126
    %p133 = scmp.eq.s32.totalorder %s25, 1
    %p134 = por %p132, %p133
    %p135 = scmp.ne.s32.totalorder %s126, %s127
    %p136 = scmp.eq.s32.totalorder %s25, 0
    %p137 = por %p135, %p136
    %p138 = scmp.ne.s32.totalorder %s126, %s127
    %p139 = scmp.eq.s32.totalorder %s26, 1
    %p140 = por %p138, %p139
    %p142 = scmp.ne.s32.totalorder %s127, %s141
    %p143 = scmp.eq.s32.totalorder %s26, 0
    %p144 = por %p142, %p143
    %s146 = sadd.s32 %s145, 1
    %p149 = scmp.eq.s32.totalorder %s20, 1
    %p150 = scmp.ne.s32.totalorder %s145, %s147
    %p151 = scmp.eq.s32.totalorder %s20, 0
    %p152 = por %p150, %p151
    %p153 = scmp.ne.s32.totalorder %s145, %s147
    %p154 = scmp.eq.s32.totalorder %s25, 1
    %p155 = por %p153, %p154
    %p156 = scmp.ne.s32.totalorder %s147, %s148
    %p157 = scmp.eq.s32.totalorder %s25, 0
    %p158 = por %p156, %p157
    %p159 = scmp.ne.s32.totalorder %s147, %s148
    %p160 = scmp.eq.s32.totalorder %s26, 1
    %p161 = por %p159, %p160
    %p163 = scmp.ne.s32.totalorder %s148, %s162
    %p164 = scmp.eq.s32.totalorder %s26, 0
    %p165 = por %p163, %p164
    %s167 = sadd.s32 %s166, 1
    %p170 = scmp.eq.s32.totalorder %s20, 1
    %p171 = scmp.ne.s32.totalorder %s166, %s168
    %p172 = scmp.eq.s32.totalorder %s20, 0
    %p173 = por %p171, %p172
    %p174 = scmp.ne.s32.totalorder %s166, %s168
    %p175 = scmp.eq.s32.totalorder %s25, 1
    %p176 = por %p174, %p175
    %p177 = scmp.ne.s32.totalorder %s168, %s169
    %p178 = scmp.eq.s32.totalorder %s25, 0
    %p179 = por %p177, %p178
    %p180 = scmp.ne.s32.totalorder %s168, %s169
    %p181 = scmp.eq.s32.totalorder %s26, 1
    %p182 = por %p180, %p181
    %p184 = scmp.ne.s32.totalorder %s169, %s183
    %p185 = scmp.eq.s32.totalorder %s26, 0
    %p186 = por %p184, %p185
    %s188 = sadd.s32 %s187, 1
    %p191 = scmp.eq.s32.totalorder %s20, 1
    %p192 = scmp.ne.s32.totalorder %s187, %s189
    %p193 = scmp.eq.s32.totalorder %s20, 0
    %p194 = por %p192, %p193
    %p195 = scmp.ne.s32.totalorder %s187, %s189
    %p196 = scmp.eq.s32.totalorder %s25, 1
    %p197 = por %p195, %p196
    %p198 = scmp.ne.s32.totalorder %s189, %s190
    %p199 = scmp.eq.s32.totalorder %s25, 0
    %p200 = por %p198, %p199
    %p201 = scmp.ne.s32.totalorder %s189, %s190
    %p202 = scmp.eq.s32.totalorder %s26, 1
    %p203 = por %p201, %p202
    %p205 = scmp.ne.s32.totalorder %s190, %s204
    %p206 = scmp.eq.s32.totalorder %s26, 0
    %p207 = por %p205, %p206
    %s209 = sadd.s32 %s208, 1
    %p212 = scmp.eq.s32.totalorder %s20, 1
    %p213 = scmp.ne.s32.totalorder %s208, %s210
    %p214 = scmp.eq.s32.totalorder %s20, 0
    %p215 = por %p213, %p214
    %p216 = scmp.ne.s32.totalorder %s208, %s210
    %p217 = scmp.eq.s32.totalorder %s25, 1
    %p218 = por %p216, %p217
    %p219 = scmp.ne.s32.totalorder %s210, %s211
    %p220 = scmp.eq.s32.totalorder %s25, 0
    %p221 = por %p219, %p220
    %p222 = scmp.ne.s32.totalorder %s210, %s211
    %p223 = scmp.eq.s32.totalorder %s26, 1
    %p224 = por %p222, %p223
    %p226 = scmp.ne.s32.totalorder %s211, %s225
    %p227 = scmp.eq.s32.totalorder %s26, 0
    %p228 = por %p226, %p227
    %s230 = sadd.s32 %s229, 1
    %p233 = scmp.eq.s32.totalorder %s20, 1
    %p234 = scmp.ne.s32.totalorder %s229, %s231
    %p235 = scmp.eq.s32.totalorder %s20, 0
    %p236 = por %p234, %p235
    %p237 = scmp.ne.s32.totalorder %s229, %s231
    %p238 = scmp.eq.s32.totalorder %s25, 1
    %p239 = por %p237, %p238
    %p240 = scmp.ne.s32.totalorder %s231, %s232
    %p241 = scmp.eq.s32.totalorder %s25, 0
    %p242 = por %p240, %p241
    %p243 = scmp.ne.s32.totalorder %s231, %s232
    %p244 = scmp.eq.s32.totalorder %s26, 1
    %p245 = por %p243, %p244
    %p247 = scmp.ne.s32.totalorder %s232, %s246
    %p248 = scmp.eq.s32.totalorder %s26, 0
    %p249 = por %p247, %p248
    %s250 = ssub.s32 %s20, %s27
    %p251 = scmp.eq.s32.totalorder %s250, 0
    %s253 = sadd.s32 %s252, 1
    %s254 = scalar_select %p251, %s252, %s253
    %p257 = pneg %p251
    %p258 = scmp.eq.s32.totalorder %s20, 1
    %p259 = por %p257, %p258
    %p260 = scmp.ne.s32.totalorder %s252, %s255
    %p261 = scmp.eq.s32.totalorder %s20, 0
    %p262 = por %p260, %p261
    %p263 = scmp.ne.s32.totalorder %s252, %s255
    %p264 = scmp.eq.s32.totalorder %s25, 1
    %p265 = por %p263, %p264
    %p266 = scmp.ne.s32.totalorder %s255, %s256
    %p267 = scmp.eq.s32.totalorder %s25, 0
    %p268 = por %p266, %p267
    %p269 = scmp.ne.s32.totalorder %s255, %s256
    %p270 = scmp.eq.s32.totalorder %s26, 1
    %p271 = por %p269, %p270
    %p273 = scmp.ne.s32.totalorder %s256, %s272
    %p274 = scmp.eq.s32.totalorder %s26, 0
    %p275 = por %p273, %p274
    %s276 = ssub.s32 1, %s20
    %s277 = ssub.s32 1, %s27
    %s278 = ssub.s32 %s276, %s277
    %p279 = scmp.eq.s32.totalorder %s278, 0
    %s281 = sadd.s32 %s280, 1
    %s282 = scalar_select %p279, %s280, %s281
    %p285 = pneg %p279
    %p286 = scmp.eq.s32.totalorder %s20, 1
    %p287 = por %p285, %p286
    %p288 = scmp.ne.s32.totalorder %s280, %s283
    %p289 = scmp.eq.s32.totalorder %s20, 0
    %p290 = por %p288, %p289
    %p291 = scmp.ne.s32.totalorder %s280, %s283
    %p292 = scmp.eq.s32.totalorder %s25, 1
    %p293 = por %p291, %p292
    %p294 = scmp.ne.s32.totalorder %s283, %s284
    %p295 = scmp.eq.s32.totalorder %s25, 0
    %p296 = por %p294, %p295
    %p297 = scmp.ne.s32.totalorder %s283, %s284
    %p298 = scmp.eq.s32.totalorder %s26, 1
    %p299 = por %p297, %p298
    %p301 = scmp.ne.s32.totalorder %s284, %s300
    %p302 = scmp.eq.s32.totalorder %s26, 0
    %p303 = por %p301, %p302
    %s305 = sadd.s32 %s304, 1
    %p308 = scmp.eq.s32.totalorder %s20, 1
    %p309 = scmp.ne.s32.totalorder %s304, %s306
    %p310 = scmp.eq.s32.totalorder %s20, 0
    %p311 = por %p309, %p310
    %p312 = scmp.ne.s32.totalorder %s304, %s306
    %p313 = scmp.eq.s32.totalorder %s25, 1
    %p314 = por %p312, %p313
    %p315 = scmp.ne.s32.totalorder %s306, %s307
    %p316 = scmp.eq.s32.totalorder %s25, 0
    %p317 = por %p315, %p316
    %p318 = scmp.ne.s32.totalorder %s306, %s307
    %p319 = scmp.eq.s32.totalorder %s26, 1
    %p320 = por %p318, %p319
    %p322 = scmp.ne.s32.totalorder %s307, %s321
    %p323 = scmp.eq.s32.totalorder %s26, 0
    %p324 = por %p322, %p323
    %s326 = sadd.s32 %s325, 1
    %p329 = scmp.eq.s32.totalorder %s20, 1
    %p330 = scmp.ne.s32.totalorder %s325, %s327
    %p331 = scmp.eq.s32.totalorder %s20, 0
    %p332 = por %p330, %p331
    %p333 = scmp.ne.s32.totalorder %s325, %s327
    %p334 = scmp.eq.s32.totalorder %s25, 1
    %p335 = por %p333, %p334
    %p336 = scmp.ne.s32.totalorder %s327, %s328
    %p337 = scmp.eq.s32.totalorder %s25, 0
    %p338 = por %p336, %p337
    %p339 = scmp.ne.s32.totalorder %s327, %s328
    %p340 = scmp.eq.s32.totalorder %s26, 1
    %p341 = por %p339, %p340
    %p343 = scmp.ne.s32.totalorder %s328, %s342
    %p344 = scmp.eq.s32.totalorder %s26, 0
    %p345 = por %p343, %p344
    %p346 = scmp.le.s32.totalorder 1, %s20
    %p347 = scmp.lt.s32.totalorder %s20, 3
    %p348 = pnand %p346, %p347
    %p349 = pneg %p348
    // Predicated region
    $region9: #{_lambda_.2} parent=5 // pred_check
      _
    $region10: #{_lambda_.2} parent=5 // pred_check_branch
      %351 = sbr.rel (%p348) target = $region12
    $region11: #{_lambda_.2} parent=5 // pred_region
      %s352 = ssub.s32 %s20, 1
      // Predicated region
      $region13: #{_lambda_.2} parent=11 // pred_check
        %p353 = pneg %p95
      $region14: #{_lambda_.2} parent=11 // pred_check_branch
        %355 = sbr.rel (%p353) target = $region16
      $region15: #{_lambda_.2} parent=11 // pred_region
        _
      $region16: #{_lambda_.2} parent=11 // pred_fallthru
        _
      // Predicated region
      $region17: #{_lambda_.2} parent=11 // pred_check
        %p356 = pneg %p116
      $region18: #{_lambda_.2} parent=11 // pred_check_branch
        %358 = sbr.rel (%p356) target = $region20
      $region19: #{_lambda_.2} parent=11 // pred_region
        _
      $region20: #{_lambda_.2} parent=11 // pred_fallthru
        _
      // Predicated region
      $region21: #{_lambda_.2} parent=11 // pred_check
        %p359 = pneg %p137
      $region22: #{_lambda_.2} parent=11 // pred_check_branch
        %361 = sbr.rel (%p359) target = $region24
      $region23: #{_lambda_.2} parent=11 // pred_region
        _
      $region24: #{_lambda_.2} parent=11 // pred_fallthru
        _
      // Predicated region
      $region25: #{_lambda_.2} parent=11 // pred_check
        %p362 = pneg %p158
      $region26: #{_lambda_.2} parent=11 // pred_check_branch
        %364 = sbr.rel (%p362) target = $region28
      $region27: #{_lambda_.2} parent=11 // pred_region
        _
      $region28: #{_lambda_.2} parent=11 // pred_fallthru
        _
      // Predicated region
      $region29: #{_lambda_.2} parent=11 // pred_check
        %p365 = pneg %p179
      $region30: #{_lambda_.2} parent=11 // pred_check_branch
        %367 = sbr.rel (%p365) target = $region32
      $region31: #{_lambda_.2} parent=11 // pred_region
        _
      $region32: #{_lambda_.2} parent=11 // pred_fallthru
        _
      // Predicated region
      $region33: #{_lambda_.2} parent=11 // pred_check
        %p368 = pneg %p200
      $region34: #{_lambda_.2} parent=11 // pred_check_branch
        %370 = sbr.rel (%p368) target = $region36
      $region35: #{_lambda_.2} parent=11 // pred_region
        _
      $region36: #{_lambda_.2} parent=11 // pred_fallthru
        _
      // Predicated region
      $region37: #{_lambda_.2} parent=11 // pred_check
        %p371 = pneg %p221
      $region38: #{_lambda_.2} parent=11 // pred_check_branch
        %373 = sbr.rel (%p371) target = $region40
      $region39: #{_lambda_.2} parent=11 // pred_region
        _
      $region40: #{_lambda_.2} parent=11 // pred_fallthru
        _
      // Predicated region
      $region41: #{_lambda_.2} parent=11 // pred_check
        %p374 = pneg %p242
      $region42: #{_lambda_.2} parent=11 // pred_check_branch
        %376 = sbr.rel (%p374) target = $region44
      $region43: #{_lambda_.2} parent=11 // pred_region
        _
      $region44: #{_lambda_.2} parent=11 // pred_fallthru
        _
    $region12: #{_lambda_.2} parent=5 // pred_fallthru
      _
    %p377 = scmp.lt.s32.totalorder %s20, 2
    // Predicated region
    $region45: #{_lambda_.2} parent=5 // pred_check
      %p378 = pneg %p377
    $region46: #{_lambda_.2} parent=5 // pred_check_branch
      %380 = sbr.rel (%p378) target = $region48
    $region47: #{_lambda_.2} parent=5 // pred_region
      // Predicated region
      $region49: #{_lambda_.2} parent=47 // pred_check
        %p381 = pneg %p40
      $region50: #{_lambda_.2} parent=47 // pred_check_branch
        %383 = sbr.rel (%p381) target = $region52
      $region51: #{_lambda_.2} parent=47 // pred_region
        %s384 = smul.u32 2, %s20
        %p385 = scmp.lt.s32.totalorder %s384, 3
        %s386 = scalar_select %p385, %s384, 3
        %s387 = smul.addr %s386, 4
        %s388 = scalar_lea.vmem %s0, %s387
        %s389 = smul.u32 2, %s20
      $region52: #{_lambda_.2} parent=47 // pred_fallthru
        _
      // Predicated region
      $region53: #{_lambda_.2} parent=47 // pred_check
        %p390 = pneg %p68
      $region54: #{_lambda_.2} parent=47 // pred_check_branch
        %392 = sbr.rel (%p390) target = $region56
      $region55: #{_lambda_.2} parent=47 // pred_region
        %s393 = ssub.s32 1, %s20
        %s394 = smul.u32 2, %s393
        %p395 = scmp.lt.s32.totalorder %s394, 3
        %s396 = scalar_select %p395, %s394, 3
        %s397 = smul.addr %s396, 4
        %s398 = scalar_lea.vmem %s1, %s397
        %s399 = ssub.s32 1, %s20
        %s400 = smul.u32 2, %s399
      $region56: #{_lambda_.2} parent=47 // pred_fallthru
        _
    $region48: #{_lambda_.2} parent=5 // pred_fallthru
      _
    %p401 = scmp.le.s32.totalorder 1, %s20
    %p402 = scmp.lt.s32.totalorder %s20, 3
    %p403 = pnand %p401, %p402
    %p404 = pneg %p403
    // Predicated region
    $region57: #{_lambda_.2} parent=5 // pred_check
      _
    $region58: #{_lambda_.2} parent=5 // pred_check_branch
      %406 = sbr.rel (%p403) target = $region60
    $region59: #{_lambda_.2} parent=5 // pred_region
      %s407 = ssub.s32 %s20, 1
      %s408 = smul.u32 2, %s25
      %p409 = scmp.lt.s32.totalorder %s408, 3
      %s410 = scalar_select %p409, %s408, 3
      %s411 = smul.addr %s410, 4
      %s412 = scalar_lea.vmem %s0, %s411
      %p413 = pneg %p46
      %p414 = pneg %p43
      %s415 = ssub.s32 1, %s25
      %s416 = smul.u32 2, %s415
      %p417 = scmp.lt.s32.totalorder %s416, 3
      %s418 = scalar_select %p417, %s416, 3
      %s419 = smul.addr %s418, 4
      %s420 = scalar_lea.vmem %s1, %s419
      %p421 = pneg %p74
      %p422 = pneg %p71
      %p423 = pneg %p95
      %p424 = pneg %p92
      %p425 = pneg %p116
      %p426 = pneg %p113
      %p427 = pneg %p137
      %p428 = pneg %p134
      %p429 = pneg %p158
      %p430 = pneg %p155
      %p431 = pneg %p179
      %p432 = pneg %p176
      %p433 = pneg %p200
      %p434 = pneg %p197
      %p435 = pneg %p221
      %p436 = pneg %p218
      %p437 = pneg %p242
      %p438 = pneg %p239
      %p439 = pneg %p268
      %p440 = pneg %p265
      %s441 = smul.u32 2, %s25
      %p442 = scmp.lt.s32.totalorder %s441, 3
      %s443 = scalar_select %p442, %s441, 3
      %s444 = smul.addr %s443, 4
      %s445 = scalar_lea.vmem %s10, %s444
      %p446 = pneg %p296
      %p447 = pneg %p293
      %s448 = ssub.s32 1, %s25
      %s449 = smul.u32 2, %s448
      %p450 = scmp.lt.s32.totalorder %s449, 3
      %s451 = scalar_select %p450, %s449, 3
      %s452 = smul.addr %s451, 4
      %s453 = scalar_lea.vmem %s11, %s452
      %p454 = pneg %p317
      %p455 = pneg %p314
      %p456 = pneg %p338
      %p457 = pneg %p335
      %s458 = smul.u32 2, %s25
      %p459 = scmp.lt.s32.totalorder %s458, 3
      %s460 = scalar_select %p459, %s458, 3
      %s461 = smul.addr %s460, 4
      %s462 = scalar_lea.vmem %s0, %s461
      %s463 = smul.u32 2, %s25
      %s464 = ssub.s32 1, %s25
      %s465 = smul.u32 2, %s464
      %p466 = scmp.lt.s32.totalorder %s465, 3
      %s467 = scalar_select %p466, %s465, 3
      %s468 = smul.addr %s467, 4
      %s469 = scalar_lea.vmem %s1, %s468
      %s470 = ssub.s32 1, %s25
      %s471 = smul.u32 2, %s470
      %s472 = smul.u32 2, %s25
      %p473 = scmp.lt.s32.totalorder %s472, 3
      %s474 = scalar_select %p473, %s472, 3
      %s475 = smul.addr %s474, 4
      %s476 = scalar_lea.vmem %s10, %s475
      %s477 = smul.u32 2, %s25
      %s478 = ssub.s32 1, %s25
      %s479 = smul.u32 2, %s478
      %p480 = scmp.lt.s32.totalorder %s479, 3
      %s481 = scalar_select %p480, %s479, 3
      %s482 = smul.addr %s481, 4
      %s483 = scalar_lea.vmem %s11, %s482
      %s484 = ssub.s32 1, %s25
      %s485 = smul.u32 2, %s484
      %p487 = scmp.eq.s32.totalorder %s25, 0
      // Predicated region
      $region61: #{_lambda_.2} parent=59 // pred_check
        %p488 = pneg %p487
      $region62: #{_lambda_.2} parent=59 // pred_check_branch
        %490 = sbr.rel (%p488) target = $region64
      $region63: #{_lambda_.2} parent=59 // pred_region
        %491 = vst [vmem:[#allocation4] sm:$0x3] 0.0
        %492 = vst [vmem:[#allocation5] sm:$0x3] 0.0
      $region64: #{_lambda_.2} parent=59 // pred_fallthru
        _
      %v493 = vld [vmem:[%s462] sm:$0xf]
      %v494 = vld [vmem:[%s462 + $0x4] sm:$0xf]
      %v495 = vld [vmem:[%s2] sm:$0xff]
      %v496 = vld [vmem:[%s2 + $0x8] sm:$0xf]
      %v497 = vld [vmem:[%s2 + $0xc] sm:$0xff]
      %v498 = vld [vmem:[%s2 + $0x14] sm:$0xf]
      %v499 = vld [vmem:[%s6] sm:$0x7]
      %v501 = vperm.slane %v499, 0
      %v502 = vperm.slane %v499, 1
      %v503 = vperm.slane %v499, 2
      %v509 = vunpack.c.l.b16 %v493
      %v510 = vunpack.c.l.b16 %v494
      %v511 = vpack.c.b16 %v510, %v509
      %v516 = vunpack.c.l.b16 %v495
      %v517 = vunpack.c.h.b16 %v495
      %v518 = vunpack.c.l.b16 %v496
      %v519 = vunpack.c.l.b16 %v497
      %v520 = vunpack.c.h.b16 %v497
      %v521 = vunpack.c.l.b16 %v498
      %v522 = vpack.c.b16 %v519, %v516
      %v523 = vpack.c.b16 %v520, %v517
      %v524 = vpack.c.b16 %v521, %v518
      %vm528 = vcmask 130048
      %v530 = vsel %vm528, %v511, 0
      %532 = vmatpush.bf16.msra.mxu0 0
      %533 = vmatpush.bf16.msra.mxu0 0
      %534 = vmatpush.bf16.msra.mxu0 0
      %535 = vmatpush.bf16.msra.mxu0 0
      %536 = vmatpush.bf16.msra.mxu0 0
      %537 = vmatpush.bf16.msra.mxu0 0
      %538 = vmatpush.bf16.msra.mxu0 0
      %539 = vmatpush.bf16.msra.mxu0 %v522
      %540 = vmatmul.bf16.gmra.mxu0 %v530
      %v541 = vpop.f32.mrf.mxu0
      %v542 = vadd.f32 %v501, %v541
      %v543 = vpop.f32.mrf.mxu0
      %v544 = vadd.f32 %v501, %v543
      %545 = vdwg.mxu0
      %546 = vmatpush.bf16.msra.mxu0 0
      %547 = vmatpush.bf16.msra.mxu0 0
      %548 = vmatpush.bf16.msra.mxu0 0
      %549 = vmatpush.bf16.msra.mxu0 0
      %550 = vmatpush.bf16.msra.mxu0 0
      %551 = vmatpush.bf16.msra.mxu0 0
      %552 = vmatpush.bf16.msra.mxu0 0
      %553 = vmatpush.bf16.msra.mxu0 %v523
      %554 = vmatmul.bf16.gmra.mxu0 %v530
      %v555 = vpop.f32.mrf.mxu0
      %v556 = vadd.f32 %v502, %v555
      %v557 = vpop.f32.mrf.mxu0
      %v558 = vadd.f32 %v502, %v557
      %559 = vdwg.mxu0
      %560 = vmatpush.bf16.msra.mxu0 0
      %561 = vmatpush.bf16.msra.mxu0 0
      %562 = vmatpush.bf16.msra.mxu0 0
      %563 = vmatpush.bf16.msra.mxu0 0
      %564 = vmatpush.bf16.msra.mxu0 0
      %565 = vmatpush.bf16.msra.mxu0 0
      %566 = vmatpush.bf16.msra.mxu0 0
      %567 = vmatpush.bf16.msra.mxu0 %v524
      %568 = vmatmul.bf16.gmra.mxu0 %v530
      %v569 = vpop.f32.mrf.mxu0
      %v570 = vadd.f32 %v503, %v569
      %v571 = vpop.f32.mrf.mxu0
      %v572 = vadd.f32 %v503, %v571
      %573 = vdwg.mxu0
      %574 = vst [vmem:[#allocation2] sm:$0xff] %v542
      %575 = vst [vmem:[#allocation2 + $0x8] sm:$0xff] %v556
      %576 = vst [vmem:[#allocation2 + $0x10] sm:$0xff] %v570
      %577 = vst [vmem:[#allocation2 + $0x18] sm:$0xff] %v544
      %578 = vst [vmem:[#allocation2 + $0x20] sm:$0xff] %v558
      %579 = vst [vmem:[#allocation2 + $0x28] sm:$0xff] %v572
      %v580 = vld [vmem:[%s469] sm:$0xf]
      %v581 = vld [vmem:[%s469 + $0x4] sm:$0xf]
      %v582 = vld [vmem:[%s3] sm:$0xff]
      %v583 = vld [vmem:[%s3 + $0x8] sm:$0xf]
      %v584 = vld [vmem:[%s3 + $0xc] sm:$0xff]
      %v585 = vld [vmem:[%s3 + $0x14] sm:$0xf]
      %v586 = vld [vmem:[%s7] sm:$0x7]
      %v588 = vperm.slane %v586, 0
      %v589 = vperm.slane %v586, 1
      %v590 = vperm.slane %v586, 2
      %v596 = vunpack.c.l.b16 %v580
      %v597 = vunpack.c.l.b16 %v581
      %v598 = vpack.c.b16 %v597, %v596
      %v603 = vunpack.c.l.b16 %v582
      %v604 = vunpack.c.h.b16 %v582
      %v605 = vunpack.c.l.b16 %v583
      %v606 = vunpack.c.l.b16 %v584
      %v607 = vunpack.c.h.b16 %v584
      %v608 = vunpack.c.l.b16 %v585
      %v609 = vpack.c.b16 %v606, %v603
      %v610 = vpack.c.b16 %v607, %v604
      %v611 = vpack.c.b16 %v608, %v605
      %v616 = vsel %vm528, %v598, 0
      %618 = vmatpush.bf16.msra.mxu0 0
      %619 = vmatpush.bf16.msra.mxu0 0
      %620 = vmatpush.bf16.msra.mxu0 0
      %621 = vmatpush.bf16.msra.mxu0 0
      %622 = vmatpush.bf16.msra.mxu0 0
      %623 = vmatpush.bf16.msra.mxu0 0
      %624 = vmatpush.bf16.msra.mxu0 0
      %625 = vmatpush.bf16.msra.mxu0 %v609
      %626 = vmatmul.bf16.gmra.mxu0 %v616
      %v627 = vpop.f32.mrf.mxu0
      %v628 = vadd.f32 %v588, %v627
      %v629 = vpop.f32.mrf.mxu0
      %v630 = vadd.f32 %v588, %v629
      %631 = vdwg.mxu0
      %632 = vmatpush.bf16.msra.mxu0 0
      %633 = vmatpush.bf16.msra.mxu0 0
      %634 = vmatpush.bf16.msra.mxu0 0
      %635 = vmatpush.bf16.msra.mxu0 0
      %636 = vmatpush.bf16.msra.mxu0 0
      %637 = vmatpush.bf16.msra.mxu0 0
      %638 = vmatpush.bf16.msra.mxu0 0
      %639 = vmatpush.bf16.msra.mxu0 %v610
      %640 = vmatmul.bf16.gmra.mxu0 %v616
      %v641 = vpop.f32.mrf.mxu0
      %v642 = vadd.f32 %v589, %v641
      %v643 = vpop.f32.mrf.mxu0
      %v644 = vadd.f32 %v589, %v643
      %645 = vdwg.mxu0
      %646 = vmatpush.bf16.msra.mxu0 0
      %647 = vmatpush.bf16.msra.mxu0 0
      %648 = vmatpush.bf16.msra.mxu0 0
      %649 = vmatpush.bf16.msra.mxu0 0
      %650 = vmatpush.bf16.msra.mxu0 0
      %651 = vmatpush.bf16.msra.mxu0 0
      %652 = vmatpush.bf16.msra.mxu0 0
      %653 = vmatpush.bf16.msra.mxu0 %v611
      %654 = vmatmul.bf16.gmra.mxu0 %v616
      %v655 = vpop.f32.mrf.mxu0
      %v656 = vadd.f32 %v590, %v655
      %v657 = vpop.f32.mrf.mxu0
      %v658 = vadd.f32 %v590, %v657
      %659 = vdwg.mxu0
      %660 = vst [vmem:[#allocation3] sm:$0xff] %v628
      %661 = vst [vmem:[#allocation3 + $0x8] sm:$0xff] %v642
      %662 = vst [vmem:[#allocation3 + $0x10] sm:$0xff] %v656
      %663 = vst [vmem:[#allocation3 + $0x18] sm:$0xff] %v630
      %664 = vst [vmem:[#allocation3 + $0x20] sm:$0xff] %v644
      %665 = vst [vmem:[#allocation3 + $0x28] sm:$0xff] %v658
      %v666 = vld [vmem:[%s8] sm:$0x1]
      %v668 = vperm.slane %v666, 0
      %v670 = vld [vmem:[%s9] sm:$0x1]
      %v672 = vperm.slane %v670, 0
      %v674 = vld [vmem:[%s4] sm:$0xff]
      %v675 = vld [vmem:[%s4 + $0x8] sm:$0xf]
      %v676 = vld [vmem:[%s4 + $0xc] sm:$0xff]
      %v677 = vld [vmem:[%s4 + $0x14] sm:$0xf]
      %v678 = vld [vmem:[%s4 + $0x18] sm:$0xff]
      %v679 = vld [vmem:[%s4 + $0x20] sm:$0xf]
      %v680 = vld [vmem:[%s4 + $0x24] sm:$0xff]
      %v681 = vld [vmem:[%s4 + $0x2c] sm:$0xf]
      %v682 = vld [vmem:[%s4 + $0x30] sm:$0xff]
      %v683 = vld [vmem:[%s4 + $0x38] sm:$0xf]
      %v684 = vld [vmem:[%s4 + $0x3c] sm:$0xff]
      %v685 = vld [vmem:[%s4 + $0x44] sm:$0xf]
      %v686 = vld [vmem:[%s4 + $0x48] sm:$0xff]
      %v687 = vld [vmem:[%s4 + $0x50] sm:$0xf]
      %v688 = vld [vmem:[%s4 + $0x54] sm:$0xff]
      %v689 = vld [vmem:[%s4 + $0x5c] sm:$0xf]
      %v690 = vld [vmem:[%s4 + $0x60] sm:$0xff]
      %v691 = vld [vmem:[%s4 + $0x68] sm:$0xf]
      %v692 = vld [vmem:[%s4 + $0x6c] sm:$0xff]
      %v693 = vld [vmem:[%s4 + $0x74] sm:$0xf]
      %v694 = vld [vmem:[%s4 + $0x78] sm:$0xff]
      %v695 = vld [vmem:[%s4 + $0x80] sm:$0xf]
      %v696 = vld [vmem:[%s4 + $0x84] sm:$0xff]
      %v697 = vld [vmem:[%s4 + $0x8c] sm:$0xf]
      %v698 = vld [vmem:[%s4 + $0x90] sm:$0xff]
      %v699 = vld [vmem:[%s4 + $0x98] sm:$0xf]
      %v700 = vld [vmem:[%s4 + $0x9c] sm:$0xff]
      %v701 = vld [vmem:[%s4 + $0xa4] sm:$0xf]
      %v702 = vld [vmem:[%s4 + $0xa8] sm:$0xff]
      %v703 = vld [vmem:[%s4 + $0xb0] sm:$0xf]
      %v704 = vld [vmem:[%s4 + $0xb4] sm:$0xff]
      %v705 = vld [vmem:[%s4 + $0xbc] sm:$0xf]
      %v706 = vld [vmem:[%s5] sm:$0xff]
      %v707 = vld [vmem:[%s5 + $0x8] sm:$0xf]
      %v708 = vld [vmem:[%s5 + $0xc] sm:$0xff]
      %v709 = vld [vmem:[%s5 + $0x14] sm:$0xf]
      %v710 = vld [vmem:[%s5 + $0x18] sm:$0xff]
      %v711 = vld [vmem:[%s5 + $0x20] sm:$0xf]
      %v712 = vld [vmem:[%s5 + $0x24] sm:$0xff]
      %v713 = vld [vmem:[%s5 + $0x2c] sm:$0xf]
      %v714 = vld [vmem:[%s5 + $0x30] sm:$0xff]
      %v715 = vld [vmem:[%s5 + $0x38] sm:$0xf]
      %v716 = vld [vmem:[%s5 + $0x3c] sm:$0xff]
      %v717 = vld [vmem:[%s5 + $0x44] sm:$0xf]
      %v718 = vld [vmem:[%s5 + $0x48] sm:$0xff]
      %v719 = vld [vmem:[%s5 + $0x50] sm:$0xf]
      %v720 = vld [vmem:[%s5 + $0x54] sm:$0xff]
      %v721 = vld [vmem:[%s5 + $0x5c] sm:$0xf]
      %v722 = vld [vmem:[%s5 + $0x60] sm:$0xff]
      %v723 = vld [vmem:[%s5 + $0x68] sm:$0xf]
      %v724 = vld [vmem:[%s5 + $0x6c] sm:$0xff]
      %v725 = vld [vmem:[%s5 + $0x74] sm:$0xf]
      %v726 = vld [vmem:[%s5 + $0x78] sm:$0xff]
      %v727 = vld [vmem:[%s5 + $0x80] sm:$0xf]
      %v728 = vld [vmem:[%s5 + $0x84] sm:$0xff]
      %v729 = vld [vmem:[%s5 + $0x8c] sm:$0xf]
      %v730 = vld [vmem:[%s5 + $0x90] sm:$0xff]
      %v731 = vld [vmem:[%s5 + $0x98] sm:$0xf]
      %v732 = vld [vmem:[%s5 + $0x9c] sm:$0xff]
      %v733 = vld [vmem:[%s5 + $0xa4] sm:$0xf]
      %v734 = vld [vmem:[%s5 + $0xa8] sm:$0xff]
      %v735 = vld [vmem:[%s5 + $0xb0] sm:$0xf]
      %v736 = vld [vmem:[%s5 + $0xb4] sm:$0xff]
      %v737 = vld [vmem:[%s5 + $0xbc] sm:$0xf]
      %v738 = vld [vmem:[#allocation4] sm:$0x3]
      %v739 = vld [vmem:[#allocation2] sm:$0x3]
      %v740 = vld [vmem:[#allocation2 + $0x8] sm:$0x3]
      %v741 = vld [vmem:[#allocation2 + $0x10] sm:$0x3]
      %v742 = vpack.c.bf16 %v738, %v738
      %v775 = vunpack.c.l.b16 %v674
      %v776 = vunpack.c.h.b16 %v674
      %v777 = vunpack.c.l.b16 %v675
      %v778 = vunpack.c.l.b16 %v676
      %v779 = vunpack.c.h.b16 %v676
      %v780 = vunpack.c.l.b16 %v677
      %v781 = vunpack.c.l.b16 %v678
      %v782 = vunpack.c.h.b16 %v678
      %v783 = vunpack.c.l.b16 %v679
      %v784 = vunpack.c.l.b16 %v680
      %v785 = vunpack.c.h.b16 %v680
      %v786 = vunpack.c.l.b16 %v681
      %v787 = vunpack.c.l.b16 %v682
      %v788 = vunpack.c.h.b16 %v682
      %v789 = vunpack.c.l.b16 %v683
      %v790 = vunpack.c.l.b16 %v684
      %v791 = vunpack.c.h.b16 %v684
      %v792 = vunpack.c.l.b16 %v685
      %v793 = vunpack.c.l.b16 %v686
      %v794 = vunpack.c.h.b16 %v686
      %v795 = vunpack.c.l.b16 %v687
      %v796 = vunpack.c.l.b16 %v688
      %v797 = vunpack.c.h.b16 %v688
      %v798 = vunpack.c.l.b16 %v689
      %v799 = vunpack.c.l.b16 %v690
      %v800 = vunpack.c.h.b16 %v690
      %v801 = vunpack.c.l.b16 %v691
      %v802 = vunpack.c.l.b16 %v692
      %v803 = vunpack.c.h.b16 %v692
      %v804 = vunpack.c.l.b16 %v693
      %v805 = vunpack.c.l.b16 %v694
      %v806 = vunpack.c.h.b16 %v694
      %v807 = vunpack.c.l.b16 %v695
      %v808 = vunpack.c.l.b16 %v696
      %v809 = vunpack.c.h.b16 %v696
      %v810 = vunpack.c.l.b16 %v697
      %v811 = vunpack.c.l.b16 %v698
      %v812 = vunpack.c.h.b16 %v698
      %v813 = vunpack.c.l.b16 %v699
      %v814 = vunpack.c.l.b16 %v700
      %v815 = vunpack.c.h.b16 %v700
      %v816 = vunpack.c.l.b16 %v701
      %v817 = vunpack.c.l.b16 %v702
      %v818 = vunpack.c.h.b16 %v702
      %v819 = vunpack.c.l.b16 %v703
      %v820 = vunpack.c.l.b16 %v704
      %v821 = vunpack.c.h.b16 %v704
      %v822 = vunpack.c.l.b16 %v705
      %v823 = vpack.c.b16 %v778, %v775
      %v824 = vpack.c.b16 %v779, %v776
      %v825 = vpack.c.b16 %v780, %v777
      %v826 = vpack.c.b16 %v784, %v781
      %v827 = vpack.c.b16 %v785, %v782
      %v828 = vpack.c.b16 %v786, %v783
      %v829 = vpack.c.b16 %v790, %v787
      %v830 = vpack.c.b16 %v791, %v788
      %v831 = vpack.c.b16 %v792, %v789
      %v832 = vpack.c.b16 %v796, %v793
      %v833 = vpack.c.b16 %v797, %v794
      %v834 = vpack.c.b16 %v798, %v795
      %v835 = vpack.c.b16 %v802, %v799
      %v836 = vpack.c.b16 %v803, %v800
      %v837 = vpack.c.b16 %v804, %v801
      %v838 = vpack.c.b16 %v808, %v805
      %v839 = vpack.c.b16 %v809, %v806
      %v840 = vpack.c.b16 %v810, %v807
      %v841 = vpack.c.b16 %v814, %v811
      %v842 = vpack.c.b16 %v815, %v812
      %v843 = vpack.c.b16 %v816, %v813
      %v844 = vpack.c.b16 %v820, %v817
      %v845 = vpack.c.b16 %v821, %v818
      %v846 = vpack.c.b16 %v822, %v819
      %871 = vmatpush.bf16.msra.mxu0 %v844
      %872 = vmatpush.bf16.msra.mxu0 %v841
      %873 = vmatpush.bf16.msra.mxu0 %v838
      %874 = vmatpush.bf16.msra.mxu0 %v835
      %875 = vmatpush.bf16.msra.mxu0 %v832
      %876 = vmatpush.bf16.msra.mxu0 %v829
      %877 = vmatpush.bf16.msra.mxu0 %v826
      %878 = vmatpush.bf16.msra.mxu0 %v823
      %879 = vmatmul.bf16.gmra.mxu0 %v742
      %v880 = vpop.f32.mrf.mxu0
      %v881 = vadd.f32 0.0, %v880
      %v882 = vpop.f32.mrf.mxu0
      %883 = vdwg.mxu0
      %884 = vmatpush.bf16.msra.mxu0 %v845
      %885 = vmatpush.bf16.msra.mxu0 %v842
      %886 = vmatpush.bf16.msra.mxu0 %v839
      %887 = vmatpush.bf16.msra.mxu0 %v836
      %888 = vmatpush.bf16.msra.mxu0 %v833
      %889 = vmatpush.bf16.msra.mxu0 %v830
      %890 = vmatpush.bf16.msra.mxu0 %v827
      %891 = vmatpush.bf16.msra.mxu0 %v824
      %892 = vmatmul.bf16.gmra.mxu0 %v742
      %v893 = vpop.f32.mrf.mxu0
      %v894 = vadd.f32 0.0, %v893
      %v895 = vpop.f32.mrf.mxu0
      %896 = vdwg.mxu0
      %897 = vmatpush.bf16.msra.mxu0 %v846
      %898 = vmatpush.bf16.msra.mxu0 %v843
      %899 = vmatpush.bf16.msra.mxu0 %v840
      %900 = vmatpush.bf16.msra.mxu0 %v837
      %901 = vmatpush.bf16.msra.mxu0 %v834
      %902 = vmatpush.bf16.msra.mxu0 %v831
      %903 = vmatpush.bf16.msra.mxu0 %v828
      %904 = vmatpush.bf16.msra.mxu0 %v825
      %905 = vmatmul.bf16.gmra.mxu0 %v742
      %v906 = vpop.f32.mrf.mxu0
      %v907 = vadd.f32 0.0, %v906
      %v908 = vpop.f32.mrf.mxu0
      %909 = vdwg.mxu0
      %v910 = vadd.f32 %v739, %v881
      %v911 = vxor.u32 %v910, 2147483648
      %v912 = vmul.f32 %v911, 1.442695
      %v913 = vpow.pop %v912
      %v914 = vadd.f32 %v913, 1.0
      %v915 = vrcp.pop %v914
      %v916 = vmul.f32 %v914, %v915
      %v917 = vsub.f32 1.0, %v916
      %v918 = vmul.f32 %v915, %v917
      %v919 = vadd.f32 %v915, %v918
      %vm920 = vweird.f32 %v914
      %vm921 = vweird.f32 %v915
      %vm922 = vmor %vm920, %vm921
      %v923 = vsel %vm922, %v915, %v919
      %v924 = vand.u32 2147483647, %v914
      %vm925 = vcmp.eq.f32.partialorder %v924, 8.507059e+37
      %v926 = vand.u32 %v914, 2147483648
      %v927 = vor.u32 1.1754944e-38, %v926
      %v928 = vsel %vm925, %v927, %v923
      %v929 = vmul.f32 1.0, %v928
      %v930 = vadd.f32 %v740, %v894
      %v931 = vxor.u32 %v930, 2147483648
      %v932 = vmul.f32 %v931, 1.442695
      %v933 = vpow.pop %v932
      %v934 = vadd.f32 %v933, 1.0
      %v935 = vrcp.pop %v934
      %v936 = vmul.f32 %v934, %v935
      %v937 = vsub.f32 1.0, %v936
      %v938 = vmul.f32 %v935, %v937
      %v939 = vadd.f32 %v935, %v938
      %vm940 = vweird.f32 %v934
      %vm941 = vweird.f32 %v935
      %vm942 = vmor %vm940, %vm941
      %v943 = vsel %vm942, %v935, %v939
      %v944 = vand.u32 2147483647, %v934
      %vm945 = vcmp.eq.f32.partialorder %v944, 8.507059e+37
      %v946 = vand.u32 %v934, 2147483648
      %v947 = vor.u32 1.1754944e-38, %v946
      %v948 = vsel %vm945, %v947, %v943
      %v949 = vmul.f32 1.0, %v948
      %v950 = vadd.f32 %v907, %v668
      %v951 = vmul.f32 %v929, %v950
      %v952 = vadd.f32 %v741, %v951
      %v953 = vtanh.pop %v952
      %v954 = vsub.f32 1.0, %v949
      %v955 = vmul.f32 %v954, %v953
      %v956 = vmul.f32 %v949, %v738
      %v957 = vadd.f32 %v955, %v956
      %s958 = smul.u32 %s25, 8
      %p959 = scmp.lt.s32.totalorder %s958, 15
      %s960 = scalar_select %p959, 1, 0
      %s961 = scvt.s32.f32 %s960
      %v962 = vstv %s961
      %v963 = vmul.f32 %v962, %v957
      %s964 = ssub.f32 1.0, %s961
      %v965 = vstv %s964
      %v966 = vmul.f32 %v965, %v738
      %v967 = vadd.f32 %v963, %v966
      %968 = vst [vmem:[#allocation4] sm:$0x3] %v967
      %v969 = vpack.c.bf16 %v967, %v967
      %970 = vst [vmem:[%s476] sm:$0x1] %v969
      %v971 = vld [vmem:[#allocation5] sm:$0x3]
      %v972 = vld [vmem:[#allocation3 + $0x18] sm:$0xc0]
      %v973 = vld [vmem:[#allocation3 + $0x20] sm:$0xc0]
      %v974 = vld [vmem:[#allocation3 + $0x28] sm:$0xc0]
      %v975 = vpack.c.bf16 %v971, %v971
      %v1008 = vunpack.c.l.b16 %v706
      %v1009 = vunpack.c.h.b16 %v706
      %v1010 = vunpack.c.l.b16 %v707
      %v1011 = vunpack.c.l.b16 %v708
      %v1012 = vunpack.c.h.b16 %v708
      %v1013 = vunpack.c.l.b16 %v709
      %v1014 = vunpack.c.l.b16 %v710
      %v1015 = vunpack.c.h.b16 %v710
      %v1016 = vunpack.c.l.b16 %v711
      %v1017 = vunpack.c.l.b16 %v712
      %v1018 = vunpack.c.h.b16 %v712
      %v1019 = vunpack.c.l.b16 %v713
      %v1020 = vunpack.c.l.b16 %v714
      %v1021 = vunpack.c.h.b16 %v714
      %v1022 = vunpack.c.l.b16 %v715
      %v1023 = vunpack.c.l.b16 %v716
      %v1024 = vunpack.c.h.b16 %v716
      %v1025 = vunpack.c.l.b16 %v717
      %v1026 = vunpack.c.l.b16 %v718
      %v1027 = vunpack.c.h.b16 %v718
      %v1028 = vunpack.c.l.b16 %v719
      %v1029 = vunpack.c.l.b16 %v720
      %v1030 = vunpack.c.h.b16 %v720
      %v1031 = vunpack.c.l.b16 %v721
      %v1032 = vunpack.c.l.b16 %v722
      %v1033 = vunpack.c.h.b16 %v722
      %v1034 = vunpack.c.l.b16 %v723
      %v1035 = vunpack.c.l.b16 %v724
      %v1036 = vunpack.c.h.b16 %v724
      %v1037 = vunpack.c.l.b16 %v725
      %v1038 = vunpack.c.l.b16 %v726
      %v1039 = vunpack.c.h.b16 %v726
      %v1040 = vunpack.c.l.b16 %v727
      %v1041 = vunpack.c.l.b16 %v728
      %v1042 = vunpack.c.h.b16 %v728
      %v1043 = vunpack.c.l.b16 %v729
      %v1044 = vunpack.c.l.b16 %v730
      %v1045 = vunpack.c.h.b16 %v730
      %v1046 = vunpack.c.l.b16 %v731
      %v1047 = vunpack.c.l.b16 %v732
      %v1048 = vunpack.c.h.b16 %v732
      %v1049 = vunpack.c.l.b16 %v733
      %v1050 = vunpack.c.l.b16 %v734
      %v1051 = vunpack.c.h.b16 %v734
      %v1052 = vunpack.c.l.b16 %v735
      %v1053 = vunpack.c.l.b16 %v736
      %v1054 = vunpack.c.h.b16 %v736
      %v1055 = vunpack.c.l.b16 %v737
      %v1056 = vpack.c.b16 %v1011, %v1008
      %v1057 = vpack.c.b16 %v1012, %v1009
      %v1058 = vpack.c.b16 %v1013, %v1010
      %v1059 = vpack.c.b16 %v1017, %v1014
      %v1060 = vpack.c.b16 %v1018, %v1015
      %v1061 = vpack.c.b16 %v1019, %v1016
      %v1062 = vpack.c.b16 %v1023, %v1020
      %v1063 = vpack.c.b16 %v1024, %v1021
      %v1064 = vpack.c.b16 %v1025, %v1022
      %v1065 = vpack.c.b16 %v1029, %v1026
      %v1066 = vpack.c.b16 %v1030, %v1027
      %v1067 = vpack.c.b16 %v1031, %v1028
      %v1068 = vpack.c.b16 %v1035, %v1032
      %v1069 = vpack.c.b16 %v1036, %v1033
      %v1070 = vpack.c.b16 %v1037, %v1034
      %v1071 = vpack.c.b16 %v1041, %v1038
      %v1072 = vpack.c.b16 %v1042, %v1039
      %v1073 = vpack.c.b16 %v1043, %v1040
      %v1074 = vpack.c.b16 %v1047, %v1044
      %v1075 = vpack.c.b16 %v1048, %v1045
      %v1076 = vpack.c.b16 %v1049, %v1046
      %v1077 = vpack.c.b16 %v1053, %v1050
      %v1078 = vpack.c.b16 %v1054, %v1051
      %v1079 = vpack.c.b16 %v1055, %v1052
      %1104 = vmatpush.bf16.msra.mxu0 %v1077
      %1105 = vmatpush.bf16.msra.mxu0 %v1074
      %1106 = vmatpush.bf16.msra.mxu0 %v1071
      %1107 = vmatpush.bf16.msra.mxu0 %v1068
      %1108 = vmatpush.bf16.msra.mxu0 %v1065
      %1109 = vmatpush.bf16.msra.mxu0 %v1062
      %1110 = vmatpush.bf16.msra.mxu0 %v1059
      %1111 = vmatpush.bf16.msra.mxu0 %v1056
      %1112 = vmatmul.bf16.gmra.mxu0 %v975
      %v1113 = vpop.f32.mrf.mxu0
      %v1114 = vadd.f32 0.0, %v1113
      %v1115 = vpop.f32.mrf.mxu0
      %1116 = vdwg.mxu0
      %1117 = vmatpush.bf16.msra.mxu0 %v1078
      %1118 = vmatpush.bf16.msra.mxu0 %v1075
      %1119 = vmatpush.bf16.msra.mxu0 %v1072
      %1120 = vmatpush.bf16.msra.mxu0 %v1069
      %1121 = vmatpush.bf16.msra.mxu0 %v1066
      %1122 = vmatpush.bf16.msra.mxu0 %v1063
      %1123 = vmatpush.bf16.msra.mxu0 %v1060
      %1124 = vmatpush.bf16.msra.mxu0 %v1057
      %1125 = vmatmul.bf16.gmra.mxu0 %v975
      %v1126 = vpop.f32.mrf.mxu0
      %v1127 = vadd.f32 0.0, %v1126
      %v1128 = vpop.f32.mrf.mxu0
      %1129 = vdwg.mxu0
      %1130 = vmatpush.bf16.msra.mxu0 %v1079
      %1131 = vmatpush.bf16.msra.mxu0 %v1076
      %1132 = vmatpush.bf16.msra.mxu0 %v1073
      %1133 = vmatpush.bf16.msra.mxu0 %v1070
      %1134 = vmatpush.bf16.msra.mxu0 %v1067
      %1135 = vmatpush.bf16.msra.mxu0 %v1064
      %1136 = vmatpush.bf16.msra.mxu0 %v1061
      %1137 = vmatpush.bf16.msra.mxu0 %v1058
      %1138 = vmatmul.bf16.gmra.mxu0 %v975
      %v1139 = vpop.f32.mrf.mxu0
      %v1140 = vadd.f32 0.0, %v1139
      %v1141 = vpop.f32.mrf.mxu0
      %1142 = vdwg.mxu0
      %v1144 = vrot.slane %v1114, 2
      %v1146 = vadd.f32 %v972, %v1144
      %v1147 = vxor.u32 %v1146, 2147483648
      %v1148 = vmul.f32 %v1147, 1.442695
      %v1149 = vpow.pop %v1148
      %v1150 = vadd.f32 %v1149, 1.0
      %v1151 = vrcp.pop %v1150
      %v1152 = vmul.f32 %v1150, %v1151
      %v1153 = vsub.f32 1.0, %v1152
      %v1154 = vmul.f32 %v1151, %v1153
      %v1155 = vadd.f32 %v1151, %v1154
      %vm1156 = vweird.f32 %v1150
      %vm1157 = vweird.f32 %v1151
      %vm1158 = vmor %vm1156, %vm1157
      %v1159 = vsel %vm1158, %v1151, %v1155
      %v1160 = vand.u32 2147483647, %v1150
      %vm1161 = vcmp.eq.f32.partialorder %v1160, 8.507059e+37
      %v1162 = vand.u32 %v1150, 2147483648
      %v1163 = vor.u32 1.1754944e-38, %v1162
      %v1164 = vsel %vm1161, %v1163, %v1159
      %v1165 = vmul.f32 1.0, %v1164
      %v1167 = vrot.slane %v1127, 2
      %v1169 = vadd.f32 %v973, %v1167
      %v1170 = vxor.u32 %v1169, 2147483648
      %v1171 = vmul.f32 %v1170, 1.442695
      %v1172 = vpow.pop %v1171
      %v1173 = vadd.f32 %v1172, 1.0
      %v1174 = vrcp.pop %v1173
      %v1175 = vmul.f32 %v1173, %v1174
      %v1176 = vsub.f32 1.0, %v1175
      %v1177 = vmul.f32 %v1174, %v1176
      %v1178 = vadd.f32 %v1174, %v1177
      %vm1179 = vweird.f32 %v1173
      %vm1180 = vweird.f32 %v1174
      %vm1181 = vmor %vm1179, %vm1180
      %v1182 = vsel %vm1181, %v1174, %v1178
      %v1183 = vand.u32 2147483647, %v1173
      %vm1184 = vcmp.eq.f32.partialorder %v1183, 8.507059e+37
      %v1185 = vand.u32 %v1173, 2147483648
      %v1186 = vor.u32 1.1754944e-38, %v1185
      %v1187 = vsel %vm1184, %v1186, %v1182
      %v1188 = vmul.f32 1.0, %v1187
      %v1189 = vadd.f32 %v1140, %v672
      %v1191 = vrot.slane %v1189, 2
      %v1193 = vmul.f32 %v1165, %v1191
      %v1194 = vadd.f32 %v974, %v1193
      %v1195 = vtanh.pop %v1194
      %v1196 = vsub.f32 1.0, %v1188
      %v1197 = vmul.f32 %v1196, %v1195
      %v1199 = vrot.slane %v971, 2
      %v1201 = vmul.f32 %v1188, %v1199
      %v1202 = vadd.f32 %v1197, %v1201
      %s1203 = ssub.s32 1, %s25
      %s1204 = smul.u32 %s1203, 8
      %s1205 = sadd.s32 %s1204, 7
      %p1206 = scmp.lt.s32.totalorder %s1205, 15
      %s1207 = scalar_select %p1206, 1, 0
      %s1208 = scvt.s32.f32 %s1207
      %v1209 = vstv %s1208
      %v1210 = vmul.f32 %v1209, %v1202
      %s1211 = ssub.f32 1.0, %s1208
      %v1212 = vstv %s1211
      %v1213 = vmul.f32 %v1212, %v971
      %v1215 = vrot.slane %v1213, 2
      %v1217 = vadd.f32 %v1210, %v1215
      %1218 = vst [vmem:[#allocation5 - $0x6] sm:$0xc0] %v1217
      %v1219 = vpack.c.bf16 %v1217, %v1217
      %1220 = vst [vmem:[%s483 + $0x4] sm:$0x8] %v1219
      %v1221 = vld [vmem:[#allocation4] sm:$0x3]
      %v1222 = vld [vmem:[#allocation2] sm:$0xc]
      %v1223 = vld [vmem:[#allocation2 + $0x8] sm:$0xc]
      %v1224 = vld [vmem:[#allocation2 + $0x10] sm:$0xc]
      %v1225 = vpack.c.bf16 %v1221, %v1221
      %1226 = vmatpush.bf16.msra.mxu0 %v844
      %1227 = vmatpush.bf16.msra.mxu0 %v841
      %1228 = vmatpush.bf16.msra.mxu0 %v838
      %1229 = vmatpush.bf16.msra.mxu0 %v835
      %1230 = vmatpush.bf16.msra.mxu0 %v832
      %1231 = vmatpush.bf16.msra.mxu0 %v829
      %1232 = vmatpush.bf16.msra.mxu0 %v826
      %1233 = vmatpush.bf16.msra.mxu0 %v823
      %1234 = vmatmul.bf16.gmra.mxu0 %v1225
      %v1235 = vpop.f32.mrf.mxu0
      %v1236 = vadd.f32 0.0, %v1235
      %v1237 = vpop.f32.mrf.mxu0
      %1238 = vdwg.mxu0
      %1239 = vmatpush.bf16.msra.mxu0 %v845
      %1240 = vmatpush.bf16.msra.mxu0 %v842
      %1241 = vmatpush.bf16.msra.mxu0 %v839
      %1242 = vmatpush.bf16.msra.mxu0 %v836
      %1243 = vmatpush.bf16.msra.mxu0 %v833
      %1244 = vmatpush.bf16.msra.mxu0 %v830
      %1245 = vmatpush.bf16.msra.mxu0 %v827
      %1246 = vmatpush.bf16.msra.mxu0 %v824
      %1247 = vmatmul.bf16.gmra.mxu0 %v1225
      %v1248 = vpop.f32.mrf.mxu0
      %v1249 = vadd.f32 0.0, %v1248
      %v1250 = vpop.f32.mrf.mxu0
      %1251 = vdwg.mxu0
      %1252 = vmatpush.bf16.msra.mxu0 %v846
      %1253 = vmatpush.bf16.msra.mxu0 %v843
      %1254 = vmatpush.bf16.msra.mxu0 %v840
      %1255 = vmatpush.bf16.msra.mxu0 %v837
      %1256 = vmatpush.bf16.msra.mxu0 %v834
      %1257 = vmatpush.bf16.msra.mxu0 %v831
      %1258 = vmatpush.bf16.msra.mxu0 %v828
      %1259 = vmatpush.bf16.msra.mxu0 %v825
      %1260 = vmatmul.bf16.gmra.mxu0 %v1225
      %v1261 = vpop.f32.mrf.mxu0
      %v1262 = vadd.f32 0.0, %v1261
      %v1263 = vpop.f32.mrf.mxu0
      %1264 = vdwg.mxu0
      %v1266 = vrot.slane %v1236, 6
      %v1268 = vadd.f32 %v1222, %v1266
      %v1269 = vxor.u32 %v1268, 2147483648
      %v1270 = vmul.f32 %v1269, 1.442695
      %v1271 = vpow.pop %v1270
      %v1272 = vadd.f32 %v1271, 1.0
      %v1273 = vrcp.pop %v1272
      %v1274 = vmul.f32 %v1272, %v1273
      %v1275 = vsub.f32 1.0, %v1274
      %v1276 = vmul.f32 %v1273, %v1275
      %v1277 = vadd.f32 %v1273, %v1276
      %vm1278 = vweird.f32 %v1272
      %vm1279 = vweird.f32 %v1273
      %vm1280 = vmor %vm1278, %vm1279
      %v1281 = vsel %vm1280, %v1273, %v1277
      %v1282 = vand.u32 2147483647, %v1272
      %vm1283 = vcmp.eq.f32.partialorder %v1282, 8.507059e+37
      %v1284 = vand.u32 %v1272, 2147483648
      %v1285 = vor.u32 1.1754944e-38, %v1284
      %v1286 = vsel %vm1283, %v1285, %v1281
      %v1287 = vmul.f32 1.0, %v1286
      %v1289 = vrot.slane %v1249, 6
      %v1291 = vadd.f32 %v1223, %v1289
      %v1292 = vxor.u32 %v1291, 2147483648
      %v1293 = vmul.f32 %v1292, 1.442695
      %v1294 = vpow.pop %v1293
      %v1295 = vadd.f32 %v1294, 1.0
      %v1296 = vrcp.pop %v1295
      %v1297 = vmul.f32 %v1295, %v1296
      %v1298 = vsub.f32 1.0, %v1297
      %v1299 = vmul.f32 %v1296, %v1298
      %v1300 = vadd.f32 %v1296, %v1299
      %vm1301 = vweird.f32 %v1295
      %vm1302 = vweird.f32 %v1296
      %vm1303 = vmor %vm1301, %vm1302
      %v1304 = vsel %vm1303, %v1296, %v1300
      %v1305 = vand.u32 2147483647, %v1295
      %vm1306 = vcmp.eq.f32.partialorder %v1305, 8.507059e+37
      %v1307 = vand.u32 %v1295, 2147483648
      %v1308 = vor.u32 1.1754944e-38, %v1307
      %v1309 = vsel %vm1306, %v1308, %v1304
      %v1310 = vmul.f32 1.0, %v1309
      %v1311 = vadd.f32 %v1262, %v668
      %v1313 = vrot.slane %v1311, 6
      %v1315 = vmul.f32 %v1287, %v1313
      %v1316 = vadd.f32 %v1224, %v1315
      %v1317 = vtanh.pop %v1316
      %v1318 = vsub.f32 1.0, %v1310
      %v1319 = vmul.f32 %v1318, %v1317
      %v1321 = vrot.slane %v1221, 6
      %v1323 = vmul.f32 %v1310, %v1321
      %v1324 = vadd.f32 %v1319, %v1323
      %s1325 = sadd.s32 %s958, 1
      %p1326 = scmp.lt.s32.totalorder %s1325, 15
      %s1327 = scalar_select %p1326, 1, 0
      %s1328 = scvt.s32.f32 %s1327
      %v1329 = vstv %s1328
      %v1330 = vmul.f32 %v1329, %v1324
      %s1331 = ssub.f32 1.0, %s1328
      %v1332 = vstv %s1331
      %v1333 = vmul.f32 %v1332, %v1221
      %v1335 = vrot.slane %v1333, 6
      %v1337 = vadd.f32 %v1330, %v1335
      %1338 = vst [vmem:[#allocation4 - $0x2] sm:$0xc] %v1337
      %v1339 = vpack.c.bf16 %v1337, %v1337
      %1340 = vst [vmem:[%s476] sm:$0x2] %v1339
      %v1341 = vld [vmem:[#allocation5] sm:$0x3]
      %v1342 = vld [vmem:[#allocation3 + $0x18] sm:$0x30]
      %v1343 = vld [vmem:[#allocation3 + $0x20] sm:$0x30]
      %v1344 = vld [vmem:[#allocation3 + $0x28] sm:$0x30]
      %v1345 = vpack.c.bf16 %v1341, %v1341
      %1346 = vmatpush.bf16.msra.mxu0 %v1077
      %1347 = vmatpush.bf16.msra.mxu0 %v1074
      %1348 = vmatpush.bf16.msra.mxu0 %v1071
      %1349 = vmatpush.bf16.msra.mxu0 %v1068
      %1350 = vmatpush.bf16.msra.mxu0 %v1065
      %1351 = vmatpush.bf16.msra.mxu0 %v1062
      %1352 = vmatpush.bf16.msra.mxu0 %v1059
      %1353 = vmatpush.bf16.msra.mxu0 %v1056
      %1354 = vmatmul.bf16.gmra.mxu0 %v1345
      %v1355 = vpop.f32.mrf.mxu0
      %v1356 = vadd.f32 0.0, %v1355
      %v1357 = vpop.f32.mrf.mxu0
      %1358 = vdwg.mxu0
      %1359 = vmatpush.bf16.msra.mxu0 %v1078
      %1360 = vmatpush.bf16.msra.mxu0 %v1075
      %1361 = vmatpush.bf16.msra.mxu0 %v1072
      %1362 = vmatpush.bf16.msra.mxu0 %v1069
      %1363 = vmatpush.bf16.msra.mxu0 %v1066
      %1364 = vmatpush.bf16.msra.mxu0 %v1063
      %1365 = vmatpush.bf16.msra.mxu0 %v1060
      %1366 = vmatpush.bf16.msra.mxu0 %v1057
      %1367 = vmatmul.bf16.gmra.mxu0 %v1345
      %v1368 = vpop.f32.mrf.mxu0
      %v1369 = vadd.f32 0.0, %v1368
      %v1370 = vpop.f32.mrf.mxu0
      %1371 = vdwg.mxu0
      %1372 = vmatpush.bf16.msra.mxu0 %v1079
      %1373 = vmatpush.bf16.msra.mxu0 %v1076
      %1374 = vmatpush.bf16.msra.mxu0 %v1073
      %1375 = vmatpush.bf16.msra.mxu0 %v1070
      %1376 = vmatpush.bf16.msra.mxu0 %v1067
      %1377 = vmatpush.bf16.msra.mxu0 %v1064
      %1378 = vmatpush.bf16.msra.mxu0 %v1061
      %1379 = vmatpush.bf16.msra.mxu0 %v1058
      %1380 = vmatmul.bf16.gmra.mxu0 %v1345
      %v1381 = vpop.f32.mrf.mxu0
      %v1382 = vadd.f32 0.0, %v1381
      %v1383 = vpop.f32.mrf.mxu0
      %1384 = vdwg.mxu0
      %v1386 = vrot.slane %v1356, 4
      %v1388 = vadd.f32 %v1342, %v1386
      %v1389 = vxor.u32 %v1388, 2147483648
      %v1390 = vmul.f32 %v1389, 1.442695
      %v1391 = vpow.pop %v1390
      %v1392 = vadd.f32 %v1391, 1.0
      %v1393 = vrcp.pop %v1392
      %v1394 = vmul.f32 %v1392, %v1393
      %v1395 = vsub.f32 1.0, %v1394
      %v1396 = vmul.f32 %v1393, %v1395
      %v1397 = vadd.f32 %v1393, %v1396
      %vm1398 = vweird.f32 %v1392
      %vm1399 = vweird.f32 %v1393
      %vm1400 = vmor %vm1398, %vm1399
      %v1401 = vsel %vm1400, %v1393, %v1397
      %v1402 = vand.u32 2147483647, %v1392
      %vm1403 = vcmp.eq.f32.partialorder %v1402, 8.507059e+37
      %v1404 = vand.u32 %v1392, 2147483648
      %v1405 = vor.u32 1.1754944e-38, %v1404
      %v1406 = vsel %vm1403, %v1405, %v1401
      %v1407 = vmul.f32 1.0, %v1406
      %v1409 = vrot.slane %v1369, 4
      %v1411 = vadd.f32 %v1343, %v1409
      %v1412 = vxor.u32 %v1411, 2147483648
      %v1413 = vmul.f32 %v1412, 1.442695
      %v1414 = vpow.pop %v1413
      %v1415 = vadd.f32 %v1414, 1.0
      %v1416 = vrcp.pop %v1415
      %v1417 = vmul.f32 %v1415, %v1416
      %v1418 = vsub.f32 1.0, %v1417
      %v1419 = vmul.f32 %v1416, %v1418
      %v1420 = vadd.f32 %v1416, %v1419
      %vm1421 = vweird.f32 %v1415
      %vm1422 = vweird.f32 %v1416
      %vm1423 = vmor %vm1421, %vm1422
      %v1424 = vsel %vm1423, %v1416, %v1420
      %v1425 = vand.u32 2147483647, %v1415
      %vm1426 = vcmp.eq.f32.partialorder %v1425, 8.507059e+37
      %v1427 = vand.u32 %v1415, 2147483648
      %v1428 = vor.u32 1.1754944e-38, %v1427
      %v1429 = vsel %vm1426, %v1428, %v1424
      %v1430 = vmul.f32 1.0, %v1429
      %v1431 = vadd.f32 %v1382, %v672
      %v1433 = vrot.slane %v1431, 4
      %v1435 = vmul.f32 %v1407, %v1433
      %v1436 = vadd.f32 %v1344, %v1435
      %v1437 = vtanh.pop %v1436
      %v1438 = vsub.f32 1.0, %v1430
      %v1439 = vmul.f32 %v1438, %v1437
      %v1441 = vrot.slane %v1341, 4
      %v1443 = vmul.f32 %v1430, %v1441
      %v1444 = vadd.f32 %v1439, %v1443
      %s1445 = sadd.s32 %s1204, 6
      %p1446 = scmp.lt.s32.totalorder %s1445, 15
      %s1447 = scalar_select %p1446, 1, 0
      %s1448 = scvt.s32.f32 %s1447
      %v1449 = vstv %s1448
      %v1450 = vmul.f32 %v1449, %v1444
      %s1451 = ssub.f32 1.0, %s1448
      %v1452 = vstv %s1451
      %v1453 = vmul.f32 %v1452, %v1341
      %v1455 = vrot.slane %v1453, 4
      %v1457 = vadd.f32 %v1450, %v1455
      %1458 = vst [vmem:[#allocation5 - $0x4] sm:$0x30] %v1457
      %v1459 = vpack.c.bf16 %v1457, %v1457
      %1460 = vst [vmem:[%s483 + $0x4] sm:$0x4] %v1459
      %v1461 = vld [vmem:[#allocation4] sm:$0x3]
      %v1462 = vld [vmem:[#allocation2] sm:$0x30]
      %v1463 = vld [vmem:[#allocation2 + $0x8] sm:$0x30]
      %v1464 = vld [vmem:[#allocation2 + $0x10] sm:$0x30]
      %v1465 = vpack.c.bf16 %v1461, %v1461
      %1466 = vmatpush.bf16.msra.mxu0 %v844
      %1467 = vmatpush.bf16.msra.mxu0 %v841
      %1468 = vmatpush.bf16.msra.mxu0 %v838
      %1469 = vmatpush.bf16.msra.mxu0 %v835
      %1470 = vmatpush.bf16.msra.mxu0 %v832
      %1471 = vmatpush.bf16.msra.mxu0 %v829
      %1472 = vmatpush.bf16.msra.mxu0 %v826
      %1473 = vmatpush.bf16.msra.mxu0 %v823
      %1474 = vmatmul.bf16.gmra.mxu0 %v1465
      %v1475 = vpop.f32.mrf.mxu0
      %v1476 = vadd.f32 0.0, %v1475
      %v1477 = vpop.f32.mrf.mxu0
      %1478 = vdwg.mxu0
      %1479 = vmatpush.bf16.msra.mxu0 %v845
      %1480 = vmatpush.bf16.msra.mxu0 %v842
      %1481 = vmatpush.bf16.msra.mxu0 %v839
      %1482 = vmatpush.bf16.msra.mxu0 %v836
      %1483 = vmatpush.bf16.msra.mxu0 %v833
      %1484 = vmatpush.bf16.msra.mxu0 %v830
      %1485 = vmatpush.bf16.msra.mxu0 %v827
      %1486 = vmatpush.bf16.msra.mxu0 %v824
      %1487 = vmatmul.bf16.gmra.mxu0 %v1465
      %v1488 = vpop.f32.mrf.mxu0
      %v1489 = vadd.f32 0.0, %v1488
      %v1490 = vpop.f32.mrf.mxu0
      %1491 = vdwg.mxu0
      %1492 = vmatpush.bf16.msra.mxu0 %v846
      %1493 = vmatpush.bf16.msra.mxu0 %v843
      %1494 = vmatpush.bf16.msra.mxu0 %v840
      %1495 = vmatpush.bf16.msra.mxu0 %v837
      %1496 = vmatpush.bf16.msra.mxu0 %v834
      %1497 = vmatpush.bf16.msra.mxu0 %v831
      %1498 = vmatpush.bf16.msra.mxu0 %v828
      %1499 = vmatpush.bf16.msra.mxu0 %v825
      %1500 = vmatmul.bf16.gmra.mxu0 %v1465
      %v1501 = vpop.f32.mrf.mxu0
      %v1502 = vadd.f32 0.0, %v1501
      %v1503 = vpop.f32.mrf.mxu0
      %1504 = vdwg.mxu0
      %v1506 = vrot.slane %v1476, 4
      %v1508 = vadd.f32 %v1462, %v1506
      %v1509 = vxor.u32 %v1508, 2147483648
      %v1510 = vmul.f32 %v1509, 1.442695
      %v1511 = vpow.pop %v1510
      %v1512 = vadd.f32 %v1511, 1.0
      %v1513 = vrcp.pop %v1512
      %v1514 = vmul.f32 %v1512, %v1513
      %v1515 = vsub.f32 1.0, %v1514
      %v1516 = vmul.f32 %v1513, %v1515
      %v1517 = vadd.f32 %v1513, %v1516
      %vm1518 = vweird.f32 %v1512
      %vm1519 = vweird.f32 %v1513
      %vm1520 = vmor %vm1518, %vm1519
      %v1521 = vsel %vm1520, %v1513, %v1517
      %v1522 = vand.u32 2147483647, %v1512
      %vm1523 = vcmp.eq.f32.partialorder %v1522, 8.507059e+37
      %v1524 = vand.u32 %v1512, 2147483648
      %v1525 = vor.u32 1.1754944e-38, %v1524
      %v1526 = vsel %vm1523, %v1525, %v1521
      %v1527 = vmul.f32 1.0, %v1526
      %v1529 = vrot.slane %v1489, 4
      %v1531 = vadd.f32 %v1463, %v1529
      %v1532 = vxor.u32 %v1531, 2147483648
      %v1533 = vmul.f32 %v1532, 1.442695
      %v1534 = vpow.pop %v1533
      %v1535 = vadd.f32 %v1534, 1.0
      %v1536 = vrcp.pop %v1535
      %v1537 = vmul.f32 %v1535, %v1536
      %v1538 = vsub.f32 1.0, %v1537
      %v1539 = vmul.f32 %v1536, %v1538
      %v1540 = vadd.f32 %v1536, %v1539
      %vm1541 = vweird.f32 %v1535
      %vm1542 = vweird.f32 %v1536
      %vm1543 = vmor %vm1541, %vm1542
      %v1544 = vsel %vm1543, %v1536, %v1540
      %v1545 = vand.u32 2147483647, %v1535
      %vm1546 = vcmp.eq.f32.partialorder %v1545, 8.507059e+37
      %v1547 = vand.u32 %v1535, 2147483648
      %v1548 = vor.u32 1.1754944e-38, %v1547
      %v1549 = vsel %vm1546, %v1548, %v1544
      %v1550 = vmul.f32 1.0, %v1549
      %v1551 = vadd.f32 %v1502, %v668
      %v1553 = vrot.slane %v1551, 4
      %v1555 = vmul.f32 %v1527, %v1553
      %v1556 = vadd.f32 %v1464, %v1555
      %v1557 = vtanh.pop %v1556
      %v1558 = vsub.f32 1.0, %v1550
      %v1559 = vmul.f32 %v1558, %v1557
      %v1561 = vrot.slane %v1461, 4
      %v1563 = vmul.f32 %v1550, %v1561
      %v1564 = vadd.f32 %v1559, %v1563
      %s1565 = sadd.s32 %s958, 2
      %p1566 = scmp.lt.s32.totalorder %s1565, 15
      %s1567 = scalar_select %p1566, 1, 0
      %s1568 = scvt.s32.f32 %s1567
      %v1569 = vstv %s1568
      %v1570 = vmul.f32 %v1569, %v1564
      %s1571 = ssub.f32 1.0, %s1568
      %v1572 = vstv %s1571
      %v1573 = vmul.f32 %v1572, %v1461
      %v1575 = vrot.slane %v1573, 4
      %v1577 = vadd.f32 %v1570, %v1575
      %1578 = vst [vmem:[#allocation4 - $0x4] sm:$0x30] %v1577
      %v1579 = vpack.c.bf16 %v1577, %v1577
      %1580 = vst [vmem:[%s476] sm:$0x4] %v1579
      %v1581 = vld [vmem:[#allocation5] sm:$0x3]
      %v1582 = vld [vmem:[#allocation3 + $0x18] sm:$0xc]
      %v1583 = vld [vmem:[#allocation3 + $0x20] sm:$0xc]
      %v1584 = vld [vmem:[#allocation3 + $0x28] sm:$0xc]
      %v1585 = vpack.c.bf16 %v1581, %v1581
      %1586 = vmatpush.bf16.msra.mxu0 %v1077
      %1587 = vmatpush.bf16.msra.mxu0 %v1074
      %1588 = vmatpush.bf16.msra.mxu0 %v1071
      %1589 = vmatpush.bf16.msra.mxu0 %v1068
      %1590 = vmatpush.bf16.msra.mxu0 %v1065
      %1591 = vmatpush.bf16.msra.mxu0 %v1062
      %1592 = vmatpush.bf16.msra.mxu0 %v1059
      %1593 = vmatpush.bf16.msra.mxu0 %v1056
      %1594 = vmatmul.bf16.gmra.mxu0 %v1585
      %v1595 = vpop.f32.mrf.mxu0
      %v1596 = vadd.f32 0.0, %v1595
      %v1597 = vpop.f32.mrf.mxu0
      %1598 = vdwg.mxu0
      %1599 = vmatpush.bf16.msra.mxu0 %v1078
      %1600 = vmatpush.bf16.msra.mxu0 %v1075
      %1601 = vmatpush.bf16.msra.mxu0 %v1072
      %1602 = vmatpush.bf16.msra.mxu0 %v1069
      %1603 = vmatpush.bf16.msra.mxu0 %v1066
      %1604 = vmatpush.bf16.msra.mxu0 %v1063
      %1605 = vmatpush.bf16.msra.mxu0 %v1060
      %1606 = vmatpush.bf16.msra.mxu0 %v1057
      %1607 = vmatmul.bf16.gmra.mxu0 %v1585
      %v1608 = vpop.f32.mrf.mxu0
      %v1609 = vadd.f32 0.0, %v1608
      %v1610 = vpop.f32.mrf.mxu0
      %1611 = vdwg.mxu0
      %1612 = vmatpush.bf16.msra.mxu0 %v1079
      %1613 = vmatpush.bf16.msra.mxu0 %v1076
      %1614 = vmatpush.bf16.msra.mxu0 %v1073
      %1615 = vmatpush.bf16.msra.mxu0 %v1070
      %1616 = vmatpush.bf16.msra.mxu0 %v1067
      %1617 = vmatpush.bf16.msra.mxu0 %v1064
      %1618 = vmatpush.bf16.msra.mxu0 %v1061
      %1619 = vmatpush.bf16.msra.mxu0 %v1058
      %1620 = vmatmul.bf16.gmra.mxu0 %v1585
      %v1621 = vpop.f32.mrf.mxu0
      %v1622 = vadd.f32 0.0, %v1621
      %v1623 = vpop.f32.mrf.mxu0
      %1624 = vdwg.mxu0
      %v1626 = vrot.slane %v1596, 6
      %v1628 = vadd.f32 %v1582, %v1626
      %v1629 = vxor.u32 %v1628, 2147483648
      %v1630 = vmul.f32 %v1629, 1.442695
      %v1631 = vpow.pop %v1630
      %v1632 = vadd.f32 %v1631, 1.0
      %v1633 = vrcp.pop %v1632
      %v1634 = vmul.f32 %v1632, %v1633
      %v1635 = vsub.f32 1.0, %v1634
      %v1636 = vmul.f32 %v1633, %v1635
      %v1637 = vadd.f32 %v1633, %v1636
      %vm1638 = vweird.f32 %v1632
      %vm1639 = vweird.f32 %v1633
      %vm1640 = vmor %vm1638, %vm1639
      %v1641 = vsel %vm1640, %v1633, %v1637
      %v1642 = vand.u32 2147483647, %v1632
      %vm1643 = vcmp.eq.f32.partialorder %v1642, 8.507059e+37
      %v1644 = vand.u32 %v1632, 2147483648
      %v1645 = vor.u32 1.1754944e-38, %v1644
      %v1646 = vsel %vm1643, %v1645, %v1641
      %v1647 = vmul.f32 1.0, %v1646
      %v1649 = vrot.slane %v1609, 6
      %v1651 = vadd.f32 %v1583, %v1649
      %v1652 = vxor.u32 %v1651, 2147483648
      %v1653 = vmul.f32 %v1652, 1.442695
      %v1654 = vpow.pop %v1653
      %v1655 = vadd.f32 %v1654, 1.0
      %v1656 = vrcp.pop %v1655
      %v1657 = vmul.f32 %v1655, %v1656
      %v1658 = vsub.f32 1.0, %v1657
      %v1659 = vmul.f32 %v1656, %v1658
      %v1660 = vadd.f32 %v1656, %v1659
      %vm1661 = vweird.f32 %v1655
      %vm1662 = vweird.f32 %v1656
      %vm1663 = vmor %vm1661, %vm1662
      %v1664 = vsel %vm1663, %v1656, %v1660
      %v1665 = vand.u32 2147483647, %v1655
      %vm1666 = vcmp.eq.f32.partialorder %v1665, 8.507059e+37
      %v1667 = vand.u32 %v1655, 2147483648
      %v1668 = vor.u32 1.1754944e-38, %v1667
      %v1669 = vsel %vm1666, %v1668, %v1664
      %v1670 = vmul.f32 1.0, %v1669
      %v1671 = vadd.f32 %v1622, %v672
      %v1673 = vrot.slane %v1671, 6
      %v1675 = vmul.f32 %v1647, %v1673
      %v1676 = vadd.f32 %v1584, %v1675
      %v1677 = vtanh.pop %v1676
      %v1678 = vsub.f32 1.0, %v1670
      %v1679 = vmul.f32 %v1678, %v1677
      %v1681 = vrot.slane %v1581, 6
      %v1683 = vmul.f32 %v1670, %v1681
      %v1684 = vadd.f32 %v1679, %v1683
      %s1685 = sadd.s32 %s1204, 5
      %p1686 = scmp.lt.s32.totalorder %s1685, 15
      %s1687 = scalar_select %p1686, 1, 0
      %s1688 = scvt.s32.f32 %s1687
      %v1689 = vstv %s1688
      %v1690 = vmul.f32 %v1689, %v1684
      %s1691 = ssub.f32 1.0, %s1688
      %v1692 = vstv %s1691
      %v1693 = vmul.f32 %v1692, %v1581
      %v1695 = vrot.slane %v1693, 6
      %v1697 = vadd.f32 %v1690, %v1695
      %1698 = vst [vmem:[#allocation5 - $0x2] sm:$0xc] %v1697
      %v1699 = vpack.c.bf16 %v1697, %v1697
      %1700 = vst [vmem:[%s483 + $0x4] sm:$0x2] %v1699
      %v1701 = vld [vmem:[#allocation4] sm:$0x3]
      %v1702 = vld [vmem:[#allocation2] sm:$0xc0]
      %v1703 = vld [vmem:[#allocation2 + $0x8] sm:$0xc0]
      %v1704 = vld [vmem:[#allocation2 + $0x10] sm:$0xc0]
      %v1705 = vpack.c.bf16 %v1701, %v1701
      %1706 = vmatpush.bf16.msra.mxu0 %v844
      %1707 = vmatpush.bf16.msra.mxu0 %v841
      %1708 = vmatpush.bf16.msra.mxu0 %v838
      %1709 = vmatpush.bf16.msra.mxu0 %v835
      %1710 = vmatpush.bf16.msra.mxu0 %v832
      %1711 = vmatpush.bf16.msra.mxu0 %v829
      %1712 = vmatpush.bf16.msra.mxu0 %v826
      %1713 = vmatpush.bf16.msra.mxu0 %v823
      %1714 = vmatmul.bf16.gmra.mxu0 %v1705
      %v1715 = vpop.f32.mrf.mxu0
      %v1716 = vadd.f32 0.0, %v1715
      %v1717 = vpop.f32.mrf.mxu0
      %1718 = vdwg.mxu0
      %1719 = vmatpush.bf16.msra.mxu0 %v845
      %1720 = vmatpush.bf16.msra.mxu0 %v842
      %1721 = vmatpush.bf16.msra.mxu0 %v839
      %1722 = vmatpush.bf16.msra.mxu0 %v836
      %1723 = vmatpush.bf16.msra.mxu0 %v833
      %1724 = vmatpush.bf16.msra.mxu0 %v830
      %1725 = vmatpush.bf16.msra.mxu0 %v827
      %1726 = vmatpush.bf16.msra.mxu0 %v824
      %1727 = vmatmul.bf16.gmra.mxu0 %v1705
      %v1728 = vpop.f32.mrf.mxu0
      %v1729 = vadd.f32 0.0, %v1728
      %v1730 = vpop.f32.mrf.mxu0
      %1731 = vdwg.mxu0
      %1732 = vmatpush.bf16.msra.mxu0 %v846
      %1733 = vmatpush.bf16.msra.mxu0 %v843
      %1734 = vmatpush.bf16.msra.mxu0 %v840
      %1735 = vmatpush.bf16.msra.mxu0 %v837
      %1736 = vmatpush.bf16.msra.mxu0 %v834
      %1737 = vmatpush.bf16.msra.mxu0 %v831
      %1738 = vmatpush.bf16.msra.mxu0 %v828
      %1739 = vmatpush.bf16.msra.mxu0 %v825
      %1740 = vmatmul.bf16.gmra.mxu0 %v1705
      %v1741 = vpop.f32.mrf.mxu0
      %v1742 = vadd.f32 0.0, %v1741
      %v1743 = vpop.f32.mrf.mxu0
      %1744 = vdwg.mxu0
      %v1746 = vrot.slane %v1716, 2
      %v1748 = vadd.f32 %v1702, %v1746
      %v1749 = vxor.u32 %v1748, 2147483648
      %v1750 = vmul.f32 %v1749, 1.442695
      %v1751 = vpow.pop %v1750
      %v1752 = vadd.f32 %v1751, 1.0
      %v1753 = vrcp.pop %v1752
      %v1754 = vmul.f32 %v1752, %v1753
      %v1755 = vsub.f32 1.0, %v1754
      %v1756 = vmul.f32 %v1753, %v1755
      %v1757 = vadd.f32 %v1753, %v1756
      %vm1758 = vweird.f32 %v1752
      %vm1759 = vweird.f32 %v1753
      %vm1760 = vmor %vm1758, %vm1759
      %v1761 = vsel %vm1760, %v1753, %v1757
      %v1762 = vand.u32 2147483647, %v1752
      %vm1763 = vcmp.eq.f32.partialorder %v1762, 8.507059e+37
      %v1764 = vand.u32 %v1752, 2147483648
      %v1765 = vor.u32 1.1754944e-38, %v1764
      %v1766 = vsel %vm1763, %v1765, %v1761
      %v1767 = vmul.f32 1.0, %v1766
      %v1769 = vrot.slane %v1729, 2
      %v1771 = vadd.f32 %v1703, %v1769
      %v1772 = vxor.u32 %v1771, 2147483648
      %v1773 = vmul.f32 %v1772, 1.442695
      %v1774 = vpow.pop %v1773
      %v1775 = vadd.f32 %v1774, 1.0
      %v1776 = vrcp.pop %v1775
      %v1777 = vmul.f32 %v1775, %v1776
      %v1778 = vsub.f32 1.0, %v1777
      %v1779 = vmul.f32 %v1776, %v1778
      %v1780 = vadd.f32 %v1776, %v1779
      %vm1781 = vweird.f32 %v1775
      %vm1782 = vweird.f32 %v1776
      %vm1783 = vmor %vm1781, %vm1782
      %v1784 = vsel %vm1783, %v1776, %v1780
      %v1785 = vand.u32 2147483647, %v1775
      %vm1786 = vcmp.eq.f32.partialorder %v1785, 8.507059e+37
      %v1787 = vand.u32 %v1775, 2147483648
      %v1788 = vor.u32 1.1754944e-38, %v1787
      %v1789 = vsel %vm1786, %v1788, %v1784
      %v1790 = vmul.f32 1.0, %v1789
      %v1791 = vadd.f32 %v1742, %v668
      %v1793 = vrot.slane %v1791, 2
      %v1795 = vmul.f32 %v1767, %v1793
      %v1796 = vadd.f32 %v1704, %v1795
      %v1797 = vtanh.pop %v1796
      %v1798 = vsub.f32 1.0, %v1790
      %v1799 = vmul.f32 %v1798, %v1797
      %v1801 = vrot.slane %v1701, 2
      %v1803 = vmul.f32 %v1790, %v1801
      %v1804 = vadd.f32 %v1799, %v1803
      %s1805 = sadd.s32 %s958, 3
      %p1806 = scmp.lt.s32.totalorder %s1805, 15
      %s1807 = scalar_select %p1806, 1, 0
      %s1808 = scvt.s32.f32 %s1807
      %v1809 = vstv %s1808
      %v1810 = vmul.f32 %v1809, %v1804
      %s1811 = ssub.f32 1.0, %s1808
      %v1812 = vstv %s1811
      %v1813 = vmul.f32 %v1812, %v1701
      %v1815 = vrot.slane %v1813, 2
      %v1817 = vadd.f32 %v1810, %v1815
      %1818 = vst [vmem:[#allocation4 - $0x6] sm:$0xc0] %v1817
      %v1819 = vpack.c.bf16 %v1817, %v1817
      %1820 = vst [vmem:[%s476] sm:$0x8] %v1819
      %v1821 = vld [vmem:[#allocation5] sm:$0x3]
      %v1822 = vld [vmem:[#allocation3 + $0x18] sm:$0x3]
      %v1823 = vld [vmem:[#allocation3 + $0x20] sm:$0x3]
      %v1824 = vld [vmem:[#allocation3 + $0x28] sm:$0x3]
      %v1825 = vpack.c.bf16 %v1821, %v1821
      %1826 = vmatpush.bf16.msra.mxu0 %v1077
      %1827 = vmatpush.bf16.msra.mxu0 %v1074
      %1828 = vmatpush.bf16.msra.mxu0 %v1071
      %1829 = vmatpush.bf16.msra.mxu0 %v1068
      %1830 = vmatpush.bf16.msra.mxu0 %v1065
      %1831 = vmatpush.bf16.msra.mxu0 %v1062
      %1832 = vmatpush.bf16.msra.mxu0 %v1059
      %1833 = vmatpush.bf16.msra.mxu0 %v1056
      %1834 = vmatmul.bf16.gmra.mxu0 %v1825
      %v1835 = vpop.f32.mrf.mxu0
      %v1836 = vadd.f32 0.0, %v1835
      %v1837 = vpop.f32.mrf.mxu0
      %1838 = vdwg.mxu0
      %1839 = vmatpush.bf16.msra.mxu0 %v1078
      %1840 = vmatpush.bf16.msra.mxu0 %v1075
      %1841 = vmatpush.bf16.msra.mxu0 %v1072
      %1842 = vmatpush.bf16.msra.mxu0 %v1069
      %1843 = vmatpush.bf16.msra.mxu0 %v1066
      %1844 = vmatpush.bf16.msra.mxu0 %v1063
      %1845 = vmatpush.bf16.msra.mxu0 %v1060
      %1846 = vmatpush.bf16.msra.mxu0 %v1057
      %1847 = vmatmul.bf16.gmra.mxu0 %v1825
      %v1848 = vpop.f32.mrf.mxu0
      %v1849 = vadd.f32 0.0, %v1848
      %v1850 = vpop.f32.mrf.mxu0
      %1851 = vdwg.mxu0
      %1852 = vmatpush.bf16.msra.mxu0 %v1079
      %1853 = vmatpush.bf16.msra.mxu0 %v1076
      %1854 = vmatpush.bf16.msra.mxu0 %v1073
      %1855 = vmatpush.bf16.msra.mxu0 %v1070
      %1856 = vmatpush.bf16.msra.mxu0 %v1067
      %1857 = vmatpush.bf16.msra.mxu0 %v1064
      %1858 = vmatpush.bf16.msra.mxu0 %v1061
      %1859 = vmatpush.bf16.msra.mxu0 %v1058
      %1860 = vmatmul.bf16.gmra.mxu0 %v1825
      %v1861 = vpop.f32.mrf.mxu0
      %v1862 = vadd.f32 0.0, %v1861
      %v1863 = vpop.f32.mrf.mxu0
      %1864 = vdwg.mxu0
      %v1865 = vadd.f32 %v1822, %v1836
      %v1866 = vxor.u32 %v1865, 2147483648
      %v1867 = vmul.f32 %v1866, 1.442695
      %v1868 = vpow.pop %v1867
      %v1869 = vadd.f32 %v1868, 1.0
      %v1870 = vrcp.pop %v1869
      %v1871 = vmul.f32 %v1869, %v1870
      %v1872 = vsub.f32 1.0, %v1871
      %v1873 = vmul.f32 %v1870, %v1872
      %v1874 = vadd.f32 %v1870, %v1873
      %vm1875 = vweird.f32 %v1869
      %vm1876 = vweird.f32 %v1870
      %vm1877 = vmor %vm1875, %vm1876
      %v1878 = vsel %vm1877, %v1870, %v1874
      %v1879 = vand.u32 2147483647, %v1869
      %vm1880 = vcmp.eq.f32.partialorder %v1879, 8.507059e+37
      %v1881 = vand.u32 %v1869, 2147483648
      %v1882 = vor.u32 1.1754944e-38, %v1881
      %v1883 = vsel %vm1880, %v1882, %v1878
      %v1884 = vmul.f32 1.0, %v1883
      %v1885 = vadd.f32 %v1823, %v1849
      %v1886 = vxor.u32 %v1885, 2147483648
      %v1887 = vmul.f32 %v1886, 1.442695
      %v1888 = vpow.pop %v1887
      %v1889 = vadd.f32 %v1888, 1.0
      %v1890 = vrcp.pop %v1889
      %v1891 = vmul.f32 %v1889, %v1890
      %v1892 = vsub.f32 1.0, %v1891
      %v1893 = vmul.f32 %v1890, %v1892
      %v1894 = vadd.f32 %v1890, %v1893
      %vm1895 = vweird.f32 %v1889
      %vm1896 = vweird.f32 %v1890
      %vm1897 = vmor %vm1895, %vm1896
      %v1898 = vsel %vm1897, %v1890, %v1894
      %v1899 = vand.u32 2147483647, %v1889
      %vm1900 = vcmp.eq.f32.partialorder %v1899, 8.507059e+37
      %v1901 = vand.u32 %v1889, 2147483648
      %v1902 = vor.u32 1.1754944e-38, %v1901
      %v1903 = vsel %vm1900, %v1902, %v1898
      %v1904 = vmul.f32 1.0, %v1903
      %v1905 = vadd.f32 %v1862, %v672
      %v1906 = vmul.f32 %v1884, %v1905
      %v1907 = vadd.f32 %v1824, %v1906
      %v1908 = vtanh.pop %v1907
      %v1909 = vsub.f32 1.0, %v1904
      %v1910 = vmul.f32 %v1909, %v1908
      %v1911 = vmul.f32 %v1904, %v1821
      %v1912 = vadd.f32 %v1910, %v1911
      %s1913 = sadd.s32 %s1204, 4
      %p1914 = scmp.lt.s32.totalorder %s1913, 15
      %s1915 = scalar_select %p1914, 1, 0
      %s1916 = scvt.s32.f32 %s1915
      %v1917 = vstv %s1916
      %v1918 = vmul.f32 %v1917, %v1912
      %s1919 = ssub.f32 1.0, %s1916
      %v1920 = vstv %s1919
      %v1921 = vmul.f32 %v1920, %v1821
      %v1922 = vadd.f32 %v1918, %v1921
      %1923 = vst [vmem:[#allocation5] sm:$0x3] %v1922
      %v1924 = vpack.c.bf16 %v1922, %v1922
      %1925 = vst [vmem:[%s483 + $0x4] sm:$0x1] %v1924
      %v1926 = vld [vmem:[#allocation4] sm:$0x3]
      %v1927 = vld [vmem:[#allocation2 + $0x18] sm:$0x3]
      %v1928 = vld [vmem:[#allocation2 + $0x20] sm:$0x3]
      %v1929 = vld [vmem:[#allocation2 + $0x28] sm:$0x3]
      %v1930 = vpack.c.bf16 %v1926, %v1926
      %1931 = vmatpush.bf16.msra.mxu0 %v844
      %1932 = vmatpush.bf16.msra.mxu0 %v841
      %1933 = vmatpush.bf16.msra.mxu0 %v838
      %1934 = vmatpush.bf16.msra.mxu0 %v835
      %1935 = vmatpush.bf16.msra.mxu0 %v832
      %1936 = vmatpush.bf16.msra.mxu0 %v829
      %1937 = vmatpush.bf16.msra.mxu0 %v826
      %1938 = vmatpush.bf16.msra.mxu0 %v823
      %1939 = vmatmul.bf16.gmra.mxu0 %v1930
      %v1940 = vpop.f32.mrf.mxu0
      %v1941 = vadd.f32 0.0, %v1940
      %v1942 = vpop.f32.mrf.mxu0
      %1943 = vdwg.mxu0
      %1944 = vmatpush.bf16.msra.mxu0 %v845
      %1945 = vmatpush.bf16.msra.mxu0 %v842
      %1946 = vmatpush.bf16.msra.mxu0 %v839
      %1947 = vmatpush.bf16.msra.mxu0 %v836
      %1948 = vmatpush.bf16.msra.mxu0 %v833
      %1949 = vmatpush.bf16.msra.mxu0 %v830
      %1950 = vmatpush.bf16.msra.mxu0 %v827
      %1951 = vmatpush.bf16.msra.mxu0 %v824
      %1952 = vmatmul.bf16.gmra.mxu0 %v1930
      %v1953 = vpop.f32.mrf.mxu0
      %v1954 = vadd.f32 0.0, %v1953
      %v1955 = vpop.f32.mrf.mxu0
      %1956 = vdwg.mxu0
      %1957 = vmatpush.bf16.msra.mxu0 %v846
      %1958 = vmatpush.bf16.msra.mxu0 %v843
      %1959 = vmatpush.bf16.msra.mxu0 %v840
      %1960 = vmatpush.bf16.msra.mxu0 %v837
      %1961 = vmatpush.bf16.msra.mxu0 %v834
      %1962 = vmatpush.bf16.msra.mxu0 %v831
      %1963 = vmatpush.bf16.msra.mxu0 %v828
      %1964 = vmatpush.bf16.msra.mxu0 %v825
      %1965 = vmatmul.bf16.gmra.mxu0 %v1930
      %v1966 = vpop.f32.mrf.mxu0
      %v1967 = vadd.f32 0.0, %v1966
      %v1968 = vpop.f32.mrf.mxu0
      %1969 = vdwg.mxu0
      %v1970 = vadd.f32 %v1927, %v1941
      %v1971 = vxor.u32 %v1970, 2147483648
      %v1972 = vmul.f32 %v1971, 1.442695
      %v1973 = vpow.pop %v1972
      %v1974 = vadd.f32 %v1973, 1.0
      %v1975 = vrcp.pop %v1974
      %v1976 = vmul.f32 %v1974, %v1975
      %v1977 = vsub.f32 1.0, %v1976
      %v1978 = vmul.f32 %v1975, %v1977
      %v1979 = vadd.f32 %v1975, %v1978
      %vm1980 = vweird.f32 %v1974
      %vm1981 = vweird.f32 %v1975
      %vm1982 = vmor %vm1980, %vm1981
      %v1983 = vsel %vm1982, %v1975, %v1979
      %v1984 = vand.u32 2147483647, %v1974
      %vm1985 = vcmp.eq.f32.partialorder %v1984, 8.507059e+37
      %v1986 = vand.u32 %v1974, 2147483648
      %v1987 = vor.u32 1.1754944e-38, %v1986
      %v1988 = vsel %vm1985, %v1987, %v1983
      %v1989 = vmul.f32 1.0, %v1988
      %v1990 = vadd.f32 %v1928, %v1954
      %v1991 = vxor.u32 %v1990, 2147483648
      %v1992 = vmul.f32 %v1991, 1.442695
      %v1993 = vpow.pop %v1992
      %v1994 = vadd.f32 %v1993, 1.0
      %v1995 = vrcp.pop %v1994
      %v1996 = vmul.f32 %v1994, %v1995
      %v1997 = vsub.f32 1.0, %v1996
      %v1998 = vmul.f32 %v1995, %v1997
      %v1999 = vadd.f32 %v1995, %v1998
      %vm2000 = vweird.f32 %v1994
      %vm2001 = vweird.f32 %v1995
      %vm2002 = vmor %vm2000, %vm2001
      %v2003 = vsel %vm2002, %v1995, %v1999
      %v2004 = vand.u32 2147483647, %v1994
      %vm2005 = vcmp.eq.f32.partialorder %v2004, 8.507059e+37
      %v2006 = vand.u32 %v1994, 2147483648
      %v2007 = vor.u32 1.1754944e-38, %v2006
      %v2008 = vsel %vm2005, %v2007, %v2003
      %v2009 = vmul.f32 1.0, %v2008
      %v2010 = vadd.f32 %v1967, %v668
      %v2011 = vmul.f32 %v1989, %v2010
      %v2012 = vadd.f32 %v1929, %v2011
      %v2013 = vtanh.pop %v2012
      %v2014 = vsub.f32 1.0, %v2009
      %v2015 = vmul.f32 %v2014, %v2013
      %v2016 = vmul.f32 %v2009, %v1926
      %v2017 = vadd.f32 %v2015, %v2016
      %s2018 = sadd.s32 %s958, 4
      %p2019 = scmp.lt.s32.totalorder %s2018, 15
      %s2020 = scalar_select %p2019, 1, 0
      %s2021 = scvt.s32.f32 %s2020
      %v2022 = vstv %s2021
      %v2023 = vmul.f32 %v2022, %v2017
      %s2024 = ssub.f32 1.0, %s2021
      %v2025 = vstv %s2024
      %v2026 = vmul.f32 %v2025, %v1926
      %v2027 = vadd.f32 %v2023, %v2026
      %2028 = vst [vmem:[#allocation4] sm:$0x3] %v2027
      %v2029 = vpack.c.bf16 %v2027, %v2027
      %2030 = vst [vmem:[%s476 + $0x4] sm:$0x1] %v2029
      %v2031 = vld [vmem:[#allocation5] sm:$0x3]
      %v2032 = vld [vmem:[#allocation3] sm:$0xc0]
      %v2033 = vld [vmem:[#allocation3 + $0x8] sm:$0xc0]
      %v2034 = vld [vmem:[#allocation3 + $0x10] sm:$0xc0]
      %v2035 = vpack.c.bf16 %v2031, %v2031
      %2036 = vmatpush.bf16.msra.mxu0 %v1077
      %2037 = vmatpush.bf16.msra.mxu0 %v1074
      %2038 = vmatpush.bf16.msra.mxu0 %v1071
      %2039 = vmatpush.bf16.msra.mxu0 %v1068
      %2040 = vmatpush.bf16.msra.mxu0 %v1065
      %2041 = vmatpush.bf16.msra.mxu0 %v1062
      %2042 = vmatpush.bf16.msra.mxu0 %v1059
      %2043 = vmatpush.bf16.msra.mxu0 %v1056
      %2044 = vmatmul.bf16.gmra.mxu0 %v2035
      %v2045 = vpop.f32.mrf.mxu0
      %v2046 = vadd.f32 0.0, %v2045
      %v2047 = vpop.f32.mrf.mxu0
      %2048 = vdwg.mxu0
      %2049 = vmatpush.bf16.msra.mxu0 %v1078
      %2050 = vmatpush.bf16.msra.mxu0 %v1075
      %2051 = vmatpush.bf16.msra.mxu0 %v1072
      %2052 = vmatpush.bf16.msra.mxu0 %v1069
      %2053 = vmatpush.bf16.msra.mxu0 %v1066
      %2054 = vmatpush.bf16.msra.mxu0 %v1063
      %2055 = vmatpush.bf16.msra.mxu0 %v1060
      %2056 = vmatpush.bf16.msra.mxu0 %v1057
      %2057 = vmatmul.bf16.gmra.mxu0 %v2035
      %v2058 = vpop.f32.mrf.mxu0
      %v2059 = vadd.f32 0.0, %v2058
      %v2060 = vpop.f32.mrf.mxu0
      %2061 = vdwg.mxu0
      %2062 = vmatpush.bf16.msra.mxu0 %v1079
      %2063 = vmatpush.bf16.msra.mxu0 %v1076
      %2064 = vmatpush.bf16.msra.mxu0 %v1073
      %2065 = vmatpush.bf16.msra.mxu0 %v1070
      %2066 = vmatpush.bf16.msra.mxu0 %v1067
      %2067 = vmatpush.bf16.msra.mxu0 %v1064
      %2068 = vmatpush.bf16.msra.mxu0 %v1061
      %2069 = vmatpush.bf16.msra.mxu0 %v1058
      %2070 = vmatmul.bf16.gmra.mxu0 %v2035
      %v2071 = vpop.f32.mrf.mxu0
      %v2072 = vadd.f32 0.0, %v2071
      %v2073 = vpop.f32.mrf.mxu0
      %2074 = vdwg.mxu0
      %v2076 = vrot.slane %v2046, 2
      %v2078 = vadd.f32 %v2032, %v2076
      %v2079 = vxor.u32 %v2078, 2147483648
      %v2080 = vmul.f32 %v2079, 1.442695
      %v2081 = vpow.pop %v2080
      %v2082 = vadd.f32 %v2081, 1.0
      %v2083 = vrcp.pop %v2082
      %v2084 = vmul.f32 %v2082, %v2083
      %v2085 = vsub.f32 1.0, %v2084
      %v2086 = vmul.f32 %v2083, %v2085
      %v2087 = vadd.f32 %v2083, %v2086
      %vm2088 = vweird.f32 %v2082
      %vm2089 = vweird.f32 %v2083
      %vm2090 = vmor %vm2088, %vm2089
      %v2091 = vsel %vm2090, %v2083, %v2087
      %v2092 = vand.u32 2147483647, %v2082
      %vm2093 = vcmp.eq.f32.partialorder %v2092, 8.507059e+37
      %v2094 = vand.u32 %v2082, 2147483648
      %v2095 = vor.u32 1.1754944e-38, %v2094
      %v2096 = vsel %vm2093, %v2095, %v2091
      %v2097 = vmul.f32 1.0, %v2096
      %v2099 = vrot.slane %v2059, 2
      %v2101 = vadd.f32 %v2033, %v2099
      %v2102 = vxor.u32 %v2101, 2147483648
      %v2103 = vmul.f32 %v2102, 1.442695
      %v2104 = vpow.pop %v2103
      %v2105 = vadd.f32 %v2104, 1.0
      %v2106 = vrcp.pop %v2105
      %v2107 = vmul.f32 %v2105, %v2106
      %v2108 = vsub.f32 1.0, %v2107
      %v2109 = vmul.f32 %v2106, %v2108
      %v2110 = vadd.f32 %v2106, %v2109
      %vm2111 = vweird.f32 %v2105
      %vm2112 = vweird.f32 %v2106
      %vm2113 = vmor %vm2111, %vm2112
      %v2114 = vsel %vm2113, %v2106, %v2110
      %v2115 = vand.u32 2147483647, %v2105
      %vm2116 = vcmp.eq.f32.partialorder %v2115, 8.507059e+37
      %v2117 = vand.u32 %v2105, 2147483648
      %v2118 = vor.u32 1.1754944e-38, %v2117
      %v2119 = vsel %vm2116, %v2118, %v2114
      %v2120 = vmul.f32 1.0, %v2119
      %v2121 = vadd.f32 %v2072, %v672
      %v2123 = vrot.slane %v2121, 2
      %v2125 = vmul.f32 %v2097, %v2123
      %v2126 = vadd.f32 %v2034, %v2125
      %v2127 = vtanh.pop %v2126
      %v2128 = vsub.f32 1.0, %v2120
      %v2129 = vmul.f32 %v2128, %v2127
      %v2131 = vrot.slane %v2031, 2
      %v2133 = vmul.f32 %v2120, %v2131
      %v2134 = vadd.f32 %v2129, %v2133
      %s2135 = sadd.s32 %s1204, 3
      %p2136 = scmp.lt.s32.totalorder %s2135, 15
      %s2137 = scalar_select %p2136, 1, 0
      %s2138 = scvt.s32.f32 %s2137
      %v2139 = vstv %s2138
      %v2140 = vmul.f32 %v2139, %v2134
      %s2141 = ssub.f32 1.0, %s2138
      %v2142 = vstv %s2141
      %v2143 = vmul.f32 %v2142, %v2031
      %v2145 = vrot.slane %v2143, 2
      %v2147 = vadd.f32 %v2140, %v2145
      %2148 = vst [vmem:[#allocation5 - $0x6] sm:$0xc0] %v2147
      %v2149 = vpack.c.bf16 %v2147, %v2147
      %2150 = vst [vmem:[%s483] sm:$0x8] %v2149
      %v2151 = vld [vmem:[#allocation4] sm:$0x3]
      %v2152 = vld [vmem:[#allocation2 + $0x18] sm:$0xc]
      %v2153 = vld [vmem:[#allocation2 + $0x20] sm:$0xc]
      %v2154 = vld [vmem:[#allocation2 + $0x28] sm:$0xc]
      %v2155 = vpack.c.bf16 %v2151, %v2151
      %2156 = vmatpush.bf16.msra.mxu0 %v844
      %2157 = vmatpush.bf16.msra.mxu0 %v841
      %2158 = vmatpush.bf16.msra.mxu0 %v838
      %2159 = vmatpush.bf16.msra.mxu0 %v835
      %2160 = vmatpush.bf16.msra.mxu0 %v832
      %2161 = vmatpush.bf16.msra.mxu0 %v829
      %2162 = vmatpush.bf16.msra.mxu0 %v826
      %2163 = vmatpush.bf16.msra.mxu0 %v823
      %2164 = vmatmul.bf16.gmra.mxu0 %v2155
      %v2165 = vpop.f32.mrf.mxu0
      %v2166 = vadd.f32 0.0, %v2165
      %v2167 = vpop.f32.mrf.mxu0
      %2168 = vdwg.mxu0
      %2169 = vmatpush.bf16.msra.mxu0 %v845
      %2170 = vmatpush.bf16.msra.mxu0 %v842
      %2171 = vmatpush.bf16.msra.mxu0 %v839
      %2172 = vmatpush.bf16.msra.mxu0 %v836
      %2173 = vmatpush.bf16.msra.mxu0 %v833
      %2174 = vmatpush.bf16.msra.mxu0 %v830
      %2175 = vmatpush.bf16.msra.mxu0 %v827
      %2176 = vmatpush.bf16.msra.mxu0 %v824
      %2177 = vmatmul.bf16.gmra.mxu0 %v2155
      %v2178 = vpop.f32.mrf.mxu0
      %v2179 = vadd.f32 0.0, %v2178
      %v2180 = vpop.f32.mrf.mxu0
      %2181 = vdwg.mxu0
      %2182 = vmatpush.bf16.msra.mxu0 %v846
      %2183 = vmatpush.bf16.msra.mxu0 %v843
      %2184 = vmatpush.bf16.msra.mxu0 %v840
      %2185 = vmatpush.bf16.msra.mxu0 %v837
      %2186 = vmatpush.bf16.msra.mxu0 %v834
      %2187 = vmatpush.bf16.msra.mxu0 %v831
      %2188 = vmatpush.bf16.msra.mxu0 %v828
      %2189 = vmatpush.bf16.msra.mxu0 %v825
      %2190 = vmatmul.bf16.gmra.mxu0 %v2155
      %v2191 = vpop.f32.mrf.mxu0
      %v2192 = vadd.f32 0.0, %v2191
      %v2193 = vpop.f32.mrf.mxu0
      %2194 = vdwg.mxu0
      %v2196 = vrot.slane %v2166, 6
      %v2198 = vadd.f32 %v2152, %v2196
      %v2199 = vxor.u32 %v2198, 2147483648
      %v2200 = vmul.f32 %v2199, 1.442695
      %v2201 = vpow.pop %v2200
      %v2202 = vadd.f32 %v2201, 1.0
      %v2203 = vrcp.pop %v2202
      %v2204 = vmul.f32 %v2202, %v2203
      %v2205 = vsub.f32 1.0, %v2204
      %v2206 = vmul.f32 %v2203, %v2205
      %v2207 = vadd.f32 %v2203, %v2206
      %vm2208 = vweird.f32 %v2202
      %vm2209 = vweird.f32 %v2203
      %vm2210 = vmor %vm2208, %vm2209
      %v2211 = vsel %vm2210, %v2203, %v2207
      %v2212 = vand.u32 2147483647, %v2202
      %vm2213 = vcmp.eq.f32.partialorder %v2212, 8.507059e+37
      %v2214 = vand.u32 %v2202, 2147483648
      %v2215 = vor.u32 1.1754944e-38, %v2214
      %v2216 = vsel %vm2213, %v2215, %v2211
      %v2217 = vmul.f32 1.0, %v2216
      %v2219 = vrot.slane %v2179, 6
      %v2221 = vadd.f32 %v2153, %v2219
      %v2222 = vxor.u32 %v2221, 2147483648
      %v2223 = vmul.f32 %v2222, 1.442695
      %v2224 = vpow.pop %v2223
      %v2225 = vadd.f32 %v2224, 1.0
      %v2226 = vrcp.pop %v2225
      %v2227 = vmul.f32 %v2225, %v2226
      %v2228 = vsub.f32 1.0, %v2227
      %v2229 = vmul.f32 %v2226, %v2228
      %v2230 = vadd.f32 %v2226, %v2229
      %vm2231 = vweird.f32 %v2225
      %vm2232 = vweird.f32 %v2226
      %vm2233 = vmor %vm2231, %vm2232
      %v2234 = vsel %vm2233, %v2226, %v2230
      %v2235 = vand.u32 2147483647, %v2225
      %vm2236 = vcmp.eq.f32.partialorder %v2235, 8.507059e+37
      %v2237 = vand.u32 %v2225, 2147483648
      %v2238 = vor.u32 1.1754944e-38, %v2237
      %v2239 = vsel %vm2236, %v2238, %v2234
      %v2240 = vmul.f32 1.0, %v2239
      %v2241 = vadd.f32 %v2192, %v668
      %v2243 = vrot.slane %v2241, 6
      %v2245 = vmul.f32 %v2217, %v2243
      %v2246 = vadd.f32 %v2154, %v2245
      %v2247 = vtanh.pop %v2246
      %v2248 = vsub.f32 1.0, %v2240
      %v2249 = vmul.f32 %v2248, %v2247
      %v2251 = vrot.slane %v2151, 6
      %v2253 = vmul.f32 %v2240, %v2251
      %v2254 = vadd.f32 %v2249, %v2253
      %s2255 = sadd.s32 %s958, 5
      %p2256 = scmp.lt.s32.totalorder %s2255, 15
      %s2257 = scalar_select %p2256, 1, 0
      %s2258 = scvt.s32.f32 %s2257
      %v2259 = vstv %s2258
      %v2260 = vmul.f32 %v2259, %v2254
      %s2261 = ssub.f32 1.0, %s2258
      %v2262 = vstv %s2261
      %v2263 = vmul.f32 %v2262, %v2151
      %v2265 = vrot.slane %v2263, 6
      %v2267 = vadd.f32 %v2260, %v2265
      %2268 = vst [vmem:[#allocation4 - $0x2] sm:$0xc] %v2267
      %v2269 = vpack.c.bf16 %v2267, %v2267
      %2270 = vst [vmem:[%s476 + $0x4] sm:$0x2] %v2269
      %v2271 = vld [vmem:[#allocation5] sm:$0x3]
      %v2272 = vld [vmem:[#allocation3] sm:$0x30]
      %v2273 = vld [vmem:[#allocation3 + $0x8] sm:$0x30]
      %v2274 = vld [vmem:[#allocation3 + $0x10] sm:$0x30]
      %v2275 = vpack.c.bf16 %v2271, %v2271
      %2276 = vmatpush.bf16.msra.mxu0 %v1077
      %2277 = vmatpush.bf16.msra.mxu0 %v1074
      %2278 = vmatpush.bf16.msra.mxu0 %v1071
      %2279 = vmatpush.bf16.msra.mxu0 %v1068
      %2280 = vmatpush.bf16.msra.mxu0 %v1065
      %2281 = vmatpush.bf16.msra.mxu0 %v1062
      %2282 = vmatpush.bf16.msra.mxu0 %v1059
      %2283 = vmatpush.bf16.msra.mxu0 %v1056
      %2284 = vmatmul.bf16.gmra.mxu0 %v2275
      %v2285 = vpop.f32.mrf.mxu0
      %v2286 = vadd.f32 0.0, %v2285
      %v2287 = vpop.f32.mrf.mxu0
      %2288 = vdwg.mxu0
      %2289 = vmatpush.bf16.msra.mxu0 %v1078
      %2290 = vmatpush.bf16.msra.mxu0 %v1075
      %2291 = vmatpush.bf16.msra.mxu0 %v1072
      %2292 = vmatpush.bf16.msra.mxu0 %v1069
      %2293 = vmatpush.bf16.msra.mxu0 %v1066
      %2294 = vmatpush.bf16.msra.mxu0 %v1063
      %2295 = vmatpush.bf16.msra.mxu0 %v1060
      %2296 = vmatpush.bf16.msra.mxu0 %v1057
      %2297 = vmatmul.bf16.gmra.mxu0 %v2275
      %v2298 = vpop.f32.mrf.mxu0
      %v2299 = vadd.f32 0.0, %v2298
      %v2300 = vpop.f32.mrf.mxu0
      %2301 = vdwg.mxu0
      %2302 = vmatpush.bf16.msra.mxu0 %v1079
      %2303 = vmatpush.bf16.msra.mxu0 %v1076
      %2304 = vmatpush.bf16.msra.mxu0 %v1073
      %2305 = vmatpush.bf16.msra.mxu0 %v1070
      %2306 = vmatpush.bf16.msra.mxu0 %v1067
      %2307 = vmatpush.bf16.msra.mxu0 %v1064
      %2308 = vmatpush.bf16.msra.mxu0 %v1061
      %2309 = vmatpush.bf16.msra.mxu0 %v1058
      %2310 = vmatmul.bf16.gmra.mxu0 %v2275
      %v2311 = vpop.f32.mrf.mxu0
      %v2312 = vadd.f32 0.0, %v2311
      %v2313 = vpop.f32.mrf.mxu0
      %2314 = vdwg.mxu0
      %v2316 = vrot.slane %v2286, 4
      %v2318 = vadd.f32 %v2272, %v2316
      %v2319 = vxor.u32 %v2318, 2147483648
      %v2320 = vmul.f32 %v2319, 1.442695
      %v2321 = vpow.pop %v2320
      %v2322 = vadd.f32 %v2321, 1.0
      %v2323 = vrcp.pop %v2322
      %v2324 = vmul.f32 %v2322, %v2323
      %v2325 = vsub.f32 1.0, %v2324
      %v2326 = vmul.f32 %v2323, %v2325
      %v2327 = vadd.f32 %v2323, %v2326
      %vm2328 = vweird.f32 %v2322
      %vm2329 = vweird.f32 %v2323
      %vm2330 = vmor %vm2328, %vm2329
      %v2331 = vsel %vm2330, %v2323, %v2327
      %v2332 = vand.u32 2147483647, %v2322
      %vm2333 = vcmp.eq.f32.partialorder %v2332, 8.507059e+37
      %v2334 = vand.u32 %v2322, 2147483648
      %v2335 = vor.u32 1.1754944e-38, %v2334
      %v2336 = vsel %vm2333, %v2335, %v2331
      %v2337 = vmul.f32 1.0, %v2336
      %v2339 = vrot.slane %v2299, 4
      %v2341 = vadd.f32 %v2273, %v2339
      %v2342 = vxor.u32 %v2341, 2147483648
      %v2343 = vmul.f32 %v2342, 1.442695
      %v2344 = vpow.pop %v2343
      %v2345 = vadd.f32 %v2344, 1.0
      %v2346 = vrcp.pop %v2345
      %v2347 = vmul.f32 %v2345, %v2346
      %v2348 = vsub.f32 1.0, %v2347
      %v2349 = vmul.f32 %v2346, %v2348
      %v2350 = vadd.f32 %v2346, %v2349
      %vm2351 = vweird.f32 %v2345
      %vm2352 = vweird.f32 %v2346
      %vm2353 = vmor %vm2351, %vm2352
      %v2354 = vsel %vm2353, %v2346, %v2350
      %v2355 = vand.u32 2147483647, %v2345
      %vm2356 = vcmp.eq.f32.partialorder %v2355, 8.507059e+37
      %v2357 = vand.u32 %v2345, 2147483648
      %v2358 = vor.u32 1.1754944e-38, %v2357
      %v2359 = vsel %vm2356, %v2358, %v2354
      %v2360 = vmul.f32 1.0, %v2359
      %v2361 = vadd.f32 %v2312, %v672
      %v2363 = vrot.slane %v2361, 4
      %v2365 = vmul.f32 %v2337, %v2363
      %v2366 = vadd.f32 %v2274, %v2365
      %v2367 = vtanh.pop %v2366
      %v2368 = vsub.f32 1.0, %v2360
      %v2369 = vmul.f32 %v2368, %v2367
      %v2371 = vrot.slane %v2271, 4
      %v2373 = vmul.f32 %v2360, %v2371
      %v2374 = vadd.f32 %v2369, %v2373
      %s2375 = sadd.s32 %s1204, 2
      %p2376 = scmp.lt.s32.totalorder %s2375, 15
      %s2377 = scalar_select %p2376, 1, 0
      %s2378 = scvt.s32.f32 %s2377
      %v2379 = vstv %s2378
      %v2380 = vmul.f32 %v2379, %v2374
      %s2381 = ssub.f32 1.0, %s2378
      %v2382 = vstv %s2381
      %v2383 = vmul.f32 %v2382, %v2271
      %v2385 = vrot.slane %v2383, 4
      %v2387 = vadd.f32 %v2380, %v2385
      %2388 = vst [vmem:[#allocation5 - $0x4] sm:$0x30] %v2387
      %v2389 = vpack.c.bf16 %v2387, %v2387
      %2390 = vst [vmem:[%s483] sm:$0x4] %v2389
      %v2391 = vld [vmem:[#allocation4] sm:$0x3]
      %v2392 = vld [vmem:[#allocation2 + $0x18] sm:$0x30]
      %v2393 = vld [vmem:[#allocation2 + $0x20] sm:$0x30]
      %v2394 = vld [vmem:[#allocation2 + $0x28] sm:$0x30]
      %v2395 = vpack.c.bf16 %v2391, %v2391
      %2396 = vmatpush.bf16.msra.mxu0 %v844
      %2397 = vmatpush.bf16.msra.mxu0 %v841
      %2398 = vmatpush.bf16.msra.mxu0 %v838
      %2399 = vmatpush.bf16.msra.mxu0 %v835
      %2400 = vmatpush.bf16.msra.mxu0 %v832
      %2401 = vmatpush.bf16.msra.mxu0 %v829
      %2402 = vmatpush.bf16.msra.mxu0 %v826
      %2403 = vmatpush.bf16.msra.mxu0 %v823
      %2404 = vmatmul.bf16.gmra.mxu0 %v2395
      %v2405 = vpop.f32.mrf.mxu0
      %v2406 = vadd.f32 0.0, %v2405
      %v2407 = vpop.f32.mrf.mxu0
      %2408 = vdwg.mxu0
      %2409 = vmatpush.bf16.msra.mxu0 %v845
      %2410 = vmatpush.bf16.msra.mxu0 %v842
      %2411 = vmatpush.bf16.msra.mxu0 %v839
      %2412 = vmatpush.bf16.msra.mxu0 %v836
      %2413 = vmatpush.bf16.msra.mxu0 %v833
      %2414 = vmatpush.bf16.msra.mxu0 %v830
      %2415 = vmatpush.bf16.msra.mxu0 %v827
      %2416 = vmatpush.bf16.msra.mxu0 %v824
      %2417 = vmatmul.bf16.gmra.mxu0 %v2395
      %v2418 = vpop.f32.mrf.mxu0
      %v2419 = vadd.f32 0.0, %v2418
      %v2420 = vpop.f32.mrf.mxu0
      %2421 = vdwg.mxu0
      %2422 = vmatpush.bf16.msra.mxu0 %v846
      %2423 = vmatpush.bf16.msra.mxu0 %v843
      %2424 = vmatpush.bf16.msra.mxu0 %v840
      %2425 = vmatpush.bf16.msra.mxu0 %v837
      %2426 = vmatpush.bf16.msra.mxu0 %v834
      %2427 = vmatpush.bf16.msra.mxu0 %v831
      %2428 = vmatpush.bf16.msra.mxu0 %v828
      %2429 = vmatpush.bf16.msra.mxu0 %v825
      %2430 = vmatmul.bf16.gmra.mxu0 %v2395
      %v2431 = vpop.f32.mrf.mxu0
      %v2432 = vadd.f32 0.0, %v2431
      %v2433 = vpop.f32.mrf.mxu0
      %2434 = vdwg.mxu0
      %v2436 = vrot.slane %v2406, 4
      %v2438 = vadd.f32 %v2392, %v2436
      %v2439 = vxor.u32 %v2438, 2147483648
      %v2440 = vmul.f32 %v2439, 1.442695
      %v2441 = vpow.pop %v2440
      %v2442 = vadd.f32 %v2441, 1.0
      %v2443 = vrcp.pop %v2442
      %v2444 = vmul.f32 %v2442, %v2443
      %v2445 = vsub.f32 1.0, %v2444
      %v2446 = vmul.f32 %v2443, %v2445
      %v2447 = vadd.f32 %v2443, %v2446
      %vm2448 = vweird.f32 %v2442
      %vm2449 = vweird.f32 %v2443
      %vm2450 = vmor %vm2448, %vm2449
      %v2451 = vsel %vm2450, %v2443, %v2447
      %v2452 = vand.u32 2147483647, %v2442
      %vm2453 = vcmp.eq.f32.partialorder %v2452, 8.507059e+37
      %v2454 = vand.u32 %v2442, 2147483648
      %v2455 = vor.u32 1.1754944e-38, %v2454
      %v2456 = vsel %vm2453, %v2455, %v2451
      %v2457 = vmul.f32 1.0, %v2456
      %v2459 = vrot.slane %v2419, 4
      %v2461 = vadd.f32 %v2393, %v2459
      %v2462 = vxor.u32 %v2461, 2147483648
      %v2463 = vmul.f32 %v2462, 1.442695
      %v2464 = vpow.pop %v2463
      %v2465 = vadd.f32 %v2464, 1.0
      %v2466 = vrcp.pop %v2465
      %v2467 = vmul.f32 %v2465, %v2466
      %v2468 = vsub.f32 1.0, %v2467
      %v2469 = vmul.f32 %v2466, %v2468
      %v2470 = vadd.f32 %v2466, %v2469
      %vm2471 = vweird.f32 %v2465
      %vm2472 = vweird.f32 %v2466
      %vm2473 = vmor %vm2471, %vm2472
      %v2474 = vsel %vm2473, %v2466, %v2470
      %v2475 = vand.u32 2147483647, %v2465
      %vm2476 = vcmp.eq.f32.partialorder %v2475, 8.507059e+37
      %v2477 = vand.u32 %v2465, 2147483648
      %v2478 = vor.u32 1.1754944e-38, %v2477
      %v2479 = vsel %vm2476, %v2478, %v2474
      %v2480 = vmul.f32 1.0, %v2479
      %v2481 = vadd.f32 %v2432, %v668
      %v2483 = vrot.slane %v2481, 4
      %v2485 = vmul.f32 %v2457, %v2483
      %v2486 = vadd.f32 %v2394, %v2485
      %v2487 = vtanh.pop %v2486
      %v2488 = vsub.f32 1.0, %v2480
      %v2489 = vmul.f32 %v2488, %v2487
      %v2491 = vrot.slane %v2391, 4
      %v2493 = vmul.f32 %v2480, %v2491
      %v2494 = vadd.f32 %v2489, %v2493
      %s2495 = sadd.s32 %s958, 6
      %p2496 = scmp.lt.s32.totalorder %s2495, 15
      %s2497 = scalar_select %p2496, 1, 0
      %s2498 = scvt.s32.f32 %s2497
      %v2499 = vstv %s2498
      %v2500 = vmul.f32 %v2499, %v2494
      %s2501 = ssub.f32 1.0, %s2498
      %v2502 = vstv %s2501
      %v2503 = vmul.f32 %v2502, %v2391
      %v2505 = vrot.slane %v2503, 4
      %v2507 = vadd.f32 %v2500, %v2505
      %2508 = vst [vmem:[#allocation4 - $0x4] sm:$0x30] %v2507
      %v2509 = vpack.c.bf16 %v2507, %v2507
      %2510 = vst [vmem:[%s476 + $0x4] sm:$0x4] %v2509
      %v2511 = vld [vmem:[#allocation5] sm:$0x3]
      %v2512 = vld [vmem:[#allocation3] sm:$0xc]
      %v2513 = vld [vmem:[#allocation3 + $0x8] sm:$0xc]
      %v2514 = vld [vmem:[#allocation3 + $0x10] sm:$0xc]
      %v2515 = vpack.c.bf16 %v2511, %v2511
      %2516 = vmatpush.bf16.msra.mxu0 %v1077
      %2517 = vmatpush.bf16.msra.mxu0 %v1074
      %2518 = vmatpush.bf16.msra.mxu0 %v1071
      %2519 = vmatpush.bf16.msra.mxu0 %v1068
      %2520 = vmatpush.bf16.msra.mxu0 %v1065
      %2521 = vmatpush.bf16.msra.mxu0 %v1062
      %2522 = vmatpush.bf16.msra.mxu0 %v1059
      %2523 = vmatpush.bf16.msra.mxu0 %v1056
      %2524 = vmatmul.bf16.gmra.mxu0 %v2515
      %v2525 = vpop.f32.mrf.mxu0
      %v2526 = vadd.f32 0.0, %v2525
      %v2527 = vpop.f32.mrf.mxu0
      %2528 = vdwg.mxu0
      %2529 = vmatpush.bf16.msra.mxu0 %v1078
      %2530 = vmatpush.bf16.msra.mxu0 %v1075
      %2531 = vmatpush.bf16.msra.mxu0 %v1072
      %2532 = vmatpush.bf16.msra.mxu0 %v1069
      %2533 = vmatpush.bf16.msra.mxu0 %v1066
      %2534 = vmatpush.bf16.msra.mxu0 %v1063
      %2535 = vmatpush.bf16.msra.mxu0 %v1060
      %2536 = vmatpush.bf16.msra.mxu0 %v1057
      %2537 = vmatmul.bf16.gmra.mxu0 %v2515
      %v2538 = vpop.f32.mrf.mxu0
      %v2539 = vadd.f32 0.0, %v2538
      %v2540 = vpop.f32.mrf.mxu0
      %2541 = vdwg.mxu0
      %2542 = vmatpush.bf16.msra.mxu0 %v1079
      %2543 = vmatpush.bf16.msra.mxu0 %v1076
      %2544 = vmatpush.bf16.msra.mxu0 %v1073
      %2545 = vmatpush.bf16.msra.mxu0 %v1070
      %2546 = vmatpush.bf16.msra.mxu0 %v1067
      %2547 = vmatpush.bf16.msra.mxu0 %v1064
      %2548 = vmatpush.bf16.msra.mxu0 %v1061
      %2549 = vmatpush.bf16.msra.mxu0 %v1058
      %2550 = vmatmul.bf16.gmra.mxu0 %v2515
      %v2551 = vpop.f32.mrf.mxu0
      %v2552 = vadd.f32 0.0, %v2551
      %v2553 = vpop.f32.mrf.mxu0
      %2554 = vdwg.mxu0
      %v2556 = vrot.slane %v2526, 6
      %v2558 = vadd.f32 %v2512, %v2556
      %v2559 = vxor.u32 %v2558, 2147483648
      %v2560 = vmul.f32 %v2559, 1.442695
      %v2561 = vpow.pop %v2560
      %v2562 = vadd.f32 %v2561, 1.0
      %v2563 = vrcp.pop %v2562
      %v2564 = vmul.f32 %v2562, %v2563
      %v2565 = vsub.f32 1.0, %v2564
      %v2566 = vmul.f32 %v2563, %v2565
      %v2567 = vadd.f32 %v2563, %v2566
      %vm2568 = vweird.f32 %v2562
      %vm2569 = vweird.f32 %v2563
      %vm2570 = vmor %vm2568, %vm2569
      %v2571 = vsel %vm2570, %v2563, %v2567
      %v2572 = vand.u32 2147483647, %v2562
      %vm2573 = vcmp.eq.f32.partialorder %v2572, 8.507059e+37
      %v2574 = vand.u32 %v2562, 2147483648
      %v2575 = vor.u32 1.1754944e-38, %v2574
      %v2576 = vsel %vm2573, %v2575, %v2571
      %v2577 = vmul.f32 1.0, %v2576
      %v2579 = vrot.slane %v2539, 6
      %v2581 = vadd.f32 %v2513, %v2579
      %v2582 = vxor.u32 %v2581, 2147483648
      %v2583 = vmul.f32 %v2582, 1.442695
      %v2584 = vpow.pop %v2583
      %v2585 = vadd.f32 %v2584, 1.0
      %v2586 = vrcp.pop %v2585
      %v2587 = vmul.f32 %v2585, %v2586
      %v2588 = vsub.f32 1.0, %v2587
      %v2589 = vmul.f32 %v2586, %v2588
      %v2590 = vadd.f32 %v2586, %v2589
      %vm2591 = vweird.f32 %v2585
      %vm2592 = vweird.f32 %v2586
      %vm2593 = vmor %vm2591, %vm2592
      %v2594 = vsel %vm2593, %v2586, %v2590
      %v2595 = vand.u32 2147483647, %v2585
      %vm2596 = vcmp.eq.f32.partialorder %v2595, 8.507059e+37
      %v2597 = vand.u32 %v2585, 2147483648
      %v2598 = vor.u32 1.1754944e-38, %v2597
      %v2599 = vsel %vm2596, %v2598, %v2594
      %v2600 = vmul.f32 1.0, %v2599
      %v2601 = vadd.f32 %v2552, %v672
      %v2603 = vrot.slane %v2601, 6
      %v2605 = vmul.f32 %v2577, %v2603
      %v2606 = vadd.f32 %v2514, %v2605
      %v2607 = vtanh.pop %v2606
      %v2608 = vsub.f32 1.0, %v2600
      %v2609 = vmul.f32 %v2608, %v2607
      %v2611 = vrot.slane %v2511, 6
      %v2613 = vmul.f32 %v2600, %v2611
      %v2614 = vadd.f32 %v2609, %v2613
      %s2615 = sadd.s32 %s1204, 1
      %p2616 = scmp.lt.s32.totalorder %s2615, 15
      %s2617 = scalar_select %p2616, 1, 0
      %s2618 = scvt.s32.f32 %s2617
      %v2619 = vstv %s2618
      %v2620 = vmul.f32 %v2619, %v2614
      %s2621 = ssub.f32 1.0, %s2618
      %v2622 = vstv %s2621
      %v2623 = vmul.f32 %v2622, %v2511
      %v2625 = vrot.slane %v2623, 6
      %v2627 = vadd.f32 %v2620, %v2625
      %2628 = vst [vmem:[#allocation5 - $0x2] sm:$0xc] %v2627
      %v2629 = vpack.c.bf16 %v2627, %v2627
      %2630 = vst [vmem:[%s483] sm:$0x2] %v2629
      %v2631 = vld [vmem:[#allocation4] sm:$0x3]
      %v2632 = vld [vmem:[#allocation2 + $0x18] sm:$0xc0]
      %v2633 = vld [vmem:[#allocation2 + $0x20] sm:$0xc0]
      %v2634 = vld [vmem:[#allocation2 + $0x28] sm:$0xc0]
      %v2635 = vpack.c.bf16 %v2631, %v2631
      %2636 = vmatpush.bf16.msra.mxu0 %v844
      %2637 = vmatpush.bf16.msra.mxu0 %v841
      %2638 = vmatpush.bf16.msra.mxu0 %v838
      %2639 = vmatpush.bf16.msra.mxu0 %v835
      %2640 = vmatpush.bf16.msra.mxu0 %v832
      %2641 = vmatpush.bf16.msra.mxu0 %v829
      %2642 = vmatpush.bf16.msra.mxu0 %v826
      %2643 = vmatpush.bf16.msra.mxu0 %v823
      %2644 = vmatmul.bf16.gmra.mxu0 %v2635
      %v2645 = vpop.f32.mrf.mxu0
      %v2646 = vadd.f32 0.0, %v2645
      %v2647 = vpop.f32.mrf.mxu0
      %2648 = vdwg.mxu0
      %2649 = vmatpush.bf16.msra.mxu0 %v845
      %2650 = vmatpush.bf16.msra.mxu0 %v842
      %2651 = vmatpush.bf16.msra.mxu0 %v839
      %2652 = vmatpush.bf16.msra.mxu0 %v836
      %2653 = vmatpush.bf16.msra.mxu0 %v833
      %2654 = vmatpush.bf16.msra.mxu0 %v830
      %2655 = vmatpush.bf16.msra.mxu0 %v827
      %2656 = vmatpush.bf16.msra.mxu0 %v824
      %2657 = vmatmul.bf16.gmra.mxu0 %v2635
      %v2658 = vpop.f32.mrf.mxu0
      %v2659 = vadd.f32 0.0, %v2658
      %v2660 = vpop.f32.mrf.mxu0
      %2661 = vdwg.mxu0
      %2662 = vmatpush.bf16.msra.mxu0 %v846
      %2663 = vmatpush.bf16.msra.mxu0 %v843
      %2664 = vmatpush.bf16.msra.mxu0 %v840
      %2665 = vmatpush.bf16.msra.mxu0 %v837
      %2666 = vmatpush.bf16.msra.mxu0 %v834
      %2667 = vmatpush.bf16.msra.mxu0 %v831
      %2668 = vmatpush.bf16.msra.mxu0 %v828
      %2669 = vmatpush.bf16.msra.mxu0 %v825
      %2670 = vmatmul.bf16.gmra.mxu0 %v2635
      %v2671 = vpop.f32.mrf.mxu0
      %v2672 = vadd.f32 0.0, %v2671
      %v2673 = vpop.f32.mrf.mxu0
      %2674 = vdwg.mxu0
      %v2676 = vrot.slane %v2646, 2
      %v2678 = vadd.f32 %v2632, %v2676
      %v2679 = vxor.u32 %v2678, 2147483648
      %v2680 = vmul.f32 %v2679, 1.442695
      %v2681 = vpow.pop %v2680
      %v2682 = vadd.f32 %v2681, 1.0
      %v2683 = vrcp.pop %v2682
      %v2684 = vmul.f32 %v2682, %v2683
      %v2685 = vsub.f32 1.0, %v2684
      %v2686 = vmul.f32 %v2683, %v2685
      %v2687 = vadd.f32 %v2683, %v2686
      %vm2688 = vweird.f32 %v2682
      %vm2689 = vweird.f32 %v2683
      %vm2690 = vmor %vm2688, %vm2689
      %v2691 = vsel %vm2690, %v2683, %v2687
      %v2692 = vand.u32 2147483647, %v2682
      %vm2693 = vcmp.eq.f32.partialorder %v2692, 8.507059e+37
      %v2694 = vand.u32 %v2682, 2147483648
      %v2695 = vor.u32 1.1754944e-38, %v2694
      %v2696 = vsel %vm2693, %v2695, %v2691
      %v2697 = vmul.f32 1.0, %v2696
      %v2699 = vrot.slane %v2659, 2
      %v2701 = vadd.f32 %v2633, %v2699
      %v2702 = vxor.u32 %v2701, 2147483648
      %v2703 = vmul.f32 %v2702, 1.442695
      %v2704 = vpow.pop %v2703
      %v2705 = vadd.f32 %v2704, 1.0
      %v2706 = vrcp.pop %v2705
      %v2707 = vmul.f32 %v2705, %v2706
      %v2708 = vsub.f32 1.0, %v2707
      %v2709 = vmul.f32 %v2706, %v2708
      %v2710 = vadd.f32 %v2706, %v2709
      %vm2711 = vweird.f32 %v2705
      %vm2712 = vweird.f32 %v2706
      %vm2713 = vmor %vm2711, %vm2712
      %v2714 = vsel %vm2713, %v2706, %v2710
      %v2715 = vand.u32 2147483647, %v2705
      %vm2716 = vcmp.eq.f32.partialorder %v2715, 8.507059e+37
      %v2717 = vand.u32 %v2705, 2147483648
      %v2718 = vor.u32 1.1754944e-38, %v2717
      %v2719 = vsel %vm2716, %v2718, %v2714
      %v2720 = vmul.f32 1.0, %v2719
      %v2721 = vadd.f32 %v2672, %v668
      %v2723 = vrot.slane %v2721, 2
      %v2725 = vmul.f32 %v2697, %v2723
      %v2726 = vadd.f32 %v2634, %v2725
      %v2727 = vtanh.pop %v2726
      %v2728 = vsub.f32 1.0, %v2720
      %v2729 = vmul.f32 %v2728, %v2727
      %v2731 = vrot.slane %v2631, 2
      %v2733 = vmul.f32 %v2720, %v2731
      %v2734 = vadd.f32 %v2729, %v2733
      %s2735 = sadd.s32 %s958, 7
      %p2736 = scmp.lt.s32.totalorder %s2735, 15
      %s2737 = scalar_select %p2736, 1, 0
      %s2738 = scvt.s32.f32 %s2737
      %v2739 = vstv %s2738
      %v2740 = vmul.f32 %v2739, %v2734
      %s2741 = ssub.f32 1.0, %s2738
      %v2742 = vstv %s2741
      %v2743 = vmul.f32 %v2742, %v2631
      %v2745 = vrot.slane %v2743, 2
      %v2747 = vadd.f32 %v2740, %v2745
      %2748 = vst [vmem:[#allocation4 - $0x6] sm:$0xc0] %v2747
      %v2749 = vpack.c.bf16 %v2747, %v2747
      %2750 = vst [vmem:[%s476 + $0x4] sm:$0x8] %v2749
      %v2751 = vld [vmem:[#allocation5] sm:$0x3]
      %v2752 = vld [vmem:[#allocation3] sm:$0x3]
      %v2753 = vld [vmem:[#allocation3 + $0x8] sm:$0x3]
      %v2754 = vld [vmem:[#allocation3 + $0x10] sm:$0x3]
      %v2755 = vpack.c.bf16 %v2751, %v2751
      %2756 = vmatpush.bf16.msra.mxu0 %v1077
      %2757 = vmatpush.bf16.msra.mxu0 %v1074
      %2758 = vmatpush.bf16.msra.mxu0 %v1071
      %2759 = vmatpush.bf16.msra.mxu0 %v1068
      %2760 = vmatpush.bf16.msra.mxu0 %v1065
      %2761 = vmatpush.bf16.msra.mxu0 %v1062
      %2762 = vmatpush.bf16.msra.mxu0 %v1059
      %2763 = vmatpush.bf16.msra.mxu0 %v1056
      %2764 = vmatmul.bf16.gmra.mxu0 %v2755
      %v2765 = vpop.f32.mrf.mxu0
      %v2766 = vadd.f32 0.0, %v2765
      %v2767 = vpop.f32.mrf.mxu0
      %2768 = vdwg.mxu0
      %2769 = vmatpush.bf16.msra.mxu0 %v1078
      %2770 = vmatpush.bf16.msra.mxu0 %v1075
      %2771 = vmatpush.bf16.msra.mxu0 %v1072
      %2772 = vmatpush.bf16.msra.mxu0 %v1069
      %2773 = vmatpush.bf16.msra.mxu0 %v1066
      %2774 = vmatpush.bf16.msra.mxu0 %v1063
      %2775 = vmatpush.bf16.msra.mxu0 %v1060
      %2776 = vmatpush.bf16.msra.mxu0 %v1057
      %2777 = vmatmul.bf16.gmra.mxu0 %v2755
      %v2778 = vpop.f32.mrf.mxu0
      %v2779 = vadd.f32 0.0, %v2778
      %v2780 = vpop.f32.mrf.mxu0
      %2781 = vdwg.mxu0
      %2782 = vmatpush.bf16.msra.mxu0 %v1079
      %2783 = vmatpush.bf16.msra.mxu0 %v1076
      %2784 = vmatpush.bf16.msra.mxu0 %v1073
      %2785 = vmatpush.bf16.msra.mxu0 %v1070
      %2786 = vmatpush.bf16.msra.mxu0 %v1067
      %2787 = vmatpush.bf16.msra.mxu0 %v1064
      %2788 = vmatpush.bf16.msra.mxu0 %v1061
      %2789 = vmatpush.bf16.msra.mxu0 %v1058
      %2790 = vmatmul.bf16.gmra.mxu0 %v2755
      %v2791 = vpop.f32.mrf.mxu0
      %v2792 = vadd.f32 0.0, %v2791
      %v2793 = vpop.f32.mrf.mxu0
      %2794 = vdwg.mxu0
      %v2795 = vadd.f32 %v2752, %v2766
      %v2796 = vxor.u32 %v2795, 2147483648
      %v2797 = vmul.f32 %v2796, 1.442695
      %v2798 = vpow.pop %v2797
      %v2799 = vadd.f32 %v2798, 1.0
      %v2800 = vrcp.pop %v2799
      %v2801 = vmul.f32 %v2799, %v2800
      %v2802 = vsub.f32 1.0, %v2801
      %v2803 = vmul.f32 %v2800, %v2802
      %v2804 = vadd.f32 %v2800, %v2803
      %vm2805 = vweird.f32 %v2799
      %vm2806 = vweird.f32 %v2800
      %vm2807 = vmor %vm2805, %vm2806
      %v2808 = vsel %vm2807, %v2800, %v2804
      %v2809 = vand.u32 2147483647, %v2799
      %vm2810 = vcmp.eq.f32.partialorder %v2809, 8.507059e+37
      %v2811 = vand.u32 %v2799, 2147483648
      %v2812 = vor.u32 1.1754944e-38, %v2811
      %v2813 = vsel %vm2810, %v2812, %v2808
      %v2814 = vmul.f32 1.0, %v2813
      %v2815 = vadd.f32 %v2753, %v2779
      %v2816 = vxor.u32 %v2815, 2147483648
      %v2817 = vmul.f32 %v2816, 1.442695
      %v2818 = vpow.pop %v2817
      %v2819 = vadd.f32 %v2818, 1.0
      %v2820 = vrcp.pop %v2819
      %v2821 = vmul.f32 %v2819, %v2820
      %v2822 = vsub.f32 1.0, %v2821
      %v2823 = vmul.f32 %v2820, %v2822
      %v2824 = vadd.f32 %v2820, %v2823
      %vm2825 = vweird.f32 %v2819
      %vm2826 = vweird.f32 %v2820
      %vm2827 = vmor %vm2825, %vm2826
      %v2828 = vsel %vm2827, %v2820, %v2824
      %v2829 = vand.u32 2147483647, %v2819
      %vm2830 = vcmp.eq.f32.partialorder %v2829, 8.507059e+37
      %v2831 = vand.u32 %v2819, 2147483648
      %v2832 = vor.u32 1.1754944e-38, %v2831
      %v2833 = vsel %vm2830, %v2832, %v2828
      %v2834 = vmul.f32 1.0, %v2833
      %v2835 = vadd.f32 %v2792, %v672
      %v2836 = vmul.f32 %v2814, %v2835
      %v2837 = vadd.f32 %v2754, %v2836
      %v2838 = vtanh.pop %v2837
      %v2839 = vsub.f32 1.0, %v2834
      %v2840 = vmul.f32 %v2839, %v2838
      %v2841 = vmul.f32 %v2834, %v2751
      %v2842 = vadd.f32 %v2840, %v2841
      %p2843 = scmp.lt.s32.totalorder %s1204, 15
      %s2844 = scalar_select %p2843, 1, 0
      %s2845 = scvt.s32.f32 %s2844
      %v2846 = vstv %s2845
      %v2847 = vmul.f32 %v2846, %v2842
      %s2848 = ssub.f32 1.0, %s2845
      %v2849 = vstv %s2848
      %v2850 = vmul.f32 %v2849, %v2751
      %v2851 = vadd.f32 %v2847, %v2850
      %2852 = vst [vmem:[#allocation5] sm:$0x3] %v2851
      %v2853 = vpack.c.bf16 %v2851, %v2851
      %2854 = vst [vmem:[%s483] sm:$0x1] %v2853
      %p2855 = scmp.eq.s32.totalorder %s25, 1
      // Predicated region
      $region65: #{_lambda_.2} parent=59 // pred_check
        %p2856 = pneg %p2855
      $region66: #{_lambda_.2} parent=59 // pred_check_branch
        %2858 = sbr.rel (%p2856) target = $region68
      $region67: #{_lambda_.2} parent=59 // pred_region
        %v2859 = vld [vmem:[#allocation4] sm:$0x3]
        %2860 = vst [vmem:[%s12] sm:$0x3] %v2859
        %v2861 = vld [vmem:[#allocation5] sm:$0x3]
        %2862 = vst [vmem:[%s13] sm:$0x3] %v2861
      $region68: #{_lambda_.2} parent=59 // pred_fallthru
        _
      %s2863 = smul.u32 2, %s25
      %p2864 = scmp.lt.s32.totalorder %s2863, 3
      %s2865 = scalar_select %p2864, %s2863, 3
      %s2866 = smul.addr %s2865, 4
      %s2867 = scalar_lea.vmem %s10, %s2866
      %s2868 = ssub.s32 1, %s25
      %s2869 = smul.u32 2, %s2868
      %p2870 = scmp.lt.s32.totalorder %s2869, 3
      %s2871 = scalar_select %p2870, %s2869, 3
      %s2872 = smul.addr %s2871, 4
      %s2873 = scalar_lea.vmem %s11, %s2872
      // Predicated region
      $region69: #{_lambda_.2} parent=59 // pred_check
        %p2874 = pneg %p265
      $region70: #{_lambda_.2} parent=59 // pred_check_branch
        %2876 = sbr.rel (%p2874) target = $region72
      $region71: #{_lambda_.2} parent=59 // pred_region
        %s2877 = smul.u32 2, %s25
      $region72: #{_lambda_.2} parent=59 // pred_fallthru
        _
      // Predicated region
      $region73: #{_lambda_.2} parent=59 // pred_check
        %p2878 = pneg %p293
      $region74: #{_lambda_.2} parent=59 // pred_check_branch
        %2880 = sbr.rel (%p2878) target = $region76
      $region75: #{_lambda_.2} parent=59 // pred_region
        %s2881 = ssub.s32 1, %s25
        %s2882 = smul.u32 2, %s2881
      $region76: #{_lambda_.2} parent=59 // pred_fallthru
        _
      // Predicated region
      $region77: #{_lambda_.2} parent=59 // pred_check
        %p2883 = pneg %p314
      $region78: #{_lambda_.2} parent=59 // pred_check_branch
        %2885 = sbr.rel (%p2883) target = $region80
      $region79: #{_lambda_.2} parent=59 // pred_region
        _
      $region80: #{_lambda_.2} parent=59 // pred_fallthru
        _
      // Predicated region
      $region81: #{_lambda_.2} parent=59 // pred_check
        %p2886 = pneg %p335
      $region82: #{_lambda_.2} parent=59 // pred_check_branch
        %2888 = sbr.rel (%p2886) target = $region84
      $region83: #{_lambda_.2} parent=59 // pred_region
        _
      $region84: #{_lambda_.2} parent=59 // pred_fallthru
        _
      // Predicated region
      $region85: #{_lambda_.2} parent=59 // pred_check
        %p2889 = pneg %p314
      $region86: #{_lambda_.2} parent=59 // pred_check_branch
        %2891 = sbr.rel (%p2889) target = $region88
      $region87: #{_lambda_.2} parent=59 // pred_region
        _
      $region88: #{_lambda_.2} parent=59 // pred_fallthru
        _
      // Predicated region
      $region89: #{_lambda_.2} parent=59 // pred_check
        %p2892 = pneg %p335
      $region90: #{_lambda_.2} parent=59 // pred_check_branch
        %2894 = sbr.rel (%p2892) target = $region92
      $region91: #{_lambda_.2} parent=59 // pred_region
        _
      $region92: #{_lambda_.2} parent=59 // pred_fallthru
        _
    $region60: #{_lambda_.2} parent=5 // pred_fallthru
      _
    %p2895 = scmp.le.s32.totalorder 2, %s20
    // Predicated region
    $region93: #{_lambda_.2} parent=5 // pred_check
      %p2896 = pneg %p2895
    $region94: #{_lambda_.2} parent=5 // pred_check_branch
      %2898 = sbr.rel (%p2896) target = $region96
    $region95: #{_lambda_.2} parent=5 // pred_region
      %s2899 = ssub.s32 %s20, 2
      // Predicated region
      $region97: #{_lambda_.2} parent=95 // pred_check
        %p2900 = pneg %p271
      $region98: #{_lambda_.2} parent=95 // pred_check_branch
        %2902 = sbr.rel (%p2900) target = $region100
      $region99: #{_lambda_.2} parent=95 // pred_region
        %s2903 = smul.u32 2, %s26
        %p2904 = scmp.lt.s32.totalorder %s2903, 3
        %s2905 = scalar_select %p2904, %s2903, 3
        %s2906 = smul.addr %s2905, 4
        %s2907 = scalar_lea.vmem %s10, %s2906
      $region100: #{_lambda_.2} parent=95 // pred_fallthru
        _
      // Predicated region
      $region101: #{_lambda_.2} parent=95 // pred_check
        %p2908 = pneg %p299
      $region102: #{_lambda_.2} parent=95 // pred_check_branch
        %2910 = sbr.rel (%p2908) target = $region104
      $region103: #{_lambda_.2} parent=95 // pred_region
        %s2911 = ssub.s32 1, %s26
        %s2912 = smul.u32 2, %s2911
        %p2913 = scmp.lt.s32.totalorder %s2912, 3
        %s2914 = scalar_select %p2913, %s2912, 3
        %s2915 = smul.addr %s2914, 4
        %s2916 = scalar_lea.vmem %s11, %s2915
      $region104: #{_lambda_.2} parent=95 // pred_fallthru
        _
    $region96: #{_lambda_.2} parent=5 // pred_fallthru
      _
  $region6: #{_lambda_.2} parent=0 // loop_footer
    %s24 = sadd.s32 1, %s20
  $region7: #{_lambda_.2} parent=0 // loop_footer_branch
    %19 = sbr.rel target = $region3
  $region8: #{_lambda_.2} parent=0 // loop_exit
    _

// kernel: _lambda_.3
$region0: #{_lambda_.3}
  #allocation0 [shape = 'u32[]', space=smem, size = 0x4, offset = 0x4, fixed_abs, tag = 'smem constant byte address 0x4 - core index']
  #allocation1 [shape = 'u32[72,128]{1,0:T(1,128)}', space=vmem, size = 0x9000, scoped, tag = 'internal scratch']
  #allocation2 [shape = 'f32[16,384]{1,0:T(8,128)}', space=vmem, size = 0x6000, scoped, tag = 'scratch operand']
  #allocation3 [shape = 'f32[16,384]{1,0:T(8,128)}', space=vmem, size = 0x6000, scoped, tag = 'scratch operand']
  #allocation4 [shape = 'f32[2,128]{1,0:T(2,128)}', space=vmem, size = 0x400, scoped, tag = 'scratch operand']
  #allocation5 [shape = 'f32[2,128]{1,0:T(2,128)}', space=vmem, size = 0x400, scoped, tag = 'scratch operand']
  %s0 = inlined_call_operand.vmem [shape: bf16[32,256], index: 0, kind: input, shape index: {}, may-alias: {0,1}]
  %s1 = inlined_call_operand.vmem [shape: bf16[32,256], index: 1, kind: input, shape index: {}, may-alias: {0,1}]
  %s2 = inlined_call_operand.vmem [shape: bf16[256,384], index: 2, kind: input, shape index: {}]
  %s3 = inlined_call_operand.vmem [shape: bf16[256,384], index: 3, kind: input, shape index: {}]
  %s4 = inlined_call_operand.vmem [shape: bf16[128,384], index: 4, kind: input, shape index: {}]
  %s5 = inlined_call_operand.vmem [shape: bf16[128,384], index: 5, kind: input, shape index: {}]
  %s6 = inlined_call_operand.vmem [shape: f32[1,384], index: 6, kind: input, shape index: {}]
  %s7 = inlined_call_operand.vmem [shape: f32[1,384], index: 7, kind: input, shape index: {}]
  %s8 = inlined_call_operand.vmem [shape: f32[1,128], index: 8, kind: input, shape index: {}]
  %s9 = inlined_call_operand.vmem [shape: f32[1,128], index: 9, kind: input, shape index: {}]
  %s10 = inlined_call_operand.vmem [shape: bf16[32,128], index: 10, kind: output, shape index: {0}]
  %s11 = inlined_call_operand.vmem [shape: bf16[32,128], index: 11, kind: output, shape index: {1}]
  %s12 = inlined_call_operand.vmem [shape: f32[2,128], index: 12, kind: output, shape index: {2}]
  %s13 = inlined_call_operand.vmem [shape: f32[2,128], index: 13, kind: output, shape index: {3}]
  %14 = xla_tuple %s10, %s11, %s12, %s13
  %s15 = sld [smem:[#allocation0]]
  $region105: #{_lambda_.3} parent=0
    _
  %s17 = ssub.s32 1, %s15
  %s18 = scalar_select 0, %s17, %s15
  loop: start=0, step=1, limit=4
  $region2: #{_lambda_.3} parent=0 // loop_pre_header
    _
  $region3: #{_lambda_.3} parent=0 // loop_header
    %s20 = sphi 0, %s24
    %p21 = scmp.ge.s32.totalorder %s20, 4
    %s30 = sphi 0, %s32
    %s33 = sphi 0, %s30
    %s34 = sphi 0, %s33
    %s50 = sphi 0, %s34
    %s58 = sphi 0, %s60
    %s61 = sphi 0, %s58
    %s62 = sphi 0, %s61
    %s78 = sphi 0, %s62
    %s82 = sphi 0, %s82
    %s84 = sphi 0, %s82
    %s85 = sphi 0, %s84
    %s99 = sphi 0, %s85
    %s103 = sphi 0, %s103
    %s105 = sphi 0, %s103
    %s106 = sphi 0, %s105
    %s120 = sphi 0, %s106
    %s124 = sphi 0, %s124
    %s126 = sphi 0, %s124
    %s127 = sphi 0, %s126
    %s141 = sphi 0, %s127
    %s145 = sphi 0, %s145
    %s147 = sphi 0, %s145
    %s148 = sphi 0, %s147
    %s162 = sphi 0, %s148
    %s166 = sphi 0, %s166
    %s168 = sphi 0, %s166
    %s169 = sphi 0, %s168
    %s183 = sphi 0, %s169
    %s187 = sphi 0, %s187
    %s189 = sphi 0, %s187
    %s190 = sphi 0, %s189
    %s204 = sphi 0, %s190
    %s208 = sphi 0, %s208
    %s210 = sphi 0, %s208
    %s211 = sphi 0, %s210
    %s225 = sphi 0, %s211
    %s229 = sphi 0, %s229
    %s231 = sphi 0, %s229
    %s232 = sphi 0, %s231
    %s246 = sphi 0, %s232
    %s252 = sphi 0, %s254
    %s255 = sphi 0, %s252
    %s256 = sphi 0, %s255
    %s272 = sphi 0, %s256
    %s280 = sphi 0, %s282
    %s283 = sphi 0, %s280
    %s284 = sphi 0, %s283
    %s300 = sphi 0, %s284
    %s304 = sphi 0, %s304
    %s306 = sphi 0, %s304
    %s307 = sphi 0, %s306
    %s321 = sphi 0, %s307
    %s325 = sphi 0, %s325
    %s327 = sphi 0, %s325
    %s328 = sphi 0, %s327
    %s342 = sphi 0, %s328
  $region4: #{_lambda_.3} parent=0 // loop_header_branch
    %23 = sbr.rel (%p21) target = $region8
  $region5: #{_lambda_.3} parent=0 // loop_body
    %s25 = ssub.s32 %s20, 1
    %s26 = ssub.s32 %s20, 2
    %s27 = sadd.s32 %s20, 1
    %s28 = ssub.s32 %s20, %s27
    %p29 = scmp.eq.s32.totalorder %s28, 0
    %s31 = sadd.s32 %s30, 1
    %s32 = scalar_select %p29, %s30, %s31
    %p35 = pneg %p29
    %p36 = scmp.eq.s32.totalorder %s20, 1
    %p37 = por %p35, %p36
    %p38 = scmp.ne.s32.totalorder %s30, %s33
    %p39 = scmp.eq.s32.totalorder %s20, 0
    %p40 = por %p38, %p39
    %p41 = scmp.ne.s32.totalorder %s30, %s33
    %p42 = scmp.eq.s32.totalorder %s25, 1
    %p43 = por %p41, %p42
    %p44 = scmp.ne.s32.totalorder %s33, %s34
    %p45 = scmp.eq.s32.totalorder %s25, 0
    %p46 = por %p44, %p45
    %p47 = scmp.ne.s32.totalorder %s33, %s34
    %p48 = scmp.eq.s32.totalorder %s26, 1
    %p49 = por %p47, %p48
    %p51 = scmp.ne.s32.totalorder %s34, %s50
    %p52 = scmp.eq.s32.totalorder %s26, 0
    %p53 = por %p51, %p52
    %s54 = ssub.s32 1, %s20
    %s55 = ssub.s32 1, %s27
    %s56 = ssub.s32 %s54, %s55
    %p57 = scmp.eq.s32.totalorder %s56, 0
    %s59 = sadd.s32 %s58, 1
    %s60 = scalar_select %p57, %s58, %s59
    %p63 = pneg %p57
    %p64 = scmp.eq.s32.totalorder %s20, 1
    %p65 = por %p63, %p64
    %p66 = scmp.ne.s32.totalorder %s58, %s61
    %p67 = scmp.eq.s32.totalorder %s20, 0
    %p68 = por %p66, %p67
    %p69 = scmp.ne.s32.totalorder %s58, %s61
    %p70 = scmp.eq.s32.totalorder %s25, 1
    %p71 = por %p69, %p70
    %p72 = scmp.ne.s32.totalorder %s61, %s62
    %p73 = scmp.eq.s32.totalorder %s25, 0
    %p74 = por %p72, %p73
    %p75 = scmp.ne.s32.totalorder %s61, %s62
    %p76 = scmp.eq.s32.totalorder %s26, 1
    %p77 = por %p75, %p76
    %p79 = scmp.ne.s32.totalorder %s62, %s78
    %p80 = scmp.eq.s32.totalorder %s26, 0
    %p81 = por %p79, %p80
    %s83 = sadd.s32 %s82, 1
    %p86 = scmp.eq.s32.totalorder %s20, 1
    %p87 = scmp.ne.s32.totalorder %s82, %s84
    %p88 = scmp.eq.s32.totalorder %s20, 0
    %p89 = por %p87, %p88
    %p90 = scmp.ne.s32.totalorder %s82, %s84
    %p91 = scmp.eq.s32.totalorder %s25, 1
    %p92 = por %p90, %p91
    %p93 = scmp.ne.s32.totalorder %s84, %s85
    %p94 = scmp.eq.s32.totalorder %s25, 0
    %p95 = por %p93, %p94
    %p96 = scmp.ne.s32.totalorder %s84, %s85
    %p97 = scmp.eq.s32.totalorder %s26, 1
    %p98 = por %p96, %p97
    %p100 = scmp.ne.s32.totalorder %s85, %s99
    %p101 = scmp.eq.s32.totalorder %s26, 0
    %p102 = por %p100, %p101
    %s104 = sadd.s32 %s103, 1
    %p107 = scmp.eq.s32.totalorder %s20, 1
    %p108 = scmp.ne.s32.totalorder %s103, %s105
    %p109 = scmp.eq.s32.totalorder %s20, 0
    %p110 = por %p108, %p109
    %p111 = scmp.ne.s32.totalorder %s103, %s105
    %p112 = scmp.eq.s32.totalorder %s25, 1
    %p113 = por %p111, %p112
    %p114 = scmp.ne.s32.totalorder %s105, %s106
    %p115 = scmp.eq.s32.totalorder %s25, 0
    %p116 = por %p114, %p115
    %p117 = scmp.ne.s32.totalorder %s105, %s106
    %p118 = scmp.eq.s32.totalorder %s26, 1
    %p119 = por %p117, %p118
    %p121 = scmp.ne.s32.totalorder %s106, %s120
    %p122 = scmp.eq.s32.totalorder %s26, 0
    %p123 = por %p121, %p122
    %s125 = sadd.s32 %s124, 1
    %p128 = scmp.eq.s32.totalorder %s20, 1
    %p129 = scmp.ne.s32.totalorder %s124, %s126
    %p130 = scmp.eq.s32.totalorder %s20, 0
    %p131 = por %p129, %p130
    %p132 = scmp.ne.s32.totalorder %s124, %s126
    %p133 = scmp.eq.s32.totalorder %s25, 1
    %p134 = por %p132, %p133
    %p135 = scmp.ne.s32.totalorder %s126, %s127
    %p136 = scmp.eq.s32.totalorder %s25, 0
    %p137 = por %p135, %p136
    %p138 = scmp.ne.s32.totalorder %s126, %s127
    %p139 = scmp.eq.s32.totalorder %s26, 1
    %p140 = por %p138, %p139
    %p142 = scmp.ne.s32.totalorder %s127, %s141
    %p143 = scmp.eq.s32.totalorder %s26, 0
    %p144 = por %p142, %p143
    %s146 = sadd.s32 %s145, 1
    %p149 = scmp.eq.s32.totalorder %s20, 1
    %p150 = scmp.ne.s32.totalorder %s145, %s147
    %p151 = scmp.eq.s32.totalorder %s20, 0
    %p152 = por %p150, %p151
    %p153 = scmp.ne.s32.totalorder %s145, %s147
    %p154 = scmp.eq.s32.totalorder %s25, 1
    %p155 = por %p153, %p154
    %p156 = scmp.ne.s32.totalorder %s147, %s148
    %p157 = scmp.eq.s32.totalorder %s25, 0
    %p158 = por %p156, %p157
    %p159 = scmp.ne.s32.totalorder %s147, %s148
    %p160 = scmp.eq.s32.totalorder %s26, 1
    %p161 = por %p159, %p160
    %p163 = scmp.ne.s32.totalorder %s148, %s162
    %p164 = scmp.eq.s32.totalorder %s26, 0
    %p165 = por %p163, %p164
    %s167 = sadd.s32 %s166, 1
    %p170 = scmp.eq.s32.totalorder %s20, 1
    %p171 = scmp.ne.s32.totalorder %s166, %s168
    %p172 = scmp.eq.s32.totalorder %s20, 0
    %p173 = por %p171, %p172
    %p174 = scmp.ne.s32.totalorder %s166, %s168
    %p175 = scmp.eq.s32.totalorder %s25, 1
    %p176 = por %p174, %p175
    %p177 = scmp.ne.s32.totalorder %s168, %s169
    %p178 = scmp.eq.s32.totalorder %s25, 0
    %p179 = por %p177, %p178
    %p180 = scmp.ne.s32.totalorder %s168, %s169
    %p181 = scmp.eq.s32.totalorder %s26, 1
    %p182 = por %p180, %p181
    %p184 = scmp.ne.s32.totalorder %s169, %s183
    %p185 = scmp.eq.s32.totalorder %s26, 0
    %p186 = por %p184, %p185
    %s188 = sadd.s32 %s187, 1
    %p191 = scmp.eq.s32.totalorder %s20, 1
    %p192 = scmp.ne.s32.totalorder %s187, %s189
    %p193 = scmp.eq.s32.totalorder %s20, 0
    %p194 = por %p192, %p193
    %p195 = scmp.ne.s32.totalorder %s187, %s189
    %p196 = scmp.eq.s32.totalorder %s25, 1
    %p197 = por %p195, %p196
    %p198 = scmp.ne.s32.totalorder %s189, %s190
    %p199 = scmp.eq.s32.totalorder %s25, 0
    %p200 = por %p198, %p199
    %p201 = scmp.ne.s32.totalorder %s189, %s190
    %p202 = scmp.eq.s32.totalorder %s26, 1
    %p203 = por %p201, %p202
    %p205 = scmp.ne.s32.totalorder %s190, %s204
    %p206 = scmp.eq.s32.totalorder %s26, 0
    %p207 = por %p205, %p206
    %s209 = sadd.s32 %s208, 1
    %p212 = scmp.eq.s32.totalorder %s20, 1
    %p213 = scmp.ne.s32.totalorder %s208, %s210
    %p214 = scmp.eq.s32.totalorder %s20, 0
    %p215 = por %p213, %p214
    %p216 = scmp.ne.s32.totalorder %s208, %s210
    %p217 = scmp.eq.s32.totalorder %s25, 1
    %p218 = por %p216, %p217
    %p219 = scmp.ne.s32.totalorder %s210, %s211
    %p220 = scmp.eq.s32.totalorder %s25, 0
    %p221 = por %p219, %p220
    %p222 = scmp.ne.s32.totalorder %s210, %s211
    %p223 = scmp.eq.s32.totalorder %s26, 1
    %p224 = por %p222, %p223
    %p226 = scmp.ne.s32.totalorder %s211, %s225
    %p227 = scmp.eq.s32.totalorder %s26, 0
    %p228 = por %p226, %p227
    %s230 = sadd.s32 %s229, 1
    %p233 = scmp.eq.s32.totalorder %s20, 1
    %p234 = scmp.ne.s32.totalorder %s229, %s231
    %p235 = scmp.eq.s32.totalorder %s20, 0
    %p236 = por %p234, %p235
    %p237 = scmp.ne.s32.totalorder %s229, %s231
    %p238 = scmp.eq.s32.totalorder %s25, 1
    %p239 = por %p237, %p238
    %p240 = scmp.ne.s32.totalorder %s231, %s232
    %p241 = scmp.eq.s32.totalorder %s25, 0
    %p242 = por %p240, %p241
    %p243 = scmp.ne.s32.totalorder %s231, %s232
    %p244 = scmp.eq.s32.totalorder %s26, 1
    %p245 = por %p243, %p244
    %p247 = scmp.ne.s32.totalorder %s232, %s246
    %p248 = scmp.eq.s32.totalorder %s26, 0
    %p249 = por %p247, %p248
    %s250 = ssub.s32 %s20, %s27
    %p251 = scmp.eq.s32.totalorder %s250, 0
    %s253 = sadd.s32 %s252, 1
    %s254 = scalar_select %p251, %s252, %s253
    %p257 = pneg %p251
    %p258 = scmp.eq.s32.totalorder %s20, 1
    %p259 = por %p257, %p258
    %p260 = scmp.ne.s32.totalorder %s252, %s255
    %p261 = scmp.eq.s32.totalorder %s20, 0
    %p262 = por %p260, %p261
    %p263 = scmp.ne.s32.totalorder %s252, %s255
    %p264 = scmp.eq.s32.totalorder %s25, 1
    %p265 = por %p263, %p264
    %p266 = scmp.ne.s32.totalorder %s255, %s256
    %p267 = scmp.eq.s32.totalorder %s25, 0
    %p268 = por %p266, %p267
    %p269 = scmp.ne.s32.totalorder %s255, %s256
    %p270 = scmp.eq.s32.totalorder %s26, 1
    %p271 = por %p269, %p270
    %p273 = scmp.ne.s32.totalorder %s256, %s272
    %p274 = scmp.eq.s32.totalorder %s26, 0
    %p275 = por %p273, %p274
    %s276 = ssub.s32 1, %s20
    %s277 = ssub.s32 1, %s27
    %s278 = ssub.s32 %s276, %s277
    %p279 = scmp.eq.s32.totalorder %s278, 0
    %s281 = sadd.s32 %s280, 1
    %s282 = scalar_select %p279, %s280, %s281
    %p285 = pneg %p279
    %p286 = scmp.eq.s32.totalorder %s20, 1
    %p287 = por %p285, %p286
    %p288 = scmp.ne.s32.totalorder %s280, %s283
    %p289 = scmp.eq.s32.totalorder %s20, 0
    %p290 = por %p288, %p289
    %p291 = scmp.ne.s32.totalorder %s280, %s283
    %p292 = scmp.eq.s32.totalorder %s25, 1
    %p293 = por %p291, %p292
    %p294 = scmp.ne.s32.totalorder %s283, %s284
    %p295 = scmp.eq.s32.totalorder %s25, 0
    %p296 = por %p294, %p295
    %p297 = scmp.ne.s32.totalorder %s283, %s284
    %p298 = scmp.eq.s32.totalorder %s26, 1
    %p299 = por %p297, %p298
    %p301 = scmp.ne.s32.totalorder %s284, %s300
    %p302 = scmp.eq.s32.totalorder %s26, 0
    %p303 = por %p301, %p302
    %s305 = sadd.s32 %s304, 1
    %p308 = scmp.eq.s32.totalorder %s20, 1
    %p309 = scmp.ne.s32.totalorder %s304, %s306
    %p310 = scmp.eq.s32.totalorder %s20, 0
    %p311 = por %p309, %p310
    %p312 = scmp.ne.s32.totalorder %s304, %s306
    %p313 = scmp.eq.s32.totalorder %s25, 1
    %p314 = por %p312, %p313
    %p315 = scmp.ne.s32.totalorder %s306, %s307
    %p316 = scmp.eq.s32.totalorder %s25, 0
    %p317 = por %p315, %p316
    %p318 = scmp.ne.s32.totalorder %s306, %s307
    %p319 = scmp.eq.s32.totalorder %s26, 1
    %p320 = por %p318, %p319
    %p322 = scmp.ne.s32.totalorder %s307, %s321
    %p323 = scmp.eq.s32.totalorder %s26, 0
    %p324 = por %p322, %p323
    %s326 = sadd.s32 %s325, 1
    %p329 = scmp.eq.s32.totalorder %s20, 1
    %p330 = scmp.ne.s32.totalorder %s325, %s327
    %p331 = scmp.eq.s32.totalorder %s20, 0
    %p332 = por %p330, %p331
    %p333 = scmp.ne.s32.totalorder %s325, %s327
    %p334 = scmp.eq.s32.totalorder %s25, 1
    %p335 = por %p333, %p334
    %p336 = scmp.ne.s32.totalorder %s327, %s328
    %p337 = scmp.eq.s32.totalorder %s25, 0
    %p338 = por %p336, %p337
    %p339 = scmp.ne.s32.totalorder %s327, %s328
    %p340 = scmp.eq.s32.totalorder %s26, 1
    %p341 = por %p339, %p340
    %p343 = scmp.ne.s32.totalorder %s328, %s342
    %p344 = scmp.eq.s32.totalorder %s26, 0
    %p345 = por %p343, %p344
    %p346 = scmp.le.s32.totalorder 1, %s20
    %p347 = scmp.lt.s32.totalorder %s20, 3
    %p348 = pnand %p346, %p347
    %p349 = pneg %p348
    // Predicated region
    $region9: #{_lambda_.3} parent=5 // pred_check
      _
    $region10: #{_lambda_.3} parent=5 // pred_check_branch
      %351 = sbr.rel (%p348) target = $region12
    $region11: #{_lambda_.3} parent=5 // pred_region
      %s352 = ssub.s32 %s20, 1
      // Predicated region
      $region13: #{_lambda_.3} parent=11 // pred_check
        %p353 = pneg %p95
      $region14: #{_lambda_.3} parent=11 // pred_check_branch
        %355 = sbr.rel (%p353) target = $region16
      $region15: #{_lambda_.3} parent=11 // pred_region
        _
      $region16: #{_lambda_.3} parent=11 // pred_fallthru
        _
      // Predicated region
      $region17: #{_lambda_.3} parent=11 // pred_check
        %p356 = pneg %p116
      $region18: #{_lambda_.3} parent=11 // pred_check_branch
        %358 = sbr.rel (%p356) target = $region20
      $region19: #{_lambda_.3} parent=11 // pred_region
        _
      $region20: #{_lambda_.3} parent=11 // pred_fallthru
        _
      // Predicated region
      $region21: #{_lambda_.3} parent=11 // pred_check
        %p359 = pneg %p137
      $region22: #{_lambda_.3} parent=11 // pred_check_branch
        %361 = sbr.rel (%p359) target = $region24
      $region23: #{_lambda_.3} parent=11 // pred_region
        _
      $region24: #{_lambda_.3} parent=11 // pred_fallthru
        _
      // Predicated region
      $region25: #{_lambda_.3} parent=11 // pred_check
        %p362 = pneg %p158
      $region26: #{_lambda_.3} parent=11 // pred_check_branch
        %364 = sbr.rel (%p362) target = $region28
      $region27: #{_lambda_.3} parent=11 // pred_region
        _
      $region28: #{_lambda_.3} parent=11 // pred_fallthru
        _
      // Predicated region
      $region29: #{_lambda_.3} parent=11 // pred_check
        %p365 = pneg %p179
      $region30: #{_lambda_.3} parent=11 // pred_check_branch
        %367 = sbr.rel (%p365) target = $region32
      $region31: #{_lambda_.3} parent=11 // pred_region
        _
      $region32: #{_lambda_.3} parent=11 // pred_fallthru
        _
      // Predicated region
      $region33: #{_lambda_.3} parent=11 // pred_check
        %p368 = pneg %p200
      $region34: #{_lambda_.3} parent=11 // pred_check_branch
        %370 = sbr.rel (%p368) target = $region36
      $region35: #{_lambda_.3} parent=11 // pred_region
        _
      $region36: #{_lambda_.3} parent=11 // pred_fallthru
        _
      // Predicated region
      $region37: #{_lambda_.3} parent=11 // pred_check
        %p371 = pneg %p221
      $region38: #{_lambda_.3} parent=11 // pred_check_branch
        %373 = sbr.rel (%p371) target = $region40
      $region39: #{_lambda_.3} parent=11 // pred_region
        _
      $region40: #{_lambda_.3} parent=11 // pred_fallthru
        _
      // Predicated region
      $region41: #{_lambda_.3} parent=11 // pred_check
        %p374 = pneg %p242
      $region42: #{_lambda_.3} parent=11 // pred_check_branch
        %376 = sbr.rel (%p374) target = $region44
      $region43: #{_lambda_.3} parent=11 // pred_region
        _
      $region44: #{_lambda_.3} parent=11 // pred_fallthru
        _
    $region12: #{_lambda_.3} parent=5 // pred_fallthru
      _
    %p377 = scmp.lt.s32.totalorder %s20, 2
    // Predicated region
    $region45: #{_lambda_.3} parent=5 // pred_check
      %p378 = pneg %p377
    $region46: #{_lambda_.3} parent=5 // pred_check_branch
      %380 = sbr.rel (%p378) target = $region48
    $region47: #{_lambda_.3} parent=5 // pred_region
      // Predicated region
      $region49: #{_lambda_.3} parent=47 // pred_check
        %p381 = pneg %p40
      $region50: #{_lambda_.3} parent=47 // pred_check_branch
        %383 = sbr.rel (%p381) target = $region52
      $region51: #{_lambda_.3} parent=47 // pred_region
        %s384 = smul.u32 2, %s20
        %p385 = scmp.lt.s32.totalorder %s384, 3
        %s386 = scalar_select %p385, %s384, 3
        %s387 = smul.addr %s386, 2
        %s388 = smul.addr %s387, 4
        %s389 = scalar_lea.vmem %s0, %s388
        %s390 = smul.u32 2, %s20
      $region52: #{_lambda_.3} parent=47 // pred_fallthru
        _
      // Predicated region
      $region53: #{_lambda_.3} parent=47 // pred_check
        %p391 = pneg %p68
      $region54: #{_lambda_.3} parent=47 // pred_check_branch
        %393 = sbr.rel (%p391) target = $region56
      $region55: #{_lambda_.3} parent=47 // pred_region
        %s394 = ssub.s32 1, %s20
        %s395 = smul.u32 2, %s394
        %p396 = scmp.lt.s32.totalorder %s395, 3
        %s397 = scalar_select %p396, %s395, 3
        %s398 = smul.addr %s397, 2
        %s399 = smul.addr %s398, 4
        %s400 = scalar_lea.vmem %s1, %s399
        %s401 = ssub.s32 1, %s20
        %s402 = smul.u32 2, %s401
      $region56: #{_lambda_.3} parent=47 // pred_fallthru
        _
    $region48: #{_lambda_.3} parent=5 // pred_fallthru
      _
    %p403 = scmp.le.s32.totalorder 1, %s20
    %p404 = scmp.lt.s32.totalorder %s20, 3
    %p405 = pnand %p403, %p404
    %p406 = pneg %p405
    // Predicated region
    $region57: #{_lambda_.3} parent=5 // pred_check
      _
    $region58: #{_lambda_.3} parent=5 // pred_check_branch
      %408 = sbr.rel (%p405) target = $region60
    $region59: #{_lambda_.3} parent=5 // pred_region
      %s409 = ssub.s32 %s20, 1
      %s410 = smul.u32 2, %s25
      %p411 = scmp.lt.s32.totalorder %s410, 3
      %s412 = scalar_select %p411, %s410, 3
      %s413 = smul.addr %s412, 2
      %s414 = smul.addr %s413, 4
      %s415 = scalar_lea.vmem %s0, %s414
      %p416 = pneg %p46
      %p417 = pneg %p43
      %s418 = ssub.s32 1, %s25
      %s419 = smul.u32 2, %s418
      %p420 = scmp.lt.s32.totalorder %s419, 3
      %s421 = scalar_select %p420, %s419, 3
      %s422 = smul.addr %s421, 2
      %s423 = smul.addr %s422, 4
      %s424 = scalar_lea.vmem %s1, %s423
      %p425 = pneg %p74
      %p426 = pneg %p71
      %p427 = pneg %p95
      %p428 = pneg %p92
      %p429 = pneg %p116
      %p430 = pneg %p113
      %p431 = pneg %p137
      %p432 = pneg %p134
      %p433 = pneg %p158
      %p434 = pneg %p155
      %p435 = pneg %p179
      %p436 = pneg %p176
      %p437 = pneg %p200
      %p438 = pneg %p197
      %p439 = pneg %p221
      %p440 = pneg %p218
      %p441 = pneg %p242
      %p442 = pneg %p239
      %p443 = pneg %p268
      %p444 = pneg %p265
      %s445 = smul.u32 2, %s25
      %p446 = scmp.lt.s32.totalorder %s445, 3
      %s447 = scalar_select %p446, %s445, 3
      %s448 = smul.addr %s447, 4
      %s449 = scalar_lea.vmem %s10, %s448
      %p450 = pneg %p296
      %p451 = pneg %p293
      %s452 = ssub.s32 1, %s25
      %s453 = smul.u32 2, %s452
      %p454 = scmp.lt.s32.totalorder %s453, 3
      %s455 = scalar_select %p454, %s453, 3
      %s456 = smul.addr %s455, 4
      %s457 = scalar_lea.vmem %s11, %s456
      %p458 = pneg %p317
      %p459 = pneg %p314
      %p460 = pneg %p338
      %p461 = pneg %p335
      %s462 = smul.u32 2, %s25
      %p463 = scmp.lt.s32.totalorder %s462, 3
      %s464 = scalar_select %p463, %s462, 3
      %s465 = smul.addr %s464, 2
      %s466 = smul.addr %s465, 4
      %s467 = scalar_lea.vmem %s0, %s466
      %s468 = smul.u32 2, %s25
      %s469 = ssub.s32 1, %s25
      %s470 = smul.u32 2, %s469
      %p471 = scmp.lt.s32.totalorder %s470, 3
      %s472 = scalar_select %p471, %s470, 3
      %s473 = smul.addr %s472, 2
      %s474 = smul.addr %s473, 4
      %s475 = scalar_lea.vmem %s1, %s474
      %s476 = ssub.s32 1, %s25
      %s477 = smul.u32 2, %s476
      %s478 = smul.u32 2, %s25
      %p479 = scmp.lt.s32.totalorder %s478, 3
      %s480 = scalar_select %p479, %s478, 3
      %s481 = smul.addr %s480, 4
      %s482 = scalar_lea.vmem %s10, %s481
      %s483 = smul.u32 2, %s25
      %s484 = ssub.s32 1, %s25
      %s485 = smul.u32 2, %s484
      %p486 = scmp.lt.s32.totalorder %s485, 3
      %s487 = scalar_select %p486, %s485, 3
      %s488 = smul.addr %s487, 4
      %s489 = scalar_lea.vmem %s11, %s488
      %s490 = ssub.s32 1, %s25
      %s491 = smul.u32 2, %s490
      %p492 = scmp.eq.s32.totalorder %s25, 0
      // Predicated region
      $region61: #{_lambda_.3} parent=59 // pred_check
        %p493 = pneg %p492
      $region62: #{_lambda_.3} parent=59 // pred_check_branch
        %495 = sbr.rel (%p493) target = $region64
      $region63: #{_lambda_.3} parent=59 // pred_region
        %496 = vst [vmem:[#allocation4] sm:$0x3] 0.0
        %497 = vst [vmem:[#allocation5] sm:$0x3] 0.0
      $region64: #{_lambda_.3} parent=59 // pred_fallthru
        _
      %v498 = vld [vmem:[%s467] sm:$0xff]
      %v499 = vld [vmem:[%s467 + $0x8] sm:$0xff]
      %v500 = vld [vmem:[%s2] sm:$0xff]
      %v501 = vld [vmem:[%s2 + $0x8] sm:$0xf]
      %v502 = vld [vmem:[%s2 + $0xc] sm:$0xff]
      %v503 = vld [vmem:[%s2 + $0x14] sm:$0xf]
      %v504 = vld [vmem:[%s2 + $0x18] sm:$0xff]
      %v505 = vld [vmem:[%s2 + $0x20] sm:$0xf]
      %v506 = vld [vmem:[%s2 + $0x24] sm:$0xff]
      %v507 = vld [vmem:[%s2 + $0x2c] sm:$0xf]
      %v508 = vld [vmem:[%s2 + $0x30] sm:$0xff]
      %v509 = vld [vmem:[%s2 + $0x38] sm:$0xf]
      %v510 = vld [vmem:[%s2 + $0x3c] sm:$0xff]
      %v511 = vld [vmem:[%s2 + $0x44] sm:$0xf]
      %v512 = vld [vmem:[%s2 + $0x48] sm:$0xff]
      %v513 = vld [vmem:[%s2 + $0x50] sm:$0xf]
      %v514 = vld [vmem:[%s2 + $0x54] sm:$0xff]
      %v515 = vld [vmem:[%s2 + $0x5c] sm:$0xf]
      %v516 = vld [vmem:[%s2 + $0x60] sm:$0xff]
      %v517 = vld [vmem:[%s2 + $0x68] sm:$0xf]
      %v518 = vld [vmem:[%s2 + $0x6c] sm:$0xff]
      %v519 = vld [vmem:[%s2 + $0x74] sm:$0xf]
      %v520 = vld [vmem:[%s2 + $0x78] sm:$0xff]
      %v521 = vld [vmem:[%s2 + $0x80] sm:$0xf]
      %v522 = vld [vmem:[%s2 + $0x84] sm:$0xff]
      %v523 = vld [vmem:[%s2 + $0x8c] sm:$0xf]
      %v524 = vld [vmem:[%s2 + $0x90] sm:$0xff]
      %v525 = vld [vmem:[%s2 + $0x98] sm:$0xf]
      %v526 = vld [vmem:[%s2 + $0x9c] sm:$0xff]
      %v527 = vld [vmem:[%s2 + $0xa4] sm:$0xf]
      %v528 = vld [vmem:[%s2 + $0xa8] sm:$0xff]
      %v529 = vld [vmem:[%s2 + $0xb0] sm:$0xf]
      %v530 = vld [vmem:[%s2 + $0xb4] sm:$0xff]
      %v531 = vld [vmem:[%s2 + $0xbc] sm:$0xf]
      %v532 = vld [vmem:[%s2 + $0xc0] sm:$0xff]
      %v533 = vld [vmem:[%s2 + $0xc8] sm:$0xf]
      %v534 = vld [vmem:[%s2 + $0xcc] sm:$0xff]
      %v535 = vld [vmem:[%s2 + $0xd4] sm:$0xf]
      %v536 = vld [vmem:[%s2 + $0xd8] sm:$0xff]
      %v537 = vld [vmem:[%s2 + $0xe0] sm:$0xf]
      %v538 = vld [vmem:[%s2 + $0xe4] sm:$0xff]
      %v539 = vld [vmem:[%s2 + $0xec] sm:$0xf]
      %v540 = vld [vmem:[%s2 + $0xf0] sm:$0xff]
      %v541 = vld [vmem:[%s2 + $0xf8] sm:$0xf]
      %v542 = vld [vmem:[%s2 + $0xfc] sm:$0xff]
      %v543 = vld [vmem:[%s2 + $0x104] sm:$0xf]
      %v544 = vld [vmem:[%s2 + $0x108] sm:$0xff]
      %v545 = vld [vmem:[%s2 + $0x110] sm:$0xf]
      %v546 = vld [vmem:[%s2 + $0x114] sm:$0xff]
      %v547 = vld [vmem:[%s2 + $0x11c] sm:$0xf]
      %v548 = vld [vmem:[%s2 + $0x120] sm:$0xff]
      %v549 = vld [vmem:[%s2 + $0x128] sm:$0xf]
      %v550 = vld [vmem:[%s2 + $0x12c] sm:$0xff]
      %v551 = vld [vmem:[%s2 + $0x134] sm:$0xf]
      %v552 = vld [vmem:[%s2 + $0x138] sm:$0xff]
      %v553 = vld [vmem:[%s2 + $0x140] sm:$0xf]
      %v554 = vld [vmem:[%s2 + $0x144] sm:$0xff]
      %v555 = vld [vmem:[%s2 + $0x14c] sm:$0xf]
      %v556 = vld [vmem:[%s2 + $0x150] sm:$0xff]
      %v557 = vld [vmem:[%s2 + $0x158] sm:$0xf]
      %v558 = vld [vmem:[%s2 + $0x15c] sm:$0xff]
      %v559 = vld [vmem:[%s2 + $0x164] sm:$0xf]
      %v560 = vld [vmem:[%s2 + $0x168] sm:$0xff]
      %v561 = vld [vmem:[%s2 + $0x170] sm:$0xf]
      %v562 = vld [vmem:[%s2 + $0x174] sm:$0xff]
      %v563 = vld [vmem:[%s2 + $0x17c] sm:$0xf]
      %v564 = vld [vmem:[%s6] sm:$0x7]
      %v566 = vperm.slane %v564, 0
      %v567 = vperm.slane %v564, 1
      %v568 = vperm.slane %v564, 2
      %v574 = vunpack.c.l.b16 %v498
      %v575 = vunpack.c.h.b16 %v498
      %v576 = vunpack.c.l.b16 %v499
      %v577 = vunpack.c.h.b16 %v499
      %v578 = vpack.c.b16 %v576, %v574
      %v579 = vpack.c.b16 %v577, %v575
      %v646 = vunpack.c.l.b16 %v500
      %v647 = vunpack.c.h.b16 %v500
      %v648 = vunpack.c.l.b16 %v501
      %v649 = vunpack.c.l.b16 %v502
      %v650 = vunpack.c.h.b16 %v502
      %v651 = vunpack.c.l.b16 %v503
      %v652 = vunpack.c.l.b16 %v504
      %v653 = vunpack.c.h.b16 %v504
      %v654 = vunpack.c.l.b16 %v505
      %v655 = vunpack.c.l.b16 %v506
      %v656 = vunpack.c.h.b16 %v506
      %v657 = vunpack.c.l.b16 %v507
      %v658 = vunpack.c.l.b16 %v508
      %v659 = vunpack.c.h.b16 %v508
      %v660 = vunpack.c.l.b16 %v509
      %v661 = vunpack.c.l.b16 %v510
      %v662 = vunpack.c.h.b16 %v510
      %v663 = vunpack.c.l.b16 %v511
      %v664 = vunpack.c.l.b16 %v512
      %v665 = vunpack.c.h.b16 %v512
      %v666 = vunpack.c.l.b16 %v513
      %v667 = vunpack.c.l.b16 %v514
      %v668 = vunpack.c.h.b16 %v514
      %v669 = vunpack.c.l.b16 %v515
      %v670 = vunpack.c.l.b16 %v516
      %v671 = vunpack.c.h.b16 %v516
      %v672 = vunpack.c.l.b16 %v517
      %v673 = vunpack.c.l.b16 %v518
      %v674 = vunpack.c.h.b16 %v518
      %v675 = vunpack.c.l.b16 %v519
      %v676 = vunpack.c.l.b16 %v520
      %v677 = vunpack.c.h.b16 %v520
      %v678 = vunpack.c.l.b16 %v521
      %v679 = vunpack.c.l.b16 %v522
      %v680 = vunpack.c.h.b16 %v522
      %v681 = vunpack.c.l.b16 %v523
      %v682 = vunpack.c.l.b16 %v524
      %v683 = vunpack.c.h.b16 %v524
      %v684 = vunpack.c.l.b16 %v525
      %v685 = vunpack.c.l.b16 %v526
      %v686 = vunpack.c.h.b16 %v526
      %v687 = vunpack.c.l.b16 %v527
      %v688 = vunpack.c.l.b16 %v528
      %v689 = vunpack.c.h.b16 %v528
      %v690 = vunpack.c.l.b16 %v529
      %v691 = vunpack.c.l.b16 %v530
      %v692 = vunpack.c.h.b16 %v530
      %v693 = vunpack.c.l.b16 %v531
      %v694 = vunpack.c.l.b16 %v532
      %v695 = vunpack.c.h.b16 %v532
      %v696 = vunpack.c.l.b16 %v533
      %v697 = vunpack.c.l.b16 %v534
      %v698 = vunpack.c.h.b16 %v534
      %v699 = vunpack.c.l.b16 %v535
      %v700 = vunpack.c.l.b16 %v536
      %v701 = vunpack.c.h.b16 %v536
      %v702 = vunpack.c.l.b16 %v537
      %v703 = vunpack.c.l.b16 %v538
      %v704 = vunpack.c.h.b16 %v538
      %v705 = vunpack.c.l.b16 %v539
      %v706 = vunpack.c.l.b16 %v540
      %v707 = vunpack.c.h.b16 %v540
      %v708 = vunpack.c.l.b16 %v541
      %v709 = vunpack.c.l.b16 %v542
      %v710 = vunpack.c.h.b16 %v542
      %v711 = vunpack.c.l.b16 %v543
      %v712 = vunpack.c.l.b16 %v544
      %v713 = vunpack.c.h.b16 %v544
      %v714 = vunpack.c.l.b16 %v545
      %v715 = vunpack.c.l.b16 %v546
      %v716 = vunpack.c.h.b16 %v546
      %v717 = vunpack.c.l.b16 %v547
      %v718 = vunpack.c.l.b16 %v548
      %v719 = vunpack.c.h.b16 %v548
      %v720 = vunpack.c.l.b16 %v549
      %v721 = vunpack.c.l.b16 %v550
      %v722 = vunpack.c.h.b16 %v550
      %v723 = vunpack.c.l.b16 %v551
      %v724 = vunpack.c.l.b16 %v552
      %v725 = vunpack.c.h.b16 %v552
      %v726 = vunpack.c.l.b16 %v553
      %v727 = vunpack.c.l.b16 %v554
      %v728 = vunpack.c.h.b16 %v554
      %v729 = vunpack.c.l.b16 %v555
      %v730 = vunpack.c.l.b16 %v556
      %v731 = vunpack.c.h.b16 %v556
      %v732 = vunpack.c.l.b16 %v557
      %v733 = vunpack.c.l.b16 %v558
      %v734 = vunpack.c.h.b16 %v558
      %v735 = vunpack.c.l.b16 %v559
      %v736 = vunpack.c.l.b16 %v560
      %v737 = vunpack.c.h.b16 %v560
      %v738 = vunpack.c.l.b16 %v561
      %v739 = vunpack.c.l.b16 %v562
      %v740 = vunpack.c.h.b16 %v562
      %v741 = vunpack.c.l.b16 %v563
      %v742 = vpack.c.b16 %v649, %v646
      %v743 = vpack.c.b16 %v650, %v647
      %v744 = vpack.c.b16 %v651, %v648
      %v745 = vpack.c.b16 %v655, %v652
      %v746 = vpack.c.b16 %v656, %v653
      %v747 = vpack.c.b16 %v657, %v654
      %v748 = vpack.c.b16 %v661, %v658
      %v749 = vpack.c.b16 %v662, %v659
      %v750 = vpack.c.b16 %v663, %v660
      %v751 = vpack.c.b16 %v667, %v664
      %v752 = vpack.c.b16 %v668, %v665
      %v753 = vpack.c.b16 %v669, %v666
      %v754 = vpack.c.b16 %v673, %v670
      %v755 = vpack.c.b16 %v674, %v671
      %v756 = vpack.c.b16 %v675, %v672
      %v757 = vpack.c.b16 %v679, %v676
      %v758 = vpack.c.b16 %v680, %v677
      %v759 = vpack.c.b16 %v681, %v678
      %v760 = vpack.c.b16 %v685, %v682
      %v761 = vpack.c.b16 %v686, %v683
      %v762 = vpack.c.b16 %v687, %v684
      %v763 = vpack.c.b16 %v691, %v688
      %v764 = vpack.c.b16 %v692, %v689
      %v765 = vpack.c.b16 %v693, %v690
      %v766 = vpack.c.b16 %v697, %v694
      %v767 = vpack.c.b16 %v698, %v695
      %v768 = vpack.c.b16 %v699, %v696
      %v769 = vpack.c.b16 %v703, %v700
      %v770 = vpack.c.b16 %v704, %v701
      %v771 = vpack.c.b16 %v705, %v702
      %v772 = vpack.c.b16 %v709, %v706
      %v773 = vpack.c.b16 %v710, %v707
      %v774 = vpack.c.b16 %v711, %v708
      %v775 = vpack.c.b16 %v715, %v712
      %v776 = vpack.c.b16 %v716, %v713
      %v777 = vpack.c.b16 %v717, %v714
      %v778 = vpack.c.b16 %v721, %v718
      %v779 = vpack.c.b16 %v722, %v719
      %v780 = vpack.c.b16 %v723, %v720
      %v781 = vpack.c.b16 %v727, %v724
      %v782 = vpack.c.b16 %v728, %v725
      %v783 = vpack.c.b16 %v729, %v726
      %v784 = vpack.c.b16 %v733, %v730
      %v785 = vpack.c.b16 %v734, %v731
      %v786 = vpack.c.b16 %v735, %v732
      %v787 = vpack.c.b16 %v739, %v736
      %v788 = vpack.c.b16 %v740, %v737
      %v789 = vpack.c.b16 %v741, %v738
      %838 = vmatpush.bf16.msra.mxu0 %v763
      %839 = vmatpush.bf16.msra.mxu0 %v760
      %840 = vmatpush.bf16.msra.mxu0 %v757
      %841 = vmatpush.bf16.msra.mxu0 %v754
      %842 = vmatpush.bf16.msra.mxu0 %v751
      %843 = vmatpush.bf16.msra.mxu0 %v748
      %844 = vmatpush.bf16.msra.mxu0 %v745
      %845 = vmatpush.bf16.msra.mxu0 %v742
      %846 = vmatmul.bf16.gmra.mxu0 %v578
      %v847 = vpop.f32.mrf.mxu0
      %v848 = vadd.f32 %v566, %v847
      %v849 = vpop.f32.mrf.mxu0
      %v850 = vadd.f32 %v566, %v849
      %851 = vdwg.mxu0
      %852 = vmatpush.bf16.msra.mxu0 %v787
      %853 = vmatpush.bf16.msra.mxu0 %v784
      %854 = vmatpush.bf16.msra.mxu0 %v781
      %855 = vmatpush.bf16.msra.mxu0 %v778
      %856 = vmatpush.bf16.msra.mxu0 %v775
      %857 = vmatpush.bf16.msra.mxu0 %v772
      %858 = vmatpush.bf16.msra.mxu0 %v769
      %859 = vmatpush.bf16.msra.mxu0 %v766
      %860 = vmatmul.bf16.gmra.mxu0 %v579
      %v861 = vpop.f32.mrf.mxu0
      %v862 = vadd.f32 %v848, %v861
      %v863 = vpop.f32.mrf.mxu0
      %v864 = vadd.f32 %v850, %v863
      %865 = vdwg.mxu0
      %866 = vmatpush.bf16.msra.mxu0 %v764
      %867 = vmatpush.bf16.msra.mxu0 %v761
      %868 = vmatpush.bf16.msra.mxu0 %v758
      %869 = vmatpush.bf16.msra.mxu0 %v755
      %870 = vmatpush.bf16.msra.mxu0 %v752
      %871 = vmatpush.bf16.msra.mxu0 %v749
      %872 = vmatpush.bf16.msra.mxu0 %v746
      %873 = vmatpush.bf16.msra.mxu0 %v743
      %874 = vmatmul.bf16.gmra.mxu0 %v578
      %v875 = vpop.f32.mrf.mxu0
      %v876 = vadd.f32 %v567, %v875
      %v877 = vpop.f32.mrf.mxu0
      %v878 = vadd.f32 %v567, %v877
      %879 = vdwg.mxu0
      %880 = vmatpush.bf16.msra.mxu0 %v788
      %881 = vmatpush.bf16.msra.mxu0 %v785
      %882 = vmatpush.bf16.msra.mxu0 %v782
      %883 = vmatpush.bf16.msra.mxu0 %v779
      %884 = vmatpush.bf16.msra.mxu0 %v776
      %885 = vmatpush.bf16.msra.mxu0 %v773
      %886 = vmatpush.bf16.msra.mxu0 %v770
      %887 = vmatpush.bf16.msra.mxu0 %v767
      %888 = vmatmul.bf16.gmra.mxu0 %v579
      %v889 = vpop.f32.mrf.mxu0
      %v890 = vadd.f32 %v876, %v889
      %v891 = vpop.f32.mrf.mxu0
      %v892 = vadd.f32 %v878, %v891
      %893 = vdwg.mxu0
      %894 = vmatpush.bf16.msra.mxu0 %v765
      %895 = vmatpush.bf16.msra.mxu0 %v762
      %896 = vmatpush.bf16.msra.mxu0 %v759
      %897 = vmatpush.bf16.msra.mxu0 %v756
      %898 = vmatpush.bf16.msra.mxu0 %v753
      %899 = vmatpush.bf16.msra.mxu0 %v750
      %900 = vmatpush.bf16.msra.mxu0 %v747
      %901 = vmatpush.bf16.msra.mxu0 %v744
      %902 = vmatmul.bf16.gmra.mxu0 %v578
      %v903 = vpop.f32.mrf.mxu0
      %v904 = vadd.f32 %v568, %v903
      %v905 = vpop.f32.mrf.mxu0
      %v906 = vadd.f32 %v568, %v905
      %907 = vdwg.mxu0
      %908 = vmatpush.bf16.msra.mxu0 %v789
      %909 = vmatpush.bf16.msra.mxu0 %v786
      %910 = vmatpush.bf16.msra.mxu0 %v783
      %911 = vmatpush.bf16.msra.mxu0 %v780
      %912 = vmatpush.bf16.msra.mxu0 %v777
      %913 = vmatpush.bf16.msra.mxu0 %v774
      %914 = vmatpush.bf16.msra.mxu0 %v771
      %915 = vmatpush.bf16.msra.mxu0 %v768
      %916 = vmatmul.bf16.gmra.mxu0 %v579
      %v917 = vpop.f32.mrf.mxu0
      %v918 = vadd.f32 %v904, %v917
      %v919 = vpop.f32.mrf.mxu0
      %v920 = vadd.f32 %v906, %v919
      %921 = vdwg.mxu0
      %922 = vst [vmem:[#allocation2] sm:$0xff] %v862
      %923 = vst [vmem:[#allocation2 + $0x8] sm:$0xff] %v890
      %924 = vst [vmem:[#allocation2 + $0x10] sm:$0xff] %v918
      %925 = vst [vmem:[#allocation2 + $0x18] sm:$0xff] %v864
      %926 = vst [vmem:[#allocation2 + $0x20] sm:$0xff] %v892
      %927 = vst [vmem:[#allocation2 + $0x28] sm:$0xff] %v920
      %v928 = vld [vmem:[%s475] sm:$0xff]
      %v929 = vld [vmem:[%s475 + $0x8] sm:$0xff]
      %v930 = vld [vmem:[%s3] sm:$0xff]
      %v931 = vld [vmem:[%s3 + $0x8] sm:$0xf]
      %v932 = vld [vmem:[%s3 + $0xc] sm:$0xff]
      %v933 = vld [vmem:[%s3 + $0x14] sm:$0xf]
      %v934 = vld [vmem:[%s3 + $0x18] sm:$0xff]
      %v935 = vld [vmem:[%s3 + $0x20] sm:$0xf]
      %v936 = vld [vmem:[%s3 + $0x24] sm:$0xff]
      %v937 = vld [vmem:[%s3 + $0x2c] sm:$0xf]
      %v938 = vld [vmem:[%s3 + $0x30] sm:$0xff]
      %v939 = vld [vmem:[%s3 + $0x38] sm:$0xf]
      %v940 = vld [vmem:[%s3 + $0x3c] sm:$0xff]
      %v941 = vld [vmem:[%s3 + $0x44] sm:$0xf]
      %v942 = vld [vmem:[%s3 + $0x48] sm:$0xff]
      %v943 = vld [vmem:[%s3 + $0x50] sm:$0xf]
      %v944 = vld [vmem:[%s3 + $0x54] sm:$0xff]
      %v945 = vld [vmem:[%s3 + $0x5c] sm:$0xf]
      %v946 = vld [vmem:[%s3 + $0x60] sm:$0xff]
      %v947 = vld [vmem:[%s3 + $0x68] sm:$0xf]
      %v948 = vld [vmem:[%s3 + $0x6c] sm:$0xff]
      %v949 = vld [vmem:[%s3 + $0x74] sm:$0xf]
      %v950 = vld [vmem:[%s3 + $0x78] sm:$0xff]
      %v951 = vld [vmem:[%s3 + $0x80] sm:$0xf]
      %v952 = vld [vmem:[%s3 + $0x84] sm:$0xff]
      %v953 = vld [vmem:[%s3 + $0x8c] sm:$0xf]
      %v954 = vld [vmem:[%s3 + $0x90] sm:$0xff]
      %v955 = vld [vmem:[%s3 + $0x98] sm:$0xf]
      %v956 = vld [vmem:[%s3 + $0x9c] sm:$0xff]
      %v957 = vld [vmem:[%s3 + $0xa4] sm:$0xf]
      %v958 = vld [vmem:[%s3 + $0xa8] sm:$0xff]
      %v959 = vld [vmem:[%s3 + $0xb0] sm:$0xf]
      %v960 = vld [vmem:[%s3 + $0xb4] sm:$0xff]
      %v961 = vld [vmem:[%s3 + $0xbc] sm:$0xf]
      %v962 = vld [vmem:[%s3 + $0xc0] sm:$0xff]
      %v963 = vld [vmem:[%s3 + $0xc8] sm:$0xf]
      %v964 = vld [vmem:[%s3 + $0xcc] sm:$0xff]
      %v965 = vld [vmem:[%s3 + $0xd4] sm:$0xf]
      %v966 = vld [vmem:[%s3 + $0xd8] sm:$0xff]
      %v967 = vld [vmem:[%s3 + $0xe0] sm:$0xf]
      %v968 = vld [vmem:[%s3 + $0xe4] sm:$0xff]
      %v969 = vld [vmem:[%s3 + $0xec] sm:$0xf]
      %v970 = vld [vmem:[%s3 + $0xf0] sm:$0xff]
      %v971 = vld [vmem:[%s3 + $0xf8] sm:$0xf]
      %v972 = vld [vmem:[%s3 + $0xfc] sm:$0xff]
      %v973 = vld [vmem:[%s3 + $0x104] sm:$0xf]
      %v974 = vld [vmem:[%s3 + $0x108] sm:$0xff]
      %v975 = vld [vmem:[%s3 + $0x110] sm:$0xf]
      %v976 = vld [vmem:[%s3 + $0x114] sm:$0xff]
      %v977 = vld [vmem:[%s3 + $0x11c] sm:$0xf]
      %v978 = vld [vmem:[%s3 + $0x120] sm:$0xff]
      %v979 = vld [vmem:[%s3 + $0x128] sm:$0xf]
      %v980 = vld [vmem:[%s3 + $0x12c] sm:$0xff]
      %v981 = vld [vmem:[%s3 + $0x134] sm:$0xf]
      %v982 = vld [vmem:[%s3 + $0x138] sm:$0xff]
      %v983 = vld [vmem:[%s3 + $0x140] sm:$0xf]
      %v984 = vld [vmem:[%s3 + $0x144] sm:$0xff]
      %v985 = vld [vmem:[%s3 + $0x14c] sm:$0xf]
      %v986 = vld [vmem:[%s3 + $0x150] sm:$0xff]
      %v987 = vld [vmem:[%s3 + $0x158] sm:$0xf]
      %v988 = vld [vmem:[%s3 + $0x15c] sm:$0xff]
      %v989 = vld [vmem:[%s3 + $0x164] sm:$0xf]
      %v990 = vld [vmem:[%s3 + $0x168] sm:$0xff]
      %v991 = vld [vmem:[%s3 + $0x170] sm:$0xf]
      %v992 = vld [vmem:[%s3 + $0x174] sm:$0xff]
      %v993 = vld [vmem:[%s3 + $0x17c] sm:$0xf]
      %v994 = vld [vmem:[%s7] sm:$0x7]
      %v996 = vperm.slane %v994, 0
      %v997 = vperm.slane %v994, 1
      %v998 = vperm.slane %v994, 2
      %v1004 = vunpack.c.l.b16 %v928
      %v1005 = vunpack.c.h.b16 %v928
      %v1006 = vunpack.c.l.b16 %v929
      %v1007 = vunpack.c.h.b16 %v929
      %v1008 = vpack.c.b16 %v1006, %v1004
      %v1009 = vpack.c.b16 %v1007, %v1005
      %v1076 = vunpack.c.l.b16 %v930
      %v1077 = vunpack.c.h.b16 %v930
      %v1078 = vunpack.c.l.b16 %v931
      %v1079 = vunpack.c.l.b16 %v932
      %v1080 = vunpack.c.h.b16 %v932
      %v1081 = vunpack.c.l.b16 %v933
      %v1082 = vunpack.c.l.b16 %v934
      %v1083 = vunpack.c.h.b16 %v934
      %v1084 = vunpack.c.l.b16 %v935
      %v1085 = vunpack.c.l.b16 %v936
      %v1086 = vunpack.c.h.b16 %v936
      %v1087 = vunpack.c.l.b16 %v937
      %v1088 = vunpack.c.l.b16 %v938
      %v1089 = vunpack.c.h.b16 %v938
      %v1090 = vunpack.c.l.b16 %v939
      %v1091 = vunpack.c.l.b16 %v940
      %v1092 = vunpack.c.h.b16 %v940
      %v1093 = vunpack.c.l.b16 %v941
      %v1094 = vunpack.c.l.b16 %v942
      %v1095 = vunpack.c.h.b16 %v942
      %v1096 = vunpack.c.l.b16 %v943
      %v1097 = vunpack.c.l.b16 %v944
      %v1098 = vunpack.c.h.b16 %v944
      %v1099 = vunpack.c.l.b16 %v945
      %v1100 = vunpack.c.l.b16 %v946
      %v1101 = vunpack.c.h.b16 %v946
      %v1102 = vunpack.c.l.b16 %v947
      %v1103 = vunpack.c.l.b16 %v948
      %v1104 = vunpack.c.h.b16 %v948
      %v1105 = vunpack.c.l.b16 %v949
      %v1106 = vunpack.c.l.b16 %v950
      %v1107 = vunpack.c.h.b16 %v950
      %v1108 = vunpack.c.l.b16 %v951
      %v1109 = vunpack.c.l.b16 %v952
      %v1110 = vunpack.c.h.b16 %v952
      %v1111 = vunpack.c.l.b16 %v953
      %v1112 = vunpack.c.l.b16 %v954
      %v1113 = vunpack.c.h.b16 %v954
      %v1114 = vunpack.c.l.b16 %v955
      %v1115 = vunpack.c.l.b16 %v956
      %v1116 = vunpack.c.h.b16 %v956
      %v1117 = vunpack.c.l.b16 %v957
      %v1118 = vunpack.c.l.b16 %v958
      %v1119 = vunpack.c.h.b16 %v958
      %v1120 = vunpack.c.l.b16 %v959
      %v1121 = vunpack.c.l.b16 %v960
      %v1122 = vunpack.c.h.b16 %v960
      %v1123 = vunpack.c.l.b16 %v961
      %v1124 = vunpack.c.l.b16 %v962
      %v1125 = vunpack.c.h.b16 %v962
      %v1126 = vunpack.c.l.b16 %v963
      %v1127 = vunpack.c.l.b16 %v964
      %v1128 = vunpack.c.h.b16 %v964
      %v1129 = vunpack.c.l.b16 %v965
      %v1130 = vunpack.c.l.b16 %v966
      %v1131 = vunpack.c.h.b16 %v966
      %v1132 = vunpack.c.l.b16 %v967
      %v1133 = vunpack.c.l.b16 %v968
      %v1134 = vunpack.c.h.b16 %v968
      %v1135 = vunpack.c.l.b16 %v969
      %v1136 = vunpack.c.l.b16 %v970
      %v1137 = vunpack.c.h.b16 %v970
      %v1138 = vunpack.c.l.b16 %v971
      %v1139 = vunpack.c.l.b16 %v972
      %v1140 = vunpack.c.h.b16 %v972
      %v1141 = vunpack.c.l.b16 %v973
      %v1142 = vunpack.c.l.b16 %v974
      %v1143 = vunpack.c.h.b16 %v974
      %v1144 = vunpack.c.l.b16 %v975
      %v1145 = vunpack.c.l.b16 %v976
      %v1146 = vunpack.c.h.b16 %v976
      %v1147 = vunpack.c.l.b16 %v977
      %v1148 = vunpack.c.l.b16 %v978
      %v1149 = vunpack.c.h.b16 %v978
      %v1150 = vunpack.c.l.b16 %v979
      %v1151 = vunpack.c.l.b16 %v980
      %v1152 = vunpack.c.h.b16 %v980
      %v1153 = vunpack.c.l.b16 %v981
      %v1154 = vunpack.c.l.b16 %v982
      %v1155 = vunpack.c.h.b16 %v982
      %v1156 = vunpack.c.l.b16 %v983
      %v1157 = vunpack.c.l.b16 %v984
      %v1158 = vunpack.c.h.b16 %v984
      %v1159 = vunpack.c.l.b16 %v985
      %v1160 = vunpack.c.l.b16 %v986
      %v1161 = vunpack.c.h.b16 %v986
      %v1162 = vunpack.c.l.b16 %v987
      %v1163 = vunpack.c.l.b16 %v988
      %v1164 = vunpack.c.h.b16 %v988
      %v1165 = vunpack.c.l.b16 %v989
      %v1166 = vunpack.c.l.b16 %v990
      %v1167 = vunpack.c.h.b16 %v990
      %v1168 = vunpack.c.l.b16 %v991
      %v1169 = vunpack.c.l.b16 %v992
      %v1170 = vunpack.c.h.b16 %v992
      %v1171 = vunpack.c.l.b16 %v993
      %v1172 = vpack.c.b16 %v1079, %v1076
      %v1173 = vpack.c.b16 %v1080, %v1077
      %v1174 = vpack.c.b16 %v1081, %v1078
      %v1175 = vpack.c.b16 %v1085, %v1082
      %v1176 = vpack.c.b16 %v1086, %v1083
      %v1177 = vpack.c.b16 %v1087, %v1084
      %v1178 = vpack.c.b16 %v1091, %v1088
      %v1179 = vpack.c.b16 %v1092, %v1089
      %v1180 = vpack.c.b16 %v1093, %v1090
      %v1181 = vpack.c.b16 %v1097, %v1094
      %v1182 = vpack.c.b16 %v1098, %v1095
      %v1183 = vpack.c.b16 %v1099, %v1096
      %v1184 = vpack.c.b16 %v1103, %v1100
      %v1185 = vpack.c.b16 %v1104, %v1101
      %v1186 = vpack.c.b16 %v1105, %v1102
      %v1187 = vpack.c.b16 %v1109, %v1106
      %v1188 = vpack.c.b16 %v1110, %v1107
      %v1189 = vpack.c.b16 %v1111, %v1108
      %v1190 = vpack.c.b16 %v1115, %v1112
      %v1191 = vpack.c.b16 %v1116, %v1113
      %v1192 = vpack.c.b16 %v1117, %v1114
      %v1193 = vpack.c.b16 %v1121, %v1118
      %v1194 = vpack.c.b16 %v1122, %v1119
      %v1195 = vpack.c.b16 %v1123, %v1120
      %v1196 = vpack.c.b16 %v1127, %v1124
      %v1197 = vpack.c.b16 %v1128, %v1125
      %v1198 = vpack.c.b16 %v1129, %v1126
      %v1199 = vpack.c.b16 %v1133, %v1130
      %v1200 = vpack.c.b16 %v1134, %v1131
      %v1201 = vpack.c.b16 %v1135, %v1132
      %v1202 = vpack.c.b16 %v1139, %v1136
      %v1203 = vpack.c.b16 %v1140, %v1137
      %v1204 = vpack.c.b16 %v1141, %v1138
      %v1205 = vpack.c.b16 %v1145, %v1142
      %v1206 = vpack.c.b16 %v1146, %v1143
      %v1207 = vpack.c.b16 %v1147, %v1144
      %v1208 = vpack.c.b16 %v1151, %v1148
      %v1209 = vpack.c.b16 %v1152, %v1149
      %v1210 = vpack.c.b16 %v1153, %v1150
      %v1211 = vpack.c.b16 %v1157, %v1154
      %v1212 = vpack.c.b16 %v1158, %v1155
      %v1213 = vpack.c.b16 %v1159, %v1156
      %v1214 = vpack.c.b16 %v1163, %v1160
      %v1215 = vpack.c.b16 %v1164, %v1161
      %v1216 = vpack.c.b16 %v1165, %v1162
      %v1217 = vpack.c.b16 %v1169, %v1166
      %v1218 = vpack.c.b16 %v1170, %v1167
      %v1219 = vpack.c.b16 %v1171, %v1168
      %1268 = vmatpush.bf16.msra.mxu0 %v1193
      %1269 = vmatpush.bf16.msra.mxu0 %v1190
      %1270 = vmatpush.bf16.msra.mxu0 %v1187
      %1271 = vmatpush.bf16.msra.mxu0 %v1184
      %1272 = vmatpush.bf16.msra.mxu0 %v1181
      %1273 = vmatpush.bf16.msra.mxu0 %v1178
      %1274 = vmatpush.bf16.msra.mxu0 %v1175
      %1275 = vmatpush.bf16.msra.mxu0 %v1172
      %1276 = vmatmul.bf16.gmra.mxu0 %v1008
      %v1277 = vpop.f32.mrf.mxu0
      %v1278 = vadd.f32 %v996, %v1277
      %v1279 = vpop.f32.mrf.mxu0
      %v1280 = vadd.f32 %v996, %v1279
      %1281 = vdwg.mxu0
      %1282 = vmatpush.bf16.msra.mxu0 %v1217
      %1283 = vmatpush.bf16.msra.mxu0 %v1214
      %1284 = vmatpush.bf16.msra.mxu0 %v1211
      %1285 = vmatpush.bf16.msra.mxu0 %v1208
      %1286 = vmatpush.bf16.msra.mxu0 %v1205
      %1287 = vmatpush.bf16.msra.mxu0 %v1202
      %1288 = vmatpush.bf16.msra.mxu0 %v1199
      %1289 = vmatpush.bf16.msra.mxu0 %v1196
      %1290 = vmatmul.bf16.gmra.mxu0 %v1009
      %v1291 = vpop.f32.mrf.mxu0
      %v1292 = vadd.f32 %v1278, %v1291
      %v1293 = vpop.f32.mrf.mxu0
      %v1294 = vadd.f32 %v1280, %v1293
      %1295 = vdwg.mxu0
      %1296 = vmatpush.bf16.msra.mxu0 %v1194
      %1297 = vmatpush.bf16.msra.mxu0 %v1191
      %1298 = vmatpush.bf16.msra.mxu0 %v1188
      %1299 = vmatpush.bf16.msra.mxu0 %v1185
      %1300 = vmatpush.bf16.msra.mxu0 %v1182
      %1301 = vmatpush.bf16.msra.mxu0 %v1179
      %1302 = vmatpush.bf16.msra.mxu0 %v1176
      %1303 = vmatpush.bf16.msra.mxu0 %v1173
      %1304 = vmatmul.bf16.gmra.mxu0 %v1008
      %v1305 = vpop.f32.mrf.mxu0
      %v1306 = vadd.f32 %v997, %v1305
      %v1307 = vpop.f32.mrf.mxu0
      %v1308 = vadd.f32 %v997, %v1307
      %1309 = vdwg.mxu0
      %1310 = vmatpush.bf16.msra.mxu0 %v1218
      %1311 = vmatpush.bf16.msra.mxu0 %v1215
      %1312 = vmatpush.bf16.msra.mxu0 %v1212
      %1313 = vmatpush.bf16.msra.mxu0 %v1209
      %1314 = vmatpush.bf16.msra.mxu0 %v1206
      %1315 = vmatpush.bf16.msra.mxu0 %v1203
      %1316 = vmatpush.bf16.msra.mxu0 %v1200
      %1317 = vmatpush.bf16.msra.mxu0 %v1197
      %1318 = vmatmul.bf16.gmra.mxu0 %v1009
      %v1319 = vpop.f32.mrf.mxu0
      %v1320 = vadd.f32 %v1306, %v1319
      %v1321 = vpop.f32.mrf.mxu0
      %v1322 = vadd.f32 %v1308, %v1321
      %1323 = vdwg.mxu0
      %1324 = vmatpush.bf16.msra.mxu0 %v1195
      %1325 = vmatpush.bf16.msra.mxu0 %v1192
      %1326 = vmatpush.bf16.msra.mxu0 %v1189
      %1327 = vmatpush.bf16.msra.mxu0 %v1186
      %1328 = vmatpush.bf16.msra.mxu0 %v1183
      %1329 = vmatpush.bf16.msra.mxu0 %v1180
      %1330 = vmatpush.bf16.msra.mxu0 %v1177
      %1331 = vmatpush.bf16.msra.mxu0 %v1174
      %1332 = vmatmul.bf16.gmra.mxu0 %v1008
      %v1333 = vpop.f32.mrf.mxu0
      %v1334 = vadd.f32 %v998, %v1333
      %v1335 = vpop.f32.mrf.mxu0
      %v1336 = vadd.f32 %v998, %v1335
      %1337 = vdwg.mxu0
      %1338 = vmatpush.bf16.msra.mxu0 %v1219
      %1339 = vmatpush.bf16.msra.mxu0 %v1216
      %1340 = vmatpush.bf16.msra.mxu0 %v1213
      %1341 = vmatpush.bf16.msra.mxu0 %v1210
      %1342 = vmatpush.bf16.msra.mxu0 %v1207
      %1343 = vmatpush.bf16.msra.mxu0 %v1204
      %1344 = vmatpush.bf16.msra.mxu0 %v1201
      %1345 = vmatpush.bf16.msra.mxu0 %v1198
      %1346 = vmatmul.bf16.gmra.mxu0 %v1009
      %v1347 = vpop.f32.mrf.mxu0
      %v1348 = vadd.f32 %v1334, %v1347
      %v1349 = vpop.f32.mrf.mxu0
      %v1350 = vadd.f32 %v1336, %v1349
      %1351 = vdwg.mxu0
      %1352 = vst [vmem:[#allocation3] sm:$0xff] %v1292
      %1353 = vst [vmem:[#allocation3 + $0x8] sm:$0xff] %v1320
      %1354 = vst [vmem:[#allocation3 + $0x10] sm:$0xff] %v1348
      %1355 = vst [vmem:[#allocation3 + $0x18] sm:$0xff] %v1294
      %1356 = vst [vmem:[#allocation3 + $0x20] sm:$0xff] %v1322
      %1357 = vst [vmem:[#allocation3 + $0x28] sm:$0xff] %v1350
      %v1358 = vld [vmem:[%s8] sm:$0x1]
      %v1360 = vperm.slane %v1358, 0
      %v1362 = vld [vmem:[%s9] sm:$0x1]
      %v1364 = vperm.slane %v1362, 0
      %v1366 = vld [vmem:[%s4] sm:$0xff]
      %v1367 = vld [vmem:[%s4 + $0x8] sm:$0xf]
      %v1368 = vld [vmem:[%s4 + $0xc] sm:$0xff]
      %v1369 = vld [vmem:[%s4 + $0x14] sm:$0xf]
      %v1370 = vld [vmem:[%s4 + $0x18] sm:$0xff]
      %v1371 = vld [vmem:[%s4 + $0x20] sm:$0xf]
      %v1372 = vld [vmem:[%s4 + $0x24] sm:$0xff]
      %v1373 = vld [vmem:[%s4 + $0x2c] sm:$0xf]
      %v1374 = vld [vmem:[%s4 + $0x30] sm:$0xff]
      %v1375 = vld [vmem:[%s4 + $0x38] sm:$0xf]
      %v1376 = vld [vmem:[%s4 + $0x3c] sm:$0xff]
      %v1377 = vld [vmem:[%s4 + $0x44] sm:$0xf]
      %v1378 = vld [vmem:[%s4 + $0x48] sm:$0xff]
      %v1379 = vld [vmem:[%s4 + $0x50] sm:$0xf]
      %v1380 = vld [vmem:[%s4 + $0x54] sm:$0xff]
      %v1381 = vld [vmem:[%s4 + $0x5c] sm:$0xf]
      %v1382 = vld [vmem:[%s4 + $0x60] sm:$0xff]
      %v1383 = vld [vmem:[%s4 + $0x68] sm:$0xf]
      %v1384 = vld [vmem:[%s4 + $0x6c] sm:$0xff]
      %v1385 = vld [vmem:[%s4 + $0x74] sm:$0xf]
      %v1386 = vld [vmem:[%s4 + $0x78] sm:$0xff]
      %v1387 = vld [vmem:[%s4 + $0x80] sm:$0xf]
      %v1388 = vld [vmem:[%s4 + $0x84] sm:$0xff]
      %v1389 = vld [vmem:[%s4 + $0x8c] sm:$0xf]
      %v1390 = vld [vmem:[%s4 + $0x90] sm:$0xff]
      %v1391 = vld [vmem:[%s4 + $0x98] sm:$0xf]
      %v1392 = vld [vmem:[%s4 + $0x9c] sm:$0xff]
      %v1393 = vld [vmem:[%s4 + $0xa4] sm:$0xf]
      %v1394 = vld [vmem:[%s4 + $0xa8] sm:$0xff]
      %v1395 = vld [vmem:[%s4 + $0xb0] sm:$0xf]
      %v1396 = vld [vmem:[%s4 + $0xb4] sm:$0xff]
      %v1397 = vld [vmem:[%s4 + $0xbc] sm:$0xf]
      %v1398 = vld [vmem:[%s5] sm:$0xff]
      %v1399 = vld [vmem:[%s5 + $0x8] sm:$0xf]
      %v1400 = vld [vmem:[%s5 + $0xc] sm:$0xff]
      %v1401 = vld [vmem:[%s5 + $0x14] sm:$0xf]
      %v1402 = vld [vmem:[%s5 + $0x18] sm:$0xff]
      %v1403 = vld [vmem:[%s5 + $0x20] sm:$0xf]
      %v1404 = vld [vmem:[%s5 + $0x24] sm:$0xff]
      %v1405 = vld [vmem:[%s5 + $0x2c] sm:$0xf]
      %v1406 = vld [vmem:[%s5 + $0x30] sm:$0xff]
      %v1407 = vld [vmem:[%s5 + $0x38] sm:$0xf]
      %v1408 = vld [vmem:[%s5 + $0x3c] sm:$0xff]
      %v1409 = vld [vmem:[%s5 + $0x44] sm:$0xf]
      %v1410 = vld [vmem:[%s5 + $0x48] sm:$0xff]
      %v1411 = vld [vmem:[%s5 + $0x50] sm:$0xf]
      %v1412 = vld [vmem:[%s5 + $0x54] sm:$0xff]
      %v1413 = vld [vmem:[%s5 + $0x5c] sm:$0xf]
      %v1414 = vld [vmem:[%s5 + $0x60] sm:$0xff]
      %v1415 = vld [vmem:[%s5 + $0x68] sm:$0xf]
      %v1416 = vld [vmem:[%s5 + $0x6c] sm:$0xff]
      %v1417 = vld [vmem:[%s5 + $0x74] sm:$0xf]
      %v1418 = vld [vmem:[%s5 + $0x78] sm:$0xff]
      %v1419 = vld [vmem:[%s5 + $0x80] sm:$0xf]
      %v1420 = vld [vmem:[%s5 + $0x84] sm:$0xff]
      %v1421 = vld [vmem:[%s5 + $0x8c] sm:$0xf]
      %v1422 = vld [vmem:[%s5 + $0x90] sm:$0xff]
      %v1423 = vld [vmem:[%s5 + $0x98] sm:$0xf]
      %v1424 = vld [vmem:[%s5 + $0x9c] sm:$0xff]
      %v1425 = vld [vmem:[%s5 + $0xa4] sm:$0xf]
      %v1426 = vld [vmem:[%s5 + $0xa8] sm:$0xff]
      %v1427 = vld [vmem:[%s5 + $0xb0] sm:$0xf]
      %v1428 = vld [vmem:[%s5 + $0xb4] sm:$0xff]
      %v1429 = vld [vmem:[%s5 + $0xbc] sm:$0xf]
      %v1430 = vld [vmem:[#allocation4] sm:$0x3]
      %v1431 = vld [vmem:[#allocation2] sm:$0x3]
      %v1432 = vld [vmem:[#allocation2 + $0x8] sm:$0x3]
      %v1433 = vld [vmem:[#allocation2 + $0x10] sm:$0x3]
      %v1434 = vpack.c.bf16 %v1430, %v1430
      %v1467 = vunpack.c.l.b16 %v1366
      %v1468 = vunpack.c.h.b16 %v1366
      %v1469 = vunpack.c.l.b16 %v1367
      %v1470 = vunpack.c.l.b16 %v1368
      %v1471 = vunpack.c.h.b16 %v1368
      %v1472 = vunpack.c.l.b16 %v1369
      %v1473 = vunpack.c.l.b16 %v1370
      %v1474 = vunpack.c.h.b16 %v1370
      %v1475 = vunpack.c.l.b16 %v1371
      %v1476 = vunpack.c.l.b16 %v1372
      %v1477 = vunpack.c.h.b16 %v1372
      %v1478 = vunpack.c.l.b16 %v1373
      %v1479 = vunpack.c.l.b16 %v1374
      %v1480 = vunpack.c.h.b16 %v1374
      %v1481 = vunpack.c.l.b16 %v1375
      %v1482 = vunpack.c.l.b16 %v1376
      %v1483 = vunpack.c.h.b16 %v1376
      %v1484 = vunpack.c.l.b16 %v1377
      %v1485 = vunpack.c.l.b16 %v1378
      %v1486 = vunpack.c.h.b16 %v1378
      %v1487 = vunpack.c.l.b16 %v1379
      %v1488 = vunpack.c.l.b16 %v1380
      %v1489 = vunpack.c.h.b16 %v1380
      %v1490 = vunpack.c.l.b16 %v1381
      %v1491 = vunpack.c.l.b16 %v1382
      %v1492 = vunpack.c.h.b16 %v1382
      %v1493 = vunpack.c.l.b16 %v1383
      %v1494 = vunpack.c.l.b16 %v1384
      %v1495 = vunpack.c.h.b16 %v1384
      %v1496 = vunpack.c.l.b16 %v1385
      %v1497 = vunpack.c.l.b16 %v1386
      %v1498 = vunpack.c.h.b16 %v1386
      %v1499 = vunpack.c.l.b16 %v1387
      %v1500 = vunpack.c.l.b16 %v1388
      %v1501 = vunpack.c.h.b16 %v1388
      %v1502 = vunpack.c.l.b16 %v1389
      %v1503 = vunpack.c.l.b16 %v1390
      %v1504 = vunpack.c.h.b16 %v1390
      %v1505 = vunpack.c.l.b16 %v1391
      %v1506 = vunpack.c.l.b16 %v1392
      %v1507 = vunpack.c.h.b16 %v1392
      %v1508 = vunpack.c.l.b16 %v1393
      %v1509 = vunpack.c.l.b16 %v1394
      %v1510 = vunpack.c.h.b16 %v1394
      %v1511 = vunpack.c.l.b16 %v1395
      %v1512 = vunpack.c.l.b16 %v1396
      %v1513 = vunpack.c.h.b16 %v1396
      %v1514 = vunpack.c.l.b16 %v1397
      %v1515 = vpack.c.b16 %v1470, %v1467
      %v1516 = vpack.c.b16 %v1471, %v1468
      %v1517 = vpack.c.b16 %v1472, %v1469
      %v1518 = vpack.c.b16 %v1476, %v1473
      %v1519 = vpack.c.b16 %v1477, %v1474
      %v1520 = vpack.c.b16 %v1478, %v1475
      %v1521 = vpack.c.b16 %v1482, %v1479
      %v1522 = vpack.c.b16 %v1483, %v1480
      %v1523 = vpack.c.b16 %v1484, %v1481
      %v1524 = vpack.c.b16 %v1488, %v1485
      %v1525 = vpack.c.b16 %v1489, %v1486
      %v1526 = vpack.c.b16 %v1490, %v1487
      %v1527 = vpack.c.b16 %v1494, %v1491
      %v1528 = vpack.c.b16 %v1495, %v1492
      %v1529 = vpack.c.b16 %v1496, %v1493
      %v1530 = vpack.c.b16 %v1500, %v1497
      %v1531 = vpack.c.b16 %v1501, %v1498
      %v1532 = vpack.c.b16 %v1502, %v1499
      %v1533 = vpack.c.b16 %v1506, %v1503
      %v1534 = vpack.c.b16 %v1507, %v1504
      %v1535 = vpack.c.b16 %v1508, %v1505
      %v1536 = vpack.c.b16 %v1512, %v1509
      %v1537 = vpack.c.b16 %v1513, %v1510
      %v1538 = vpack.c.b16 %v1514, %v1511
      %1563 = vmatpush.bf16.msra.mxu0 %v1536
      %1564 = vmatpush.bf16.msra.mxu0 %v1533
      %1565 = vmatpush.bf16.msra.mxu0 %v1530
      %1566 = vmatpush.bf16.msra.mxu0 %v1527
      %1567 = vmatpush.bf16.msra.mxu0 %v1524
      %1568 = vmatpush.bf16.msra.mxu0 %v1521
      %1569 = vmatpush.bf16.msra.mxu0 %v1518
      %1570 = vmatpush.bf16.msra.mxu0 %v1515
      %1571 = vmatmul.bf16.gmra.mxu0 %v1434
      %v1572 = vpop.f32.mrf.mxu0
      %v1573 = vadd.f32 0.0, %v1572
      %v1574 = vpop.f32.mrf.mxu0
      %1575 = vdwg.mxu0
      %1576 = vmatpush.bf16.msra.mxu0 %v1537
      %1577 = vmatpush.bf16.msra.mxu0 %v1534
      %1578 = vmatpush.bf16.msra.mxu0 %v1531
      %1579 = vmatpush.bf16.msra.mxu0 %v1528
      %1580 = vmatpush.bf16.msra.mxu0 %v1525
      %1581 = vmatpush.bf16.msra.mxu0 %v1522
      %1582 = vmatpush.bf16.msra.mxu0 %v1519
      %1583 = vmatpush.bf16.msra.mxu0 %v1516
      %1584 = vmatmul.bf16.gmra.mxu0 %v1434
      %v1585 = vpop.f32.mrf.mxu0
      %v1586 = vadd.f32 0.0, %v1585
      %v1587 = vpop.f32.mrf.mxu0
      %1588 = vdwg.mxu0
      %1589 = vmatpush.bf16.msra.mxu0 %v1538
      %1590 = vmatpush.bf16.msra.mxu0 %v1535
      %1591 = vmatpush.bf16.msra.mxu0 %v1532
      %1592 = vmatpush.bf16.msra.mxu0 %v1529
      %1593 = vmatpush.bf16.msra.mxu0 %v1526
      %1594 = vmatpush.bf16.msra.mxu0 %v1523
      %1595 = vmatpush.bf16.msra.mxu0 %v1520
      %1596 = vmatpush.bf16.msra.mxu0 %v1517
      %1597 = vmatmul.bf16.gmra.mxu0 %v1434
      %v1598 = vpop.f32.mrf.mxu0
      %v1599 = vadd.f32 0.0, %v1598
      %v1600 = vpop.f32.mrf.mxu0
      %1601 = vdwg.mxu0
      %v1602 = vadd.f32 %v1431, %v1573
      %v1603 = vxor.u32 %v1602, 2147483648
      %v1604 = vmul.f32 %v1603, 1.442695
      %v1605 = vpow.pop %v1604
      %v1606 = vadd.f32 %v1605, 1.0
      %v1607 = vrcp.pop %v1606
      %v1608 = vmul.f32 %v1606, %v1607
      %v1609 = vsub.f32 1.0, %v1608
      %v1610 = vmul.f32 %v1607, %v1609
      %v1611 = vadd.f32 %v1607, %v1610
      %vm1612 = vweird.f32 %v1606
      %vm1613 = vweird.f32 %v1607
      %vm1614 = vmor %vm1612, %vm1613
      %v1615 = vsel %vm1614, %v1607, %v1611
      %v1616 = vand.u32 2147483647, %v1606
      %vm1617 = vcmp.eq.f32.partialorder %v1616, 8.507059e+37
      %v1618 = vand.u32 %v1606, 2147483648
      %v1619 = vor.u32 1.1754944e-38, %v1618
      %v1620 = vsel %vm1617, %v1619, %v1615
      %v1621 = vmul.f32 1.0, %v1620
      %v1622 = vadd.f32 %v1432, %v1586
      %v1623 = vxor.u32 %v1622, 2147483648
      %v1624 = vmul.f32 %v1623, 1.442695
      %v1625 = vpow.pop %v1624
      %v1626 = vadd.f32 %v1625, 1.0
      %v1627 = vrcp.pop %v1626
      %v1628 = vmul.f32 %v1626, %v1627
      %v1629 = vsub.f32 1.0, %v1628
      %v1630 = vmul.f32 %v1627, %v1629
      %v1631 = vadd.f32 %v1627, %v1630
      %vm1632 = vweird.f32 %v1626
      %vm1633 = vweird.f32 %v1627
      %vm1634 = vmor %vm1632, %vm1633
      %v1635 = vsel %vm1634, %v1627, %v1631
      %v1636 = vand.u32 2147483647, %v1626
      %vm1637 = vcmp.eq.f32.partialorder %v1636, 8.507059e+37
      %v1638 = vand.u32 %v1626, 2147483648
      %v1639 = vor.u32 1.1754944e-38, %v1638
      %v1640 = vsel %vm1637, %v1639, %v1635
      %v1641 = vmul.f32 1.0, %v1640
      %v1642 = vadd.f32 %v1599, %v1360
      %v1643 = vmul.f32 %v1621, %v1642
      %v1644 = vadd.f32 %v1433, %v1643
      %v1645 = vtanh.pop %v1644
      %v1646 = vsub.f32 1.0, %v1641
      %v1647 = vmul.f32 %v1646, %v1645
      %v1648 = vmul.f32 %v1641, %v1430
      %v1649 = vadd.f32 %v1647, %v1648
      %s1650 = smul.u32 %s25, 8
      %p1651 = scmp.lt.s32.totalorder %s1650, 15
      %s1652 = scalar_select %p1651, 1, 0
      %s1653 = scvt.s32.f32 %s1652
      %v1654 = vstv %s1653
      %v1655 = vmul.f32 %v1654, %v1649
      %s1656 = ssub.f32 1.0, %s1653
      %v1657 = vstv %s1656
      %v1658 = vmul.f32 %v1657, %v1430
      %v1659 = vadd.f32 %v1655, %v1658
      %1660 = vst [vmem:[#allocation4] sm:$0x3] %v1659
      %v1661 = vpack.c.bf16 %v1659, %v1659
      %1662 = vst [vmem:[%s482] sm:$0x1] %v1661
      %v1663 = vld [vmem:[#allocation5] sm:$0x3]
      %v1664 = vld [vmem:[#allocation3 + $0x18] sm:$0xc0]
      %v1665 = vld [vmem:[#allocation3 + $0x20] sm:$0xc0]
      %v1666 = vld [vmem:[#allocation3 + $0x28] sm:$0xc0]
      %v1667 = vpack.c.bf16 %v1663, %v1663
      %v1700 = vunpack.c.l.b16 %v1398
      %v1701 = vunpack.c.h.b16 %v1398
      %v1702 = vunpack.c.l.b16 %v1399
      %v1703 = vunpack.c.l.b16 %v1400
      %v1704 = vunpack.c.h.b16 %v1400
      %v1705 = vunpack.c.l.b16 %v1401
      %v1706 = vunpack.c.l.b16 %v1402
      %v1707 = vunpack.c.h.b16 %v1402
      %v1708 = vunpack.c.l.b16 %v1403
      %v1709 = vunpack.c.l.b16 %v1404
      %v1710 = vunpack.c.h.b16 %v1404
      %v1711 = vunpack.c.l.b16 %v1405
      %v1712 = vunpack.c.l.b16 %v1406
      %v1713 = vunpack.c.h.b16 %v1406
      %v1714 = vunpack.c.l.b16 %v1407
      %v1715 = vunpack.c.l.b16 %v1408
      %v1716 = vunpack.c.h.b16 %v1408
      %v1717 = vunpack.c.l.b16 %v1409
      %v1718 = vunpack.c.l.b16 %v1410
      %v1719 = vunpack.c.h.b16 %v1410
      %v1720 = vunpack.c.l.b16 %v1411
      %v1721 = vunpack.c.l.b16 %v1412
      %v1722 = vunpack.c.h.b16 %v1412
      %v1723 = vunpack.c.l.b16 %v1413
      %v1724 = vunpack.c.l.b16 %v1414
      %v1725 = vunpack.c.h.b16 %v1414
      %v1726 = vunpack.c.l.b16 %v1415
      %v1727 = vunpack.c.l.b16 %v1416
      %v1728 = vunpack.c.h.b16 %v1416
      %v1729 = vunpack.c.l.b16 %v1417
      %v1730 = vunpack.c.l.b16 %v1418
      %v1731 = vunpack.c.h.b16 %v1418
      %v1732 = vunpack.c.l.b16 %v1419
      %v1733 = vunpack.c.l.b16 %v1420
      %v1734 = vunpack.c.h.b16 %v1420
      %v1735 = vunpack.c.l.b16 %v1421
      %v1736 = vunpack.c.l.b16 %v1422
      %v1737 = vunpack.c.h.b16 %v1422
      %v1738 = vunpack.c.l.b16 %v1423
      %v1739 = vunpack.c.l.b16 %v1424
      %v1740 = vunpack.c.h.b16 %v1424
      %v1741 = vunpack.c.l.b16 %v1425
      %v1742 = vunpack.c.l.b16 %v1426
      %v1743 = vunpack.c.h.b16 %v1426
      %v1744 = vunpack.c.l.b16 %v1427
      %v1745 = vunpack.c.l.b16 %v1428
      %v1746 = vunpack.c.h.b16 %v1428
      %v1747 = vunpack.c.l.b16 %v1429
      %v1748 = vpack.c.b16 %v1703, %v1700
      %v1749 = vpack.c.b16 %v1704, %v1701
      %v1750 = vpack.c.b16 %v1705, %v1702
      %v1751 = vpack.c.b16 %v1709, %v1706
      %v1752 = vpack.c.b16 %v1710, %v1707
      %v1753 = vpack.c.b16 %v1711, %v1708
      %v1754 = vpack.c.b16 %v1715, %v1712
      %v1755 = vpack.c.b16 %v1716, %v1713
      %v1756 = vpack.c.b16 %v1717, %v1714
      %v1757 = vpack.c.b16 %v1721, %v1718
      %v1758 = vpack.c.b16 %v1722, %v1719
      %v1759 = vpack.c.b16 %v1723, %v1720
      %v1760 = vpack.c.b16 %v1727, %v1724
      %v1761 = vpack.c.b16 %v1728, %v1725
      %v1762 = vpack.c.b16 %v1729, %v1726
      %v1763 = vpack.c.b16 %v1733, %v1730
      %v1764 = vpack.c.b16 %v1734, %v1731
      %v1765 = vpack.c.b16 %v1735, %v1732
      %v1766 = vpack.c.b16 %v1739, %v1736
      %v1767 = vpack.c.b16 %v1740, %v1737
      %v1768 = vpack.c.b16 %v1741, %v1738
      %v1769 = vpack.c.b16 %v1745, %v1742
      %v1770 = vpack.c.b16 %v1746, %v1743
      %v1771 = vpack.c.b16 %v1747, %v1744
      %1796 = vmatpush.bf16.msra.mxu0 %v1769
      %1797 = vmatpush.bf16.msra.mxu0 %v1766
      %1798 = vmatpush.bf16.msra.mxu0 %v1763
      %1799 = vmatpush.bf16.msra.mxu0 %v1760
      %1800 = vmatpush.bf16.msra.mxu0 %v1757
      %1801 = vmatpush.bf16.msra.mxu0 %v1754
      %1802 = vmatpush.bf16.msra.mxu0 %v1751
      %1803 = vmatpush.bf16.msra.mxu0 %v1748
      %1804 = vmatmul.bf16.gmra.mxu0 %v1667
      %v1805 = vpop.f32.mrf.mxu0
      %v1806 = vadd.f32 0.0, %v1805
      %v1807 = vpop.f32.mrf.mxu0
      %1808 = vdwg.mxu0
      %1809 = vmatpush.bf16.msra.mxu0 %v1770
      %1810 = vmatpush.bf16.msra.mxu0 %v1767
      %1811 = vmatpush.bf16.msra.mxu0 %v1764
      %1812 = vmatpush.bf16.msra.mxu0 %v1761
      %1813 = vmatpush.bf16.msra.mxu0 %v1758
      %1814 = vmatpush.bf16.msra.mxu0 %v1755
      %1815 = vmatpush.bf16.msra.mxu0 %v1752
      %1816 = vmatpush.bf16.msra.mxu0 %v1749
      %1817 = vmatmul.bf16.gmra.mxu0 %v1667
      %v1818 = vpop.f32.mrf.mxu0
      %v1819 = vadd.f32 0.0, %v1818
      %v1820 = vpop.f32.mrf.mxu0
      %1821 = vdwg.mxu0
      %1822 = vmatpush.bf16.msra.mxu0 %v1771
      %1823 = vmatpush.bf16.msra.mxu0 %v1768
      %1824 = vmatpush.bf16.msra.mxu0 %v1765
      %1825 = vmatpush.bf16.msra.mxu0 %v1762
      %1826 = vmatpush.bf16.msra.mxu0 %v1759
      %1827 = vmatpush.bf16.msra.mxu0 %v1756
      %1828 = vmatpush.bf16.msra.mxu0 %v1753
      %1829 = vmatpush.bf16.msra.mxu0 %v1750
      %1830 = vmatmul.bf16.gmra.mxu0 %v1667
      %v1831 = vpop.f32.mrf.mxu0
      %v1832 = vadd.f32 0.0, %v1831
      %v1833 = vpop.f32.mrf.mxu0
      %1834 = vdwg.mxu0
      %v1836 = vrot.slane %v1806, 2
      %v1838 = vadd.f32 %v1664, %v1836
      %v1839 = vxor.u32 %v1838, 2147483648
      %v1840 = vmul.f32 %v1839, 1.442695
      %v1841 = vpow.pop %v1840
      %v1842 = vadd.f32 %v1841, 1.0
      %v1843 = vrcp.pop %v1842
      %v1844 = vmul.f32 %v1842, %v1843
      %v1845 = vsub.f32 1.0, %v1844
      %v1846 = vmul.f32 %v1843, %v1845
      %v1847 = vadd.f32 %v1843, %v1846
      %vm1848 = vweird.f32 %v1842
      %vm1849 = vweird.f32 %v1843
      %vm1850 = vmor %vm1848, %vm1849
      %v1851 = vsel %vm1850, %v1843, %v1847
      %v1852 = vand.u32 2147483647, %v1842
      %vm1853 = vcmp.eq.f32.partialorder %v1852, 8.507059e+37
      %v1854 = vand.u32 %v1842, 2147483648
      %v1855 = vor.u32 1.1754944e-38, %v1854
      %v1856 = vsel %vm1853, %v1855, %v1851
      %v1857 = vmul.f32 1.0, %v1856
      %v1859 = vrot.slane %v1819, 2
      %v1861 = vadd.f32 %v1665, %v1859
      %v1862 = vxor.u32 %v1861, 2147483648
      %v1863 = vmul.f32 %v1862, 1.442695
      %v1864 = vpow.pop %v1863
      %v1865 = vadd.f32 %v1864, 1.0
      %v1866 = vrcp.pop %v1865
      %v1867 = vmul.f32 %v1865, %v1866
      %v1868 = vsub.f32 1.0, %v1867
      %v1869 = vmul.f32 %v1866, %v1868
      %v1870 = vadd.f32 %v1866, %v1869
      %vm1871 = vweird.f32 %v1865
      %vm1872 = vweird.f32 %v1866
      %vm1873 = vmor %vm1871, %vm1872
      %v1874 = vsel %vm1873, %v1866, %v1870
      %v1875 = vand.u32 2147483647, %v1865
      %vm1876 = vcmp.eq.f32.partialorder %v1875, 8.507059e+37
      %v1877 = vand.u32 %v1865, 2147483648
      %v1878 = vor.u32 1.1754944e-38, %v1877
      %v1879 = vsel %vm1876, %v1878, %v1874
      %v1880 = vmul.f32 1.0, %v1879
      %v1881 = vadd.f32 %v1832, %v1364
      %v1883 = vrot.slane %v1881, 2
      %v1885 = vmul.f32 %v1857, %v1883
      %v1886 = vadd.f32 %v1666, %v1885
      %v1887 = vtanh.pop %v1886
      %v1888 = vsub.f32 1.0, %v1880
      %v1889 = vmul.f32 %v1888, %v1887
      %v1891 = vrot.slane %v1663, 2
      %v1893 = vmul.f32 %v1880, %v1891
      %v1894 = vadd.f32 %v1889, %v1893
      %s1895 = ssub.s32 1, %s25
      %s1896 = smul.u32 %s1895, 8
      %s1897 = sadd.s32 %s1896, 7
      %p1898 = scmp.lt.s32.totalorder %s1897, 15
      %s1899 = scalar_select %p1898, 1, 0
      %s1900 = scvt.s32.f32 %s1899
      %v1901 = vstv %s1900
      %v1902 = vmul.f32 %v1901, %v1894
      %s1903 = ssub.f32 1.0, %s1900
      %v1904 = vstv %s1903
      %v1905 = vmul.f32 %v1904, %v1663
      %v1907 = vrot.slane %v1905, 2
      %v1909 = vadd.f32 %v1902, %v1907
      %1910 = vst [vmem:[#allocation5 - $0x6] sm:$0xc0] %v1909
      %v1911 = vpack.c.bf16 %v1909, %v1909
      %1912 = vst [vmem:[%s489 + $0x4] sm:$0x8] %v1911
      %v1913 = vld [vmem:[#allocation4] sm:$0x3]
      %v1914 = vld [vmem:[#allocation2] sm:$0xc]
      %v1915 = vld [vmem:[#allocation2 + $0x8] sm:$0xc]
      %v1916 = vld [vmem:[#allocation2 + $0x10] sm:$0xc]
      %v1917 = vpack.c.bf16 %v1913, %v1913
      %1918 = vmatpush.bf16.msra.mxu0 %v1536
      %1919 = vmatpush.bf16.msra.mxu0 %v1533
      %1920 = vmatpush.bf16.msra.mxu0 %v1530
      %1921 = vmatpush.bf16.msra.mxu0 %v1527
      %1922 = vmatpush.bf16.msra.mxu0 %v1524
      %1923 = vmatpush.bf16.msra.mxu0 %v1521
      %1924 = vmatpush.bf16.msra.mxu0 %v1518
      %1925 = vmatpush.bf16.msra.mxu0 %v1515
      %1926 = vmatmul.bf16.gmra.mxu0 %v1917
      %v1927 = vpop.f32.mrf.mxu0
      %v1928 = vadd.f32 0.0, %v1927
      %v1929 = vpop.f32.mrf.mxu0
      %1930 = vdwg.mxu0
      %1931 = vmatpush.bf16.msra.mxu0 %v1537
      %1932 = vmatpush.bf16.msra.mxu0 %v1534
      %1933 = vmatpush.bf16.msra.mxu0 %v1531
      %1934 = vmatpush.bf16.msra.mxu0 %v1528
      %1935 = vmatpush.bf16.msra.mxu0 %v1525
      %1936 = vmatpush.bf16.msra.mxu0 %v1522
      %1937 = vmatpush.bf16.msra.mxu0 %v1519
      %1938 = vmatpush.bf16.msra.mxu0 %v1516
      %1939 = vmatmul.bf16.gmra.mxu0 %v1917
      %v1940 = vpop.f32.mrf.mxu0
      %v1941 = vadd.f32 0.0, %v1940
      %v1942 = vpop.f32.mrf.mxu0
      %1943 = vdwg.mxu0
      %1944 = vmatpush.bf16.msra.mxu0 %v1538
      %1945 = vmatpush.bf16.msra.mxu0 %v1535
      %1946 = vmatpush.bf16.msra.mxu0 %v1532
      %1947 = vmatpush.bf16.msra.mxu0 %v1529
      %1948 = vmatpush.bf16.msra.mxu0 %v1526
      %1949 = vmatpush.bf16.msra.mxu0 %v1523
      %1950 = vmatpush.bf16.msra.mxu0 %v1520
      %1951 = vmatpush.bf16.msra.mxu0 %v1517
      %1952 = vmatmul.bf16.gmra.mxu0 %v1917
      %v1953 = vpop.f32.mrf.mxu0
      %v1954 = vadd.f32 0.0, %v1953
      %v1955 = vpop.f32.mrf.mxu0
      %1956 = vdwg.mxu0
      %v1958 = vrot.slane %v1928, 6
      %v1960 = vadd.f32 %v1914, %v1958
      %v1961 = vxor.u32 %v1960, 2147483648
      %v1962 = vmul.f32 %v1961, 1.442695
      %v1963 = vpow.pop %v1962
      %v1964 = vadd.f32 %v1963, 1.0
      %v1965 = vrcp.pop %v1964
      %v1966 = vmul.f32 %v1964, %v1965
      %v1967 = vsub.f32 1.0, %v1966
      %v1968 = vmul.f32 %v1965, %v1967
      %v1969 = vadd.f32 %v1965, %v1968
      %vm1970 = vweird.f32 %v1964
      %vm1971 = vweird.f32 %v1965
      %vm1972 = vmor %vm1970, %vm1971
      %v1973 = vsel %vm1972, %v1965, %v1969
      %v1974 = vand.u32 2147483647, %v1964
      %vm1975 = vcmp.eq.f32.partialorder %v1974, 8.507059e+37
      %v1976 = vand.u32 %v1964, 2147483648
      %v1977 = vor.u32 1.1754944e-38, %v1976
      %v1978 = vsel %vm1975, %v1977, %v1973
      %v1979 = vmul.f32 1.0, %v1978
      %v1981 = vrot.slane %v1941, 6
      %v1983 = vadd.f32 %v1915, %v1981
      %v1984 = vxor.u32 %v1983, 2147483648
      %v1985 = vmul.f32 %v1984, 1.442695
      %v1986 = vpow.pop %v1985
      %v1987 = vadd.f32 %v1986, 1.0
      %v1988 = vrcp.pop %v1987
      %v1989 = vmul.f32 %v1987, %v1988
      %v1990 = vsub.f32 1.0, %v1989
      %v1991 = vmul.f32 %v1988, %v1990
      %v1992 = vadd.f32 %v1988, %v1991
      %vm1993 = vweird.f32 %v1987
      %vm1994 = vweird.f32 %v1988
      %vm1995 = vmor %vm1993, %vm1994
      %v1996 = vsel %vm1995, %v1988, %v1992
      %v1997 = vand.u32 2147483647, %v1987
      %vm1998 = vcmp.eq.f32.partialorder %v1997, 8.507059e+37
      %v1999 = vand.u32 %v1987, 2147483648
      %v2000 = vor.u32 1.1754944e-38, %v1999
      %v2001 = vsel %vm1998, %v2000, %v1996
      %v2002 = vmul.f32 1.0, %v2001
      %v2003 = vadd.f32 %v1954, %v1360
      %v2005 = vrot.slane %v2003, 6
      %v2007 = vmul.f32 %v1979, %v2005
      %v2008 = vadd.f32 %v1916, %v2007
      %v2009 = vtanh.pop %v2008
      %v2010 = vsub.f32 1.0, %v2002
      %v2011 = vmul.f32 %v2010, %v2009
      %v2013 = vrot.slane %v1913, 6
      %v2015 = vmul.f32 %v2002, %v2013
      %v2016 = vadd.f32 %v2011, %v2015
      %s2017 = sadd.s32 %s1650, 1
      %p2018 = scmp.lt.s32.totalorder %s2017, 15
      %s2019 = scalar_select %p2018, 1, 0
      %s2020 = scvt.s32.f32 %s2019
      %v2021 = vstv %s2020
      %v2022 = vmul.f32 %v2021, %v2016
      %s2023 = ssub.f32 1.0, %s2020
      %v2024 = vstv %s2023
      %v2025 = vmul.f32 %v2024, %v1913
      %v2027 = vrot.slane %v2025, 6
      %v2029 = vadd.f32 %v2022, %v2027
      %2030 = vst [vmem:[#allocation4 - $0x2] sm:$0xc] %v2029
      %v2031 = vpack.c.bf16 %v2029, %v2029
      %2032 = vst [vmem:[%s482] sm:$0x2] %v2031
      %v2033 = vld [vmem:[#allocation5] sm:$0x3]
      %v2034 = vld [vmem:[#allocation3 + $0x18] sm:$0x30]
      %v2035 = vld [vmem:[#allocation3 + $0x20] sm:$0x30]
      %v2036 = vld [vmem:[#allocation3 + $0x28] sm:$0x30]
      %v2037 = vpack.c.bf16 %v2033, %v2033
      %2038 = vmatpush.bf16.msra.mxu0 %v1769
      %2039 = vmatpush.bf16.msra.mxu0 %v1766
      %2040 = vmatpush.bf16.msra.mxu0 %v1763
      %2041 = vmatpush.bf16.msra.mxu0 %v1760
      %2042 = vmatpush.bf16.msra.mxu0 %v1757
      %2043 = vmatpush.bf16.msra.mxu0 %v1754
      %2044 = vmatpush.bf16.msra.mxu0 %v1751
      %2045 = vmatpush.bf16.msra.mxu0 %v1748
      %2046 = vmatmul.bf16.gmra.mxu0 %v2037
      %v2047 = vpop.f32.mrf.mxu0
      %v2048 = vadd.f32 0.0, %v2047
      %v2049 = vpop.f32.mrf.mxu0
      %2050 = vdwg.mxu0
      %2051 = vmatpush.bf16.msra.mxu0 %v1770
      %2052 = vmatpush.bf16.msra.mxu0 %v1767
      %2053 = vmatpush.bf16.msra.mxu0 %v1764
      %2054 = vmatpush.bf16.msra.mxu0 %v1761
      %2055 = vmatpush.bf16.msra.mxu0 %v1758
      %2056 = vmatpush.bf16.msra.mxu0 %v1755
      %2057 = vmatpush.bf16.msra.mxu0 %v1752
      %2058 = vmatpush.bf16.msra.mxu0 %v1749
      %2059 = vmatmul.bf16.gmra.mxu0 %v2037
      %v2060 = vpop.f32.mrf.mxu0
      %v2061 = vadd.f32 0.0, %v2060
      %v2062 = vpop.f32.mrf.mxu0
      %2063 = vdwg.mxu0
      %2064 = vmatpush.bf16.msra.mxu0 %v1771
      %2065 = vmatpush.bf16.msra.mxu0 %v1768
      %2066 = vmatpush.bf16.msra.mxu0 %v1765
      %2067 = vmatpush.bf16.msra.mxu0 %v1762
      %2068 = vmatpush.bf16.msra.mxu0 %v1759
      %2069 = vmatpush.bf16.msra.mxu0 %v1756
      %2070 = vmatpush.bf16.msra.mxu0 %v1753
      %2071 = vmatpush.bf16.msra.mxu0 %v1750
      %2072 = vmatmul.bf16.gmra.mxu0 %v2037
      %v2073 = vpop.f32.mrf.mxu0
      %v2074 = vadd.f32 0.0, %v2073
      %v2075 = vpop.f32.mrf.mxu0
      %2076 = vdwg.mxu0
      %v2078 = vrot.slane %v2048, 4
      %v2080 = vadd.f32 %v2034, %v2078
      %v2081 = vxor.u32 %v2080, 2147483648
      %v2082 = vmul.f32 %v2081, 1.442695
      %v2083 = vpow.pop %v2082
      %v2084 = vadd.f32 %v2083, 1.0
      %v2085 = vrcp.pop %v2084
      %v2086 = vmul.f32 %v2084, %v2085
      %v2087 = vsub.f32 1.0, %v2086
      %v2088 = vmul.f32 %v2085, %v2087
      %v2089 = vadd.f32 %v2085, %v2088
      %vm2090 = vweird.f32 %v2084
      %vm2091 = vweird.f32 %v2085
      %vm2092 = vmor %vm2090, %vm2091
      %v2093 = vsel %vm2092, %v2085, %v2089
      %v2094 = vand.u32 2147483647, %v2084
      %vm2095 = vcmp.eq.f32.partialorder %v2094, 8.507059e+37
      %v2096 = vand.u32 %v2084, 2147483648
      %v2097 = vor.u32 1.1754944e-38, %v2096
      %v2098 = vsel %vm2095, %v2097, %v2093
      %v2099 = vmul.f32 1.0, %v2098
      %v2101 = vrot.slane %v2061, 4
      %v2103 = vadd.f32 %v2035, %v2101
      %v2104 = vxor.u32 %v2103, 2147483648
      %v2105 = vmul.f32 %v2104, 1.442695
      %v2106 = vpow.pop %v2105
      %v2107 = vadd.f32 %v2106, 1.0
      %v2108 = vrcp.pop %v2107
      %v2109 = vmul.f32 %v2107, %v2108
      %v2110 = vsub.f32 1.0, %v2109
      %v2111 = vmul.f32 %v2108, %v2110
      %v2112 = vadd.f32 %v2108, %v2111
      %vm2113 = vweird.f32 %v2107
      %vm2114 = vweird.f32 %v2108
      %vm2115 = vmor %vm2113, %vm2114
      %v2116 = vsel %vm2115, %v2108, %v2112
      %v2117 = vand.u32 2147483647, %v2107
      %vm2118 = vcmp.eq.f32.partialorder %v2117, 8.507059e+37
      %v2119 = vand.u32 %v2107, 2147483648
      %v2120 = vor.u32 1.1754944e-38, %v2119
      %v2121 = vsel %vm2118, %v2120, %v2116
      %v2122 = vmul.f32 1.0, %v2121
      %v2123 = vadd.f32 %v2074, %v1364
      %v2125 = vrot.slane %v2123, 4
      %v2127 = vmul.f32 %v2099, %v2125
      %v2128 = vadd.f32 %v2036, %v2127
      %v2129 = vtanh.pop %v2128
      %v2130 = vsub.f32 1.0, %v2122
      %v2131 = vmul.f32 %v2130, %v2129
      %v2133 = vrot.slane %v2033, 4
      %v2135 = vmul.f32 %v2122, %v2133
      %v2136 = vadd.f32 %v2131, %v2135
      %s2137 = sadd.s32 %s1896, 6
      %p2138 = scmp.lt.s32.totalorder %s2137, 15
      %s2139 = scalar_select %p2138, 1, 0
      %s2140 = scvt.s32.f32 %s2139
      %v2141 = vstv %s2140
      %v2142 = vmul.f32 %v2141, %v2136
      %s2143 = ssub.f32 1.0, %s2140
      %v2144 = vstv %s2143
      %v2145 = vmul.f32 %v2144, %v2033
      %v2147 = vrot.slane %v2145, 4
      %v2149 = vadd.f32 %v2142, %v2147
      %2150 = vst [vmem:[#allocation5 - $0x4] sm:$0x30] %v2149
      %v2151 = vpack.c.bf16 %v2149, %v2149
      %2152 = vst [vmem:[%s489 + $0x4] sm:$0x4] %v2151
      %v2153 = vld [vmem:[#allocation4] sm:$0x3]
      %v2154 = vld [vmem:[#allocation2] sm:$0x30]
      %v2155 = vld [vmem:[#allocation2 + $0x8] sm:$0x30]
      %v2156 = vld [vmem:[#allocation2 + $0x10] sm:$0x30]
      %v2157 = vpack.c.bf16 %v2153, %v2153
      %2158 = vmatpush.bf16.msra.mxu0 %v1536
      %2159 = vmatpush.bf16.msra.mxu0 %v1533
      %2160 = vmatpush.bf16.msra.mxu0 %v1530
      %2161 = vmatpush.bf16.msra.mxu0 %v1527
      %2162 = vmatpush.bf16.msra.mxu0 %v1524
      %2163 = vmatpush.bf16.msra.mxu0 %v1521
      %2164 = vmatpush.bf16.msra.mxu0 %v1518
      %2165 = vmatpush.bf16.msra.mxu0 %v1515
      %2166 = vmatmul.bf16.gmra.mxu0 %v2157
      %v2167 = vpop.f32.mrf.mxu0
      %v2168 = vadd.f32 0.0, %v2167
      %v2169 = vpop.f32.mrf.mxu0
      %2170 = vdwg.mxu0
      %2171 = vmatpush.bf16.msra.mxu0 %v1537
      %2172 = vmatpush.bf16.msra.mxu0 %v1534
      %2173 = vmatpush.bf16.msra.mxu0 %v1531
      %2174 = vmatpush.bf16.msra.mxu0 %v1528
      %2175 = vmatpush.bf16.msra.mxu0 %v1525
      %2176 = vmatpush.bf16.msra.mxu0 %v1522
      %2177 = vmatpush.bf16.msra.mxu0 %v1519
      %2178 = vmatpush.bf16.msra.mxu0 %v1516
      %2179 = vmatmul.bf16.gmra.mxu0 %v2157
      %v2180 = vpop.f32.mrf.mxu0
      %v2181 = vadd.f32 0.0, %v2180
      %v2182 = vpop.f32.mrf.mxu0
      %2183 = vdwg.mxu0
      %2184 = vmatpush.bf16.msra.mxu0 %v1538
      %2185 = vmatpush.bf16.msra.mxu0 %v1535
      %2186 = vmatpush.bf16.msra.mxu0 %v1532
      %2187 = vmatpush.bf16.msra.mxu0 %v1529
      %2188 = vmatpush.bf16.msra.mxu0 %v1526
      %2189 = vmatpush.bf16.msra.mxu0 %v1523
      %2190 = vmatpush.bf16.msra.mxu0 %v1520
      %2191 = vmatpush.bf16.msra.mxu0 %v1517
      %2192 = vmatmul.bf16.gmra.mxu0 %v2157
      %v2193 = vpop.f32.mrf.mxu0
      %v2194 = vadd.f32 0.0, %v2193
      %v2195 = vpop.f32.mrf.mxu0
      %2196 = vdwg.mxu0
      %v2198 = vrot.slane %v2168, 4
      %v2200 = vadd.f32 %v2154, %v2198
      %v2201 = vxor.u32 %v2200, 2147483648
      %v2202 = vmul.f32 %v2201, 1.442695
      %v2203 = vpow.pop %v2202
      %v2204 = vadd.f32 %v2203, 1.0
      %v2205 = vrcp.pop %v2204
      %v2206 = vmul.f32 %v2204, %v2205
      %v2207 = vsub.f32 1.0, %v2206
      %v2208 = vmul.f32 %v2205, %v2207
      %v2209 = vadd.f32 %v2205, %v2208
      %vm2210 = vweird.f32 %v2204
      %vm2211 = vweird.f32 %v2205
      %vm2212 = vmor %vm2210, %vm2211
      %v2213 = vsel %vm2212, %v2205, %v2209
      %v2214 = vand.u32 2147483647, %v2204
      %vm2215 = vcmp.eq.f32.partialorder %v2214, 8.507059e+37
      %v2216 = vand.u32 %v2204, 2147483648
      %v2217 = vor.u32 1.1754944e-38, %v2216
      %v2218 = vsel %vm2215, %v2217, %v2213
      %v2219 = vmul.f32 1.0, %v2218
      %v2221 = vrot.slane %v2181, 4
      %v2223 = vadd.f32 %v2155, %v2221
      %v2224 = vxor.u32 %v2223, 2147483648
      %v2225 = vmul.f32 %v2224, 1.442695
      %v2226 = vpow.pop %v2225
      %v2227 = vadd.f32 %v2226, 1.0
      %v2228 = vrcp.pop %v2227
      %v2229 = vmul.f32 %v2227, %v2228
      %v2230 = vsub.f32 1.0, %v2229
      %v2231 = vmul.f32 %v2228, %v2230
      %v2232 = vadd.f32 %v2228, %v2231
      %vm2233 = vweird.f32 %v2227
      %vm2234 = vweird.f32 %v2228
      %vm2235 = vmor %vm2233, %vm2234
      %v2236 = vsel %vm2235, %v2228, %v2232
      %v2237 = vand.u32 2147483647, %v2227
      %vm2238 = vcmp.eq.f32.partialorder %v2237, 8.507059e+37
      %v2239 = vand.u32 %v2227, 2147483648
      %v2240 = vor.u32 1.1754944e-38, %v2239
      %v2241 = vsel %vm2238, %v2240, %v2236
      %v2242 = vmul.f32 1.0, %v2241
      %v2243 = vadd.f32 %v2194, %v1360
      %v2245 = vrot.slane %v2243, 4
      %v2247 = vmul.f32 %v2219, %v2245
      %v2248 = vadd.f32 %v2156, %v2247
      %v2249 = vtanh.pop %v2248
      %v2250 = vsub.f32 1.0, %v2242
      %v2251 = vmul.f32 %v2250, %v2249
      %v2253 = vrot.slane %v2153, 4
      %v2255 = vmul.f32 %v2242, %v2253
      %v2256 = vadd.f32 %v2251, %v2255
      %s2257 = sadd.s32 %s1650, 2
      %p2258 = scmp.lt.s32.totalorder %s2257, 15
      %s2259 = scalar_select %p2258, 1, 0
      %s2260 = scvt.s32.f32 %s2259
      %v2261 = vstv %s2260
      %v2262 = vmul.f32 %v2261, %v2256
      %s2263 = ssub.f32 1.0, %s2260
      %v2264 = vstv %s2263
      %v2265 = vmul.f32 %v2264, %v2153
      %v2267 = vrot.slane %v2265, 4
      %v2269 = vadd.f32 %v2262, %v2267
      %2270 = vst [vmem:[#allocation4 - $0x4] sm:$0x30] %v2269
      %v2271 = vpack.c.bf16 %v2269, %v2269
      %2272 = vst [vmem:[%s482] sm:$0x4] %v2271
      %v2273 = vld [vmem:[#allocation5] sm:$0x3]
      %v2274 = vld [vmem:[#allocation3 + $0x18] sm:$0xc]
      %v2275 = vld [vmem:[#allocation3 + $0x20] sm:$0xc]
      %v2276 = vld [vmem:[#allocation3 + $0x28] sm:$0xc]
      %v2277 = vpack.c.bf16 %v2273, %v2273
      %2278 = vmatpush.bf16.msra.mxu0 %v1769
      %2279 = vmatpush.bf16.msra.mxu0 %v1766
      %2280 = vmatpush.bf16.msra.mxu0 %v1763
      %2281 = vmatpush.bf16.msra.mxu0 %v1760
      %2282 = vmatpush.bf16.msra.mxu0 %v1757
      %2283 = vmatpush.bf16.msra.mxu0 %v1754
      %2284 = vmatpush.bf16.msra.mxu0 %v1751
      %2285 = vmatpush.bf16.msra.mxu0 %v1748
      %2286 = vmatmul.bf16.gmra.mxu0 %v2277
      %v2287 = vpop.f32.mrf.mxu0
      %v2288 = vadd.f32 0.0, %v2287
      %v2289 = vpop.f32.mrf.mxu0
      %2290 = vdwg.mxu0
      %2291 = vmatpush.bf16.msra.mxu0 %v1770
      %2292 = vmatpush.bf16.msra.mxu0 %v1767
      %2293 = vmatpush.bf16.msra.mxu0 %v1764
      %2294 = vmatpush.bf16.msra.mxu0 %v1761
      %2295 = vmatpush.bf16.msra.mxu0 %v1758
      %2296 = vmatpush.bf16.msra.mxu0 %v1755
      %2297 = vmatpush.bf16.msra.mxu0 %v1752
      %2298 = vmatpush.bf16.msra.mxu0 %v1749
      %2299 = vmatmul.bf16.gmra.mxu0 %v2277
      %v2300 = vpop.f32.mrf.mxu0
      %v2301 = vadd.f32 0.0, %v2300
      %v2302 = vpop.f32.mrf.mxu0
      %2303 = vdwg.mxu0
      %2304 = vmatpush.bf16.msra.mxu0 %v1771
      %2305 = vmatpush.bf16.msra.mxu0 %v1768
      %2306 = vmatpush.bf16.msra.mxu0 %v1765
      %2307 = vmatpush.bf16.msra.mxu0 %v1762
      %2308 = vmatpush.bf16.msra.mxu0 %v1759
      %2309 = vmatpush.bf16.msra.mxu0 %v1756
      %2310 = vmatpush.bf16.msra.mxu0 %v1753
      %2311 = vmatpush.bf16.msra.mxu0 %v1750
      %2312 = vmatmul.bf16.gmra.mxu0 %v2277
      %v2313 = vpop.f32.mrf.mxu0
      %v2314 = vadd.f32 0.0, %v2313
      %v2315 = vpop.f32.mrf.mxu0
      %2316 = vdwg.mxu0
      %v2318 = vrot.slane %v2288, 6
      %v2320 = vadd.f32 %v2274, %v2318
      %v2321 = vxor.u32 %v2320, 2147483648
      %v2322 = vmul.f32 %v2321, 1.442695
      %v2323 = vpow.pop %v2322
      %v2324 = vadd.f32 %v2323, 1.0
      %v2325 = vrcp.pop %v2324
      %v2326 = vmul.f32 %v2324, %v2325
      %v2327 = vsub.f32 1.0, %v2326
      %v2328 = vmul.f32 %v2325, %v2327
      %v2329 = vadd.f32 %v2325, %v2328
      %vm2330 = vweird.f32 %v2324
      %vm2331 = vweird.f32 %v2325
      %vm2332 = vmor %vm2330, %vm2331
      %v2333 = vsel %vm2332, %v2325, %v2329
      %v2334 = vand.u32 2147483647, %v2324
      %vm2335 = vcmp.eq.f32.partialorder %v2334, 8.507059e+37
      %v2336 = vand.u32 %v2324, 2147483648
      %v2337 = vor.u32 1.1754944e-38, %v2336
      %v2338 = vsel %vm2335, %v2337, %v2333
      %v2339 = vmul.f32 1.0, %v2338
      %v2341 = vrot.slane %v2301, 6
      %v2343 = vadd.f32 %v2275, %v2341
      %v2344 = vxor.u32 %v2343, 2147483648
      %v2345 = vmul.f32 %v2344, 1.442695
      %v2346 = vpow.pop %v2345
      %v2347 = vadd.f32 %v2346, 1.0
      %v2348 = vrcp.pop %v2347
      %v2349 = vmul.f32 %v2347, %v2348
      %v2350 = vsub.f32 1.0, %v2349
      %v2351 = vmul.f32 %v2348, %v2350
      %v2352 = vadd.f32 %v2348, %v2351
      %vm2353 = vweird.f32 %v2347
      %vm2354 = vweird.f32 %v2348
      %vm2355 = vmor %vm2353, %vm2354
      %v2356 = vsel %vm2355, %v2348, %v2352
      %v2357 = vand.u32 2147483647, %v2347
      %vm2358 = vcmp.eq.f32.partialorder %v2357, 8.507059e+37
      %v2359 = vand.u32 %v2347, 2147483648
      %v2360 = vor.u32 1.1754944e-38, %v2359
      %v2361 = vsel %vm2358, %v2360, %v2356
      %v2362 = vmul.f32 1.0, %v2361
      %v2363 = vadd.f32 %v2314, %v1364
      %v2365 = vrot.slane %v2363, 6
      %v2367 = vmul.f32 %v2339, %v2365
      %v2368 = vadd.f32 %v2276, %v2367
      %v2369 = vtanh.pop %v2368
      %v2370 = vsub.f32 1.0, %v2362
      %v2371 = vmul.f32 %v2370, %v2369
      %v2373 = vrot.slane %v2273, 6
      %v2375 = vmul.f32 %v2362, %v2373
      %v2376 = vadd.f32 %v2371, %v2375
      %s2377 = sadd.s32 %s1896, 5
      %p2378 = scmp.lt.s32.totalorder %s2377, 15
      %s2379 = scalar_select %p2378, 1, 0
      %s2380 = scvt.s32.f32 %s2379
      %v2381 = vstv %s2380
      %v2382 = vmul.f32 %v2381, %v2376
      %s2383 = ssub.f32 1.0, %s2380
      %v2384 = vstv %s2383
      %v2385 = vmul.f32 %v2384, %v2273
      %v2387 = vrot.slane %v2385, 6
      %v2389 = vadd.f32 %v2382, %v2387
      %2390 = vst [vmem:[#allocation5 - $0x2] sm:$0xc] %v2389
      %v2391 = vpack.c.bf16 %v2389, %v2389
      %2392 = vst [vmem:[%s489 + $0x4] sm:$0x2] %v2391
      %v2393 = vld [vmem:[#allocation4] sm:$0x3]
      %v2394 = vld [vmem:[#allocation2] sm:$0xc0]
      %v2395 = vld [vmem:[#allocation2 + $0x8] sm:$0xc0]
      %v2396 = vld [vmem:[#allocation2 + $0x10] sm:$0xc0]
      %v2397 = vpack.c.bf16 %v2393, %v2393
      %2398 = vmatpush.bf16.msra.mxu0 %v1536
      %2399 = vmatpush.bf16.msra.mxu0 %v1533
      %2400 = vmatpush.bf16.msra.mxu0 %v1530
      %2401 = vmatpush.bf16.msra.mxu0 %v1527
      %2402 = vmatpush.bf16.msra.mxu0 %v1524
      %2403 = vmatpush.bf16.msra.mxu0 %v1521
      %2404 = vmatpush.bf16.msra.mxu0 %v1518
      %2405 = vmatpush.bf16.msra.mxu0 %v1515
      %2406 = vmatmul.bf16.gmra.mxu0 %v2397
      %v2407 = vpop.f32.mrf.mxu0
      %v2408 = vadd.f32 0.0, %v2407
      %v2409 = vpop.f32.mrf.mxu0
      %2410 = vdwg.mxu0
      %2411 = vmatpush.bf16.msra.mxu0 %v1537
      %2412 = vmatpush.bf16.msra.mxu0 %v1534
      %2413 = vmatpush.bf16.msra.mxu0 %v1531
      %2414 = vmatpush.bf16.msra.mxu0 %v1528
      %2415 = vmatpush.bf16.msra.mxu0 %v1525
      %2416 = vmatpush.bf16.msra.mxu0 %v1522
      %2417 = vmatpush.bf16.msra.mxu0 %v1519
      %2418 = vmatpush.bf16.msra.mxu0 %v1516
      %2419 = vmatmul.bf16.gmra.mxu0 %v2397
      %v2420 = vpop.f32.mrf.mxu0
      %v2421 = vadd.f32 0.0, %v2420
      %v2422 = vpop.f32.mrf.mxu0
      %2423 = vdwg.mxu0
      %2424 = vmatpush.bf16.msra.mxu0 %v1538
      %2425 = vmatpush.bf16.msra.mxu0 %v1535
      %2426 = vmatpush.bf16.msra.mxu0 %v1532
      %2427 = vmatpush.bf16.msra.mxu0 %v1529
      %2428 = vmatpush.bf16.msra.mxu0 %v1526
      %2429 = vmatpush.bf16.msra.mxu0 %v1523
      %2430 = vmatpush.bf16.msra.mxu0 %v1520
      %2431 = vmatpush.bf16.msra.mxu0 %v1517
      %2432 = vmatmul.bf16.gmra.mxu0 %v2397
      %v2433 = vpop.f32.mrf.mxu0
      %v2434 = vadd.f32 0.0, %v2433
      %v2435 = vpop.f32.mrf.mxu0
      %2436 = vdwg.mxu0
      %v2438 = vrot.slane %v2408, 2
      %v2440 = vadd.f32 %v2394, %v2438
      %v2441 = vxor.u32 %v2440, 2147483648
      %v2442 = vmul.f32 %v2441, 1.442695
      %v2443 = vpow.pop %v2442
      %v2444 = vadd.f32 %v2443, 1.0
      %v2445 = vrcp.pop %v2444
      %v2446 = vmul.f32 %v2444, %v2445
      %v2447 = vsub.f32 1.0, %v2446
      %v2448 = vmul.f32 %v2445, %v2447
      %v2449 = vadd.f32 %v2445, %v2448
      %vm2450 = vweird.f32 %v2444
      %vm2451 = vweird.f32 %v2445
      %vm2452 = vmor %vm2450, %vm2451
      %v2453 = vsel %vm2452, %v2445, %v2449
      %v2454 = vand.u32 2147483647, %v2444
      %vm2455 = vcmp.eq.f32.partialorder %v2454, 8.507059e+37
      %v2456 = vand.u32 %v2444, 2147483648
      %v2457 = vor.u32 1.1754944e-38, %v2456
      %v2458 = vsel %vm2455, %v2457, %v2453
      %v2459 = vmul.f32 1.0, %v2458
      %v2461 = vrot.slane %v2421, 2
      %v2463 = vadd.f32 %v2395, %v2461
      %v2464 = vxor.u32 %v2463, 2147483648
      %v2465 = vmul.f32 %v2464, 1.442695
      %v2466 = vpow.pop %v2465
      %v2467 = vadd.f32 %v2466, 1.0
      %v2468 = vrcp.pop %v2467
      %v2469 = vmul.f32 %v2467, %v2468
      %v2470 = vsub.f32 1.0, %v2469
      %v2471 = vmul.f32 %v2468, %v2470
      %v2472 = vadd.f32 %v2468, %v2471
      %vm2473 = vweird.f32 %v2467
      %vm2474 = vweird.f32 %v2468
      %vm2475 = vmor %vm2473, %vm2474
      %v2476 = vsel %vm2475, %v2468, %v2472
      %v2477 = vand.u32 2147483647, %v2467
      %vm2478 = vcmp.eq.f32.partialorder %v2477, 8.507059e+37
      %v2479 = vand.u32 %v2467, 2147483648
      %v2480 = vor.u32 1.1754944e-38, %v2479
      %v2481 = vsel %vm2478, %v2480, %v2476
      %v2482 = vmul.f32 1.0, %v2481
      %v2483 = vadd.f32 %v2434, %v1360
      %v2485 = vrot.slane %v2483, 2
      %v2487 = vmul.f32 %v2459, %v2485
      %v2488 = vadd.f32 %v2396, %v2487
      %v2489 = vtanh.pop %v2488
      %v2490 = vsub.f32 1.0, %v2482
      %v2491 = vmul.f32 %v2490, %v2489
      %v2493 = vrot.slane %v2393, 2
      %v2495 = vmul.f32 %v2482, %v2493
      %v2496 = vadd.f32 %v2491, %v2495
      %s2497 = sadd.s32 %s1650, 3
      %p2498 = scmp.lt.s32.totalorder %s2497, 15
      %s2499 = scalar_select %p2498, 1, 0
      %s2500 = scvt.s32.f32 %s2499
      %v2501 = vstv %s2500
      %v2502 = vmul.f32 %v2501, %v2496
      %s2503 = ssub.f32 1.0, %s2500
      %v2504 = vstv %s2503
      %v2505 = vmul.f32 %v2504, %v2393
      %v2507 = vrot.slane %v2505, 2
      %v2509 = vadd.f32 %v2502, %v2507
      %2510 = vst [vmem:[#allocation4 - $0x6] sm:$0xc0] %v2509
      %v2511 = vpack.c.bf16 %v2509, %v2509
      %2512 = vst [vmem:[%s482] sm:$0x8] %v2511
      %v2513 = vld [vmem:[#allocation5] sm:$0x3]
      %v2514 = vld [vmem:[#allocation3 + $0x18] sm:$0x3]
      %v2515 = vld [vmem:[#allocation3 + $0x20] sm:$0x3]
      %v2516 = vld [vmem:[#allocation3 + $0x28] sm:$0x3]
      %v2517 = vpack.c.bf16 %v2513, %v2513
      %2518 = vmatpush.bf16.msra.mxu0 %v1769
      %2519 = vmatpush.bf16.msra.mxu0 %v1766
      %2520 = vmatpush.bf16.msra.mxu0 %v1763
      %2521 = vmatpush.bf16.msra.mxu0 %v1760
      %2522 = vmatpush.bf16.msra.mxu0 %v1757
      %2523 = vmatpush.bf16.msra.mxu0 %v1754
      %2524 = vmatpush.bf16.msra.mxu0 %v1751
      %2525 = vmatpush.bf16.msra.mxu0 %v1748
      %2526 = vmatmul.bf16.gmra.mxu0 %v2517
      %v2527 = vpop.f32.mrf.mxu0
      %v2528 = vadd.f32 0.0, %v2527
      %v2529 = vpop.f32.mrf.mxu0
      %2530 = vdwg.mxu0
      %2531 = vmatpush.bf16.msra.mxu0 %v1770
      %2532 = vmatpush.bf16.msra.mxu0 %v1767
      %2533 = vmatpush.bf16.msra.mxu0 %v1764
      %2534 = vmatpush.bf16.msra.mxu0 %v1761
      %2535 = vmatpush.bf16.msra.mxu0 %v1758
      %2536 = vmatpush.bf16.msra.mxu0 %v1755
      %2537 = vmatpush.bf16.msra.mxu0 %v1752
      %2538 = vmatpush.bf16.msra.mxu0 %v1749
      %2539 = vmatmul.bf16.gmra.mxu0 %v2517
      %v2540 = vpop.f32.mrf.mxu0
      %v2541 = vadd.f32 0.0, %v2540
      %v2542 = vpop.f32.mrf.mxu0
      %2543 = vdwg.mxu0
      %2544 = vmatpush.bf16.msra.mxu0 %v1771
      %2545 = vmatpush.bf16.msra.mxu0 %v1768
      %2546 = vmatpush.bf16.msra.mxu0 %v1765
      %2547 = vmatpush.bf16.msra.mxu0 %v1762
      %2548 = vmatpush.bf16.msra.mxu0 %v1759
      %2549 = vmatpush.bf16.msra.mxu0 %v1756
      %2550 = vmatpush.bf16.msra.mxu0 %v1753
      %2551 = vmatpush.bf16.msra.mxu0 %v1750
      %2552 = vmatmul.bf16.gmra.mxu0 %v2517
      %v2553 = vpop.f32.mrf.mxu0
      %v2554 = vadd.f32 0.0, %v2553
      %v2555 = vpop.f32.mrf.mxu0
      %2556 = vdwg.mxu0
      %v2557 = vadd.f32 %v2514, %v2528
      %v2558 = vxor.u32 %v2557, 2147483648
      %v2559 = vmul.f32 %v2558, 1.442695
      %v2560 = vpow.pop %v2559
      %v2561 = vadd.f32 %v2560, 1.0
      %v2562 = vrcp.pop %v2561
      %v2563 = vmul.f32 %v2561, %v2562
      %v2564 = vsub.f32 1.0, %v2563
      %v2565 = vmul.f32 %v2562, %v2564
      %v2566 = vadd.f32 %v2562, %v2565
      %vm2567 = vweird.f32 %v2561
      %vm2568 = vweird.f32 %v2562
      %vm2569 = vmor %vm2567, %vm2568
      %v2570 = vsel %vm2569, %v2562, %v2566
      %v2571 = vand.u32 2147483647, %v2561
      %vm2572 = vcmp.eq.f32.partialorder %v2571, 8.507059e+37
      %v2573 = vand.u32 %v2561, 2147483648
      %v2574 = vor.u32 1.1754944e-38, %v2573
      %v2575 = vsel %vm2572, %v2574, %v2570
      %v2576 = vmul.f32 1.0, %v2575
      %v2577 = vadd.f32 %v2515, %v2541
      %v2578 = vxor.u32 %v2577, 2147483648
      %v2579 = vmul.f32 %v2578, 1.442695
      %v2580 = vpow.pop %v2579
      %v2581 = vadd.f32 %v2580, 1.0
      %v2582 = vrcp.pop %v2581
      %v2583 = vmul.f32 %v2581, %v2582
      %v2584 = vsub.f32 1.0, %v2583
      %v2585 = vmul.f32 %v2582, %v2584
      %v2586 = vadd.f32 %v2582, %v2585
      %vm2587 = vweird.f32 %v2581
      %vm2588 = vweird.f32 %v2582
      %vm2589 = vmor %vm2587, %vm2588
      %v2590 = vsel %vm2589, %v2582, %v2586
      %v2591 = vand.u32 2147483647, %v2581
      %vm2592 = vcmp.eq.f32.partialorder %v2591, 8.507059e+37
      %v2593 = vand.u32 %v2581, 2147483648
      %v2594 = vor.u32 1.1754944e-38, %v2593
      %v2595 = vsel %vm2592, %v2594, %v2590
      %v2596 = vmul.f32 1.0, %v2595
      %v2597 = vadd.f32 %v2554, %v1364
      %v2598 = vmul.f32 %v2576, %v2597
      %v2599 = vadd.f32 %v2516, %v2598
      %v2600 = vtanh.pop %v2599
      %v2601 = vsub.f32 1.0, %v2596
      %v2602 = vmul.f32 %v2601, %v2600
      %v2603 = vmul.f32 %v2596, %v2513
      %v2604 = vadd.f32 %v2602, %v2603
      %s2605 = sadd.s32 %s1896, 4
      %p2606 = scmp.lt.s32.totalorder %s2605, 15
      %s2607 = scalar_select %p2606, 1, 0
      %s2608 = scvt.s32.f32 %s2607
      %v2609 = vstv %s2608
      %v2610 = vmul.f32 %v2609, %v2604
      %s2611 = ssub.f32 1.0, %s2608
      %v2612 = vstv %s2611
      %v2613 = vmul.f32 %v2612, %v2513
      %v2614 = vadd.f32 %v2610, %v2613
      %2615 = vst [vmem:[#allocation5] sm:$0x3] %v2614
      %v2616 = vpack.c.bf16 %v2614, %v2614
      %2617 = vst [vmem:[%s489 + $0x4] sm:$0x1] %v2616
      %v2618 = vld [vmem:[#allocation4] sm:$0x3]
      %v2619 = vld [vmem:[#allocation2 + $0x18] sm:$0x3]
      %v2620 = vld [vmem:[#allocation2 + $0x20] sm:$0x3]
      %v2621 = vld [vmem:[#allocation2 + $0x28] sm:$0x3]
      %v2622 = vpack.c.bf16 %v2618, %v2618
      %2623 = vmatpush.bf16.msra.mxu0 %v1536
      %2624 = vmatpush.bf16.msra.mxu0 %v1533
      %2625 = vmatpush.bf16.msra.mxu0 %v1530
      %2626 = vmatpush.bf16.msra.mxu0 %v1527
      %2627 = vmatpush.bf16.msra.mxu0 %v1524
      %2628 = vmatpush.bf16.msra.mxu0 %v1521
      %2629 = vmatpush.bf16.msra.mxu0 %v1518
      %2630 = vmatpush.bf16.msra.mxu0 %v1515
      %2631 = vmatmul.bf16.gmra.mxu0 %v2622
      %v2632 = vpop.f32.mrf.mxu0
      %v2633 = vadd.f32 0.0, %v2632
      %v2634 = vpop.f32.mrf.mxu0
      %2635 = vdwg.mxu0
      %2636 = vmatpush.bf16.msra.mxu0 %v1537
      %2637 = vmatpush.bf16.msra.mxu0 %v1534
      %2638 = vmatpush.bf16.msra.mxu0 %v1531
      %2639 = vmatpush.bf16.msra.mxu0 %v1528
      %2640 = vmatpush.bf16.msra.mxu0 %v1525
      %2641 = vmatpush.bf16.msra.mxu0 %v1522
      %2642 = vmatpush.bf16.msra.mxu0 %v1519
      %2643 = vmatpush.bf16.msra.mxu0 %v1516
      %2644 = vmatmul.bf16.gmra.mxu0 %v2622
      %v2645 = vpop.f32.mrf.mxu0
      %v2646 = vadd.f32 0.0, %v2645
      %v2647 = vpop.f32.mrf.mxu0
      %2648 = vdwg.mxu0
      %2649 = vmatpush.bf16.msra.mxu0 %v1538
      %2650 = vmatpush.bf16.msra.mxu0 %v1535
      %2651 = vmatpush.bf16.msra.mxu0 %v1532
      %2652 = vmatpush.bf16.msra.mxu0 %v1529
      %2653 = vmatpush.bf16.msra.mxu0 %v1526
      %2654 = vmatpush.bf16.msra.mxu0 %v1523
      %2655 = vmatpush.bf16.msra.mxu0 %v1520
      %2656 = vmatpush.bf16.msra.mxu0 %v1517
      %2657 = vmatmul.bf16.gmra.mxu0 %v2622
      %v2658 = vpop.f32.mrf.mxu0
      %v2659 = vadd.f32 0.0, %v2658
      %v2660 = vpop.f32.mrf.mxu0
      %2661 = vdwg.mxu0
      %v2662 = vadd.f32 %v2619, %v2633
      %v2663 = vxor.u32 %v2662, 2147483648
      %v2664 = vmul.f32 %v2663, 1.442695
      %v2665 = vpow.pop %v2664
      %v2666 = vadd.f32 %v2665, 1.0
      %v2667 = vrcp.pop %v2666
      %v2668 = vmul.f32 %v2666, %v2667
      %v2669 = vsub.f32 1.0, %v2668
      %v2670 = vmul.f32 %v2667, %v2669
      %v2671 = vadd.f32 %v2667, %v2670
      %vm2672 = vweird.f32 %v2666
      %vm2673 = vweird.f32 %v2667
      %vm2674 = vmor %vm2672, %vm2673
      %v2675 = vsel %vm2674, %v2667, %v2671
      %v2676 = vand.u32 2147483647, %v2666
      %vm2677 = vcmp.eq.f32.partialorder %v2676, 8.507059e+37
      %v2678 = vand.u32 %v2666, 2147483648
      %v2679 = vor.u32 1.1754944e-38, %v2678
      %v2680 = vsel %vm2677, %v2679, %v2675
      %v2681 = vmul.f32 1.0, %v2680
      %v2682 = vadd.f32 %v2620, %v2646
      %v2683 = vxor.u32 %v2682, 2147483648
      %v2684 = vmul.f32 %v2683, 1.442695
      %v2685 = vpow.pop %v2684
      %v2686 = vadd.f32 %v2685, 1.0
      %v2687 = vrcp.pop %v2686
      %v2688 = vmul.f32 %v2686, %v2687
      %v2689 = vsub.f32 1.0, %v2688
      %v2690 = vmul.f32 %v2687, %v2689
      %v2691 = vadd.f32 %v2687, %v2690
      %vm2692 = vweird.f32 %v2686
      %vm2693 = vweird.f32 %v2687
      %vm2694 = vmor %vm2692, %vm2693
      %v2695 = vsel %vm2694, %v2687, %v2691
      %v2696 = vand.u32 2147483647, %v2686
      %vm2697 = vcmp.eq.f32.partialorder %v2696, 8.507059e+37
      %v2698 = vand.u32 %v2686, 2147483648
      %v2699 = vor.u32 1.1754944e-38, %v2698
      %v2700 = vsel %vm2697, %v2699, %v2695
      %v2701 = vmul.f32 1.0, %v2700
      %v2702 = vadd.f32 %v2659, %v1360
      %v2703 = vmul.f32 %v2681, %v2702
      %v2704 = vadd.f32 %v2621, %v2703
      %v2705 = vtanh.pop %v2704
      %v2706 = vsub.f32 1.0, %v2701
      %v2707 = vmul.f32 %v2706, %v2705
      %v2708 = vmul.f32 %v2701, %v2618
      %v2709 = vadd.f32 %v2707, %v2708
      %s2710 = sadd.s32 %s1650, 4
      %p2711 = scmp.lt.s32.totalorder %s2710, 15
      %s2712 = scalar_select %p2711, 1, 0
      %s2713 = scvt.s32.f32 %s2712
      %v2714 = vstv %s2713
      %v2715 = vmul.f32 %v2714, %v2709
      %s2716 = ssub.f32 1.0, %s2713
      %v2717 = vstv %s2716
      %v2718 = vmul.f32 %v2717, %v2618
      %v2719 = vadd.f32 %v2715, %v2718
      %2720 = vst [vmem:[#allocation4] sm:$0x3] %v2719
      %v2721 = vpack.c.bf16 %v2719, %v2719
      %2722 = vst [vmem:[%s482 + $0x4] sm:$0x1] %v2721
      %v2723 = vld [vmem:[#allocation5] sm:$0x3]
      %v2724 = vld [vmem:[#allocation3] sm:$0xc0]
      %v2725 = vld [vmem:[#allocation3 + $0x8] sm:$0xc0]
      %v2726 = vld [vmem:[#allocation3 + $0x10] sm:$0xc0]
      %v2727 = vpack.c.bf16 %v2723, %v2723
      %2728 = vmatpush.bf16.msra.mxu0 %v1769
      %2729 = vmatpush.bf16.msra.mxu0 %v1766
      %2730 = vmatpush.bf16.msra.mxu0 %v1763
      %2731 = vmatpush.bf16.msra.mxu0 %v1760
      %2732 = vmatpush.bf16.msra.mxu0 %v1757
      %2733 = vmatpush.bf16.msra.mxu0 %v1754
      %2734 = vmatpush.bf16.msra.mxu0 %v1751
      %2735 = vmatpush.bf16.msra.mxu0 %v1748
      %2736 = vmatmul.bf16.gmra.mxu0 %v2727
      %v2737 = vpop.f32.mrf.mxu0
      %v2738 = vadd.f32 0.0, %v2737
      %v2739 = vpop.f32.mrf.mxu0
      %2740 = vdwg.mxu0
      %2741 = vmatpush.bf16.msra.mxu0 %v1770
      %2742 = vmatpush.bf16.msra.mxu0 %v1767
      %2743 = vmatpush.bf16.msra.mxu0 %v1764
      %2744 = vmatpush.bf16.msra.mxu0 %v1761
      %2745 = vmatpush.bf16.msra.mxu0 %v1758
      %2746 = vmatpush.bf16.msra.mxu0 %v1755
      %2747 = vmatpush.bf16.msra.mxu0 %v1752
      %2748 = vmatpush.bf16.msra.mxu0 %v1749
      %2749 = vmatmul.bf16.gmra.mxu0 %v2727
      %v2750 = vpop.f32.mrf.mxu0
      %v2751 = vadd.f32 0.0, %v2750
      %v2752 = vpop.f32.mrf.mxu0
      %2753 = vdwg.mxu0
      %2754 = vmatpush.bf16.msra.mxu0 %v1771
      %2755 = vmatpush.bf16.msra.mxu0 %v1768
      %2756 = vmatpush.bf16.msra.mxu0 %v1765
      %2757 = vmatpush.bf16.msra.mxu0 %v1762
      %2758 = vmatpush.bf16.msra.mxu0 %v1759
      %2759 = vmatpush.bf16.msra.mxu0 %v1756
      %2760 = vmatpush.bf16.msra.mxu0 %v1753
      %2761 = vmatpush.bf16.msra.mxu0 %v1750
      %2762 = vmatmul.bf16.gmra.mxu0 %v2727
      %v2763 = vpop.f32.mrf.mxu0
      %v2764 = vadd.f32 0.0, %v2763
      %v2765 = vpop.f32.mrf.mxu0
      %2766 = vdwg.mxu0
      %v2768 = vrot.slane %v2738, 2
      %v2770 = vadd.f32 %v2724, %v2768
      %v2771 = vxor.u32 %v2770, 2147483648
      %v2772 = vmul.f32 %v2771, 1.442695
      %v2773 = vpow.pop %v2772
      %v2774 = vadd.f32 %v2773, 1.0
      %v2775 = vrcp.pop %v2774
      %v2776 = vmul.f32 %v2774, %v2775
      %v2777 = vsub.f32 1.0, %v2776
      %v2778 = vmul.f32 %v2775, %v2777
      %v2779 = vadd.f32 %v2775, %v2778
      %vm2780 = vweird.f32 %v2774
      %vm2781 = vweird.f32 %v2775
      %vm2782 = vmor %vm2780, %vm2781
      %v2783 = vsel %vm2782, %v2775, %v2779
      %v2784 = vand.u32 2147483647, %v2774
      %vm2785 = vcmp.eq.f32.partialorder %v2784, 8.507059e+37
      %v2786 = vand.u32 %v2774, 2147483648
      %v2787 = vor.u32 1.1754944e-38, %v2786
      %v2788 = vsel %vm2785, %v2787, %v2783
      %v2789 = vmul.f32 1.0, %v2788
      %v2791 = vrot.slane %v2751, 2
      %v2793 = vadd.f32 %v2725, %v2791
      %v2794 = vxor.u32 %v2793, 2147483648
      %v2795 = vmul.f32 %v2794, 1.442695
      %v2796 = vpow.pop %v2795
      %v2797 = vadd.f32 %v2796, 1.0
      %v2798 = vrcp.pop %v2797
      %v2799 = vmul.f32 %v2797, %v2798
      %v2800 = vsub.f32 1.0, %v2799
      %v2801 = vmul.f32 %v2798, %v2800
      %v2802 = vadd.f32 %v2798, %v2801
      %vm2803 = vweird.f32 %v2797
      %vm2804 = vweird.f32 %v2798
      %vm2805 = vmor %vm2803, %vm2804
      %v2806 = vsel %vm2805, %v2798, %v2802
      %v2807 = vand.u32 2147483647, %v2797
      %vm2808 = vcmp.eq.f32.partialorder %v2807, 8.507059e+37
      %v2809 = vand.u32 %v2797, 2147483648
      %v2810 = vor.u32 1.1754944e-38, %v2809
      %v2811 = vsel %vm2808, %v2810, %v2806
      %v2812 = vmul.f32 1.0, %v2811
      %v2813 = vadd.f32 %v2764, %v1364
      %v2815 = vrot.slane %v2813, 2
      %v2817 = vmul.f32 %v2789, %v2815
      %v2818 = vadd.f32 %v2726, %v2817
      %v2819 = vtanh.pop %v2818
      %v2820 = vsub.f32 1.0, %v2812
      %v2821 = vmul.f32 %v2820, %v2819
      %v2823 = vrot.slane %v2723, 2
      %v2825 = vmul.f32 %v2812, %v2823
      %v2826 = vadd.f32 %v2821, %v2825
      %s2827 = sadd.s32 %s1896, 3
      %p2828 = scmp.lt.s32.totalorder %s2827, 15
      %s2829 = scalar_select %p2828, 1, 0
      %s2830 = scvt.s32.f32 %s2829
      %v2831 = vstv %s2830
      %v2832 = vmul.f32 %v2831, %v2826
      %s2833 = ssub.f32 1.0, %s2830
      %v2834 = vstv %s2833
      %v2835 = vmul.f32 %v2834, %v2723
      %v2837 = vrot.slane %v2835, 2
      %v2839 = vadd.f32 %v2832, %v2837
      %2840 = vst [vmem:[#allocation5 - $0x6] sm:$0xc0] %v2839
      %v2841 = vpack.c.bf16 %v2839, %v2839
      %2842 = vst [vmem:[%s489] sm:$0x8] %v2841
      %v2843 = vld [vmem:[#allocation4] sm:$0x3]
      %v2844 = vld [vmem:[#allocation2 + $0x18] sm:$0xc]
      %v2845 = vld [vmem:[#allocation2 + $0x20] sm:$0xc]
      %v2846 = vld [vmem:[#allocation2 + $0x28] sm:$0xc]
      %v2847 = vpack.c.bf16 %v2843, %v2843
      %2848 = vmatpush.bf16.msra.mxu0 %v1536
      %2849 = vmatpush.bf16.msra.mxu0 %v1533
      %2850 = vmatpush.bf16.msra.mxu0 %v1530
      %2851 = vmatpush.bf16.msra.mxu0 %v1527
      %2852 = vmatpush.bf16.msra.mxu0 %v1524
      %2853 = vmatpush.bf16.msra.mxu0 %v1521
      %2854 = vmatpush.bf16.msra.mxu0 %v1518
      %2855 = vmatpush.bf16.msra.mxu0 %v1515
      %2856 = vmatmul.bf16.gmra.mxu0 %v2847
      %v2857 = vpop.f32.mrf.mxu0
      %v2858 = vadd.f32 0.0, %v2857
      %v2859 = vpop.f32.mrf.mxu0
      %2860 = vdwg.mxu0
      %2861 = vmatpush.bf16.msra.mxu0 %v1537
      %2862 = vmatpush.bf16.msra.mxu0 %v1534
      %2863 = vmatpush.bf16.msra.mxu0 %v1531
      %2864 = vmatpush.bf16.msra.mxu0 %v1528
      %2865 = vmatpush.bf16.msra.mxu0 %v1525
      %2866 = vmatpush.bf16.msra.mxu0 %v1522
      %2867 = vmatpush.bf16.msra.mxu0 %v1519
      %2868 = vmatpush.bf16.msra.mxu0 %v1516
      %2869 = vmatmul.bf16.gmra.mxu0 %v2847
      %v2870 = vpop.f32.mrf.mxu0
      %v2871 = vadd.f32 0.0, %v2870
      %v2872 = vpop.f32.mrf.mxu0
      %2873 = vdwg.mxu0
      %2874 = vmatpush.bf16.msra.mxu0 %v1538
      %2875 = vmatpush.bf16.msra.mxu0 %v1535
      %2876 = vmatpush.bf16.msra.mxu0 %v1532
      %2877 = vmatpush.bf16.msra.mxu0 %v1529
      %2878 = vmatpush.bf16.msra.mxu0 %v1526
      %2879 = vmatpush.bf16.msra.mxu0 %v1523
      %2880 = vmatpush.bf16.msra.mxu0 %v1520
      %2881 = vmatpush.bf16.msra.mxu0 %v1517
      %2882 = vmatmul.bf16.gmra.mxu0 %v2847
      %v2883 = vpop.f32.mrf.mxu0
      %v2884 = vadd.f32 0.0, %v2883
      %v2885 = vpop.f32.mrf.mxu0
      %2886 = vdwg.mxu0
      %v2888 = vrot.slane %v2858, 6
      %v2890 = vadd.f32 %v2844, %v2888
      %v2891 = vxor.u32 %v2890, 2147483648
      %v2892 = vmul.f32 %v2891, 1.442695
      %v2893 = vpow.pop %v2892
      %v2894 = vadd.f32 %v2893, 1.0
      %v2895 = vrcp.pop %v2894
      %v2896 = vmul.f32 %v2894, %v2895
      %v2897 = vsub.f32 1.0, %v2896
      %v2898 = vmul.f32 %v2895, %v2897
      %v2899 = vadd.f32 %v2895, %v2898
      %vm2900 = vweird.f32 %v2894
      %vm2901 = vweird.f32 %v2895
      %vm2902 = vmor %vm2900, %vm2901
      %v2903 = vsel %vm2902, %v2895, %v2899
      %v2904 = vand.u32 2147483647, %v2894
      %vm2905 = vcmp.eq.f32.partialorder %v2904, 8.507059e+37
      %v2906 = vand.u32 %v2894, 2147483648
      %v2907 = vor.u32 1.1754944e-38, %v2906
      %v2908 = vsel %vm2905, %v2907, %v2903
      %v2909 = vmul.f32 1.0, %v2908
      %v2911 = vrot.slane %v2871, 6
      %v2913 = vadd.f32 %v2845, %v2911
      %v2914 = vxor.u32 %v2913, 2147483648
      %v2915 = vmul.f32 %v2914, 1.442695
      %v2916 = vpow.pop %v2915
      %v2917 = vadd.f32 %v2916, 1.0
      %v2918 = vrcp.pop %v2917
      %v2919 = vmul.f32 %v2917, %v2918
      %v2920 = vsub.f32 1.0, %v2919
      %v2921 = vmul.f32 %v2918, %v2920
      %v2922 = vadd.f32 %v2918, %v2921
      %vm2923 = vweird.f32 %v2917
      %vm2924 = vweird.f32 %v2918
      %vm2925 = vmor %vm2923, %vm2924
      %v2926 = vsel %vm2925, %v2918, %v2922
      %v2927 = vand.u32 2147483647, %v2917
      %vm2928 = vcmp.eq.f32.partialorder %v2927, 8.507059e+37
      %v2929 = vand.u32 %v2917, 2147483648
      %v2930 = vor.u32 1.1754944e-38, %v2929
      %v2931 = vsel %vm2928, %v2930, %v2926
      %v2932 = vmul.f32 1.0, %v2931
      %v2933 = vadd.f32 %v2884, %v1360
      %v2935 = vrot.slane %v2933, 6
      %v2937 = vmul.f32 %v2909, %v2935
      %v2938 = vadd.f32 %v2846, %v2937
      %v2939 = vtanh.pop %v2938
      %v2940 = vsub.f32 1.0, %v2932
      %v2941 = vmul.f32 %v2940, %v2939
      %v2943 = vrot.slane %v2843, 6
      %v2945 = vmul.f32 %v2932, %v2943
      %v2946 = vadd.f32 %v2941, %v2945
      %s2947 = sadd.s32 %s1650, 5
      %p2948 = scmp.lt.s32.totalorder %s2947, 15
      %s2949 = scalar_select %p2948, 1, 0
      %s2950 = scvt.s32.f32 %s2949
      %v2951 = vstv %s2950
      %v2952 = vmul.f32 %v2951, %v2946
      %s2953 = ssub.f32 1.0, %s2950
      %v2954 = vstv %s2953
      %v2955 = vmul.f32 %v2954, %v2843
      %v2957 = vrot.slane %v2955, 6
      %v2959 = vadd.f32 %v2952, %v2957
      %2960 = vst [vmem:[#allocation4 - $0x2] sm:$0xc] %v2959
      %v2961 = vpack.c.bf16 %v2959, %v2959
      %2962 = vst [vmem:[%s482 + $0x4] sm:$0x2] %v2961
      %v2963 = vld [vmem:[#allocation5] sm:$0x3]
      %v2964 = vld [vmem:[#allocation3] sm:$0x30]
      %v2965 = vld [vmem:[#allocation3 + $0x8] sm:$0x30]
      %v2966 = vld [vmem:[#allocation3 + $0x10] sm:$0x30]
      %v2967 = vpack.c.bf16 %v2963, %v2963
      %2968 = vmatpush.bf16.msra.mxu0 %v1769
      %2969 = vmatpush.bf16.msra.mxu0 %v1766
      %2970 = vmatpush.bf16.msra.mxu0 %v1763
      %2971 = vmatpush.bf16.msra.mxu0 %v1760
      %2972 = vmatpush.bf16.msra.mxu0 %v1757
      %2973 = vmatpush.bf16.msra.mxu0 %v1754
      %2974 = vmatpush.bf16.msra.mxu0 %v1751
      %2975 = vmatpush.bf16.msra.mxu0 %v1748
      %2976 = vmatmul.bf16.gmra.mxu0 %v2967
      %v2977 = vpop.f32.mrf.mxu0
      %v2978 = vadd.f32 0.0, %v2977
      %v2979 = vpop.f32.mrf.mxu0
      %2980 = vdwg.mxu0
      %2981 = vmatpush.bf16.msra.mxu0 %v1770
      %2982 = vmatpush.bf16.msra.mxu0 %v1767
      %2983 = vmatpush.bf16.msra.mxu0 %v1764
      %2984 = vmatpush.bf16.msra.mxu0 %v1761
      %2985 = vmatpush.bf16.msra.mxu0 %v1758
      %2986 = vmatpush.bf16.msra.mxu0 %v1755
      %2987 = vmatpush.bf16.msra.mxu0 %v1752
      %2988 = vmatpush.bf16.msra.mxu0 %v1749
      %2989 = vmatmul.bf16.gmra.mxu0 %v2967
      %v2990 = vpop.f32.mrf.mxu0
      %v2991 = vadd.f32 0.0, %v2990
      %v2992 = vpop.f32.mrf.mxu0
      %2993 = vdwg.mxu0
      %2994 = vmatpush.bf16.msra.mxu0 %v1771
      %2995 = vmatpush.bf16.msra.mxu0 %v1768
      %2996 = vmatpush.bf16.msra.mxu0 %v1765
      %2997 = vmatpush.bf16.msra.mxu0 %v1762
      %2998 = vmatpush.bf16.msra.mxu0 %v1759
      %2999 = vmatpush.bf16.msra.mxu0 %v1756
      %3000 = vmatpush.bf16.msra.mxu0 %v1753
      %3001 = vmatpush.bf16.msra.mxu0 %v1750
      %3002 = vmatmul.bf16.gmra.mxu0 %v2967
      %v3003 = vpop.f32.mrf.mxu0
      %v3004 = vadd.f32 0.0, %v3003
      %v3005 = vpop.f32.mrf.mxu0
      %3006 = vdwg.mxu0
      %v3008 = vrot.slane %v2978, 4
      %v3010 = vadd.f32 %v2964, %v3008
      %v3011 = vxor.u32 %v3010, 2147483648
      %v3012 = vmul.f32 %v3011, 1.442695
      %v3013 = vpow.pop %v3012
      %v3014 = vadd.f32 %v3013, 1.0
      %v3015 = vrcp.pop %v3014
      %v3016 = vmul.f32 %v3014, %v3015
      %v3017 = vsub.f32 1.0, %v3016
      %v3018 = vmul.f32 %v3015, %v3017
      %v3019 = vadd.f32 %v3015, %v3018
      %vm3020 = vweird.f32 %v3014
      %vm3021 = vweird.f32 %v3015
      %vm3022 = vmor %vm3020, %vm3021
      %v3023 = vsel %vm3022, %v3015, %v3019
      %v3024 = vand.u32 2147483647, %v3014
      %vm3025 = vcmp.eq.f32.partialorder %v3024, 8.507059e+37
      %v3026 = vand.u32 %v3014, 2147483648
      %v3027 = vor.u32 1.1754944e-38, %v3026
      %v3028 = vsel %vm3025, %v3027, %v3023
      %v3029 = vmul.f32 1.0, %v3028
      %v3031 = vrot.slane %v2991, 4
      %v3033 = vadd.f32 %v2965, %v3031
      %v3034 = vxor.u32 %v3033, 2147483648
      %v3035 = vmul.f32 %v3034, 1.442695
      %v3036 = vpow.pop %v3035
      %v3037 = vadd.f32 %v3036, 1.0
      %v3038 = vrcp.pop %v3037
      %v3039 = vmul.f32 %v3037, %v3038
      %v3040 = vsub.f32 1.0, %v3039
      %v3041 = vmul.f32 %v3038, %v3040
      %v3042 = vadd.f32 %v3038, %v3041
      %vm3043 = vweird.f32 %v3037
      %vm3044 = vweird.f32 %v3038
      %vm3045 = vmor %vm3043, %vm3044
      %v3046 = vsel %vm3045, %v3038, %v3042
      %v3047 = vand.u32 2147483647, %v3037
      %vm3048 = vcmp.eq.f32.partialorder %v3047, 8.507059e+37
      %v3049 = vand.u32 %v3037, 2147483648
      %v3050 = vor.u32 1.1754944e-38, %v3049
      %v3051 = vsel %vm3048, %v3050, %v3046
      %v3052 = vmul.f32 1.0, %v3051
      %v3053 = vadd.f32 %v3004, %v1364
      %v3055 = vrot.slane %v3053, 4
      %v3057 = vmul.f32 %v3029, %v3055
      %v3058 = vadd.f32 %v2966, %v3057
      %v3059 = vtanh.pop %v3058
      %v3060 = vsub.f32 1.0, %v3052
      %v3061 = vmul.f32 %v3060, %v3059
      %v3063 = vrot.slane %v2963, 4
      %v3065 = vmul.f32 %v3052, %v3063
      %v3066 = vadd.f32 %v3061, %v3065
      %s3067 = sadd.s32 %s1896, 2
      %p3068 = scmp.lt.s32.totalorder %s3067, 15
      %s3069 = scalar_select %p3068, 1, 0
      %s3070 = scvt.s32.f32 %s3069
      %v3071 = vstv %s3070
      %v3072 = vmul.f32 %v3071, %v3066
      %s3073 = ssub.f32 1.0, %s3070
      %v3074 = vstv %s3073
      %v3075 = vmul.f32 %v3074, %v2963
      %v3077 = vrot.slane %v3075, 4
      %v3079 = vadd.f32 %v3072, %v3077
      %3080 = vst [vmem:[#allocation5 - $0x4] sm:$0x30] %v3079
      %v3081 = vpack.c.bf16 %v3079, %v3079
      %3082 = vst [vmem:[%s489] sm:$0x4] %v3081
      %v3083 = vld [vmem:[#allocation4] sm:$0x3]
      %v3084 = vld [vmem:[#allocation2 + $0x18] sm:$0x30]
      %v3085 = vld [vmem:[#allocation2 + $0x20] sm:$0x30]
      %v3086 = vld [vmem:[#allocation2 + $0x28] sm:$0x30]
      %v3087 = vpack.c.bf16 %v3083, %v3083
      %3088 = vmatpush.bf16.msra.mxu0 %v1536
      %3089 = vmatpush.bf16.msra.mxu0 %v1533
      %3090 = vmatpush.bf16.msra.mxu0 %v1530
      %3091 = vmatpush.bf16.msra.mxu0 %v1527
      %3092 = vmatpush.bf16.msra.mxu0 %v1524
      %3093 = vmatpush.bf16.msra.mxu0 %v1521
      %3094 = vmatpush.bf16.msra.mxu0 %v1518
      %3095 = vmatpush.bf16.msra.mxu0 %v1515
      %3096 = vmatmul.bf16.gmra.mxu0 %v3087
      %v3097 = vpop.f32.mrf.mxu0
      %v3098 = vadd.f32 0.0, %v3097
      %v3099 = vpop.f32.mrf.mxu0
      %3100 = vdwg.mxu0
      %3101 = vmatpush.bf16.msra.mxu0 %v1537
      %3102 = vmatpush.bf16.msra.mxu0 %v1534
      %3103 = vmatpush.bf16.msra.mxu0 %v1531
      %3104 = vmatpush.bf16.msra.mxu0 %v1528
      %3105 = vmatpush.bf16.msra.mxu0 %v1525
      %3106 = vmatpush.bf16.msra.mxu0 %v1522
      %3107 = vmatpush.bf16.msra.mxu0 %v1519
      %3108 = vmatpush.bf16.msra.mxu0 %v1516
      %3109 = vmatmul.bf16.gmra.mxu0 %v3087
      %v3110 = vpop.f32.mrf.mxu0
      %v3111 = vadd.f32 0.0, %v3110
      %v3112 = vpop.f32.mrf.mxu0
      %3113 = vdwg.mxu0
      %3114 = vmatpush.bf16.msra.mxu0 %v1538
      %3115 = vmatpush.bf16.msra.mxu0 %v1535
      %3116 = vmatpush.bf16.msra.mxu0 %v1532
      %3117 = vmatpush.bf16.msra.mxu0 %v1529
      %3118 = vmatpush.bf16.msra.mxu0 %v1526
      %3119 = vmatpush.bf16.msra.mxu0 %v1523
      %3120 = vmatpush.bf16.msra.mxu0 %v1520
      %3121 = vmatpush.bf16.msra.mxu0 %v1517
      %3122 = vmatmul.bf16.gmra.mxu0 %v3087
      %v3123 = vpop.f32.mrf.mxu0
      %v3124 = vadd.f32 0.0, %v3123
      %v3125 = vpop.f32.mrf.mxu0
      %3126 = vdwg.mxu0
      %v3128 = vrot.slane %v3098, 4
      %v3130 = vadd.f32 %v3084, %v3128
      %v3131 = vxor.u32 %v3130, 2147483648
      %v3132 = vmul.f32 %v3131, 1.442695
      %v3133 = vpow.pop %v3132
      %v3134 = vadd.f32 %v3133, 1.0
      %v3135 = vrcp.pop %v3134
      %v3136 = vmul.f32 %v3134, %v3135
      %v3137 = vsub.f32 1.0, %v3136
      %v3138 = vmul.f32 %v3135, %v3137
      %v3139 = vadd.f32 %v3135, %v3138
      %vm3140 = vweird.f32 %v3134
      %vm3141 = vweird.f32 %v3135
      %vm3142 = vmor %vm3140, %vm3141
      %v3143 = vsel %vm3142, %v3135, %v3139
      %v3144 = vand.u32 2147483647, %v3134
      %vm3145 = vcmp.eq.f32.partialorder %v3144, 8.507059e+37
      %v3146 = vand.u32 %v3134, 2147483648
      %v3147 = vor.u32 1.1754944e-38, %v3146
      %v3148 = vsel %vm3145, %v3147, %v3143
      %v3149 = vmul.f32 1.0, %v3148
      %v3151 = vrot.slane %v3111, 4
      %v3153 = vadd.f32 %v3085, %v3151
      %v3154 = vxor.u32 %v3153, 2147483648
      %v3155 = vmul.f32 %v3154, 1.442695
      %v3156 = vpow.pop %v3155
      %v3157 = vadd.f32 %v3156, 1.0
      %v3158 = vrcp.pop %v3157
      %v3159 = vmul.f32 %v3157, %v3158
      %v3160 = vsub.f32 1.0, %v3159
      %v3161 = vmul.f32 %v3158, %v3160
      %v3162 = vadd.f32 %v3158, %v3161
      %vm3163 = vweird.f32 %v3157
      %vm3164 = vweird.f32 %v3158
      %vm3165 = vmor %vm3163, %vm3164
      %v3166 = vsel %vm3165, %v3158, %v3162
      %v3167 = vand.u32 2147483647, %v3157
      %vm3168 = vcmp.eq.f32.partialorder %v3167, 8.507059e+37
      %v3169 = vand.u32 %v3157, 2147483648
      %v3170 = vor.u32 1.1754944e-38, %v3169
      %v3171 = vsel %vm3168, %v3170, %v3166
      %v3172 = vmul.f32 1.0, %v3171
      %v3173 = vadd.f32 %v3124, %v1360
      %v3175 = vrot.slane %v3173, 4
      %v3177 = vmul.f32 %v3149, %v3175
      %v3178 = vadd.f32 %v3086, %v3177
      %v3179 = vtanh.pop %v3178
      %v3180 = vsub.f32 1.0, %v3172
      %v3181 = vmul.f32 %v3180, %v3179
      %v3183 = vrot.slane %v3083, 4
      %v3185 = vmul.f32 %v3172, %v3183
      %v3186 = vadd.f32 %v3181, %v3185
      %s3187 = sadd.s32 %s1650, 6
      %p3188 = scmp.lt.s32.totalorder %s3187, 15
      %s3189 = scalar_select %p3188, 1, 0
      %s3190 = scvt.s32.f32 %s3189
      %v3191 = vstv %s3190
      %v3192 = vmul.f32 %v3191, %v3186
      %s3193 = ssub.f32 1.0, %s3190
      %v3194 = vstv %s3193
      %v3195 = vmul.f32 %v3194, %v3083
      %v3197 = vrot.slane %v3195, 4
      %v3199 = vadd.f32 %v3192, %v3197
      %3200 = vst [vmem:[#allocation4 - $0x4] sm:$0x30] %v3199
      %v3201 = vpack.c.bf16 %v3199, %v3199
      %3202 = vst [vmem:[%s482 + $0x4] sm:$0x4] %v3201
      %v3203 = vld [vmem:[#allocation5] sm:$0x3]
      %v3204 = vld [vmem:[#allocation3] sm:$0xc]
      %v3205 = vld [vmem:[#allocation3 + $0x8] sm:$0xc]
      %v3206 = vld [vmem:[#allocation3 + $0x10] sm:$0xc]
      %v3207 = vpack.c.bf16 %v3203, %v3203
      %3208 = vmatpush.bf16.msra.mxu0 %v1769
      %3209 = vmatpush.bf16.msra.mxu0 %v1766
      %3210 = vmatpush.bf16.msra.mxu0 %v1763
      %3211 = vmatpush.bf16.msra.mxu0 %v1760
      %3212 = vmatpush.bf16.msra.mxu0 %v1757
      %3213 = vmatpush.bf16.msra.mxu0 %v1754
      %3214 = vmatpush.bf16.msra.mxu0 %v1751
      %3215 = vmatpush.bf16.msra.mxu0 %v1748
      %3216 = vmatmul.bf16.gmra.mxu0 %v3207
      %v3217 = vpop.f32.mrf.mxu0
      %v3218 = vadd.f32 0.0, %v3217
      %v3219 = vpop.f32.mrf.mxu0
      %3220 = vdwg.mxu0
      %3221 = vmatpush.bf16.msra.mxu0 %v1770
      %3222 = vmatpush.bf16.msra.mxu0 %v1767
      %3223 = vmatpush.bf16.msra.mxu0 %v1764
      %3224 = vmatpush.bf16.msra.mxu0 %v1761
      %3225 = vmatpush.bf16.msra.mxu0 %v1758
      %3226 = vmatpush.bf16.msra.mxu0 %v1755
      %3227 = vmatpush.bf16.msra.mxu0 %v1752
      %3228 = vmatpush.bf16.msra.mxu0 %v1749
      %3229 = vmatmul.bf16.gmra.mxu0 %v3207
      %v3230 = vpop.f32.mrf.mxu0
      %v3231 = vadd.f32 0.0, %v3230
      %v3232 = vpop.f32.mrf.mxu0
      %3233 = vdwg.mxu0
      %3234 = vmatpush.bf16.msra.mxu0 %v1771
      %3235 = vmatpush.bf16.msra.mxu0 %v1768
      %3236 = vmatpush.bf16.msra.mxu0 %v1765
      %3237 = vmatpush.bf16.msra.mxu0 %v1762
      %3238 = vmatpush.bf16.msra.mxu0 %v1759
      %3239 = vmatpush.bf16.msra.mxu0 %v1756
      %3240 = vmatpush.bf16.msra.mxu0 %v1753
      %3241 = vmatpush.bf16.msra.mxu0 %v1750
      %3242 = vmatmul.bf16.gmra.mxu0 %v3207
      %v3243 = vpop.f32.mrf.mxu0
      %v3244 = vadd.f32 0.0, %v3243
      %v3245 = vpop.f32.mrf.mxu0
      %3246 = vdwg.mxu0
      %v3248 = vrot.slane %v3218, 6
      %v3250 = vadd.f32 %v3204, %v3248
      %v3251 = vxor.u32 %v3250, 2147483648
      %v3252 = vmul.f32 %v3251, 1.442695
      %v3253 = vpow.pop %v3252
      %v3254 = vadd.f32 %v3253, 1.0
      %v3255 = vrcp.pop %v3254
      %v3256 = vmul.f32 %v3254, %v3255
      %v3257 = vsub.f32 1.0, %v3256
      %v3258 = vmul.f32 %v3255, %v3257
      %v3259 = vadd.f32 %v3255, %v3258
      %vm3260 = vweird.f32 %v3254
      %vm3261 = vweird.f32 %v3255
      %vm3262 = vmor %vm3260, %vm3261
      %v3263 = vsel %vm3262, %v3255, %v3259
      %v3264 = vand.u32 2147483647, %v3254
      %vm3265 = vcmp.eq.f32.partialorder %v3264, 8.507059e+37
      %v3266 = vand.u32 %v3254, 2147483648
      %v3267 = vor.u32 1.1754944e-38, %v3266
      %v3268 = vsel %vm3265, %v3267, %v3263
      %v3269 = vmul.f32 1.0, %v3268
      %v3271 = vrot.slane %v3231, 6
      %v3273 = vadd.f32 %v3205, %v3271
      %v3274 = vxor.u32 %v3273, 2147483648
      %v3275 = vmul.f32 %v3274, 1.442695
      %v3276 = vpow.pop %v3275
      %v3277 = vadd.f32 %v3276, 1.0
      %v3278 = vrcp.pop %v3277
      %v3279 = vmul.f32 %v3277, %v3278
      %v3280 = vsub.f32 1.0, %v3279
      %v3281 = vmul.f32 %v3278, %v3280
      %v3282 = vadd.f32 %v3278, %v3281
      %vm3283 = vweird.f32 %v3277
      %vm3284 = vweird.f32 %v3278
      %vm3285 = vmor %vm3283, %vm3284
      %v3286 = vsel %vm3285, %v3278, %v3282
      %v3287 = vand.u32 2147483647, %v3277
      %vm3288 = vcmp.eq.f32.partialorder %v3287, 8.507059e+37
      %v3289 = vand.u32 %v3277, 2147483648
      %v3290 = vor.u32 1.1754944e-38, %v3289
      %v3291 = vsel %vm3288, %v3290, %v3286
      %v3292 = vmul.f32 1.0, %v3291
      %v3293 = vadd.f32 %v3244, %v1364
      %v3295 = vrot.slane %v3293, 6
      %v3297 = vmul.f32 %v3269, %v3295
      %v3298 = vadd.f32 %v3206, %v3297
      %v3299 = vtanh.pop %v3298
      %v3300 = vsub.f32 1.0, %v3292
      %v3301 = vmul.f32 %v3300, %v3299
      %v3303 = vrot.slane %v3203, 6
      %v3305 = vmul.f32 %v3292, %v3303
      %v3306 = vadd.f32 %v3301, %v3305
      %s3307 = sadd.s32 %s1896, 1
      %p3308 = scmp.lt.s32.totalorder %s3307, 15
      %s3309 = scalar_select %p3308, 1, 0
      %s3310 = scvt.s32.f32 %s3309
      %v3311 = vstv %s3310
      %v3312 = vmul.f32 %v3311, %v3306
      %s3313 = ssub.f32 1.0, %s3310
      %v3314 = vstv %s3313
      %v3315 = vmul.f32 %v3314, %v3203
      %v3317 = vrot.slane %v3315, 6
      %v3319 = vadd.f32 %v3312, %v3317
      %3320 = vst [vmem:[#allocation5 - $0x2] sm:$0xc] %v3319
      %v3321 = vpack.c.bf16 %v3319, %v3319
      %3322 = vst [vmem:[%s489] sm:$0x2] %v3321
      %v3323 = vld [vmem:[#allocation4] sm:$0x3]
      %v3324 = vld [vmem:[#allocation2 + $0x18] sm:$0xc0]
      %v3325 = vld [vmem:[#allocation2 + $0x20] sm:$0xc0]
      %v3326 = vld [vmem:[#allocation2 + $0x28] sm:$0xc0]
      %v3327 = vpack.c.bf16 %v3323, %v3323
      %3328 = vmatpush.bf16.msra.mxu0 %v1536
      %3329 = vmatpush.bf16.msra.mxu0 %v1533
      %3330 = vmatpush.bf16.msra.mxu0 %v1530
      %3331 = vmatpush.bf16.msra.mxu0 %v1527
      %3332 = vmatpush.bf16.msra.mxu0 %v1524
      %3333 = vmatpush.bf16.msra.mxu0 %v1521
      %3334 = vmatpush.bf16.msra.mxu0 %v1518
      %3335 = vmatpush.bf16.msra.mxu0 %v1515
      %3336 = vmatmul.bf16.gmra.mxu0 %v3327
      %v3337 = vpop.f32.mrf.mxu0
      %v3338 = vadd.f32 0.0, %v3337
      %v3339 = vpop.f32.mrf.mxu0
      %3340 = vdwg.mxu0
      %3341 = vmatpush.bf16.msra.mxu0 %v1537
      %3342 = vmatpush.bf16.msra.mxu0 %v1534
      %3343 = vmatpush.bf16.msra.mxu0 %v1531
      %3344 = vmatpush.bf16.msra.mxu0 %v1528
      %3345 = vmatpush.bf16.msra.mxu0 %v1525
      %3346 = vmatpush.bf16.msra.mxu0 %v1522
      %3347 = vmatpush.bf16.msra.mxu0 %v1519
      %3348 = vmatpush.bf16.msra.mxu0 %v1516
      %3349 = vmatmul.bf16.gmra.mxu0 %v3327
      %v3350 = vpop.f32.mrf.mxu0
      %v3351 = vadd.f32 0.0, %v3350
      %v3352 = vpop.f32.mrf.mxu0
      %3353 = vdwg.mxu0
      %3354 = vmatpush.bf16.msra.mxu0 %v1538
      %3355 = vmatpush.bf16.msra.mxu0 %v1535
      %3356 = vmatpush.bf16.msra.mxu0 %v1532
      %3357 = vmatpush.bf16.msra.mxu0 %v1529
      %3358 = vmatpush.bf16.msra.mxu0 %v1526
      %3359 = vmatpush.bf16.msra.mxu0 %v1523
      %3360 = vmatpush.bf16.msra.mxu0 %v1520
      %3361 = vmatpush.bf16.msra.mxu0 %v1517
      %3362 = vmatmul.bf16.gmra.mxu0 %v3327
      %v3363 = vpop.f32.mrf.mxu0
      %v3364 = vadd.f32 0.0, %v3363
      %v3365 = vpop.f32.mrf.mxu0
      %3366 = vdwg.mxu0
      %v3368 = vrot.slane %v3338, 2
      %v3370 = vadd.f32 %v3324, %v3368
      %v3371 = vxor.u32 %v3370, 2147483648
      %v3372 = vmul.f32 %v3371, 1.442695
      %v3373 = vpow.pop %v3372
      %v3374 = vadd.f32 %v3373, 1.0
      %v3375 = vrcp.pop %v3374
      %v3376 = vmul.f32 %v3374, %v3375
      %v3377 = vsub.f32 1.0, %v3376
      %v3378 = vmul.f32 %v3375, %v3377
      %v3379 = vadd.f32 %v3375, %v3378
      %vm3380 = vweird.f32 %v3374
      %vm3381 = vweird.f32 %v3375
      %vm3382 = vmor %vm3380, %vm3381
      %v3383 = vsel %vm3382, %v3375, %v3379
      %v3384 = vand.u32 2147483647, %v3374
      %vm3385 = vcmp.eq.f32.partialorder %v3384, 8.507059e+37
      %v3386 = vand.u32 %v3374, 2147483648
      %v3387 = vor.u32 1.1754944e-38, %v3386
      %v3388 = vsel %vm3385, %v3387, %v3383
      %v3389 = vmul.f32 1.0, %v3388
      %v3391 = vrot.slane %v3351, 2
      %v3393 = vadd.f32 %v3325, %v3391
      %v3394 = vxor.u32 %v3393, 2147483648
      %v3395 = vmul.f32 %v3394, 1.442695
      %v3396 = vpow.pop %v3395
      %v3397 = vadd.f32 %v3396, 1.0
      %v3398 = vrcp.pop %v3397
      %v3399 = vmul.f32 %v3397, %v3398
      %v3400 = vsub.f32 1.0, %v3399
      %v3401 = vmul.f32 %v3398, %v3400
      %v3402 = vadd.f32 %v3398, %v3401
      %vm3403 = vweird.f32 %v3397
      %vm3404 = vweird.f32 %v3398
      %vm3405 = vmor %vm3403, %vm3404
      %v3406 = vsel %vm3405, %v3398, %v3402
      %v3407 = vand.u32 2147483647, %v3397
      %vm3408 = vcmp.eq.f32.partialorder %v3407, 8.507059e+37
      %v3409 = vand.u32 %v3397, 2147483648
      %v3410 = vor.u32 1.1754944e-38, %v3409
      %v3411 = vsel %vm3408, %v3410, %v3406
      %v3412 = vmul.f32 1.0, %v3411
      %v3413 = vadd.f32 %v3364, %v1360
      %v3415 = vrot.slane %v3413, 2
      %v3417 = vmul.f32 %v3389, %v3415
      %v3418 = vadd.f32 %v3326, %v3417
      %v3419 = vtanh.pop %v3418
      %v3420 = vsub.f32 1.0, %v3412
      %v3421 = vmul.f32 %v3420, %v3419
      %v3423 = vrot.slane %v3323, 2
      %v3425 = vmul.f32 %v3412, %v3423
      %v3426 = vadd.f32 %v3421, %v3425
      %s3427 = sadd.s32 %s1650, 7
      %p3428 = scmp.lt.s32.totalorder %s3427, 15
      %s3429 = scalar_select %p3428, 1, 0
      %s3430 = scvt.s32.f32 %s3429
      %v3431 = vstv %s3430
      %v3432 = vmul.f32 %v3431, %v3426
      %s3433 = ssub.f32 1.0, %s3430
      %v3434 = vstv %s3433
      %v3435 = vmul.f32 %v3434, %v3323
      %v3437 = vrot.slane %v3435, 2
      %v3439 = vadd.f32 %v3432, %v3437
      %3440 = vst [vmem:[#allocation4 - $0x6] sm:$0xc0] %v3439
      %v3441 = vpack.c.bf16 %v3439, %v3439
      %3442 = vst [vmem:[%s482 + $0x4] sm:$0x8] %v3441
      %v3443 = vld [vmem:[#allocation5] sm:$0x3]
      %v3444 = vld [vmem:[#allocation3] sm:$0x3]
      %v3445 = vld [vmem:[#allocation3 + $0x8] sm:$0x3]
      %v3446 = vld [vmem:[#allocation3 + $0x10] sm:$0x3]
      %v3447 = vpack.c.bf16 %v3443, %v3443
      %3448 = vmatpush.bf16.msra.mxu0 %v1769
      %3449 = vmatpush.bf16.msra.mxu0 %v1766
      %3450 = vmatpush.bf16.msra.mxu0 %v1763
      %3451 = vmatpush.bf16.msra.mxu0 %v1760
      %3452 = vmatpush.bf16.msra.mxu0 %v1757
      %3453 = vmatpush.bf16.msra.mxu0 %v1754
      %3454 = vmatpush.bf16.msra.mxu0 %v1751
      %3455 = vmatpush.bf16.msra.mxu0 %v1748
      %3456 = vmatmul.bf16.gmra.mxu0 %v3447
      %v3457 = vpop.f32.mrf.mxu0
      %v3458 = vadd.f32 0.0, %v3457
      %v3459 = vpop.f32.mrf.mxu0
      %3460 = vdwg.mxu0
      %3461 = vmatpush.bf16.msra.mxu0 %v1770
      %3462 = vmatpush.bf16.msra.mxu0 %v1767
      %3463 = vmatpush.bf16.msra.mxu0 %v1764
      %3464 = vmatpush.bf16.msra.mxu0 %v1761
      %3465 = vmatpush.bf16.msra.mxu0 %v1758
      %3466 = vmatpush.bf16.msra.mxu0 %v1755
      %3467 = vmatpush.bf16.msra.mxu0 %v1752
      %3468 = vmatpush.bf16.msra.mxu0 %v1749
      %3469 = vmatmul.bf16.gmra.mxu0 %v3447
      %v3470 = vpop.f32.mrf.mxu0
      %v3471 = vadd.f32 0.0, %v3470
      %v3472 = vpop.f32.mrf.mxu0
      %3473 = vdwg.mxu0
      %3474 = vmatpush.bf16.msra.mxu0 %v1771
      %3475 = vmatpush.bf16.msra.mxu0 %v1768
      %3476 = vmatpush.bf16.msra.mxu0 %v1765
      %3477 = vmatpush.bf16.msra.mxu0 %v1762
      %3478 = vmatpush.bf16.msra.mxu0 %v1759
      %3479 = vmatpush.bf16.msra.mxu0 %v1756
      %3480 = vmatpush.bf16.msra.mxu0 %v1753
      %3481 = vmatpush.bf16.msra.mxu0 %v1750
      %3482 = vmatmul.bf16.gmra.mxu0 %v3447
      %v3483 = vpop.f32.mrf.mxu0
      %v3484 = vadd.f32 0.0, %v3483
      %v3485 = vpop.f32.mrf.mxu0
      %3486 = vdwg.mxu0
      %v3487 = vadd.f32 %v3444, %v3458
      %v3488 = vxor.u32 %v3487, 2147483648
      %v3489 = vmul.f32 %v3488, 1.442695
      %v3490 = vpow.pop %v3489
      %v3491 = vadd.f32 %v3490, 1.0
      %v3492 = vrcp.pop %v3491
      %v3493 = vmul.f32 %v3491, %v3492
      %v3494 = vsub.f32 1.0, %v3493
      %v3495 = vmul.f32 %v3492, %v3494
      %v3496 = vadd.f32 %v3492, %v3495
      %vm3497 = vweird.f32 %v3491
      %vm3498 = vweird.f32 %v3492
      %vm3499 = vmor %vm3497, %vm3498
      %v3500 = vsel %vm3499, %v3492, %v3496
      %v3501 = vand.u32 2147483647, %v3491
      %vm3502 = vcmp.eq.f32.partialorder %v3501, 8.507059e+37
      %v3503 = vand.u32 %v3491, 2147483648
      %v3504 = vor.u32 1.1754944e-38, %v3503
      %v3505 = vsel %vm3502, %v3504, %v3500
      %v3506 = vmul.f32 1.0, %v3505
      %v3507 = vadd.f32 %v3445, %v3471
      %v3508 = vxor.u32 %v3507, 2147483648
      %v3509 = vmul.f32 %v3508, 1.442695
      %v3510 = vpow.pop %v3509
      %v3511 = vadd.f32 %v3510, 1.0
      %v3512 = vrcp.pop %v3511
      %v3513 = vmul.f32 %v3511, %v3512
      %v3514 = vsub.f32 1.0, %v3513
      %v3515 = vmul.f32 %v3512, %v3514
      %v3516 = vadd.f32 %v3512, %v3515
      %vm3517 = vweird.f32 %v3511
      %vm3518 = vweird.f32 %v3512
      %vm3519 = vmor %vm3517, %vm3518
      %v3520 = vsel %vm3519, %v3512, %v3516
      %v3521 = vand.u32 2147483647, %v3511
      %vm3522 = vcmp.eq.f32.partialorder %v3521, 8.507059e+37
      %v3523 = vand.u32 %v3511, 2147483648
      %v3524 = vor.u32 1.1754944e-38, %v3523
      %v3525 = vsel %vm3522, %v3524, %v3520
      %v3526 = vmul.f32 1.0, %v3525
      %v3527 = vadd.f32 %v3484, %v1364
      %v3528 = vmul.f32 %v3506, %v3527
      %v3529 = vadd.f32 %v3446, %v3528
      %v3530 = vtanh.pop %v3529
      %v3531 = vsub.f32 1.0, %v3526
      %v3532 = vmul.f32 %v3531, %v3530
      %v3533 = vmul.f32 %v3526, %v3443
      %v3534 = vadd.f32 %v3532, %v3533
      %p3535 = scmp.lt.s32.totalorder %s1896, 15
      %s3536 = scalar_select %p3535, 1, 0
      %s3537 = scvt.s32.f32 %s3536
      %v3538 = vstv %s3537
      %v3539 = vmul.f32 %v3538, %v3534
      %s3540 = ssub.f32 1.0, %s3537
      %v3541 = vstv %s3540
      %v3542 = vmul.f32 %v3541, %v3443
      %v3543 = vadd.f32 %v3539, %v3542
      %3544 = vst [vmem:[#allocation5] sm:$0x3] %v3543
      %v3545 = vpack.c.bf16 %v3543, %v3543
      %3546 = vst [vmem:[%s489] sm:$0x1] %v3545
      %p3547 = scmp.eq.s32.totalorder %s25, 1
      // Predicated region
      $region65: #{_lambda_.3} parent=59 // pred_check
        %p3548 = pneg %p3547
      $region66: #{_lambda_.3} parent=59 // pred_check_branch
        %3550 = sbr.rel (%p3548) target = $region68
      $region67: #{_lambda_.3} parent=59 // pred_region
        %v3551 = vld [vmem:[#allocation4] sm:$0x3]
        %3552 = vst [vmem:[%s12] sm:$0x3] %v3551
        %v3553 = vld [vmem:[#allocation5] sm:$0x3]
        %3554 = vst [vmem:[%s13] sm:$0x3] %v3553
      $region68: #{_lambda_.3} parent=59 // pred_fallthru
        _
      %s3555 = smul.u32 2, %s25
      %p3556 = scmp.lt.s32.totalorder %s3555, 3
      %s3557 = scalar_select %p3556, %s3555, 3
      %s3558 = smul.addr %s3557, 4
      %s3559 = scalar_lea.vmem %s10, %s3558
      %s3560 = ssub.s32 1, %s25
      %s3561 = smul.u32 2, %s3560
      %p3562 = scmp.lt.s32.totalorder %s3561, 3
      %s3563 = scalar_select %p3562, %s3561, 3
      %s3564 = smul.addr %s3563, 4
      %s3565 = scalar_lea.vmem %s11, %s3564
      // Predicated region
      $region69: #{_lambda_.3} parent=59 // pred_check
        %p3566 = pneg %p265
      $region70: #{_lambda_.3} parent=59 // pred_check_branch
        %3568 = sbr.rel (%p3566) target = $region72
      $region71: #{_lambda_.3} parent=59 // pred_region
        %s3569 = smul.u32 2, %s25
      $region72: #{_lambda_.3} parent=59 // pred_fallthru
        _
      // Predicated region
      $region73: #{_lambda_.3} parent=59 // pred_check
        %p3570 = pneg %p293
      $region74: #{_lambda_.3} parent=59 // pred_check_branch
        %3572 = sbr.rel (%p3570) target = $region76
      $region75: #{_lambda_.3} parent=59 // pred_region
        %s3573 = ssub.s32 1, %s25
        %s3574 = smul.u32 2, %s3573
      $region76: #{_lambda_.3} parent=59 // pred_fallthru
        _
      // Predicated region
      $region77: #{_lambda_.3} parent=59 // pred_check
        %p3575 = pneg %p314
      $region78: #{_lambda_.3} parent=59 // pred_check_branch
        %3577 = sbr.rel (%p3575) target = $region80
      $region79: #{_lambda_.3} parent=59 // pred_region
        _
      $region80: #{_lambda_.3} parent=59 // pred_fallthru
        _
      // Predicated region
      $region81: #{_lambda_.3} parent=59 // pred_check
        %p3578 = pneg %p335
      $region82: #{_lambda_.3} parent=59 // pred_check_branch
        %3580 = sbr.rel (%p3578) target = $region84
      $region83: #{_lambda_.3} parent=59 // pred_region
        _
      $region84: #{_lambda_.3} parent=59 // pred_fallthru
        _
      // Predicated region
      $region85: #{_lambda_.3} parent=59 // pred_check
        %p3581 = pneg %p314
      $region86: #{_lambda_.3} parent=59 // pred_check_branch
        %3583 = sbr.rel (%p3581) target = $region88
      $region87: #{_lambda_.3} parent=59 // pred_region
        _
      $region88: #{_lambda_.3} parent=59 // pred_fallthru
        _
      // Predicated region
      $region89: #{_lambda_.3} parent=59 // pred_check
        %p3584 = pneg %p335
      $region90: #{_lambda_.3} parent=59 // pred_check_branch
        %3586 = sbr.rel (%p3584) target = $region92
      $region91: #{_lambda_.3} parent=59 // pred_region
        _
      $region92: #{_lambda_.3} parent=59 // pred_fallthru
        _
    $region60: #{_lambda_.3} parent=5 // pred_fallthru
      _
    %p3587 = scmp.le.s32.totalorder 2, %s20
    // Predicated region
    $region93: #{_lambda_.3} parent=5 // pred_check
      %p3588 = pneg %p3587
    $region94: #{_lambda_.3} parent=5 // pred_check_branch
      %3590 = sbr.rel (%p3588) target = $region96
    $region95: #{_lambda_.3} parent=5 // pred_region
      %s3591 = ssub.s32 %s20, 2
      // Predicated region
      $region97: #{_lambda_.3} parent=95 // pred_check
        %p3592 = pneg %p271
      $region98: #{_lambda_.3} parent=95 // pred_check_branch
        %3594 = sbr.rel (%p3592) target = $region100
      $region99: #{_lambda_.3} parent=95 // pred_region
        %s3595 = smul.u32 2, %s26
        %p3596 = scmp.lt.s32.totalorder %s3595, 3
        %s3597 = scalar_select %p3596, %s3595, 3
        %s3598 = smul.addr %s3597, 4
        %s3599 = scalar_lea.vmem %s10, %s3598
      $region100: #{_lambda_.3} parent=95 // pred_fallthru
        _
      // Predicated region
      $region101: #{_lambda_.3} parent=95 // pred_check
        %p3600 = pneg %p299
      $region102: #{_lambda_.3} parent=95 // pred_check_branch
        %3602 = sbr.rel (%p3600) target = $region104
      $region103: #{_lambda_.3} parent=95 // pred_region
        %s3603 = ssub.s32 1, %s26
        %s3604 = smul.u32 2, %s3603
        %p3605 = scmp.lt.s32.totalorder %s3604, 3
        %s3606 = scalar_select %p3605, %s3604, 3
        %s3607 = smul.addr %s3606, 4
        %s3608 = scalar_lea.vmem %s11, %s3607
      $region104: #{_lambda_.3} parent=95 // pred_fallthru
        _
    $region96: #{_lambda_.3} parent=5 // pred_fallthru
      _
  $region6: #{_lambda_.3} parent=0 // loop_footer
    %s24 = sadd.s32 1, %s20
  $region7: #{_lambda_.3} parent=0 // loop_footer_branch
    %19 = sbr.rel target = $region3
  $region8: #{_lambda_.3} parent=0 // loop_exit
    _

</llo_original>
